<compile_context>
chip_gen: v6e
topology: v6e:2x2x1
jax: 0.10.0
libtpu: 0.0.40
codegen_flags: <defaults>
</compile_context>

<pallas_src>
import functools
import math

import jax
import jax.numpy as jnp
from jax.experimental import pallas as pl
from jax.experimental.pallas import tpu as pltpu

# ---------------- model configuration (small, consistent with the module) -------------
NUM_TOKENS = 256
DIM = (48, 32)          # (coarse_dim, fine_dim)   -> stages = 2
DEPTH = (2, 2)
MAX_SEQ_LEN = (4, 4)    # (num_patches, patch_len)
DIM_HEAD = 16
HEADS = 4
FF_MULT = 4
PAD_ID = 0
FINE_DIM = DIM[-1]
INNER = HEADS * DIM_HEAD  # 64


# =========================== shared in-kernel helpers ==================================

def _mm(a, w):
    """Flat 2-D matmul on the MXU: bf16 operands, f32 accumulation."""
    return jnp.dot(a.astype(jnp.bfloat16), w.astype(jnp.bfloat16),
                   preferred_element_type=jnp.float32)


def _rms(x, g):
    # TODO(synk): the upstream `Transformer` class is not part of the provided spec; a
    # standard pre-norm RMSNorm block is assumed (token-shift / rotary variants omitted).
    return x * jax.lax.rsqrt(jnp.mean(x * x, axis=-1, keepdims=True) + 1e-6) * g


def _blockdiag_causal_bias(nseq, seqlen):
    """(R, R) additive attention bias, R = nseq*seqlen: causal within each sequence,
    -inf across sequences.  Built once per invocation from iota + compares only."""
    R = nseq * seqlen
    row = jax.lax.broadcasted_iota(jnp.int32, (R, R), 0)
    col = jax.lax.broadcasted_iota(jnp.int32, (R, R), 1)
    same = None
    for s in range(nseq):
        lo, hi = s * seqlen, (s + 1) * seqlen
        term = (row >= lo) & (row < hi) & (col >= lo) & (col < hi)
        same = term if same is None else (same | term)
    return jnp.where(same & (col <= row), 0.0, -1e30).astype(jnp.float32)


def _transformer_layers(x, bias, ov_ref, vecD_ref, wqkv_ref, bqkv_ref, wo_ref,
                        w1_ref, b1_ref, w2_ref, *, depth, heads, dim_head):
    """Pre-norm transformer over flat rows x:(R, D) with additive attention bias (R, R).
    vecD_ref rows per layer: [attn_gain, out_bias, ff_gain, ff_bias2], then final_gain."""
    inner = heads * dim_head
    for l in range(depth):
        attn_g = vecD_ref[4 * l + 0:4 * l + 1, :]
        bo     = vecD_ref[4 * l + 1:4 * l + 2, :]
        ff_g   = vecD_ref[4 * l + 2:4 * l + 3, :]
        b2     = vecD_ref[4 * l + 3:4 * l + 4, :]

        # -------- multi-head causal self-attention (flat over sequences*positions) -----
        h = _rms(x, attn_g)
        qkv = _mm(h, wqkv_ref[l]) + bqkv_ref[l:l + 1, :]        # (R, 3*inner), Q pre-scaled
        for hh in range(heads):
            lo = hh * dim_head
            q = qkv[:, lo:lo + dim_head]
            k = qkv[:, inner + lo:inner + lo + dim_head]
            v = qkv[:, 2 * inner + lo:2 * inner + lo + dim_head]
            s = jax.lax.dot_general(q.astype(jnp.bfloat16), k.astype(jnp.bfloat16),
                                    (((1,), (1,)), ((), ())),
                                    preferred_element_type=jnp.float32) + bias
            s = s - jnp.max(s, axis=-1, keepdims=True)
            p = jnp.exp(s)
            p = p / jnp.sum(p, axis=-1, keepdims=True)          # exact softmax denom
            ov_ref[:, lo:lo + dim_head] = _mm(p, v)             # static 16-lane store
        x = x + _mm(ov_ref[...], wo_ref[l]) + bo                # one K=inner out-projection

        # -------- feed-forward ----------------------------------------------------------
        h = _rms(x, ff_g)
        h = _mm(h, w1_ref[l]) + b1_ref[l:l + 1, :]
        h = jax.nn.gelu(h, approximate=True)  # TODO(synk): PyTorch nn.GELU default is exact erf
        h = _mm(h, w2_ref[l]) + b2
        x = x + h

    return _rms(x, vecD_ref[4 * depth:4 * depth + 1, :])        # final norm


# =========================== K_coarse: patch-embed + coarse stage ======================

def _coarse_kernel(patch_ref, ln1_ref, pw_ref, pvec_ref, start_ref, vecD_ref,
                   wqkv_ref, bqkv_ref, wo_ref, w1_ref, b1_ref, w2_ref,
                   projw_ref, projb_ref, o_ref, xbuf_ref, ov_ref,
                   *, b, m, depth, heads, dim_head):
    f32 = jnp.float32
    N = m + 1

    # ---- fused patch-embedding head: LayerNorm -> Linear -> LayerNorm -----------------
    x = patch_ref[...].astype(f32)                               # (b*m, n1*fine) lane-dense
    mu = jnp.mean(x, axis=-1, keepdims=True)
    var = jnp.mean((x - mu) ** 2, axis=-1, keepdims=True)
    h = (x - mu) * jax.lax.rsqrt(var + 1e-5) * ln1_ref[0:1, :] + ln1_ref[1:2, :]
    y = _mm(h, pw_ref[...]) + pvec_ref[0:1, :]                   # (b*m, D0)
    mu = jnp.mean(y, axis=-1, keepdims=True)
    var = jnp.mean((y - mu) ** 2, axis=-1, keepdims=True)
    coarse = (y - mu) * jax.lax.rsqrt(var + 1e-5) * pvec_ref[1:2, :] + pvec_ref[2:3, :]

    # ---- prepend the start token per batch (assembled in VMEM scratch) ----------------
    start = start_ref[...].astype(f32)                           # (1, D0)
    for i in range(b):
        xbuf_ref[i * N:i * N + 1, :] = start
        xbuf_ref[i * N + 1:(i + 1) * N, :] = coarse[i * m:(i + 1) * m, :]

    # ---- coarse transformer over all b sequences flattened into the matmul M dim ------
    bias = _blockdiag_causal_bias(b, N)
    xt = _transformer_layers(xbuf_ref[...], bias, ov_ref, vecD_ref, wqkv_ref, bqkv_ref,
                             wo_ref, w1_ref, b1_ref, w2_ref,
                             depth=depth, heads=heads, dim_head=dim_head)

    # ---- next-stage projection; drop the last position of every sequence --------------
    y = _mm(xt, projw_ref[...]) + projb_ref[...]                 # (b*N, n1*fine)
    for i in range(b):
        o_ref[i * m:(i + 1) * m, :] = y[i * N:i * N + m, :].astype(o_ref.dtype)


# =========================== K_fine: fine stage + logits head ==========================

def _fine_kernel(fine_ref, prev_ref, start_ref, vecD_ref, wqkv_ref, bqkv_ref,
                 wo_ref, w1_ref, b1_ref, w2_ref, lw_ref, lb_ref,
                 o_ref, xbuf_ref, ov_ref, *, chunk, n1, depth, heads, dim_head):
    f32 = jnp.float32
    N = n1 + 1

    # ---- prev-stage shift-add + start-token prepend, assembled in VMEM scratch --------
    tok = fine_ref[...].astype(f32) + prev_ref[...].astype(f32)  # (chunk*n1, D1)
    start = start_ref[...].astype(f32)                           # (1, D1)
    for s in range(chunk):
        xbuf_ref[s * N:s * N + 1, :] = start
        xbuf_ref[s * N + 1:(s + 1) * N, :] = tok[s * n1:(s + 1) * n1, :]

    bias = _blockdiag_causal_bias(chunk, N)
    xt = _transformer_layers(xbuf_ref[...], bias, ov_ref, vecD_ref, wqkv_ref, bqkv_ref,
                             wo_ref, w1_ref, b1_ref, w2_ref,
                             depth=depth, heads=heads, dim_head=dim_head)

    # ---- logits head; drop the start-token position of every sequence -----------------
    y = _mm(xt, lw_ref[...]) + lb_ref[...]                       # (chunk*N, vocab)
    for s in range(chunk):
        o_ref[s * n1:(s + 1) * n1, :] = y[s * N + 1:(s + 1) * N, :].astype(o_ref.dtype)


# =========================== wrappers ===================================================

def _const_spec(a):
    nd = a.ndim
    return pl.BlockSpec(a.shape, lambda *_: (0,) * nd)


def _cost(args, out_shape, flops, transcendentals):
    bytes_acc = sum(int(a.size) * a.dtype.itemsize for a in args)
    bytes_acc += math.prod(out_shape.shape) * jnp.dtype(out_shape.dtype).itemsize
    return pl.CostEstimate(flops=int(flops), transcendentals=int(transcendentals),
                           bytes_accessed=int(bytes_acc))


def coarse_stage(patch, params, *, b, m):
    t = params["t0"]
    D0 = DIM[0]
    n1 = MAX_SEQ_LEN[1]
    R = b * (m + 1)
    args = (patch, params["patch_ln1"], params["patch_w"], params["patch_vec"],
            params["start0"], t["vecD"], t["wqkv"], t["bqkv"], t["wo"],
            t["w1"], t["b1"], t["w2"], params["proj_w"], params["proj_b"])
    out_shape = jax.ShapeDtypeStruct((b * m, n1 * DIM[1]), jnp.float32)

    flops = (2 * b * m * (n1 * FINE_DIM) * D0
             + DEPTH[0] * (2 * R * D0 * 3 * INNER + 4 * R * R * DIM_HEAD * HEADS
                           + 2 * R * INNER * D0 + 4 * R * D0 * D0 * FF_MULT)
             + 2 * R * D0 * n1 * DIM[1])
    transc = DEPTH[0] * (HEADS * R * R + R * D0 * FF_MULT)

    kernel = functools.partial(_coarse_kernel, b=b, m=m, depth=DEPTH[0],
                               heads=HEADS, dim_head=DIM_HEAD)
    return pl.pallas_call(
        kernel,
        out_shape=out_shape,
        grid=(1,),
        in_specs=[_const_spec(a) for a in args],
        out_specs=pl.BlockSpec(out_shape.shape, lambda *_: (0, 0)),
        scratch_shapes=[pltpu.VMEM((R, D0), jnp.float32),
                        pltpu.VMEM((R, INNER), jnp.float32)],
        compiler_params=pltpu.CompilerParams(dimension_semantics=("arbitrary",)),
        cost_estimate=_cost(args, out_shape, flops, transc),
    )(*args)


def fine_stage(fine2d, prev2d, params, *, nseq, n1):
    t = params["t1"]
    D1 = DIM[1]
    # shard the independent fine sequences across v7x's two TensorCores when alignment allows
    G = 2
    if nseq % G != 0 or ((nseq // G) * n1) % 8 != 0:
        G = 1
    chunk = nseq // G
    R = chunk * (n1 + 1)
    rows = chunk * n1

    const_args = (params["start1"], t["vecD"], t["wqkv"], t["bqkv"], t["wo"],
                  t["w1"], t["b1"], t["w2"], params["logits_w"], params["logits_b"])
    out_shape = jax.ShapeDtypeStruct((nseq * n1, NUM_TOKENS), jnp.float32)

    flops = G * (DEPTH[1] * (2 * R * D1 * 3 * INNER + 4 * R * R * DIM_HEAD * HEADS
                             + 2 * R * INNER * D1 + 4 * R * D1 * D1 * FF_MULT)
                 + 2 * R * D1 * NUM_TOKENS)
    transc = G * DEPTH[1] * (HEADS * R * R + R * D1 * FF_MULT)

    kernel = functools.partial(_fine_kernel, chunk=chunk, n1=n1, depth=DEPTH[1],
                               heads=HEADS, dim_head=DIM_HEAD)
    return pl.pallas_call(
        kernel,
        out_shape=out_shape,
        grid=(G,),
        in_specs=([pl.BlockSpec((rows, D1), lambda i: (i, 0)),
                   pl.BlockSpec((rows, D1), lambda i: (i, 0))]
                  + [_const_spec(a) for a in const_args]),
        out_specs=pl.BlockSpec((rows, NUM_TOKENS), lambda i: (i, 0)),
        scratch_shapes=[pltpu.VMEM((R, D1), jnp.float32),
                        pltpu.VMEM((R, INNER), jnp.float32)],
        compiler_params=pltpu.CompilerParams(dimension_semantics=("parallel",)),
        cost_estimate=_cost((fine2d, prev2d) + const_args, out_shape, flops, transc),
    )(fine2d, prev2d, *const_args)


# =========================== TerraByte forward ==========================================

def terra_byte_forward(params, ids):
    b, seq_len = ids.shape
    n1 = MAX_SEQ_LEN[1]

    # pad the flat sequence to a multiple of the patch length and reshape to patches
    pad = (-seq_len) % n1
    ids = jnp.pad(ids, ((0, 0), (0, pad)), constant_values=PAD_ID)
    ids = ids.reshape(b, -1, n1)                                  # (b, m, n1)
    m = ids.shape[1]
    assert m <= MAX_SEQ_LEN[0]

    # token-embedding gathers stay in plain JAX (data-dependent gathers, tiny)
    fine_tok = jnp.take(params["emb_fine"], ids, axis=0)          # (b, m, n1, D1)
    patch = jnp.take(params["emb_patch"], ids, axis=0).reshape(b * m, n1 * FINE_DIM)

    # stage 0: patch embed + coarse transformer + next-stage projection (one kernel)
    prev = coarse_stage(patch, params, b=b, m=m)                  # (b*m, n1*D1) = (8,128)

    # stage 1: fine transformer + logits head (one kernel, gridded over sequence chunks)
    fine2d = fine_tok.reshape(b * m * n1, FINE_DIM)               # (32, 32)
    prev2d = prev.reshape(b * m * n1, FINE_DIM)                   # (32, 32)
    logits = fine_stage(fine2d, prev2d, params, nseq=b * m, n1=n1)  # (b*m*n1, vocab)

    logits = logits.reshape(b, m * n1, NUM_TOKENS)[:, :seq_len]
    return logits


# =========================== deterministic parameter init ==============================

def init_params(key):
    ks = iter(jax.random.split(key, 64))
    bf16 = jnp.bfloat16

    def nrm(shape, scale=0.02, dtype=jnp.float32):
        return (scale * jax.random.normal(next(ks), shape, dtype=jnp.float32)).astype(dtype)

    D0, D1 = DIM
    n1 = MAX_SEQ_LEN[1]
    qscale = DIM_HEAD ** -0.5

    def make_stage(D, L):
        vecD, wqkv, bqkv, wo, w1, b1, w2 = [], [], [], [], [], [], []
        for _ in range(L):
            vecD += [jnp.ones((D,), jnp.float32),     # attn RMSNorm gain
                     jnp.zeros((D,), jnp.float32),    # attention out-proj bias
                     jnp.ones((D,), jnp.float32),     # ff RMSNorm gain
                     jnp.zeros((D,), jnp.float32)]    # ff second bias
            w = nrm((D, 3 * INNER))
            w = w.at[:, :INNER].multiply(qscale)      # fold 1/sqrt(dh) into Q columns
            wqkv.append(w.astype(bf16))
            bq = jnp.zeros((3 * INNER,), jnp.float32)
            bqkv.append(bq.at[:INNER].multiply(qscale))
            wo.append(nrm((INNER, D), dtype=bf16))
            w1.append(nrm((D, D * FF_MULT), dtype=bf16))
            b1.append(jnp.zeros((D * FF_MULT,), jnp.float32))
            w2.append(nrm((D * FF_MULT, D), dtype=bf16))
        vecD.append(jnp.ones((D,), jnp.float32))      # final RMSNorm gain
        return {"vecD": jnp.stack(vecD), "wqkv": jnp.stack(wqkv), "bqkv": jnp.stack(bqkv),
                "wo": jnp.stack(wo), "w1": jnp.stack(w1), "b1": jnp.stack(b1),
                "w2": jnp.stack(w2)}

    params = {
        "emb_fine": nrm((NUM_TOKENS, FINE_DIM)),
        "emb_patch": nrm((NUM_TOKENS, FINE_DIM)),
        "patch_ln1": jnp.stack([jnp.ones((n1 * FINE_DIM,), jnp.float32),
                                jnp.zeros((n1 * FINE_DIM,), jnp.float32)]),   # LN1 gamma/beta
        "patch_w": nrm((n1 * FINE_DIM, D0), dtype=bf16),
        "patch_vec": jnp.stack([jnp.zeros((D0,), jnp.float32),   # Linear bias
                                jnp.ones((D0,), jnp.float32),    # LN2 gamma
                                jnp.zeros((D0,), jnp.float32)]), # LN2 beta
        "start0": nrm((1, D0), 1.0),
        "start1": nrm((1, D1), 1.0),
        "proj_w": nrm((D0, D1 * n1), dtype=bf16),
        "proj_b": jnp.zeros((1, D1 * n1), jnp.float32),
        "logits_w": nrm((FINE_DIM, NUM_TOKENS), dtype=bf16),
        "logits_b": jnp.zeros((1, NUM_TOKENS), jnp.float32),
        "t0": make_stage(D0, DEPTH[0]),
        "t1": make_stage(D1, DEPTH[1]),
    }
    return params


# =========================== main =======================================================

if __name__ == "__main__":
    key = jax.random.PRNGKey(0)
    pkey, ikey = jax.random.split(key)
    params = init_params(pkey)

    # batch=2, flat sequence length 14 (padded to 16 = 4 patches of 4 tokens)
    ids = jax.random.randint(ikey, (2, 14), 1, NUM_TOKENS, dtype=jnp.int32)

    logits = jax.jit(terra_byte_forward)(params, ids)
    jax.block_until_ready(logits)
    assert logits.shape == (2, 14, NUM_TOKENS), logits.shape
    assert bool(jnp.all(jnp.isfinite(logits)))
    print("KERNEL_OK")
</pallas_src>

<mosaic_0001>
module attributes {stable_mosaic.version = 11 : i64} {
  func.func @_coarse_kernel(%arg0: i32, %arg1: memref<8x128xf32, #tpu.memory_space<vmem>>, %arg2: memref<2x128xf32, #tpu.memory_space<vmem>>, %arg3: memref<128x48xbf16, #tpu.memory_space<vmem>>, %arg4: memref<3x48xf32, #tpu.memory_space<vmem>>, %arg5: memref<1x48xf32, #tpu.memory_space<vmem>>, %arg6: memref<9x48xf32, #tpu.memory_space<vmem>>, %arg7: memref<2x48x192xbf16, #tpu.memory_space<vmem>>, %arg8: memref<2x192xf32, #tpu.memory_space<vmem>>, %arg9: memref<2x64x48xbf16, #tpu.memory_space<vmem>>, %arg10: memref<2x48x192xbf16, #tpu.memory_space<vmem>>, %arg11: memref<2x192xf32, #tpu.memory_space<vmem>>, %arg12: memref<2x192x48xbf16, #tpu.memory_space<vmem>>, %arg13: memref<48x128xbf16, #tpu.memory_space<vmem>>, %arg14: memref<1x128xf32, #tpu.memory_space<vmem>>, %arg15: memref<8x128xf32, #tpu.memory_space<vmem>>, %arg16: memref<10x48xf32, #tpu.memory_space<vmem>>, %arg17: memref<10x64xf32, #tpu.memory_space<vmem>>) attributes {dimension_semantics = [#tpu.dimension_semantics<arbitrary>], iteration_bounds = array<i64: 1>, scalar_prefetch = 0 : i64, scratch_operands = 2 : i64, tpu.core_type = #tpu.core_type<tc>, window_params = [{pipeline_mode = #tpu.pipeline_mode<synchronous>, transform_indices = @transform_0, window_bounds = array<i64: 8, 128>}, {pipeline_mode = #tpu.pipeline_mode<synchronous>, transform_indices = @transform_1, window_bounds = array<i64: 2, 128>}, {pipeline_mode = #tpu.pipeline_mode<synchronous>, transform_indices = @transform_2, window_bounds = array<i64: 128, 48>}, {pipeline_mode = #tpu.pipeline_mode<synchronous>, transform_indices = @transform_3, window_bounds = array<i64: 3, 48>}, {pipeline_mode = #tpu.pipeline_mode<synchronous>, transform_indices = @transform_4, window_bounds = array<i64: 1, 48>}, {pipeline_mode = #tpu.pipeline_mode<synchronous>, transform_indices = @transform_5, window_bounds = array<i64: 9, 48>}, {pipeline_mode = #tpu.pipeline_mode<synchronous>, transform_indices = @transform_6, window_bounds = array<i64: 2, 48, 192>}, {pipeline_mode = #tpu.pipeline_mode<synchronous>, transform_indices = @transform_7, window_bounds = array<i64: 2, 192>}, {pipeline_mode = #tpu.pipeline_mode<synchronous>, transform_indices = @transform_8, window_bounds = array<i64: 2, 64, 48>}, {pipeline_mode = #tpu.pipeline_mode<synchronous>, transform_indices = @transform_9, window_bounds = array<i64: 2, 48, 192>}, {pipeline_mode = #tpu.pipeline_mode<synchronous>, transform_indices = @transform_10, window_bounds = array<i64: 2, 192>}, {pipeline_mode = #tpu.pipeline_mode<synchronous>, transform_indices = @transform_11, window_bounds = array<i64: 2, 192, 48>}, {pipeline_mode = #tpu.pipeline_mode<synchronous>, transform_indices = @transform_12, window_bounds = array<i64: 48, 128>}, {pipeline_mode = #tpu.pipeline_mode<synchronous>, transform_indices = @transform_13, window_bounds = array<i64: 1, 128>}, {pipeline_mode = #tpu.pipeline_mode<synchronous>, transform_indices = @transform_14, window_bounds = array<i64: 8, 128>}]} {
    %c0 = arith.constant 0 : index
    %c0_0 = arith.constant 0 : index
    %0 = vector.load %arg1[%c0, %c0_0] : memref<8x128xf32, #tpu.memory_space<vmem>>, vector<8x128xf32>
    %cst = arith.constant dense<0.000000e+00> : vector<8xf32>
    %1 = vector.multi_reduction <add>, %0, %cst [1] : vector<8x128xf32> to vector<8xf32>
    %2 = vector.shape_cast %1 : vector<8xf32> to vector<8x1xf32>
    %cst_1 = arith.constant 1.280000e+02 : f32
    %3 = vector.broadcast %cst_1 : f32 to vector<8x1xf32>
    %4 = arith.divf %2, %3 : vector<8x1xf32>
    %5 = vector.broadcast %4 : vector<8x1xf32> to vector<8x128xf32>
    %6 = arith.subf %0, %5 : vector<8x128xf32>
    %7 = arith.mulf %6, %6 : vector<8x128xf32>
    %cst_2 = arith.constant dense<0.000000e+00> : vector<8xf32>
    %8 = vector.multi_reduction <add>, %7, %cst_2 [1] : vector<8x128xf32> to vector<8xf32>
    %9 = vector.shape_cast %8 : vector<8xf32> to vector<8x1xf32>
    %cst_3 = arith.constant 1.280000e+02 : f32
    %10 = vector.broadcast %cst_3 : f32 to vector<8x1xf32>
    %11 = arith.divf %9, %10 : vector<8x1xf32>
    %12 = vector.broadcast %4 : vector<8x1xf32> to vector<8x128xf32>
    %13 = arith.subf %0, %12 : vector<8x128xf32>
    %cst_4 = arith.constant 9.99999974E-6 : f32
    %14 = vector.broadcast %cst_4 : f32 to vector<8x1xf32>
    %15 = arith.addf %11, %14 : vector<8x1xf32>
    %16 = math.rsqrt %15 : vector<8x1xf32>
    %17 = vector.broadcast %16 : vector<8x1xf32> to vector<8x128xf32>
    %18 = arith.mulf %13, %17 : vector<8x128xf32>
    %c0_5 = arith.constant 0 : index
    %c0_6 = arith.constant 0 : index
    %19 = vector.load %arg2[%c0_5, %c0_6] : memref<2x128xf32, #tpu.memory_space<vmem>>, vector<1x128xf32>
    %20 = vector.broadcast %19 : vector<1x128xf32> to vector<8x128xf32>
    %21 = arith.mulf %18, %20 : vector<8x128xf32>
    %c1 = arith.constant 1 : index
    %c0_7 = arith.constant 0 : index
    %22 = vector.load %arg2[%c1, %c0_7] : memref<2x128xf32, #tpu.memory_space<vmem>>, vector<1x128xf32>
    %23 = vector.broadcast %22 : vector<1x128xf32> to vector<8x128xf32>
    %24 = arith.addf %21, %23 : vector<8x128xf32>
    %c0_8 = arith.constant 0 : index
    %c0_9 = arith.constant 0 : index
    %25 = vector.load %arg3[%c0_8, %c0_9] : memref<128x48xbf16, #tpu.memory_space<vmem>>, vector<128x48xbf16>
    %26 = arith.truncf %24 : vector<8x128xf32> to vector<8x128xbf16>
    %cst_10 = arith.constant dense<0.000000e+00> : vector<8x48xf32>
    %27 = tpu.matmul %26, %25, %cst_10 {dimension_numbers = #tpu.dot_dimension_numbers<[1], [0], [0], [1], [0, 0, 1, 1], [], []>} : vector<8x128xbf16>, vector<128x48xbf16>, vector<8x48xf32> -> vector<8x48xf32>
    %c0_11 = arith.constant 0 : index
    %c0_12 = arith.constant 0 : index
    %28 = vector.load %arg4[%c0_11, %c0_12] : memref<3x48xf32, #tpu.memory_space<vmem>>, vector<1x48xf32>
    %29 = vector.broadcast %28 : vector<1x48xf32> to vector<8x48xf32>
    %30 = arith.addf %27, %29 : vector<8x48xf32>
    %cst_13 = arith.constant dense<0.000000e+00> : vector<8xf32>
    %31 = vector.multi_reduction <add>, %30, %cst_13 [1] : vector<8x48xf32> to vector<8xf32>
    %32 = vector.shape_cast %31 : vector<8xf32> to vector<8x1xf32>
    %cst_14 = arith.constant 4.800000e+01 : f32
    %33 = vector.broadcast %cst_14 : f32 to vector<8x1xf32>
    %34 = arith.divf %32, %33 : vector<8x1xf32>
    %35 = vector.broadcast %34 : vector<8x1xf32> to vector<8x48xf32>
    %36 = arith.subf %30, %35 : vector<8x48xf32>
    %37 = arith.mulf %36, %36 : vector<8x48xf32>
    %cst_15 = arith.constant dense<0.000000e+00> : vector<8xf32>
    %38 = vector.multi_reduction <add>, %37, %cst_15 [1] : vector<8x48xf32> to vector<8xf32>
    %39 = vector.shape_cast %38 : vector<8xf32> to vector<8x1xf32>
    %cst_16 = arith.constant 4.800000e+01 : f32
    %40 = vector.broadcast %cst_16 : f32 to vector<8x1xf32>
    %41 = arith.divf %39, %40 : vector<8x1xf32>
    %42 = vector.broadcast %34 : vector<8x1xf32> to vector<8x48xf32>
    %43 = arith.subf %30, %42 : vector<8x48xf32>
    %cst_17 = arith.constant 9.99999974E-6 : f32
    %44 = vector.broadcast %cst_17 : f32 to vector<8x1xf32>
    %45 = arith.addf %41, %44 : vector<8x1xf32>
    %46 = math.rsqrt %45 : vector<8x1xf32>
    %47 = vector.broadcast %46 : vector<8x1xf32> to vector<8x48xf32>
    %48 = arith.mulf %43, %47 : vector<8x48xf32>
    %c1_18 = arith.constant 1 : index
    %c0_19 = arith.constant 0 : index
    %49 = vector.load %arg4[%c1_18, %c0_19] : memref<3x48xf32, #tpu.memory_space<vmem>>, vector<1x48xf32>
    %50 = vector.broadcast %49 : vector<1x48xf32> to vector<8x48xf32>
    %51 = arith.mulf %48, %50 : vector<8x48xf32>
    %c2 = arith.constant 2 : index
    %c0_20 = arith.constant 0 : index
    %52 = vector.load %arg4[%c2, %c0_20] : memref<3x48xf32, #tpu.memory_space<vmem>>, vector<1x48xf32>
    %53 = vector.broadcast %52 : vector<1x48xf32> to vector<8x48xf32>
    %54 = arith.addf %51, %53 : vector<8x48xf32>
    %c0_21 = arith.constant 0 : index
    %c0_22 = arith.constant 0 : index
    %55 = vector.load %arg5[%c0_21, %c0_22] : memref<1x48xf32, #tpu.memory_space<vmem>>, vector<1x48xf32>
    %c0_23 = arith.constant 0 : index
    %c0_24 = arith.constant 0 : index
    %56 = vector.load %arg16[%c0_23, %c0_24] : memref<10x48xf32, #tpu.memory_space<vmem>>, vector<1x48xf32>
    tpu.vector_store %arg16[%c0_23, %c0_24], %55 {strides = array<i32>} : memref<10x48xf32, #tpu.memory_space<vmem>>, vector<1x48xf32>,
    %57 = vector.extract_strided_slice %54 {offsets = [0, 0], sizes = [4, 48], strides = [1, 1]} : vector<8x48xf32> to vector<4x48xf32>
    %c1_25 = arith.constant 1 : index
    %c0_26 = arith.constant 0 : index
    %58 = vector.load %arg16[%c1_25, %c0_26] : memref<10x48xf32, #tpu.memory_space<vmem>>, vector<4x48xf32>
    tpu.vector_store %arg16[%c1_25, %c0_26], %57 {strides = array<i32>} : memref<10x48xf32, #tpu.memory_space<vmem>>, vector<4x48xf32>,
    %c5 = arith.constant 5 : index
    %c0_27 = arith.constant 0 : index
    %59 = vector.load %arg16[%c5, %c0_27] : memref<10x48xf32, #tpu.memory_space<vmem>>, vector<1x48xf32>
    tpu.vector_store %arg16[%c5, %c0_27], %55 {strides = array<i32>} : memref<10x48xf32, #tpu.memory_space<vmem>>, vector<1x48xf32>,
    %60 = vector.extract_strided_slice %54 {offsets = [4, 0], sizes = [4, 48], strides = [1, 1]} : vector<8x48xf32> to vector<4x48xf32>
    %c6 = arith.constant 6 : index
    %c0_28 = arith.constant 0 : index
    %61 = vector.load %arg16[%c6, %c0_28] : memref<10x48xf32, #tpu.memory_space<vmem>>, vector<4x48xf32>
    tpu.vector_store %arg16[%c6, %c0_28], %60 {strides = array<i32>} : memref<10x48xf32, #tpu.memory_space<vmem>>, vector<4x48xf32>,
    %62 = tpu.iota {dimensions = array<i32: 0>} : vector<10x10xi32>
    %63 = tpu.iota {dimensions = array<i32: 1>} : vector<10x10xi32>
    %c0_i32 = arith.constant 0 : i32
    %64 = vector.broadcast %c0_i32 : i32 to vector<10x10xi32>
    %65 = arith.cmpi sge, %62, %64 : vector<10x10xi32>
    %c5_i32 = arith.constant 5 : i32
    %66 = vector.broadcast %c5_i32 : i32 to vector<10x10xi32>
    %67 = arith.cmpi slt, %62, %66 : vector<10x10xi32>
    %68 = arith.andi %65, %67 : vector<10x10xi1>
    %c0_i32_29 = arith.constant 0 : i32
    %69 = vector.broadcast %c0_i32_29 : i32 to vector<10x10xi32>
    %70 = arith.cmpi sge, %63, %69 : vector<10x10xi32>
    %71 = arith.andi %68, %70 : vector<10x10xi1>
    %c5_i32_30 = arith.constant 5 : i32
    %72 = vector.broadcast %c5_i32_30 : i32 to vector<10x10xi32>
    %73 = arith.cmpi slt, %63, %72 : vector<10x10xi32>
    %74 = arith.andi %71, %73 : vector<10x10xi1>
    %c5_i32_31 = arith.constant 5 : i32
    %75 = vector.broadcast %c5_i32_31 : i32 to vector<10x10xi32>
    %76 = arith.cmpi sge, %62, %75 : vector<10x10xi32>
    %c10_i32 = arith.constant 10 : i32
    %77 = vector.broadcast %c10_i32 : i32 to vector<10x10xi32>
    %78 = arith.cmpi slt, %62, %77 : vector<10x10xi32>
    %79 = arith.andi %76, %78 : vector<10x10xi1>
    %c5_i32_32 = arith.constant 5 : i32
    %80 = vector.broadcast %c5_i32_32 : i32 to vector<10x10xi32>
    %81 = arith.cmpi sge, %63, %80 : vector<10x10xi32>
    %82 = arith.andi %79, %81 : vector<10x10xi1>
    %c10_i32_33 = arith.constant 10 : i32
    %83 = vector.broadcast %c10_i32_33 : i32 to vector<10x10xi32>
    %84 = arith.cmpi slt, %63, %83 : vector<10x10xi32>
    %85 = arith.andi %82, %84 : vector<10x10xi1>
    %86 = arith.ori %74, %85 : vector<10x10xi1>
    %87 = arith.cmpi sle, %63, %62 : vector<10x10xi32>
    %88 = arith.andi %86, %87 : vector<10x10xi1>
    %cst_34 = arith.constant 0.000000e+00 : f32
    %cst_35 = arith.constant -1.000000e+30 : f32
    %89 = vector.broadcast %cst_34 : f32 to vector<10x10xf32>
    %90 = vector.broadcast %cst_35 : f32 to vector<10x10xf32>
    %91 = arith.select %88, %89, %90 : vector<10x10xi1>, vector<10x10xf32>
    %c0_36 = arith.constant 0 : index
    %c0_37 = arith.constant 0 : index
    %92 = vector.load %arg16[%c0_36, %c0_37] : memref<10x48xf32, #tpu.memory_space<vmem>>, vector<10x48xf32>
    %c0_38 = arith.constant 0 : index
    %c0_39 = arith.constant 0 : index
    %93 = vector.load %arg6[%c0_38, %c0_39] : memref<9x48xf32, #tpu.memory_space<vmem>>, vector<1x48xf32>
    %c1_40 = arith.constant 1 : index
    %c0_41 = arith.constant 0 : index
    %94 = vector.load %arg6[%c1_40, %c0_41] : memref<9x48xf32, #tpu.memory_space<vmem>>, vector<1x48xf32>
    %c2_42 = arith.constant 2 : index
    %c0_43 = arith.constant 0 : index
    %95 = vector.load %arg6[%c2_42, %c0_43] : memref<9x48xf32, #tpu.memory_space<vmem>>, vector<1x48xf32>
    %c3 = arith.constant 3 : index
    %c0_44 = arith.constant 0 : index
    %96 = vector.load %arg6[%c3, %c0_44] : memref<9x48xf32, #tpu.memory_space<vmem>>, vector<1x48xf32>
    %97 = arith.mulf %92, %92 : vector<10x48xf32>
    %cst_45 = arith.constant dense<0.000000e+00> : vector<10xf32>
    %98 = vector.multi_reduction <add>, %97, %cst_45 [1] : vector<10x48xf32> to vector<10xf32>
    %99 = vector.shape_cast %98 : vector<10xf32> to vector<10x1xf32>
    %cst_46 = arith.constant 4.800000e+01 : f32
    %100 = vector.broadcast %cst_46 : f32 to vector<10x1xf32>
    %101 = arith.divf %99, %100 : vector<10x1xf32>
    %cst_47 = arith.constant 9.99999997E-7 : f32
    %102 = vector.broadcast %cst_47 : f32 to vector<10x1xf32>
    %103 = arith.addf %101, %102 : vector<10x1xf32>
    %104 = math.rsqrt %103 : vector<10x1xf32>
    %105 = vector.broadcast %104 : vector<10x1xf32> to vector<10x48xf32>
    %106 = arith.mulf %92, %105 : vector<10x48xf32>
    %107 = vector.broadcast %93 : vector<1x48xf32> to vector<10x48xf32>
    %108 = arith.mulf %106, %107 : vector<10x48xf32>
    %c0_48 = arith.constant 0 : index
    %c0_49 = arith.constant 0 : index
    %c0_50 = arith.constant 0 : index
    %109 = vector.load %arg7[%c0_48, %c0_49, %c0_50] : memref<2x48x192xbf16, #tpu.memory_space<vmem>>, vector<1x48x192xbf16>
    %110 = vector.shape_cast %109 : vector<1x48x192xbf16> to vector<48x192xbf16>
    %111 = arith.truncf %108 : vector<10x48xf32> to vector<10x48xbf16>
    %cst_51 = arith.constant dense<0.000000e+00> : vector<10x192xf32>
    %112 = tpu.matmul %111, %110, %cst_51 {dimension_numbers = #tpu.dot_dimension_numbers<[1], [0], [0], [1], [0, 0, 1, 1], [], []>} : vector<10x48xbf16>, vector<48x192xbf16>, vector<10x192xf32> -> vector<10x192xf32>
    %c0_52 = arith.constant 0 : index
    %c0_53 = arith.constant 0 : index
    %113 = vector.load %arg8[%c0_52, %c0_53] : memref<2x192xf32, #tpu.memory_space<vmem>>, vector<1x192xf32>
    %114 = vector.broadcast %113 : vector<1x192xf32> to vector<10x192xf32>
    %115 = arith.addf %112, %114 : vector<10x192xf32>
    %116 = vector.extract_strided_slice %115 {offsets = [0, 0], sizes = [10, 16], strides = [1, 1]} : vector<10x192xf32> to vector<10x16xf32>
    %117 = vector.extract_strided_slice %115 {offsets = [0, 64], sizes = [10, 16], strides = [1, 1]} : vector<10x192xf32> to vector<10x16xf32>
    %118 = vector.extract_strided_slice %115 {offsets = [0, 128], sizes = [10, 16], strides = [1, 1]} : vector<10x192xf32> to vector<10x16xf32>
    %119 = arith.truncf %116 : vector<10x16xf32> to vector<10x16xbf16>
    %120 = arith.truncf %117 : vector<10x16xf32> to vector<10x16xbf16>
    %cst_54 = arith.constant dense<0.000000e+00> : vector<10x10xf32>
    %121 = tpu.matmul %119, %120, %cst_54 {dimension_numbers = #tpu.dot_dimension_numbers<[1], [1], [0], [0], [0, 0, 1, 0], [], []>} : vector<10x16xbf16>, vector<10x16xbf16>, vector<10x10xf32> -> vector<10x10xf32>
    %122 = arith.addf %121, %91 : vector<10x10xf32>
    %cst_55 = arith.constant dense<0xFF800000> : vector<10xf32>
    %123 = vector.multi_reduction <maximumf>, %122, %cst_55 [1] : vector<10x10xf32> to vector<10xf32>
    %124 = vector.shape_cast %123 : vector<10xf32> to vector<10x1xf32>
    %125 = vector.broadcast %124 : vector<10x1xf32> to vector<10x10xf32>
    %126 = arith.subf %122, %125 : vector<10x10xf32>
    %127 = math.exp %126 : vector<10x10xf32>
    %cst_56 = arith.constant dense<0.000000e+00> : vector<10xf32>
    %128 = vector.multi_reduction <add>, %127, %cst_56 [1] : vector<10x10xf32> to vector<10xf32>
    %129 = vector.shape_cast %128 : vector<10xf32> to vector<10x1xf32>
    %130 = vector.broadcast %129 : vector<10x1xf32> to vector<10x10xf32>
    %131 = arith.divf %127, %130 : vector<10x10xf32>
    %132 = arith.truncf %131 : vector<10x10xf32> to vector<10x10xbf16>
    %133 = arith.truncf %118 : vector<10x16xf32> to vector<10x16xbf16>
    %cst_57 = arith.constant dense<0.000000e+00> : vector<10x16xf32>
    %134 = tpu.matmul %132, %133, %cst_57 {dimension_numbers = #tpu.dot_dimension_numbers<[1], [0], [0], [1], [0, 0, 1, 1], [], []>} : vector<10x10xbf16>, vector<10x16xbf16>, vector<10x16xf32> -> vector<10x16xf32>
    %c0_58 = arith.constant 0 : index
    %c0_59 = arith.constant 0 : index
    %135 = vector.load %arg17[%c0_58, %c0_59] : memref<10x64xf32, #tpu.memory_space<vmem>>, vector<10x16xf32>
    tpu.vector_store %arg17[%c0_58, %c0_59], %134 {strides = array<i32>} : memref<10x64xf32, #tpu.memory_space<vmem>>, vector<10x16xf32>,
    %136 = vector.extract_strided_slice %115 {offsets = [0, 16], sizes = [10, 16], strides = [1, 1]} : vector<10x192xf32> to vector<10x16xf32>
    %137 = vector.extract_strided_slice %115 {offsets = [0, 80], sizes = [10, 16], strides = [1, 1]} : vector<10x192xf32> to vector<10x16xf32>
    %138 = vector.extract_strided_slice %115 {offsets = [0, 144], sizes = [10, 16], strides = [1, 1]} : vector<10x192xf32> to vector<10x16xf32>
    %139 = arith.truncf %136 : vector<10x16xf32> to vector<10x16xbf16>
    %140 = arith.truncf %137 : vector<10x16xf32> to vector<10x16xbf16>
    %cst_60 = arith.constant dense<0.000000e+00> : vector<10x10xf32>
    %141 = tpu.matmul %139, %140, %cst_60 {dimension_numbers = #tpu.dot_dimension_numbers<[1], [1], [0], [0], [0, 0, 1, 0], [], []>} : vector<10x16xbf16>, vector<10x16xbf16>, vector<10x10xf32> -> vector<10x10xf32>
    %142 = arith.addf %141, %91 : vector<10x10xf32>
    %cst_61 = arith.constant dense<0xFF800000> : vector<10xf32>
    %143 = vector.multi_reduction <maximumf>, %142, %cst_61 [1] : vector<10x10xf32> to vector<10xf32>
    %144 = vector.shape_cast %143 : vector<10xf32> to vector<10x1xf32>
    %145 = vector.broadcast %144 : vector<10x1xf32> to vector<10x10xf32>
    %146 = arith.subf %142, %145 : vector<10x10xf32>
    %147 = math.exp %146 : vector<10x10xf32>
    %cst_62 = arith.constant dense<0.000000e+00> : vector<10xf32>
    %148 = vector.multi_reduction <add>, %147, %cst_62 [1] : vector<10x10xf32> to vector<10xf32>
    %149 = vector.shape_cast %148 : vector<10xf32> to vector<10x1xf32>
    %150 = vector.broadcast %149 : vector<10x1xf32> to vector<10x10xf32>
    %151 = arith.divf %147, %150 : vector<10x10xf32>
    %152 = arith.truncf %151 : vector<10x10xf32> to vector<10x10xbf16>
    %153 = arith.truncf %138 : vector<10x16xf32> to vector<10x16xbf16>
    %cst_63 = arith.constant dense<0.000000e+00> : vector<10x16xf32>
    %154 = tpu.matmul %152, %153, %cst_63 {dimension_numbers = #tpu.dot_dimension_numbers<[1], [0], [0], [1], [0, 0, 1, 1], [], []>} : vector<10x10xbf16>, vector<10x16xbf16>, vector<10x16xf32> -> vector<10x16xf32>
    %c0_64 = arith.constant 0 : index
    %c16 = arith.constant 16 : index
    %155 = vector.load %arg17[%c0_64, %c16] : memref<10x64xf32, #tpu.memory_space<vmem>>, vector<10x16xf32>
    tpu.vector_store %arg17[%c0_64, %c16], %154 {strides = array<i32>} : memref<10x64xf32, #tpu.memory_space<vmem>>, vector<10x16xf32>,
    %156 = vector.extract_strided_slice %115 {offsets = [0, 32], sizes = [10, 16], strides = [1, 1]} : vector<10x192xf32> to vector<10x16xf32>
    %157 = vector.extract_strided_slice %115 {offsets = [0, 96], sizes = [10, 16], strides = [1, 1]} : vector<10x192xf32> to vector<10x16xf32>
    %158 = vector.extract_strided_slice %115 {offsets = [0, 160], sizes = [10, 16], strides = [1, 1]} : vector<10x192xf32> to vector<10x16xf32>
    %159 = arith.truncf %156 : vector<10x16xf32> to vector<10x16xbf16>
    %160 = arith.truncf %157 : vector<10x16xf32> to vector<10x16xbf16>
    %cst_65 = arith.constant dense<0.000000e+00> : vector<10x10xf32>
    %161 = tpu.matmul %159, %160, %cst_65 {dimension_numbers = #tpu.dot_dimension_numbers<[1], [1], [0], [0], [0, 0, 1, 0], [], []>} : vector<10x16xbf16>, vector<10x16xbf16>, vector<10x10xf32> -> vector<10x10xf32>
    %162 = arith.addf %161, %91 : vector<10x10xf32>
    %cst_66 = arith.constant dense<0xFF800000> : vector<10xf32>
    %163 = vector.multi_reduction <maximumf>, %162, %cst_66 [1] : vector<10x10xf32> to vector<10xf32>
    %164 = vector.shape_cast %163 : vector<10xf32> to vector<10x1xf32>
    %165 = vector.broadcast %164 : vector<10x1xf32> to vector<10x10xf32>
    %166 = arith.subf %162, %165 : vector<10x10xf32>
    %167 = math.exp %166 : vector<10x10xf32>
    %cst_67 = arith.constant dense<0.000000e+00> : vector<10xf32>
    %168 = vector.multi_reduction <add>, %167, %cst_67 [1] : vector<10x10xf32> to vector<10xf32>
    %169 = vector.shape_cast %168 : vector<10xf32> to vector<10x1xf32>
    %170 = vector.broadcast %169 : vector<10x1xf32> to vector<10x10xf32>
    %171 = arith.divf %167, %170 : vector<10x10xf32>
    %172 = arith.truncf %171 : vector<10x10xf32> to vector<10x10xbf16>
    %173 = arith.truncf %158 : vector<10x16xf32> to vector<10x16xbf16>
    %cst_68 = arith.constant dense<0.000000e+00> : vector<10x16xf32>
    %174 = tpu.matmul %172, %173, %cst_68 {dimension_numbers = #tpu.dot_dimension_numbers<[1], [0], [0], [1], [0, 0, 1, 1], [], []>} : vector<10x10xbf16>, vector<10x16xbf16>, vector<10x16xf32> -> vector<10x16xf32>
    %c0_69 = arith.constant 0 : index
    %c32 = arith.constant 32 : index
    %175 = vector.load %arg17[%c0_69, %c32] : memref<10x64xf32, #tpu.memory_space<vmem>>, vector<10x16xf32>
    tpu.vector_store %arg17[%c0_69, %c32], %174 {strides = array<i32>} : memref<10x64xf32, #tpu.memory_space<vmem>>, vector<10x16xf32>,
    %176 = vector.extract_strided_slice %115 {offsets = [0, 48], sizes = [10, 16], strides = [1, 1]} : vector<10x192xf32> to vector<10x16xf32>
    %177 = vector.extract_strided_slice %115 {offsets = [0, 112], sizes = [10, 16], strides = [1, 1]} : vector<10x192xf32> to vector<10x16xf32>
    %178 = vector.extract_strided_slice %115 {offsets = [0, 176], sizes = [10, 16], strides = [1, 1]} : vector<10x192xf32> to vector<10x16xf32>
    %179 = arith.truncf %176 : vector<10x16xf32> to vector<10x16xbf16>
    %180 = arith.truncf %177 : vector<10x16xf32> to vector<10x16xbf16>
    %cst_70 = arith.constant dense<0.000000e+00> : vector<10x10xf32>
    %181 = tpu.matmul %179, %180, %cst_70 {dimension_numbers = #tpu.dot_dimension_numbers<[1], [1], [0], [0], [0, 0, 1, 0], [], []>} : vector<10x16xbf16>, vector<10x16xbf16>, vector<10x10xf32> -> vector<10x10xf32>
    %182 = arith.addf %181, %91 : vector<10x10xf32>
    %cst_71 = arith.constant dense<0xFF800000> : vector<10xf32>
    %183 = vector.multi_reduction <maximumf>, %182, %cst_71 [1] : vector<10x10xf32> to vector<10xf32>
    %184 = vector.shape_cast %183 : vector<10xf32> to vector<10x1xf32>
    %185 = vector.broadcast %184 : vector<10x1xf32> to vector<10x10xf32>
    %186 = arith.subf %182, %185 : vector<10x10xf32>
    %187 = math.exp %186 : vector<10x10xf32>
    %cst_72 = arith.constant dense<0.000000e+00> : vector<10xf32>
    %188 = vector.multi_reduction <add>, %187, %cst_72 [1] : vector<10x10xf32> to vector<10xf32>
    %189 = vector.shape_cast %188 : vector<10xf32> to vector<10x1xf32>
    %190 = vector.broadcast %189 : vector<10x1xf32> to vector<10x10xf32>
    %191 = arith.divf %187, %190 : vector<10x10xf32>
    %192 = arith.truncf %191 : vector<10x10xf32> to vector<10x10xbf16>
    %193 = arith.truncf %178 : vector<10x16xf32> to vector<10x16xbf16>
    %cst_73 = arith.constant dense<0.000000e+00> : vector<10x16xf32>
    %194 = tpu.matmul %192, %193, %cst_73 {dimension_numbers = #tpu.dot_dimension_numbers<[1], [0], [0], [1], [0, 0, 1, 1], [], []>} : vector<10x10xbf16>, vector<10x16xbf16>, vector<10x16xf32> -> vector<10x16xf32>
    %c0_74 = arith.constant 0 : index
    %c48 = arith.constant 48 : index
    %195 = vector.load %arg17[%c0_74, %c48] : memref<10x64xf32, #tpu.memory_space<vmem>>, vector<10x16xf32>
    tpu.vector_store %arg17[%c0_74, %c48], %194 {strides = array<i32>} : memref<10x64xf32, #tpu.memory_space<vmem>>, vector<10x16xf32>,
    %c0_75 = arith.constant 0 : index
    %c0_76 = arith.constant 0 : index
    %196 = vector.load %arg17[%c0_75, %c0_76] : memref<10x64xf32, #tpu.memory_space<vmem>>, vector<10x64xf32>
    %c0_77 = arith.constant 0 : index
    %c0_78 = arith.constant 0 : index
    %c0_79 = arith.constant 0 : index
    %197 = vector.load %arg9[%c0_77, %c0_78, %c0_79] : memref<2x64x48xbf16, #tpu.memory_space<vmem>>, vector<1x64x48xbf16>
    %198 = vector.shape_cast %197 : vector<1x64x48xbf16> to vector<64x48xbf16>
    %199 = arith.truncf %196 : vector<10x64xf32> to vector<10x64xbf16>
    %cst_80 = arith.constant dense<0.000000e+00> : vector<10x48xf32>
    %200 = tpu.matmul %199, %198, %cst_80 {dimension_numbers = #tpu.dot_dimension_numbers<[1], [0], [0], [1], [0, 0, 1, 1], [], []>} : vector<10x64xbf16>, vector<64x48xbf16>, vector<10x48xf32> -> vector<10x48xf32>
    %201 = arith.addf %92, %200 : vector<10x48xf32>
    %202 = vector.broadcast %94 : vector<1x48xf32> to vector<10x48xf32>
    %203 = arith.addf %201, %202 : vector<10x48xf32>
    %204 = arith.mulf %203, %203 : vector<10x48xf32>
    %cst_81 = arith.constant dense<0.000000e+00> : vector<10xf32>
    %205 = vector.multi_reduction <add>, %204, %cst_81 [1] : vector<10x48xf32> to vector<10xf32>
    %206 = vector.shape_cast %205 : vector<10xf32> to vector<10x1xf32>
    %cst_82 = arith.constant 4.800000e+01 : f32
    %207 = vector.broadcast %cst_82 : f32 to vector<10x1xf32>
    %208 = arith.divf %206, %207 : vector<10x1xf32>
    %cst_83 = arith.constant 9.99999997E-7 : f32
    %209 = vector.broadcast %cst_83 : f32 to vector<10x1xf32>
    %210 = arith.addf %208, %209 : vector<10x1xf32>
    %211 = math.rsqrt %210 : vector<10x1xf32>
    %212 = vector.broadcast %211 : vector<10x1xf32> to vector<10x48xf32>
    %213 = arith.mulf %203, %212 : vector<10x48xf32>
    %214 = vector.broadcast %95 : vector<1x48xf32> to vector<10x48xf32>
    %215 = arith.mulf %213, %214 : vector<10x48xf32>
    %c0_84 = arith.constant 0 : index
    %c0_85 = arith.constant 0 : index
    %c0_86 = arith.constant 0 : index
    %216 = vector.load %arg10[%c0_84, %c0_85, %c0_86] : memref<2x48x192xbf16, #tpu.memory_space<vmem>>, vector<1x48x192xbf16>
    %217 = vector.shape_cast %216 : vector<1x48x192xbf16> to vector<48x192xbf16>
    %218 = arith.truncf %215 : vector<10x48xf32> to vector<10x48xbf16>
    %cst_87 = arith.constant dense<0.000000e+00> : vector<10x192xf32>
    %219 = tpu.matmul %218, %217, %cst_87 {dimension_numbers = #tpu.dot_dimension_numbers<[1], [0], [0], [1], [0, 0, 1, 1], [], []>} : vector<10x48xbf16>, vector<48x192xbf16>, vector<10x192xf32> -> vector<10x192xf32>
    %c0_88 = arith.constant 0 : index
    %c0_89 = arith.constant 0 : index
    %220 = vector.load %arg11[%c0_88, %c0_89] : memref<2x192xf32, #tpu.memory_space<vmem>>, vector<1x192xf32>
    %221 = vector.broadcast %220 : vector<1x192xf32> to vector<10x192xf32>
    %222 = arith.addf %219, %221 : vector<10x192xf32>
    %223 = arith.mulf %222, %222 : vector<10x192xf32>
    %224 = arith.mulf %222, %223 : vector<10x192xf32>
    %cst_90 = arith.constant 4.471500e-02 : f32
    %225 = vector.broadcast %cst_90 : f32 to vector<10x192xf32>
    %226 = arith.mulf %225, %224 : vector<10x192xf32>
    %227 = arith.addf %222, %226 : vector<10x192xf32>
    %cst_91 = arith.constant 0.797884583 : f32
    %228 = vector.broadcast %cst_91 : f32 to vector<10x192xf32>
    %229 = arith.mulf %228, %227 : vector<10x192xf32>
    %230 = math.tanh %229 : vector<10x192xf32>
    %cst_92 = arith.constant 1.000000e+00 : f32
    %231 = vector.broadcast %cst_92 : f32 to vector<10x192xf32>
    %232 = arith.addf %231, %230 : vector<10x192xf32>
    %cst_93 = arith.constant 5.000000e-01 : f32
    %233 = vector.broadcast %cst_93 : f32 to vector<10x192xf32>
    %234 = arith.mulf %233, %232 : vector<10x192xf32>
    %235 = arith.mulf %222, %234 : vector<10x192xf32>
    %c0_94 = arith.constant 0 : index
    %c0_95 = arith.constant 0 : index
    %c0_96 = arith.constant 0 : index
    %236 = vector.load %arg12[%c0_94, %c0_95, %c0_96] : memref<2x192x48xbf16, #tpu.memory_space<vmem>>, vector<1x192x48xbf16>
    %237 = vector.shape_cast %236 : vector<1x192x48xbf16> to vector<192x48xbf16>
    %238 = arith.truncf %235 : vector<10x192xf32> to vector<10x192xbf16>
    %cst_97 = arith.constant dense<0.000000e+00> : vector<10x48xf32>
    %239 = tpu.matmul %238, %237, %cst_97 {dimension_numbers = #tpu.dot_dimension_numbers<[1], [0], [0], [1], [0, 0, 1, 1], [], []>} : vector<10x192xbf16>, vector<192x48xbf16>, vector<10x48xf32> -> vector<10x48xf32>
    %240 = vector.broadcast %96 : vector<1x48xf32> to vector<10x48xf32>
    %241 = arith.addf %239, %240 : vector<10x48xf32>
    %242 = arith.addf %203, %241 : vector<10x48xf32>
    %c4 = arith.constant 4 : index
    %c0_98 = arith.constant 0 : index
    %243 = vector.load %arg6[%c4, %c0_98] : memref<9x48xf32, #tpu.memory_space<vmem>>, vector<1x48xf32>
    %c5_99 = arith.constant 5 : index
    %c0_100 = arith.constant 0 : index
    %244 = vector.load %arg6[%c5_99, %c0_100] : memref<9x48xf32, #tpu.memory_space<vmem>>, vector<1x48xf32>
    %c6_101 = arith.constant 6 : index
    %c0_102 = arith.constant 0 : index
    %245 = vector.load %arg6[%c6_101, %c0_102] : memref<9x48xf32, #tpu.memory_space<vmem>>, vector<1x48xf32>
    %c7 = arith.constant 7 : index
    %c0_103 = arith.constant 0 : index
    %246 = vector.load %arg6[%c7, %c0_103] : memref<9x48xf32, #tpu.memory_space<vmem>>, vector<1x48xf32>
    %247 = arith.mulf %242, %242 : vector<10x48xf32>
    %cst_104 = arith.constant dense<0.000000e+00> : vector<10xf32>
    %248 = vector.multi_reduction <add>, %247, %cst_104 [1] : vector<10x48xf32> to vector<10xf32>
    %249 = vector.shape_cast %248 : vector<10xf32> to vector<10x1xf32>
    %cst_105 = arith.constant 4.800000e+01 : f32
    %250 = vector.broadcast %cst_105 : f32 to vector<10x1xf32>
    %251 = arith.divf %249, %250 : vector<10x1xf32>
    %cst_106 = arith.constant 9.99999997E-7 : f32
    %252 = vector.broadcast %cst_106 : f32 to vector<10x1xf32>
    %253 = arith.addf %251, %252 : vector<10x1xf32>
    %254 = math.rsqrt %253 : vector<10x1xf32>
    %255 = vector.broadcast %254 : vector<10x1xf32> to vector<10x48xf32>
    %256 = arith.mulf %242, %255 : vector<10x48xf32>
    %257 = vector.broadcast %243 : vector<1x48xf32> to vector<10x48xf32>
    %258 = arith.mulf %256, %257 : vector<10x48xf32>
    %c1_107 = arith.constant 1 : index
    %c0_108 = arith.constant 0 : index
    %c0_109 = arith.constant 0 : index
    %259 = vector.load %arg7[%c1_107, %c0_108, %c0_109] : memref<2x48x192xbf16, #tpu.memory_space<vmem>>, vector<1x48x192xbf16>
    %260 = vector.shape_cast %259 : vector<1x48x192xbf16> to vector<48x192xbf16>
    %261 = arith.truncf %258 : vector<10x48xf32> to vector<10x48xbf16>
    %cst_110 = arith.constant dense<0.000000e+00> : vector<10x192xf32>
    %262 = tpu.matmul %261, %260, %cst_110 {dimension_numbers = #tpu.dot_dimension_numbers<[1], [0], [0], [1], [0, 0, 1, 1], [], []>} : vector<10x48xbf16>, vector<48x192xbf16>, vector<10x192xf32> -> vector<10x192xf32>
    %c1_111 = arith.constant 1 : index
    %c0_112 = arith.constant 0 : index
    %263 = vector.load %arg8[%c1_111, %c0_112] : memref<2x192xf32, #tpu.memory_space<vmem>>, vector<1x192xf32>
    %264 = vector.broadcast %263 : vector<1x192xf32> to vector<10x192xf32>
    %265 = arith.addf %262, %264 : vector<10x192xf32>
    %266 = vector.extract_strided_slice %265 {offsets = [0, 0], sizes = [10, 16], strides = [1, 1]} : vector<10x192xf32> to vector<10x16xf32>
    %267 = vector.extract_strided_slice %265 {offsets = [0, 64], sizes = [10, 16], strides = [1, 1]} : vector<10x192xf32> to vector<10x16xf32>
    %268 = vector.extract_strided_slice %265 {offsets = [0, 128], sizes = [10, 16], strides = [1, 1]} : vector<10x192xf32> to vector<10x16xf32>
    %269 = arith.truncf %266 : vector<10x16xf32> to vector<10x16xbf16>
    %270 = arith.truncf %267 : vector<10x16xf32> to vector<10x16xbf16>
    %cst_113 = arith.constant dense<0.000000e+00> : vector<10x10xf32>
    %271 = tpu.matmul %269, %270, %cst_113 {dimension_numbers = #tpu.dot_dimension_numbers<[1], [1], [0], [0], [0, 0, 1, 0], [], []>} : vector<10x16xbf16>, vector<10x16xbf16>, vector<10x10xf32> -> vector<10x10xf32>
    %272 = arith.addf %271, %91 : vector<10x10xf32>
    %cst_114 = arith.constant dense<0xFF800000> : vector<10xf32>
    %273 = vector.multi_reduction <maximumf>, %272, %cst_114 [1] : vector<10x10xf32> to vector<10xf32>
    %274 = vector.shape_cast %273 : vector<10xf32> to vector<10x1xf32>
    %275 = vector.broadcast %274 : vector<10x1xf32> to vector<10x10xf32>
    %276 = arith.subf %272, %275 : vector<10x10xf32>
    %277 = math.exp %276 : vector<10x10xf32>
    %cst_115 = arith.constant dense<0.000000e+00> : vector<10xf32>
    %278 = vector.multi_reduction <add>, %277, %cst_115 [1] : vector<10x10xf32> to vector<10xf32>
    %279 = vector.shape_cast %278 : vector<10xf32> to vector<10x1xf32>
    %280 = vector.broadcast %279 : vector<10x1xf32> to vector<10x10xf32>
    %281 = arith.divf %277, %280 : vector<10x10xf32>
    %282 = arith.truncf %281 : vector<10x10xf32> to vector<10x10xbf16>
    %283 = arith.truncf %268 : vector<10x16xf32> to vector<10x16xbf16>
    %cst_116 = arith.constant dense<0.000000e+00> : vector<10x16xf32>
    %284 = tpu.matmul %282, %283, %cst_116 {dimension_numbers = #tpu.dot_dimension_numbers<[1], [0], [0], [1], [0, 0, 1, 1], [], []>} : vector<10x10xbf16>, vector<10x16xbf16>, vector<10x16xf32> -> vector<10x16xf32>
    %c0_117 = arith.constant 0 : index
    %c0_118 = arith.constant 0 : index
    %285 = vector.load %arg17[%c0_117, %c0_118] : memref<10x64xf32, #tpu.memory_space<vmem>>, vector<10x16xf32>
    tpu.vector_store %arg17[%c0_117, %c0_118], %284 {strides = array<i32>} : memref<10x64xf32, #tpu.memory_space<vmem>>, vector<10x16xf32>,
    %286 = vector.extract_strided_slice %265 {offsets = [0, 16], sizes = [10, 16], strides = [1, 1]} : vector<10x192xf32> to vector<10x16xf32>
    %287 = vector.extract_strided_slice %265 {offsets = [0, 80], sizes = [10, 16], strides = [1, 1]} : vector<10x192xf32> to vector<10x16xf32>
    %288 = vector.extract_strided_slice %265 {offsets = [0, 144], sizes = [10, 16], strides = [1, 1]} : vector<10x192xf32> to vector<10x16xf32>
    %289 = arith.truncf %286 : vector<10x16xf32> to vector<10x16xbf16>
    %290 = arith.truncf %287 : vector<10x16xf32> to vector<10x16xbf16>
    %cst_119 = arith.constant dense<0.000000e+00> : vector<10x10xf32>
    %291 = tpu.matmul %289, %290, %cst_119 {dimension_numbers = #tpu.dot_dimension_numbers<[1], [1], [0], [0], [0, 0, 1, 0], [], []>} : vector<10x16xbf16>, vector<10x16xbf16>, vector<10x10xf32> -> vector<10x10xf32>
    %292 = arith.addf %291, %91 : vector<10x10xf32>
    %cst_120 = arith.constant dense<0xFF800000> : vector<10xf32>
    %293 = vector.multi_reduction <maximumf>, %292, %cst_120 [1] : vector<10x10xf32> to vector<10xf32>
    %294 = vector.shape_cast %293 : vector<10xf32> to vector<10x1xf32>
    %295 = vector.broadcast %294 : vector<10x1xf32> to vector<10x10xf32>
    %296 = arith.subf %292, %295 : vector<10x10xf32>
    %297 = math.exp %296 : vector<10x10xf32>
    %cst_121 = arith.constant dense<0.000000e+00> : vector<10xf32>
    %298 = vector.multi_reduction <add>, %297, %cst_121 [1] : vector<10x10xf32> to vector<10xf32>
    %299 = vector.shape_cast %298 : vector<10xf32> to vector<10x1xf32>
    %300 = vector.broadcast %299 : vector<10x1xf32> to vector<10x10xf32>
    %301 = arith.divf %297, %300 : vector<10x10xf32>
    %302 = arith.truncf %301 : vector<10x10xf32> to vector<10x10xbf16>
    %303 = arith.truncf %288 : vector<10x16xf32> to vector<10x16xbf16>
    %cst_122 = arith.constant dense<0.000000e+00> : vector<10x16xf32>
    %304 = tpu.matmul %302, %303, %cst_122 {dimension_numbers = #tpu.dot_dimension_numbers<[1], [0], [0], [1], [0, 0, 1, 1], [], []>} : vector<10x10xbf16>, vector<10x16xbf16>, vector<10x16xf32> -> vector<10x16xf32>
    %c0_123 = arith.constant 0 : index
    %c16_124 = arith.constant 16 : index
    %305 = vector.load %arg17[%c0_123, %c16_124] : memref<10x64xf32, #tpu.memory_space<vmem>>, vector<10x16xf32>
    tpu.vector_store %arg17[%c0_123, %c16_124], %304 {strides = array<i32>} : memref<10x64xf32, #tpu.memory_space<vmem>>, vector<10x16xf32>,
    %306 = vector.extract_strided_slice %265 {offsets = [0, 32], sizes = [10, 16], strides = [1, 1]} : vector<10x192xf32> to vector<10x16xf32>
    %307 = vector.extract_strided_slice %265 {offsets = [0, 96], sizes = [10, 16], strides = [1, 1]} : vector<10x192xf32> to vector<10x16xf32>
    %308 = vector.extract_strided_slice %265 {offsets = [0, 160], sizes = [10, 16], strides = [1, 1]} : vector<10x192xf32> to vector<10x16xf32>
    %309 = arith.truncf %306 : vector<10x16xf32> to vector<10x16xbf16>
    %310 = arith.truncf %307 : vector<10x16xf32> to vector<10x16xbf16>
    %cst_125 = arith.constant dense<0.000000e+00> : vector<10x10xf32>
    %311 = tpu.matmul %309, %310, %cst_125 {dimension_numbers = #tpu.dot_dimension_numbers<[1], [1], [0], [0], [0, 0, 1, 0], [], []>} : vector<10x16xbf16>, vector<10x16xbf16>, vector<10x10xf32> -> vector<10x10xf32>
    %312 = arith.addf %311, %91 : vector<10x10xf32>
    %cst_126 = arith.constant dense<0xFF800000> : vector<10xf32>
    %313 = vector.multi_reduction <maximumf>, %312, %cst_126 [1] : vector<10x10xf32> to vector<10xf32>
    %314 = vector.shape_cast %313 : vector<10xf32> to vector<10x1xf32>
    %315 = vector.broadcast %314 : vector<10x1xf32> to vector<10x10xf32>
    %316 = arith.subf %312, %315 : vector<10x10xf32>
    %317 = math.exp %316 : vector<10x10xf32>
    %cst_127 = arith.constant dense<0.000000e+00> : vector<10xf32>
    %318 = vector.multi_reduction <add>, %317, %cst_127 [1] : vector<10x10xf32> to vector<10xf32>
    %319 = vector.shape_cast %318 : vector<10xf32> to vector<10x1xf32>
    %320 = vector.broadcast %319 : vector<10x1xf32> to vector<10x10xf32>
    %321 = arith.divf %317, %320 : vector<10x10xf32>
    %322 = arith.truncf %321 : vector<10x10xf32> to vector<10x10xbf16>
    %323 = arith.truncf %308 : vector<10x16xf32> to vector<10x16xbf16>
    %cst_128 = arith.constant dense<0.000000e+00> : vector<10x16xf32>
    %324 = tpu.matmul %322, %323, %cst_128 {dimension_numbers = #tpu.dot_dimension_numbers<[1], [0], [0], [1], [0, 0, 1, 1], [], []>} : vector<10x10xbf16>, vector<10x16xbf16>, vector<10x16xf32> -> vector<10x16xf32>
    %c0_129 = arith.constant 0 : index
    %c32_130 = arith.constant 32 : index
    %325 = vector.load %arg17[%c0_129, %c32_130] : memref<10x64xf32, #tpu.memory_space<vmem>>, vector<10x16xf32>
    tpu.vector_store %arg17[%c0_129, %c32_130], %324 {strides = array<i32>} : memref<10x64xf32, #tpu.memory_space<vmem>>, vector<10x16xf32>,
    %326 = vector.extract_strided_slice %265 {offsets = [0, 48], sizes = [10, 16], strides = [1, 1]} : vector<10x192xf32> to vector<10x16xf32>
    %327 = vector.extract_strided_slice %265 {offsets = [0, 112], sizes = [10, 16], strides = [1, 1]} : vector<10x192xf32> to vector<10x16xf32>
    %328 = vector.extract_strided_slice %265 {offsets = [0, 176], sizes = [10, 16], strides = [1, 1]} : vector<10x192xf32> to vector<10x16xf32>
    %329 = arith.truncf %326 : vector<10x16xf32> to vector<10x16xbf16>
    %330 = arith.truncf %327 : vector<10x16xf32> to vector<10x16xbf16>
    %cst_131 = arith.constant dense<0.000000e+00> : vector<10x10xf32>
    %331 = tpu.matmul %329, %330, %cst_131 {dimension_numbers = #tpu.dot_dimension_numbers<[1], [1], [0], [0], [0, 0, 1, 0], [], []>} : vector<10x16xbf16>, vector<10x16xbf16>, vector<10x10xf32> -> vector<10x10xf32>
    %332 = arith.addf %331, %91 : vector<10x10xf32>
    %cst_132 = arith.constant dense<0xFF800000> : vector<10xf32>
    %333 = vector.multi_reduction <maximumf>, %332, %cst_132 [1] : vector<10x10xf32> to vector<10xf32>
    %334 = vector.shape_cast %333 : vector<10xf32> to vector<10x1xf32>
    %335 = vector.broadcast %334 : vector<10x1xf32> to vector<10x10xf32>
    %336 = arith.subf %332, %335 : vector<10x10xf32>
    %337 = math.exp %336 : vector<10x10xf32>
    %cst_133 = arith.constant dense<0.000000e+00> : vector<10xf32>
    %338 = vector.multi_reduction <add>, %337, %cst_133 [1] : vector<10x10xf32> to vector<10xf32>
    %339 = vector.shape_cast %338 : vector<10xf32> to vector<10x1xf32>
    %340 = vector.broadcast %339 : vector<10x1xf32> to vector<10x10xf32>
    %341 = arith.divf %337, %340 : vector<10x10xf32>
    %342 = arith.truncf %341 : vector<10x10xf32> to vector<10x10xbf16>
    %343 = arith.truncf %328 : vector<10x16xf32> to vector<10x16xbf16>
    %cst_134 = arith.constant dense<0.000000e+00> : vector<10x16xf32>
    %344 = tpu.matmul %342, %343, %cst_134 {dimension_numbers = #tpu.dot_dimension_numbers<[1], [0], [0], [1], [0, 0, 1, 1], [], []>} : vector<10x10xbf16>, vector<10x16xbf16>, vector<10x16xf32> -> vector<10x16xf32>
    %c0_135 = arith.constant 0 : index
    %c48_136 = arith.constant 48 : index
    %345 = vector.load %arg17[%c0_135, %c48_136] : memref<10x64xf32, #tpu.memory_space<vmem>>, vector<10x16xf32>
    tpu.vector_store %arg17[%c0_135, %c48_136], %344 {strides = array<i32>} : memref<10x64xf32, #tpu.memory_space<vmem>>, vector<10x16xf32>,
    %c0_137 = arith.constant 0 : index
    %c0_138 = arith.constant 0 : index
    %346 = vector.load %arg17[%c0_137, %c0_138] : memref<10x64xf32, #tpu.memory_space<vmem>>, vector<10x64xf32>
    %c1_139 = arith.constant 1 : index
    %c0_140 = arith.constant 0 : index
    %c0_141 = arith.constant 0 : index
    %347 = vector.load %arg9[%c1_139, %c0_140, %c0_141] : memref<2x64x48xbf16, #tpu.memory_space<vmem>>, vector<1x64x48xbf16>
    %348 = vector.shape_cast %347 : vector<1x64x48xbf16> to vector<64x48xbf16>
    %349 = arith.truncf %346 : vector<10x64xf32> to vector<10x64xbf16>
    %cst_142 = arith.constant dense<0.000000e+00> : vector<10x48xf32>
    %350 = tpu.matmul %349, %348, %cst_142 {dimension_numbers = #tpu.dot_dimension_numbers<[1], [0], [0], [1], [0, 0, 1, 1], [], []>} : vector<10x64xbf16>, vector<64x48xbf16>, vector<10x48xf32> -> vector<10x48xf32>
    %351 = arith.addf %242, %350 : vector<10x48xf32>
    %352 = vector.broadcast %244 : vector<1x48xf32> to vector<10x48xf32>
    %353 = arith.addf %351, %352 : vector<10x48xf32>
    %354 = arith.mulf %353, %353 : vector<10x48xf32>
    %cst_143 = arith.constant dense<0.000000e+00> : vector<10xf32>
    %355 = vector.multi_reduction <add>, %354, %cst_143 [1] : vector<10x48xf32> to vector<10xf32>
    %356 = vector.shape_cast %355 : vector<10xf32> to vector<10x1xf32>
    %cst_144 = arith.constant 4.800000e+01 : f32
    %357 = vector.broadcast %cst_144 : f32 to vector<10x1xf32>
    %358 = arith.divf %356, %357 : vector<10x1xf32>
    %cst_145 = arith.constant 9.99999997E-7 : f32
    %359 = vector.broadcast %cst_145 : f32 to vector<10x1xf32>
    %360 = arith.addf %358, %359 : vector<10x1xf32>
    %361 = math.rsqrt %360 : vector<10x1xf32>
    %362 = vector.broadcast %361 : vector<10x1xf32> to vector<10x48xf32>
    %363 = arith.mulf %353, %362 : vector<10x48xf32>
    %364 = vector.broadcast %245 : vector<1x48xf32> to vector<10x48xf32>
    %365 = arith.mulf %363, %364 : vector<10x48xf32>
    %c1_146 = arith.constant 1 : index
    %c0_147 = arith.constant 0 : index
    %c0_148 = arith.constant 0 : index
    %366 = vector.load %arg10[%c1_146, %c0_147, %c0_148] : memref<2x48x192xbf16, #tpu.memory_space<vmem>>, vector<1x48x192xbf16>
    %367 = vector.shape_cast %366 : vector<1x48x192xbf16> to vector<48x192xbf16>
    %368 = arith.truncf %365 : vector<10x48xf32> to vector<10x48xbf16>
    %cst_149 = arith.constant dense<0.000000e+00> : vector<10x192xf32>
    %369 = tpu.matmul %368, %367, %cst_149 {dimension_numbers = #tpu.dot_dimension_numbers<[1], [0], [0], [1], [0, 0, 1, 1], [], []>} : vector<10x48xbf16>, vector<48x192xbf16>, vector<10x192xf32> -> vector<10x192xf32>
    %c1_150 = arith.constant 1 : index
    %c0_151 = arith.constant 0 : index
    %370 = vector.load %arg11[%c1_150, %c0_151] : memref<2x192xf32, #tpu.memory_space<vmem>>, vector<1x192xf32>
    %371 = vector.broadcast %370 : vector<1x192xf32> to vector<10x192xf32>
    %372 = arith.addf %369, %371 : vector<10x192xf32>
    %373 = arith.mulf %372, %372 : vector<10x192xf32>
    %374 = arith.mulf %372, %373 : vector<10x192xf32>
    %cst_152 = arith.constant 4.471500e-02 : f32
    %375 = vector.broadcast %cst_152 : f32 to vector<10x192xf32>
    %376 = arith.mulf %375, %374 : vector<10x192xf32>
    %377 = arith.addf %372, %376 : vector<10x192xf32>
    %cst_153 = arith.constant 0.797884583 : f32
    %378 = vector.broadcast %cst_153 : f32 to vector<10x192xf32>
    %379 = arith.mulf %378, %377 : vector<10x192xf32>
    %380 = math.tanh %379 : vector<10x192xf32>
    %cst_154 = arith.constant 1.000000e+00 : f32
    %381 = vector.broadcast %cst_154 : f32 to vector<10x192xf32>
    %382 = arith.addf %381, %380 : vector<10x192xf32>
    %cst_155 = arith.constant 5.000000e-01 : f32
    %383 = vector.broadcast %cst_155 : f32 to vector<10x192xf32>
    %384 = arith.mulf %383, %382 : vector<10x192xf32>
    %385 = arith.mulf %372, %384 : vector<10x192xf32>
    %c1_156 = arith.constant 1 : index
    %c0_157 = arith.constant 0 : index
    %c0_158 = arith.constant 0 : index
    %386 = vector.load %arg12[%c1_156, %c0_157, %c0_158] : memref<2x192x48xbf16, #tpu.memory_space<vmem>>, vector<1x192x48xbf16>
    %387 = vector.shape_cast %386 : vector<1x192x48xbf16> to vector<192x48xbf16>
    %388 = arith.truncf %385 : vector<10x192xf32> to vector<10x192xbf16>
    %cst_159 = arith.constant dense<0.000000e+00> : vector<10x48xf32>
    %389 = tpu.matmul %388, %387, %cst_159 {dimension_numbers = #tpu.dot_dimension_numbers<[1], [0], [0], [1], [0, 0, 1, 1], [], []>} : vector<10x192xbf16>, vector<192x48xbf16>, vector<10x48xf32> -> vector<10x48xf32>
    %390 = vector.broadcast %246 : vector<1x48xf32> to vector<10x48xf32>
    %391 = arith.addf %389, %390 : vector<10x48xf32>
    %392 = arith.addf %353, %391 : vector<10x48xf32>
    %c8 = arith.constant 8 : index
    %c0_160 = arith.constant 0 : index
    %393 = vector.load %arg6[%c8, %c0_160] : memref<9x48xf32, #tpu.memory_space<vmem>>, vector<1x48xf32>
    %394 = arith.mulf %392, %392 : vector<10x48xf32>
    %cst_161 = arith.constant dense<0.000000e+00> : vector<10xf32>
    %395 = vector.multi_reduction <add>, %394, %cst_161 [1] : vector<10x48xf32> to vector<10xf32>
    %396 = vector.shape_cast %395 : vector<10xf32> to vector<10x1xf32>
    %cst_162 = arith.constant 4.800000e+01 : f32
    %397 = vector.broadcast %cst_162 : f32 to vector<10x1xf32>
    %398 = arith.divf %396, %397 : vector<10x1xf32>
    %cst_163 = arith.constant 9.99999997E-7 : f32
    %399 = vector.broadcast %cst_163 : f32 to vector<10x1xf32>
    %400 = arith.addf %398, %399 : vector<10x1xf32>
    %401 = math.rsqrt %400 : vector<10x1xf32>
    %402 = vector.broadcast %401 : vector<10x1xf32> to vector<10x48xf32>
    %403 = arith.mulf %392, %402 : vector<10x48xf32>
    %404 = vector.broadcast %393 : vector<1x48xf32> to vector<10x48xf32>
    %405 = arith.mulf %403, %404 : vector<10x48xf32>
    %c0_164 = arith.constant 0 : index
    %c0_165 = arith.constant 0 : index
    %406 = vector.load %arg13[%c0_164, %c0_165] : memref<48x128xbf16, #tpu.memory_space<vmem>>, vector<48x128xbf16>
    %407 = arith.truncf %405 : vector<10x48xf32> to vector<10x48xbf16>
    %cst_166 = arith.constant dense<0.000000e+00> : vector<10x128xf32>
    %408 = tpu.matmul %407, %406, %cst_166 {dimension_numbers = #tpu.dot_dimension_numbers<[1], [0], [0], [1], [0, 0, 1, 1], [], []>} : vector<10x48xbf16>, vector<48x128xbf16>, vector<10x128xf32> -> vector<10x128xf32>
    %c0_167 = arith.constant 0 : index
    %c0_168 = arith.constant 0 : index
    %409 = vector.load %arg14[%c0_167, %c0_168] : memref<1x128xf32, #tpu.memory_space<vmem>>, vector<1x128xf32>
    %410 = vector.broadcast %409 : vector<1x128xf32> to vector<10x128xf32>
    %411 = arith.addf %408, %410 : vector<10x128xf32>
    %412 = vector.extract_strided_slice %411 {offsets = [0, 0], sizes = [4, 128], strides = [1, 1]} : vector<10x128xf32> to vector<4x128xf32>
    %c0_169 = arith.constant 0 : index
    %c0_170 = arith.constant 0 : index
    %413 = vector.load %arg15[%c0_169, %c0_170] : memref<8x128xf32, #tpu.memory_space<vmem>>, vector<4x128xf32>
    tpu.vector_store %arg15[%c0_169, %c0_170], %412 {strides = array<i32>} : memref<8x128xf32, #tpu.memory_space<vmem>>, vector<4x128xf32>,
    %414 = vector.extract_strided_slice %411 {offsets = [5, 0], sizes = [4, 128], strides = [1, 1]} : vector<10x128xf32> to vector<4x128xf32>
    %c4_171 = arith.constant 4 : index
    %c0_172 = arith.constant 0 : index
    %415 = vector.load %arg15[%c4_171, %c0_172] : memref<8x128xf32, #tpu.memory_space<vmem>>, vector<4x128xf32>
    tpu.vector_store %arg15[%c4_171, %c0_172], %414 {strides = array<i32>} : memref<8x128xf32, #tpu.memory_space<vmem>>, vector<4x128xf32>,
    return
  }
  func.func @transform_0(%arg0: i32) -> (i32, i32) {
    %c0_i32 = arith.constant 0 : i32
    %c0_i32_0 = arith.constant 0 : i32
    %c0_i32_1 = arith.constant 0 : i32
    return %c0_i32, %c0_i32_0 : i32, i32
  }
  func.func @transform_1(%arg0: i32) -> (i32, i32) {
    %c0_i32 = arith.constant 0 : i32
    %c0_i32_0 = arith.constant 0 : i32
    %c0_i32_1 = arith.constant 0 : i32
    return %c0_i32, %c0_i32_0 : i32, i32
  }
  func.func @transform_2(%arg0: i32) -> (i32, i32) {
    %c0_i32 = arith.constant 0 : i32
    %c0_i32_0 = arith.constant 0 : i32
    %c0_i32_1 = arith.constant 0 : i32
    return %c0_i32, %c0_i32_0 : i32, i32
  }
  func.func @transform_3(%arg0: i32) -> (i32, i32) {
    %c0_i32 = arith.constant 0 : i32
    %c0_i32_0 = arith.constant 0 : i32
    %c0_i32_1 = arith.constant 0 : i32
    return %c0_i32, %c0_i32_0 : i32, i32
  }
  func.func @transform_4(%arg0: i32) -> (i32, i32) {
    %c0_i32 = arith.constant 0 : i32
    %c0_i32_0 = arith.constant 0 : i32
    %c0_i32_1 = arith.constant 0 : i32
    return %c0_i32, %c0_i32_0 : i32, i32
  }
  func.func @transform_5(%arg0: i32) -> (i32, i32) {
    %c0_i32 = arith.constant 0 : i32
    %c0_i32_0 = arith.constant 0 : i32
    %c0_i32_1 = arith.constant 0 : i32
    return %c0_i32, %c0_i32_0 : i32, i32
  }
  func.func @transform_6(%arg0: i32) -> (i32, i32, i32) {
    %c0_i32 = arith.constant 0 : i32
    %c0_i32_0 = arith.constant 0 : i32
    %c0_i32_1 = arith.constant 0 : i32
    %c0_i32_2 = arith.constant 0 : i32
    return %c0_i32, %c0_i32_0, %c0_i32_1 : i32, i32, i32
  }
  func.func @transform_7(%arg0: i32) -> (i32, i32) {
    %c0_i32 = arith.constant 0 : i32
    %c0_i32_0 = arith.constant 0 : i32
    %c0_i32_1 = arith.constant 0 : i32
    return %c0_i32, %c0_i32_0 : i32, i32
  }
  func.func @transform_8(%arg0: i32) -> (i32, i32, i32) {
    %c0_i32 = arith.constant 0 : i32
    %c0_i32_0 = arith.constant 0 : i32
    %c0_i32_1 = arith.constant 0 : i32
    %c0_i32_2 = arith.constant 0 : i32
    return %c0_i32, %c0_i32_0, %c0_i32_1 : i32, i32, i32
  }
  func.func @transform_9(%arg0: i32) -> (i32, i32, i32) {
    %c0_i32 = arith.constant 0 : i32
    %c0_i32_0 = arith.constant 0 : i32
    %c0_i32_1 = arith.constant 0 : i32
    %c0_i32_2 = arith.constant 0 : i32
    return %c0_i32, %c0_i32_0, %c0_i32_1 : i32, i32, i32
  }
  func.func @transform_10(%arg0: i32) -> (i32, i32) {
    %c0_i32 = arith.constant 0 : i32
    %c0_i32_0 = arith.constant 0 : i32
    %c0_i32_1 = arith.constant 0 : i32
    return %c0_i32, %c0_i32_0 : i32, i32
  }
  func.func @transform_11(%arg0: i32) -> (i32, i32, i32) {
    %c0_i32 = arith.constant 0 : i32
    %c0_i32_0 = arith.constant 0 : i32
    %c0_i32_1 = arith.constant 0 : i32
    %c0_i32_2 = arith.constant 0 : i32
    return %c0_i32, %c0_i32_0, %c0_i32_1 : i32, i32, i32
  }
  func.func @transform_12(%arg0: i32) -> (i32, i32) {
    %c0_i32 = arith.constant 0 : i32
    %c0_i32_0 = arith.constant 0 : i32
    %c0_i32_1 = arith.constant 0 : i32
    return %c0_i32, %c0_i32_0 : i32, i32
  }
  func.func @transform_13(%arg0: i32) -> (i32, i32) {
    %c0_i32 = arith.constant 0 : i32
    %c0_i32_0 = arith.constant 0 : i32
    %c0_i32_1 = arith.constant 0 : i32
    return %c0_i32, %c0_i32_0 : i32, i32
  }
  func.func @transform_14(%arg0: i32) -> (i32, i32) {
    %c0_i32 = arith.constant 0 : i32
    %c0_i32_0 = arith.constant 0 : i32
    %c0_i32_1 = arith.constant 0 : i32
    return %c0_i32, %c0_i32_0 : i32, i32
  }
}

module attributes {stable_mosaic.version = 11 : i64} {
  func.func @_fine_kernel(%arg0: i32, %arg1: memref<16x32xf32, #tpu.memory_space<vmem>>, %arg2: memref<16x32xf32, #tpu.memory_space<vmem>>, %arg3: memref<1x32xf32, #tpu.memory_space<vmem>>, %arg4: memref<9x32xf32, #tpu.memory_space<vmem>>, %arg5: memref<2x32x192xbf16, #tpu.memory_space<vmem>>, %arg6: memref<2x192xf32, #tpu.memory_space<vmem>>, %arg7: memref<2x64x32xbf16, #tpu.memory_space<vmem>>, %arg8: memref<2x32x128xbf16, #tpu.memory_space<vmem>>, %arg9: memref<2x128xf32, #tpu.memory_space<vmem>>, %arg10: memref<2x128x32xbf16, #tpu.memory_space<vmem>>, %arg11: memref<32x256xbf16, #tpu.memory_space<vmem>>, %arg12: memref<1x256xf32, #tpu.memory_space<vmem>>, %arg13: memref<16x256xf32, #tpu.memory_space<vmem>>, %arg14: memref<20x32xf32, #tpu.memory_space<vmem>>, %arg15: memref<20x64xf32, #tpu.memory_space<vmem>>) attributes {dimension_semantics = [#tpu.dimension_semantics<parallel>], iteration_bounds = array<i64: 2>, scalar_prefetch = 0 : i64, scratch_operands = 2 : i64, tpu.core_type = #tpu.core_type<tc>, window_params = [{transform_indices = @transform_0, window_bounds = array<i64: 16, 32>}, {transform_indices = @transform_1, window_bounds = array<i64: 16, 32>}, {pipeline_mode = #tpu.pipeline_mode<synchronous>, transform_indices = @transform_2, window_bounds = array<i64: 1, 32>}, {pipeline_mode = #tpu.pipeline_mode<synchronous>, transform_indices = @transform_3, window_bounds = array<i64: 9, 32>}, {pipeline_mode = #tpu.pipeline_mode<synchronous>, transform_indices = @transform_4, window_bounds = array<i64: 2, 32, 192>}, {pipeline_mode = #tpu.pipeline_mode<synchronous>, transform_indices = @transform_5, window_bounds = array<i64: 2, 192>}, {pipeline_mode = #tpu.pipeline_mode<synchronous>, transform_indices = @transform_6, window_bounds = array<i64: 2, 64, 32>}, {pipeline_mode = #tpu.pipeline_mode<synchronous>, transform_indices = @transform_7, window_bounds = array<i64: 2, 32, 128>}, {pipeline_mode = #tpu.pipeline_mode<synchronous>, transform_indices = @transform_8, window_bounds = array<i64: 2, 128>}, {pipeline_mode = #tpu.pipeline_mode<synchronous>, transform_indices = @transform_9, window_bounds = array<i64: 2, 128, 32>}, {pipeline_mode = #tpu.pipeline_mode<synchronous>, transform_indices = @transform_10, window_bounds = array<i64: 32, 256>}, {pipeline_mode = #tpu.pipeline_mode<synchronous>, transform_indices = @transform_11, window_bounds = array<i64: 1, 256>}, {transform_indices = @transform_12, window_bounds = array<i64: 16, 256>}]} {
    %c0 = arith.constant 0 : index
    %c0_0 = arith.constant 0 : index
    %0 = vector.load %arg1[%c0, %c0_0] : memref<16x32xf32, #tpu.memory_space<vmem>>, vector<16x32xf32>
    %c0_1 = arith.constant 0 : index
    %c0_2 = arith.constant 0 : index
    %1 = vector.load %arg2[%c0_1, %c0_2] : memref<16x32xf32, #tpu.memory_space<vmem>>, vector<16x32xf32>
    %2 = arith.addf %0, %1 : vector<16x32xf32>
    %c0_3 = arith.constant 0 : index
    %c0_4 = arith.constant 0 : index
    %3 = vector.load %arg3[%c0_3, %c0_4] : memref<1x32xf32, #tpu.memory_space<vmem>>, vector<1x32xf32>
    %c0_5 = arith.constant 0 : index
    %c0_6 = arith.constant 0 : index
    %4 = vector.load %arg14[%c0_5, %c0_6] : memref<20x32xf32, #tpu.memory_space<vmem>>, vector<1x32xf32>
    tpu.vector_store %arg14[%c0_5, %c0_6], %3 {strides = array<i32>} : memref<20x32xf32, #tpu.memory_space<vmem>>, vector<1x32xf32>,
    %5 = vector.extract_strided_slice %2 {offsets = [0, 0], sizes = [4, 32], strides = [1, 1]} : vector<16x32xf32> to vector<4x32xf32>
    %c1 = arith.constant 1 : index
    %c0_7 = arith.constant 0 : index
    %6 = vector.load %arg14[%c1, %c0_7] : memref<20x32xf32, #tpu.memory_space<vmem>>, vector<4x32xf32>
    tpu.vector_store %arg14[%c1, %c0_7], %5 {strides = array<i32>} : memref<20x32xf32, #tpu.memory_space<vmem>>, vector<4x32xf32>,
    %c5 = arith.constant 5 : index
    %c0_8 = arith.constant 0 : index
    %7 = vector.load %arg14[%c5, %c0_8] : memref<20x32xf32, #tpu.memory_space<vmem>>, vector<1x32xf32>
    tpu.vector_store %arg14[%c5, %c0_8], %3 {strides = array<i32>} : memref<20x32xf32, #tpu.memory_space<vmem>>, vector<1x32xf32>,
    %8 = vector.extract_strided_slice %2 {offsets = [4, 0], sizes = [4, 32], strides = [1, 1]} : vector<16x32xf32> to vector<4x32xf32>
    %c6 = arith.constant 6 : index
    %c0_9 = arith.constant 0 : index
    %9 = vector.load %arg14[%c6, %c0_9] : memref<20x32xf32, #tpu.memory_space<vmem>>, vector<4x32xf32>
    tpu.vector_store %arg14[%c6, %c0_9], %8 {strides = array<i32>} : memref<20x32xf32, #tpu.memory_space<vmem>>, vector<4x32xf32>,
    %c10 = arith.constant 10 : index
    %c0_10 = arith.constant 0 : index
    %10 = vector.load %arg14[%c10, %c0_10] : memref<20x32xf32, #tpu.memory_space<vmem>>, vector<1x32xf32>
    tpu.vector_store %arg14[%c10, %c0_10], %3 {strides = array<i32>} : memref<20x32xf32, #tpu.memory_space<vmem>>, vector<1x32xf32>,
    %11 = vector.extract_strided_slice %2 {offsets = [8, 0], sizes = [4, 32], strides = [1, 1]} : vector<16x32xf32> to vector<4x32xf32>
    %c11 = arith.constant 11 : index
    %c0_11 = arith.constant 0 : index
    %12 = vector.load %arg14[%c11, %c0_11] : memref<20x32xf32, #tpu.memory_space<vmem>>, vector<4x32xf32>
    tpu.vector_store %arg14[%c11, %c0_11], %11 {strides = array<i32>} : memref<20x32xf32, #tpu.memory_space<vmem>>, vector<4x32xf32>,
    %c15 = arith.constant 15 : index
    %c0_12 = arith.constant 0 : index
    %13 = vector.load %arg14[%c15, %c0_12] : memref<20x32xf32, #tpu.memory_space<vmem>>, vector<1x32xf32>
    tpu.vector_store %arg14[%c15, %c0_12], %3 {strides = array<i32>} : memref<20x32xf32, #tpu.memory_space<vmem>>, vector<1x32xf32>,
    %14 = vector.extract_strided_slice %2 {offsets = [12, 0], sizes = [4, 32], strides = [1, 1]} : vector<16x32xf32> to vector<4x32xf32>
    %c16 = arith.constant 16 : index
    %c0_13 = arith.constant 0 : index
    %15 = vector.load %arg14[%c16, %c0_13] : memref<20x32xf32, #tpu.memory_space<vmem>>, vector<4x32xf32>
    tpu.vector_store %arg14[%c16, %c0_13], %14 {strides = array<i32>} : memref<20x32xf32, #tpu.memory_space<vmem>>, vector<4x32xf32>,
    %16 = tpu.iota {dimensions = array<i32: 0>} : vector<20x20xi32>
    %17 = tpu.iota {dimensions = array<i32: 1>} : vector<20x20xi32>
    %c0_i32 = arith.constant 0 : i32
    %18 = vector.broadcast %c0_i32 : i32 to vector<20x20xi32>
    %19 = arith.cmpi sge, %16, %18 : vector<20x20xi32>
    %c5_i32 = arith.constant 5 : i32
    %20 = vector.broadcast %c5_i32 : i32 to vector<20x20xi32>
    %21 = arith.cmpi slt, %16, %20 : vector<20x20xi32>
    %22 = arith.andi %19, %21 : vector<20x20xi1>
    %c0_i32_14 = arith.constant 0 : i32
    %23 = vector.broadcast %c0_i32_14 : i32 to vector<20x20xi32>
    %24 = arith.cmpi sge, %17, %23 : vector<20x20xi32>
    %25 = arith.andi %22, %24 : vector<20x20xi1>
    %c5_i32_15 = arith.constant 5 : i32
    %26 = vector.broadcast %c5_i32_15 : i32 to vector<20x20xi32>
    %27 = arith.cmpi slt, %17, %26 : vector<20x20xi32>
    %28 = arith.andi %25, %27 : vector<20x20xi1>
    %c5_i32_16 = arith.constant 5 : i32
    %29 = vector.broadcast %c5_i32_16 : i32 to vector<20x20xi32>
    %30 = arith.cmpi sge, %16, %29 : vector<20x20xi32>
    %c10_i32 = arith.constant 10 : i32
    %31 = vector.broadcast %c10_i32 : i32 to vector<20x20xi32>
    %32 = arith.cmpi slt, %16, %31 : vector<20x20xi32>
    %33 = arith.andi %30, %32 : vector<20x20xi1>
    %c5_i32_17 = arith.constant 5 : i32
    %34 = vector.broadcast %c5_i32_17 : i32 to vector<20x20xi32>
    %35 = arith.cmpi sge, %17, %34 : vector<20x20xi32>
    %36 = arith.andi %33, %35 : vector<20x20xi1>
    %c10_i32_18 = arith.constant 10 : i32
    %37 = vector.broadcast %c10_i32_18 : i32 to vector<20x20xi32>
    %38 = arith.cmpi slt, %17, %37 : vector<20x20xi32>
    %39 = arith.andi %36, %38 : vector<20x20xi1>
    %40 = arith.ori %28, %39 : vector<20x20xi1>
    %c10_i32_19 = arith.constant 10 : i32
    %41 = vector.broadcast %c10_i32_19 : i32 to vector<20x20xi32>
    %42 = arith.cmpi sge, %16, %41 : vector<20x20xi32>
    %c15_i32 = arith.constant 15 : i32
    %43 = vector.broadcast %c15_i32 : i32 to vector<20x20xi32>
    %44 = arith.cmpi slt, %16, %43 : vector<20x20xi32>
    %45 = arith.andi %42, %44 : vector<20x20xi1>
    %c10_i32_20 = arith.constant 10 : i32
    %46 = vector.broadcast %c10_i32_20 : i32 to vector<20x20xi32>
    %47 = arith.cmpi sge, %17, %46 : vector<20x20xi32>
    %48 = arith.andi %45, %47 : vector<20x20xi1>
    %c15_i32_21 = arith.constant 15 : i32
    %49 = vector.broadcast %c15_i32_21 : i32 to vector<20x20xi32>
    %50 = arith.cmpi slt, %17, %49 : vector<20x20xi32>
    %51 = arith.andi %48, %50 : vector<20x20xi1>
    %52 = arith.ori %40, %51 : vector<20x20xi1>
    %c15_i32_22 = arith.constant 15 : i32
    %53 = vector.broadcast %c15_i32_22 : i32 to vector<20x20xi32>
    %54 = arith.cmpi sge, %16, %53 : vector<20x20xi32>
    %c20_i32 = arith.constant 20 : i32
    %55 = vector.broadcast %c20_i32 : i32 to vector<20x20xi32>
    %56 = arith.cmpi slt, %16, %55 : vector<20x20xi32>
    %57 = arith.andi %54, %56 : vector<20x20xi1>
    %c15_i32_23 = arith.constant 15 : i32
    %58 = vector.broadcast %c15_i32_23 : i32 to vector<20x20xi32>
    %59 = arith.cmpi sge, %17, %58 : vector<20x20xi32>
    %60 = arith.andi %57, %59 : vector<20x20xi1>
    %c20_i32_24 = arith.constant 20 : i32
    %61 = vector.broadcast %c20_i32_24 : i32 to vector<20x20xi32>
    %62 = arith.cmpi slt, %17, %61 : vector<20x20xi32>
    %63 = arith.andi %60, %62 : vector<20x20xi1>
    %64 = arith.ori %52, %63 : vector<20x20xi1>
    %65 = arith.cmpi sle, %17, %16 : vector<20x20xi32>
    %66 = arith.andi %64, %65 : vector<20x20xi1>
    %cst = arith.constant 0.000000e+00 : f32
    %cst_25 = arith.constant -1.000000e+30 : f32
    %67 = vector.broadcast %cst : f32 to vector<20x20xf32>
    %68 = vector.broadcast %cst_25 : f32 to vector<20x20xf32>
    %69 = arith.select %66, %67, %68 : vector<20x20xi1>, vector<20x20xf32>
    %c0_26 = arith.constant 0 : index
    %c0_27 = arith.constant 0 : index
    %70 = vector.load %arg14[%c0_26, %c0_27] : memref<20x32xf32, #tpu.memory_space<vmem>>, vector<20x32xf32>
    %c0_28 = arith.constant 0 : index
    %c0_29 = arith.constant 0 : index
    %71 = vector.load %arg4[%c0_28, %c0_29] : memref<9x32xf32, #tpu.memory_space<vmem>>, vector<1x32xf32>
    %c1_30 = arith.constant 1 : index
    %c0_31 = arith.constant 0 : index
    %72 = vector.load %arg4[%c1_30, %c0_31] : memref<9x32xf32, #tpu.memory_space<vmem>>, vector<1x32xf32>
    %c2 = arith.constant 2 : index
    %c0_32 = arith.constant 0 : index
    %73 = vector.load %arg4[%c2, %c0_32] : memref<9x32xf32, #tpu.memory_space<vmem>>, vector<1x32xf32>
    %c3 = arith.constant 3 : index
    %c0_33 = arith.constant 0 : index
    %74 = vector.load %arg4[%c3, %c0_33] : memref<9x32xf32, #tpu.memory_space<vmem>>, vector<1x32xf32>
    %75 = arith.mulf %70, %70 : vector<20x32xf32>
    %cst_34 = arith.constant dense<0.000000e+00> : vector<20xf32>
    %76 = vector.multi_reduction <add>, %75, %cst_34 [1] : vector<20x32xf32> to vector<20xf32>
    %77 = vector.shape_cast %76 : vector<20xf32> to vector<20x1xf32>
    %cst_35 = arith.constant 3.200000e+01 : f32
    %78 = vector.broadcast %cst_35 : f32 to vector<20x1xf32>
    %79 = arith.divf %77, %78 : vector<20x1xf32>
    %cst_36 = arith.constant 9.99999997E-7 : f32
    %80 = vector.broadcast %cst_36 : f32 to vector<20x1xf32>
    %81 = arith.addf %79, %80 : vector<20x1xf32>
    %82 = math.rsqrt %81 : vector<20x1xf32>
    %83 = vector.broadcast %82 : vector<20x1xf32> to vector<20x32xf32>
    %84 = arith.mulf %70, %83 : vector<20x32xf32>
    %85 = vector.broadcast %71 : vector<1x32xf32> to vector<20x32xf32>
    %86 = arith.mulf %84, %85 : vector<20x32xf32>
    %c0_37 = arith.constant 0 : index
    %c0_38 = arith.constant 0 : index
    %c0_39 = arith.constant 0 : index
    %87 = vector.load %arg5[%c0_37, %c0_38, %c0_39] : memref<2x32x192xbf16, #tpu.memory_space<vmem>>, vector<1x32x192xbf16>
    %88 = vector.shape_cast %87 : vector<1x32x192xbf16> to vector<32x192xbf16>
    %89 = arith.truncf %86 : vector<20x32xf32> to vector<20x32xbf16>
    %cst_40 = arith.constant dense<0.000000e+00> : vector<20x192xf32>
    %90 = tpu.matmul %89, %88, %cst_40 {dimension_numbers = #tpu.dot_dimension_numbers<[1], [0], [0], [1], [0, 0, 1, 1], [], []>} : vector<20x32xbf16>, vector<32x192xbf16>, vector<20x192xf32> -> vector<20x192xf32>
    %c0_41 = arith.constant 0 : index
    %c0_42 = arith.constant 0 : index
    %91 = vector.load %arg6[%c0_41, %c0_42] : memref<2x192xf32, #tpu.memory_space<vmem>>, vector<1x192xf32>
    %92 = vector.broadcast %91 : vector<1x192xf32> to vector<20x192xf32>
    %93 = arith.addf %90, %92 : vector<20x192xf32>
    %94 = vector.extract_strided_slice %93 {offsets = [0, 0], sizes = [20, 16], strides = [1, 1]} : vector<20x192xf32> to vector<20x16xf32>
    %95 = vector.extract_strided_slice %93 {offsets = [0, 64], sizes = [20, 16], strides = [1, 1]} : vector<20x192xf32> to vector<20x16xf32>
    %96 = vector.extract_strided_slice %93 {offsets = [0, 128], sizes = [20, 16], strides = [1, 1]} : vector<20x192xf32> to vector<20x16xf32>
    %97 = arith.truncf %94 : vector<20x16xf32> to vector<20x16xbf16>
    %98 = arith.truncf %95 : vector<20x16xf32> to vector<20x16xbf16>
    %cst_43 = arith.constant dense<0.000000e+00> : vector<20x20xf32>
    %99 = tpu.matmul %97, %98, %cst_43 {dimension_numbers = #tpu.dot_dimension_numbers<[1], [1], [0], [0], [0, 0, 1, 0], [], []>} : vector<20x16xbf16>, vector<20x16xbf16>, vector<20x20xf32> -> vector<20x20xf32>
    %100 = arith.addf %99, %69 : vector<20x20xf32>
    %cst_44 = arith.constant dense<0xFF800000> : vector<20xf32>
    %101 = vector.multi_reduction <maximumf>, %100, %cst_44 [1] : vector<20x20xf32> to vector<20xf32>
    %102 = vector.shape_cast %101 : vector<20xf32> to vector<20x1xf32>
    %103 = vector.broadcast %102 : vector<20x1xf32> to vector<20x20xf32>
    %104 = arith.subf %100, %103 : vector<20x20xf32>
    %105 = math.exp %104 : vector<20x20xf32>
    %cst_45 = arith.constant dense<0.000000e+00> : vector<20xf32>
    %106 = vector.multi_reduction <add>, %105, %cst_45 [1] : vector<20x20xf32> to vector<20xf32>
    %107 = vector.shape_cast %106 : vector<20xf32> to vector<20x1xf32>
    %108 = vector.broadcast %107 : vector<20x1xf32> to vector<20x20xf32>
    %109 = arith.divf %105, %108 : vector<20x20xf32>
    %110 = arith.truncf %109 : vector<20x20xf32> to vector<20x20xbf16>
    %111 = arith.truncf %96 : vector<20x16xf32> to vector<20x16xbf16>
    %cst_46 = arith.constant dense<0.000000e+00> : vector<20x16xf32>
    %112 = tpu.matmul %110, %111, %cst_46 {dimension_numbers = #tpu.dot_dimension_numbers<[1], [0], [0], [1], [0, 0, 1, 1], [], []>} : vector<20x20xbf16>, vector<20x16xbf16>, vector<20x16xf32> -> vector<20x16xf32>
    %c0_47 = arith.constant 0 : index
    %c0_48 = arith.constant 0 : index
    %113 = vector.load %arg15[%c0_47, %c0_48] : memref<20x64xf32, #tpu.memory_space<vmem>>, vector<20x16xf32>
    tpu.vector_store %arg15[%c0_47, %c0_48], %112 {strides = array<i32>} : memref<20x64xf32, #tpu.memory_space<vmem>>, vector<20x16xf32>,
    %114 = vector.extract_strided_slice %93 {offsets = [0, 16], sizes = [20, 16], strides = [1, 1]} : vector<20x192xf32> to vector<20x16xf32>
    %115 = vector.extract_strided_slice %93 {offsets = [0, 80], sizes = [20, 16], strides = [1, 1]} : vector<20x192xf32> to vector<20x16xf32>
    %116 = vector.extract_strided_slice %93 {offsets = [0, 144], sizes = [20, 16], strides = [1, 1]} : vector<20x192xf32> to vector<20x16xf32>
    %117 = arith.truncf %114 : vector<20x16xf32> to vector<20x16xbf16>
    %118 = arith.truncf %115 : vector<20x16xf32> to vector<20x16xbf16>
    %cst_49 = arith.constant dense<0.000000e+00> : vector<20x20xf32>
    %119 = tpu.matmul %117, %118, %cst_49 {dimension_numbers = #tpu.dot_dimension_numbers<[1], [1], [0], [0], [0, 0, 1, 0], [], []>} : vector<20x16xbf16>, vector<20x16xbf16>, vector<20x20xf32> -> vector<20x20xf32>
    %120 = arith.addf %119, %69 : vector<20x20xf32>
    %cst_50 = arith.constant dense<0xFF800000> : vector<20xf32>
    %121 = vector.multi_reduction <maximumf>, %120, %cst_50 [1] : vector<20x20xf32> to vector<20xf32>
    %122 = vector.shape_cast %121 : vector<20xf32> to vector<20x1xf32>
    %123 = vector.broadcast %122 : vector<20x1xf32> to vector<20x20xf32>
    %124 = arith.subf %120, %123 : vector<20x20xf32>
    %125 = math.exp %124 : vector<20x20xf32>
    %cst_51 = arith.constant dense<0.000000e+00> : vector<20xf32>
    %126 = vector.multi_reduction <add>, %125, %cst_51 [1] : vector<20x20xf32> to vector<20xf32>
    %127 = vector.shape_cast %126 : vector<20xf32> to vector<20x1xf32>
    %128 = vector.broadcast %127 : vector<20x1xf32> to vector<20x20xf32>
    %129 = arith.divf %125, %128 : vector<20x20xf32>
    %130 = arith.truncf %129 : vector<20x20xf32> to vector<20x20xbf16>
    %131 = arith.truncf %116 : vector<20x16xf32> to vector<20x16xbf16>
    %cst_52 = arith.constant dense<0.000000e+00> : vector<20x16xf32>
    %132 = tpu.matmul %130, %131, %cst_52 {dimension_numbers = #tpu.dot_dimension_numbers<[1], [0], [0], [1], [0, 0, 1, 1], [], []>} : vector<20x20xbf16>, vector<20x16xbf16>, vector<20x16xf32> -> vector<20x16xf32>
    %c0_53 = arith.constant 0 : index
    %c16_54 = arith.constant 16 : index
    %133 = vector.load %arg15[%c0_53, %c16_54] : memref<20x64xf32, #tpu.memory_space<vmem>>, vector<20x16xf32>
    tpu.vector_store %arg15[%c0_53, %c16_54], %132 {strides = array<i32>} : memref<20x64xf32, #tpu.memory_space<vmem>>, vector<20x16xf32>,
    %134 = vector.extract_strided_slice %93 {offsets = [0, 32], sizes = [20, 16], strides = [1, 1]} : vector<20x192xf32> to vector<20x16xf32>
    %135 = vector.extract_strided_slice %93 {offsets = [0, 96], sizes = [20, 16], strides = [1, 1]} : vector<20x192xf32> to vector<20x16xf32>
    %136 = vector.extract_strided_slice %93 {offsets = [0, 160], sizes = [20, 16], strides = [1, 1]} : vector<20x192xf32> to vector<20x16xf32>
    %137 = arith.truncf %134 : vector<20x16xf32> to vector<20x16xbf16>
    %138 = arith.truncf %135 : vector<20x16xf32> to vector<20x16xbf16>
    %cst_55 = arith.constant dense<0.000000e+00> : vector<20x20xf32>
    %139 = tpu.matmul %137, %138, %cst_55 {dimension_numbers = #tpu.dot_dimension_numbers<[1], [1], [0], [0], [0, 0, 1, 0], [], []>} : vector<20x16xbf16>, vector<20x16xbf16>, vector<20x20xf32> -> vector<20x20xf32>
    %140 = arith.addf %139, %69 : vector<20x20xf32>
    %cst_56 = arith.constant dense<0xFF800000> : vector<20xf32>
    %141 = vector.multi_reduction <maximumf>, %140, %cst_56 [1] : vector<20x20xf32> to vector<20xf32>
    %142 = vector.shape_cast %141 : vector<20xf32> to vector<20x1xf32>
    %143 = vector.broadcast %142 : vector<20x1xf32> to vector<20x20xf32>
    %144 = arith.subf %140, %143 : vector<20x20xf32>
    %145 = math.exp %144 : vector<20x20xf32>
    %cst_57 = arith.constant dense<0.000000e+00> : vector<20xf32>
    %146 = vector.multi_reduction <add>, %145, %cst_57 [1] : vector<20x20xf32> to vector<20xf32>
    %147 = vector.shape_cast %146 : vector<20xf32> to vector<20x1xf32>
    %148 = vector.broadcast %147 : vector<20x1xf32> to vector<20x20xf32>
    %149 = arith.divf %145, %148 : vector<20x20xf32>
    %150 = arith.truncf %149 : vector<20x20xf32> to vector<20x20xbf16>
    %151 = arith.truncf %136 : vector<20x16xf32> to vector<20x16xbf16>
    %cst_58 = arith.constant dense<0.000000e+00> : vector<20x16xf32>
    %152 = tpu.matmul %150, %151, %cst_58 {dimension_numbers = #tpu.dot_dimension_numbers<[1], [0], [0], [1], [0, 0, 1, 1], [], []>} : vector<20x20xbf16>, vector<20x16xbf16>, vector<20x16xf32> -> vector<20x16xf32>
    %c0_59 = arith.constant 0 : index
    %c32 = arith.constant 32 : index
    %153 = vector.load %arg15[%c0_59, %c32] : memref<20x64xf32, #tpu.memory_space<vmem>>, vector<20x16xf32>
    tpu.vector_store %arg15[%c0_59, %c32], %152 {strides = array<i32>} : memref<20x64xf32, #tpu.memory_space<vmem>>, vector<20x16xf32>,
    %154 = vector.extract_strided_slice %93 {offsets = [0, 48], sizes = [20, 16], strides = [1, 1]} : vector<20x192xf32> to vector<20x16xf32>
    %155 = vector.extract_strided_slice %93 {offsets = [0, 112], sizes = [20, 16], strides = [1, 1]} : vector<20x192xf32> to vector<20x16xf32>
    %156 = vector.extract_strided_slice %93 {offsets = [0, 176], sizes = [20, 16], strides = [1, 1]} : vector<20x192xf32> to vector<20x16xf32>
    %157 = arith.truncf %154 : vector<20x16xf32> to vector<20x16xbf16>
    %158 = arith.truncf %155 : vector<20x16xf32> to vector<20x16xbf16>
    %cst_60 = arith.constant dense<0.000000e+00> : vector<20x20xf32>
    %159 = tpu.matmul %157, %158, %cst_60 {dimension_numbers = #tpu.dot_dimension_numbers<[1], [1], [0], [0], [0, 0, 1, 0], [], []>} : vector<20x16xbf16>, vector<20x16xbf16>, vector<20x20xf32> -> vector<20x20xf32>
    %160 = arith.addf %159, %69 : vector<20x20xf32>
    %cst_61 = arith.constant dense<0xFF800000> : vector<20xf32>
    %161 = vector.multi_reduction <maximumf>, %160, %cst_61 [1] : vector<20x20xf32> to vector<20xf32>
    %162 = vector.shape_cast %161 : vector<20xf32> to vector<20x1xf32>
    %163 = vector.broadcast %162 : vector<20x1xf32> to vector<20x20xf32>
    %164 = arith.subf %160, %163 : vector<20x20xf32>
    %165 = math.exp %164 : vector<20x20xf32>
    %cst_62 = arith.constant dense<0.000000e+00> : vector<20xf32>
    %166 = vector.multi_reduction <add>, %165, %cst_62 [1] : vector<20x20xf32> to vector<20xf32>
    %167 = vector.shape_cast %166 : vector<20xf32> to vector<20x1xf32>
    %168 = vector.broadcast %167 : vector<20x1xf32> to vector<20x20xf32>
    %169 = arith.divf %165, %168 : vector<20x20xf32>
    %170 = arith.truncf %169 : vector<20x20xf32> to vector<20x20xbf16>
    %171 = arith.truncf %156 : vector<20x16xf32> to vector<20x16xbf16>
    %cst_63 = arith.constant dense<0.000000e+00> : vector<20x16xf32>
    %172 = tpu.matmul %170, %171, %cst_63 {dimension_numbers = #tpu.dot_dimension_numbers<[1], [0], [0], [1], [0, 0, 1, 1], [], []>} : vector<20x20xbf16>, vector<20x16xbf16>, vector<20x16xf32> -> vector<20x16xf32>
    %c0_64 = arith.constant 0 : index
    %c48 = arith.constant 48 : index
    %173 = vector.load %arg15[%c0_64, %c48] : memref<20x64xf32, #tpu.memory_space<vmem>>, vector<20x16xf32>
    tpu.vector_store %arg15[%c0_64, %c48], %172 {strides = array<i32>} : memref<20x64xf32, #tpu.memory_space<vmem>>, vector<20x16xf32>,
    %c0_65 = arith.constant 0 : index
    %c0_66 = arith.constant 0 : index
    %174 = vector.load %arg15[%c0_65, %c0_66] : memref<20x64xf32, #tpu.memory_space<vmem>>, vector<20x64xf32>
    %c0_67 = arith.constant 0 : index
    %c0_68 = arith.constant 0 : index
    %c0_69 = arith.constant 0 : index
    %175 = vector.load %arg7[%c0_67, %c0_68, %c0_69] : memref<2x64x32xbf16, #tpu.memory_space<vmem>>, vector<1x64x32xbf16>
    %176 = vector.shape_cast %175 : vector<1x64x32xbf16> to vector<64x32xbf16>
    %177 = arith.truncf %174 : vector<20x64xf32> to vector<20x64xbf16>
    %cst_70 = arith.constant dense<0.000000e+00> : vector<20x32xf32>
    %178 = tpu.matmul %177, %176, %cst_70 {dimension_numbers = #tpu.dot_dimension_numbers<[1], [0], [0], [1], [0, 0, 1, 1], [], []>} : vector<20x64xbf16>, vector<64x32xbf16>, vector<20x32xf32> -> vector<20x32xf32>
    %179 = arith.addf %70, %178 : vector<20x32xf32>
    %180 = vector.broadcast %72 : vector<1x32xf32> to vector<20x32xf32>
    %181 = arith.addf %179, %180 : vector<20x32xf32>
    %182 = arith.mulf %181, %181 : vector<20x32xf32>
    %cst_71 = arith.constant dense<0.000000e+00> : vector<20xf32>
    %183 = vector.multi_reduction <add>, %182, %cst_71 [1] : vector<20x32xf32> to vector<20xf32>
    %184 = vector.shape_cast %183 : vector<20xf32> to vector<20x1xf32>
    %cst_72 = arith.constant 3.200000e+01 : f32
    %185 = vector.broadcast %cst_72 : f32 to vector<20x1xf32>
    %186 = arith.divf %184, %185 : vector<20x1xf32>
    %cst_73 = arith.constant 9.99999997E-7 : f32
    %187 = vector.broadcast %cst_73 : f32 to vector<20x1xf32>
    %188 = arith.addf %186, %187 : vector<20x1xf32>
    %189 = math.rsqrt %188 : vector<20x1xf32>
    %190 = vector.broadcast %189 : vector<20x1xf32> to vector<20x32xf32>
    %191 = arith.mulf %181, %190 : vector<20x32xf32>
    %192 = vector.broadcast %73 : vector<1x32xf32> to vector<20x32xf32>
    %193 = arith.mulf %191, %192 : vector<20x32xf32>
    %c0_74 = arith.constant 0 : index
    %c0_75 = arith.constant 0 : index
    %c0_76 = arith.constant 0 : index
    %194 = vector.load %arg8[%c0_74, %c0_75, %c0_76] : memref<2x32x128xbf16, #tpu.memory_space<vmem>>, vector<1x32x128xbf16>
    %195 = vector.shape_cast %194 : vector<1x32x128xbf16> to vector<32x128xbf16>
    %196 = arith.truncf %193 : vector<20x32xf32> to vector<20x32xbf16>
    %cst_77 = arith.constant dense<0.000000e+00> : vector<20x128xf32>
    %197 = tpu.matmul %196, %195, %cst_77 {dimension_numbers = #tpu.dot_dimension_numbers<[1], [0], [0], [1], [0, 0, 1, 1], [], []>} : vector<20x32xbf16>, vector<32x128xbf16>, vector<20x128xf32> -> vector<20x128xf32>
    %c0_78 = arith.constant 0 : index
    %c0_79 = arith.constant 0 : index
    %198 = vector.load %arg9[%c0_78, %c0_79] : memref<2x128xf32, #tpu.memory_space<vmem>>, vector<1x128xf32>
    %199 = vector.broadcast %198 : vector<1x128xf32> to vector<20x128xf32>
    %200 = arith.addf %197, %199 : vector<20x128xf32>
    %201 = arith.mulf %200, %200 : vector<20x128xf32>
    %202 = arith.mulf %200, %201 : vector<20x128xf32>
    %cst_80 = arith.constant 4.471500e-02 : f32
    %203 = vector.broadcast %cst_80 : f32 to vector<20x128xf32>
    %204 = arith.mulf %203, %202 : vector<20x128xf32>
    %205 = arith.addf %200, %204 : vector<20x128xf32>
    %cst_81 = arith.constant 0.797884583 : f32
    %206 = vector.broadcast %cst_81 : f32 to vector<20x128xf32>
    %207 = arith.mulf %206, %205 : vector<20x128xf32>
    %208 = math.tanh %207 : vector<20x128xf32>
    %cst_82 = arith.constant 1.000000e+00 : f32
    %209 = vector.broadcast %cst_82 : f32 to vector<20x128xf32>
    %210 = arith.addf %209, %208 : vector<20x128xf32>
    %cst_83 = arith.constant 5.000000e-01 : f32
    %211 = vector.broadcast %cst_83 : f32 to vector<20x128xf32>
    %212 = arith.mulf %211, %210 : vector<20x128xf32>
    %213 = arith.mulf %200, %212 : vector<20x128xf32>
    %c0_84 = arith.constant 0 : index
    %c0_85 = arith.constant 0 : index
    %c0_86 = arith.constant 0 : index
    %214 = vector.load %arg10[%c0_84, %c0_85, %c0_86] : memref<2x128x32xbf16, #tpu.memory_space<vmem>>, vector<1x128x32xbf16>
    %215 = vector.shape_cast %214 : vector<1x128x32xbf16> to vector<128x32xbf16>
    %216 = arith.truncf %213 : vector<20x128xf32> to vector<20x128xbf16>
    %cst_87 = arith.constant dense<0.000000e+00> : vector<20x32xf32>
    %217 = tpu.matmul %216, %215, %cst_87 {dimension_numbers = #tpu.dot_dimension_numbers<[1], [0], [0], [1], [0, 0, 1, 1], [], []>} : vector<20x128xbf16>, vector<128x32xbf16>, vector<20x32xf32> -> vector<20x32xf32>
    %218 = vector.broadcast %74 : vector<1x32xf32> to vector<20x32xf32>
    %219 = arith.addf %217, %218 : vector<20x32xf32>
    %220 = arith.addf %181, %219 : vector<20x32xf32>
    %c4 = arith.constant 4 : index
    %c0_88 = arith.constant 0 : index
    %221 = vector.load %arg4[%c4, %c0_88] : memref<9x32xf32, #tpu.memory_space<vmem>>, vector<1x32xf32>
    %c5_89 = arith.constant 5 : index
    %c0_90 = arith.constant 0 : index
    %222 = vector.load %arg4[%c5_89, %c0_90] : memref<9x32xf32, #tpu.memory_space<vmem>>, vector<1x32xf32>
    %c6_91 = arith.constant 6 : index
    %c0_92 = arith.constant 0 : index
    %223 = vector.load %arg4[%c6_91, %c0_92] : memref<9x32xf32, #tpu.memory_space<vmem>>, vector<1x32xf32>
    %c7 = arith.constant 7 : index
    %c0_93 = arith.constant 0 : index
    %224 = vector.load %arg4[%c7, %c0_93] : memref<9x32xf32, #tpu.memory_space<vmem>>, vector<1x32xf32>
    %225 = arith.mulf %220, %220 : vector<20x32xf32>
    %cst_94 = arith.constant dense<0.000000e+00> : vector<20xf32>
    %226 = vector.multi_reduction <add>, %225, %cst_94 [1] : vector<20x32xf32> to vector<20xf32>
    %227 = vector.shape_cast %226 : vector<20xf32> to vector<20x1xf32>
    %cst_95 = arith.constant 3.200000e+01 : f32
    %228 = vector.broadcast %cst_95 : f32 to vector<20x1xf32>
    %229 = arith.divf %227, %228 : vector<20x1xf32>
    %cst_96 = arith.constant 9.99999997E-7 : f32
    %230 = vector.broadcast %cst_96 : f32 to vector<20x1xf32>
    %231 = arith.addf %229, %230 : vector<20x1xf32>
    %232 = math.rsqrt %231 : vector<20x1xf32>
    %233 = vector.broadcast %232 : vector<20x1xf32> to vector<20x32xf32>
    %234 = arith.mulf %220, %233 : vector<20x32xf32>
    %235 = vector.broadcast %221 : vector<1x32xf32> to vector<20x32xf32>
    %236 = arith.mulf %234, %235 : vector<20x32xf32>
    %c1_97 = arith.constant 1 : index
    %c0_98 = arith.constant 0 : index
    %c0_99 = arith.constant 0 : index
    %237 = vector.load %arg5[%c1_97, %c0_98, %c0_99] : memref<2x32x192xbf16, #tpu.memory_space<vmem>>, vector<1x32x192xbf16>
    %238 = vector.shape_cast %237 : vector<1x32x192xbf16> to vector<32x192xbf16>
    %239 = arith.truncf %236 : vector<20x32xf32> to vector<20x32xbf16>
    %cst_100 = arith.constant dense<0.000000e+00> : vector<20x192xf32>
    %240 = tpu.matmul %239, %238, %cst_100 {dimension_numbers = #tpu.dot_dimension_numbers<[1], [0], [0], [1], [0, 0, 1, 1], [], []>} : vector<20x32xbf16>, vector<32x192xbf16>, vector<20x192xf32> -> vector<20x192xf32>
    %c1_101 = arith.constant 1 : index
    %c0_102 = arith.constant 0 : index
    %241 = vector.load %arg6[%c1_101, %c0_102] : memref<2x192xf32, #tpu.memory_space<vmem>>, vector<1x192xf32>
    %242 = vector.broadcast %241 : vector<1x192xf32> to vector<20x192xf32>
    %243 = arith.addf %240, %242 : vector<20x192xf32>
    %244 = vector.extract_strided_slice %243 {offsets = [0, 0], sizes = [20, 16], strides = [1, 1]} : vector<20x192xf32> to vector<20x16xf32>
    %245 = vector.extract_strided_slice %243 {offsets = [0, 64], sizes = [20, 16], strides = [1, 1]} : vector<20x192xf32> to vector<20x16xf32>
    %246 = vector.extract_strided_slice %243 {offsets = [0, 128], sizes = [20, 16], strides = [1, 1]} : vector<20x192xf32> to vector<20x16xf32>
    %247 = arith.truncf %244 : vector<20x16xf32> to vector<20x16xbf16>
    %248 = arith.truncf %245 : vector<20x16xf32> to vector<20x16xbf16>
    %cst_103 = arith.constant dense<0.000000e+00> : vector<20x20xf32>
    %249 = tpu.matmul %247, %248, %cst_103 {dimension_numbers = #tpu.dot_dimension_numbers<[1], [1], [0], [0], [0, 0, 1, 0], [], []>} : vector<20x16xbf16>, vector<20x16xbf16>, vector<20x20xf32> -> vector<20x20xf32>
    %250 = arith.addf %249, %69 : vector<20x20xf32>
    %cst_104 = arith.constant dense<0xFF800000> : vector<20xf32>
    %251 = vector.multi_reduction <maximumf>, %250, %cst_104 [1] : vector<20x20xf32> to vector<20xf32>
    %252 = vector.shape_cast %251 : vector<20xf32> to vector<20x1xf32>
    %253 = vector.broadcast %252 : vector<20x1xf32> to vector<20x20xf32>
    %254 = arith.subf %250, %253 : vector<20x20xf32>
    %255 = math.exp %254 : vector<20x20xf32>
    %cst_105 = arith.constant dense<0.000000e+00> : vector<20xf32>
    %256 = vector.multi_reduction <add>, %255, %cst_105 [1] : vector<20x20xf32> to vector<20xf32>
    %257 = vector.shape_cast %256 : vector<20xf32> to vector<20x1xf32>
    %258 = vector.broadcast %257 : vector<20x1xf32> to vector<20x20xf32>
    %259 = arith.divf %255, %258 : vector<20x20xf32>
    %260 = arith.truncf %259 : vector<20x20xf32> to vector<20x20xbf16>
    %261 = arith.truncf %246 : vector<20x16xf32> to vector<20x16xbf16>
    %cst_106 = arith.constant dense<0.000000e+00> : vector<20x16xf32>
    %262 = tpu.matmul %260, %261, %cst_106 {dimension_numbers = #tpu.dot_dimension_numbers<[1], [0], [0], [1], [0, 0, 1, 1], [], []>} : vector<20x20xbf16>, vector<20x16xbf16>, vector<20x16xf32> -> vector<20x16xf32>
    %c0_107 = arith.constant 0 : index
    %c0_108 = arith.constant 0 : index
    %263 = vector.load %arg15[%c0_107, %c0_108] : memref<20x64xf32, #tpu.memory_space<vmem>>, vector<20x16xf32>
    tpu.vector_store %arg15[%c0_107, %c0_108], %262 {strides = array<i32>} : memref<20x64xf32, #tpu.memory_space<vmem>>, vector<20x16xf32>,
    %264 = vector.extract_strided_slice %243 {offsets = [0, 16], sizes = [20, 16], strides = [1, 1]} : vector<20x192xf32> to vector<20x16xf32>
    %265 = vector.extract_strided_slice %243 {offsets = [0, 80], sizes = [20, 16], strides = [1, 1]} : vector<20x192xf32> to vector<20x16xf32>
    %266 = vector.extract_strided_slice %243 {offsets = [0, 144], sizes = [20, 16], strides = [1, 1]} : vector<20x192xf32> to vector<20x16xf32>
    %267 = arith.truncf %264 : vector<20x16xf32> to vector<20x16xbf16>
    %268 = arith.truncf %265 : vector<20x16xf32> to vector<20x16xbf16>
    %cst_109 = arith.constant dense<0.000000e+00> : vector<20x20xf32>
    %269 = tpu.matmul %267, %268, %cst_109 {dimension_numbers = #tpu.dot_dimension_numbers<[1], [1], [0], [0], [0, 0, 1, 0], [], []>} : vector<20x16xbf16>, vector<20x16xbf16>, vector<20x20xf32> -> vector<20x20xf32>
    %270 = arith.addf %269, %69 : vector<20x20xf32>
    %cst_110 = arith.constant dense<0xFF800000> : vector<20xf32>
    %271 = vector.multi_reduction <maximumf>, %270, %cst_110 [1] : vector<20x20xf32> to vector<20xf32>
    %272 = vector.shape_cast %271 : vector<20xf32> to vector<20x1xf32>
    %273 = vector.broadcast %272 : vector<20x1xf32> to vector<20x20xf32>
    %274 = arith.subf %270, %273 : vector<20x20xf32>
    %275 = math.exp %274 : vector<20x20xf32>
    %cst_111 = arith.constant dense<0.000000e+00> : vector<20xf32>
    %276 = vector.multi_reduction <add>, %275, %cst_111 [1] : vector<20x20xf32> to vector<20xf32>
    %277 = vector.shape_cast %276 : vector<20xf32> to vector<20x1xf32>
    %278 = vector.broadcast %277 : vector<20x1xf32> to vector<20x20xf32>
    %279 = arith.divf %275, %278 : vector<20x20xf32>
    %280 = arith.truncf %279 : vector<20x20xf32> to vector<20x20xbf16>
    %281 = arith.truncf %266 : vector<20x16xf32> to vector<20x16xbf16>
    %cst_112 = arith.constant dense<0.000000e+00> : vector<20x16xf32>
    %282 = tpu.matmul %280, %281, %cst_112 {dimension_numbers = #tpu.dot_dimension_numbers<[1], [0], [0], [1], [0, 0, 1, 1], [], []>} : vector<20x20xbf16>, vector<20x16xbf16>, vector<20x16xf32> -> vector<20x16xf32>
    %c0_113 = arith.constant 0 : index
    %c16_114 = arith.constant 16 : index
    %283 = vector.load %arg15[%c0_113, %c16_114] : memref<20x64xf32, #tpu.memory_space<vmem>>, vector<20x16xf32>
    tpu.vector_store %arg15[%c0_113, %c16_114], %282 {strides = array<i32>} : memref<20x64xf32, #tpu.memory_space<vmem>>, vector<20x16xf32>,
    %284 = vector.extract_strided_slice %243 {offsets = [0, 32], sizes = [20, 16], strides = [1, 1]} : vector<20x192xf32> to vector<20x16xf32>
    %285 = vector.extract_strided_slice %243 {offsets = [0, 96], sizes = [20, 16], strides = [1, 1]} : vector<20x192xf32> to vector<20x16xf32>
    %286 = vector.extract_strided_slice %243 {offsets = [0, 160], sizes = [20, 16], strides = [1, 1]} : vector<20x192xf32> to vector<20x16xf32>
    %287 = arith.truncf %284 : vector<20x16xf32> to vector<20x16xbf16>
    %288 = arith.truncf %285 : vector<20x16xf32> to vector<20x16xbf16>
    %cst_115 = arith.constant dense<0.000000e+00> : vector<20x20xf32>
    %289 = tpu.matmul %287, %288, %cst_115 {dimension_numbers = #tpu.dot_dimension_numbers<[1], [1], [0], [0], [0, 0, 1, 0], [], []>} : vector<20x16xbf16>, vector<20x16xbf16>, vector<20x20xf32> -> vector<20x20xf32>
    %290 = arith.addf %289, %69 : vector<20x20xf32>
    %cst_116 = arith.constant dense<0xFF800000> : vector<20xf32>
    %291 = vector.multi_reduction <maximumf>, %290, %cst_116 [1] : vector<20x20xf32> to vector<20xf32>
    %292 = vector.shape_cast %291 : vector<20xf32> to vector<20x1xf32>
    %293 = vector.broadcast %292 : vector<20x1xf32> to vector<20x20xf32>
    %294 = arith.subf %290, %293 : vector<20x20xf32>
    %295 = math.exp %294 : vector<20x20xf32>
    %cst_117 = arith.constant dense<0.000000e+00> : vector<20xf32>
    %296 = vector.multi_reduction <add>, %295, %cst_117 [1] : vector<20x20xf32> to vector<20xf32>
    %297 = vector.shape_cast %296 : vector<20xf32> to vector<20x1xf32>
    %298 = vector.broadcast %297 : vector<20x1xf32> to vector<20x20xf32>
    %299 = arith.divf %295, %298 : vector<20x20xf32>
    %300 = arith.truncf %299 : vector<20x20xf32> to vector<20x20xbf16>
    %301 = arith.truncf %286 : vector<20x16xf32> to vector<20x16xbf16>
    %cst_118 = arith.constant dense<0.000000e+00> : vector<20x16xf32>
    %302 = tpu.matmul %300, %301, %cst_118 {dimension_numbers = #tpu.dot_dimension_numbers<[1], [0], [0], [1], [0, 0, 1, 1], [], []>} : vector<20x20xbf16>, vector<20x16xbf16>, vector<20x16xf32> -> vector<20x16xf32>
    %c0_119 = arith.constant 0 : index
    %c32_120 = arith.constant 32 : index
    %303 = vector.load %arg15[%c0_119, %c32_120] : memref<20x64xf32, #tpu.memory_space<vmem>>, vector<20x16xf32>
    tpu.vector_store %arg15[%c0_119, %c32_120], %302 {strides = array<i32>} : memref<20x64xf32, #tpu.memory_space<vmem>>, vector<20x16xf32>,
    %304 = vector.extract_strided_slice %243 {offsets = [0, 48], sizes = [20, 16], strides = [1, 1]} : vector<20x192xf32> to vector<20x16xf32>
    %305 = vector.extract_strided_slice %243 {offsets = [0, 112], sizes = [20, 16], strides = [1, 1]} : vector<20x192xf32> to vector<20x16xf32>
    %306 = vector.extract_strided_slice %243 {offsets = [0, 176], sizes = [20, 16], strides = [1, 1]} : vector<20x192xf32> to vector<20x16xf32>
    %307 = arith.truncf %304 : vector<20x16xf32> to vector<20x16xbf16>
    %308 = arith.truncf %305 : vector<20x16xf32> to vector<20x16xbf16>
    %cst_121 = arith.constant dense<0.000000e+00> : vector<20x20xf32>
    %309 = tpu.matmul %307, %308, %cst_121 {dimension_numbers = #tpu.dot_dimension_numbers<[1], [1], [0], [0], [0, 0, 1, 0], [], []>} : vector<20x16xbf16>, vector<20x16xbf16>, vector<20x20xf32> -> vector<20x20xf32>
    %310 = arith.addf %309, %69 : vector<20x20xf32>
    %cst_122 = arith.constant dense<0xFF800000> : vector<20xf32>
    %311 = vector.multi_reduction <maximumf>, %310, %cst_122 [1] : vector<20x20xf32> to vector<20xf32>
    %312 = vector.shape_cast %311 : vector<20xf32> to vector<20x1xf32>
    %313 = vector.broadcast %312 : vector<20x1xf32> to vector<20x20xf32>
    %314 = arith.subf %310, %313 : vector<20x20xf32>
    %315 = math.exp %314 : vector<20x20xf32>
    %cst_123 = arith.constant dense<0.000000e+00> : vector<20xf32>
    %316 = vector.multi_reduction <add>, %315, %cst_123 [1] : vector<20x20xf32> to vector<20xf32>
    %317 = vector.shape_cast %316 : vector<20xf32> to vector<20x1xf32>
    %318 = vector.broadcast %317 : vector<20x1xf32> to vector<20x20xf32>
    %319 = arith.divf %315, %318 : vector<20x20xf32>
    %320 = arith.truncf %319 : vector<20x20xf32> to vector<20x20xbf16>
    %321 = arith.truncf %306 : vector<20x16xf32> to vector<20x16xbf16>
    %cst_124 = arith.constant dense<0.000000e+00> : vector<20x16xf32>
    %322 = tpu.matmul %320, %321, %cst_124 {dimension_numbers = #tpu.dot_dimension_numbers<[1], [0], [0], [1], [0, 0, 1, 1], [], []>} : vector<20x20xbf16>, vector<20x16xbf16>, vector<20x16xf32> -> vector<20x16xf32>
    %c0_125 = arith.constant 0 : index
    %c48_126 = arith.constant 48 : index
    %323 = vector.load %arg15[%c0_125, %c48_126] : memref<20x64xf32, #tpu.memory_space<vmem>>, vector<20x16xf32>
    tpu.vector_store %arg15[%c0_125, %c48_126], %322 {strides = array<i32>} : memref<20x64xf32, #tpu.memory_space<vmem>>, vector<20x16xf32>,
    %c0_127 = arith.constant 0 : index
    %c0_128 = arith.constant 0 : index
    %324 = vector.load %arg15[%c0_127, %c0_128] : memref<20x64xf32, #tpu.memory_space<vmem>>, vector<20x64xf32>
    %c1_129 = arith.constant 1 : index
    %c0_130 = arith.constant 0 : index
    %c0_131 = arith.constant 0 : index
    %325 = vector.load %arg7[%c1_129, %c0_130, %c0_131] : memref<2x64x32xbf16, #tpu.memory_space<vmem>>, vector<1x64x32xbf16>
    %326 = vector.shape_cast %325 : vector<1x64x32xbf16> to vector<64x32xbf16>
    %327 = arith.truncf %324 : vector<20x64xf32> to vector<20x64xbf16>
    %cst_132 = arith.constant dense<0.000000e+00> : vector<20x32xf32>
    %328 = tpu.matmul %327, %326, %cst_132 {dimension_numbers = #tpu.dot_dimension_numbers<[1], [0], [0], [1], [0, 0, 1, 1], [], []>} : vector<20x64xbf16>, vector<64x32xbf16>, vector<20x32xf32> -> vector<20x32xf32>
    %329 = arith.addf %220, %328 : vector<20x32xf32>
    %330 = vector.broadcast %222 : vector<1x32xf32> to vector<20x32xf32>
    %331 = arith.addf %329, %330 : vector<20x32xf32>
    %332 = arith.mulf %331, %331 : vector<20x32xf32>
    %cst_133 = arith.constant dense<0.000000e+00> : vector<20xf32>
    %333 = vector.multi_reduction <add>, %332, %cst_133 [1] : vector<20x32xf32> to vector<20xf32>
    %334 = vector.shape_cast %333 : vector<20xf32> to vector<20x1xf32>
    %cst_134 = arith.constant 3.200000e+01 : f32
    %335 = vector.broadcast %cst_134 : f32 to vector<20x1xf32>
    %336 = arith.divf %334, %335 : vector<20x1xf32>
    %cst_135 = arith.constant 9.99999997E-7 : f32
    %337 = vector.broadcast %cst_135 : f32 to vector<20x1xf32>
    %338 = arith.addf %336, %337 : vector<20x1xf32>
    %339 = math.rsqrt %338 : vector<20x1xf32>
    %340 = vector.broadcast %339 : vector<20x1xf32> to vector<20x32xf32>
    %341 = arith.mulf %331, %340 : vector<20x32xf32>
    %342 = vector.broadcast %223 : vector<1x32xf32> to vector<20x32xf32>
    %343 = arith.mulf %341, %342 : vector<20x32xf32>
    %c1_136 = arith.constant 1 : index
    %c0_137 = arith.constant 0 : index
    %c0_138 = arith.constant 0 : index
    %344 = vector.load %arg8[%c1_136, %c0_137, %c0_138] : memref<2x32x128xbf16, #tpu.memory_space<vmem>>, vector<1x32x128xbf16>
    %345 = vector.shape_cast %344 : vector<1x32x128xbf16> to vector<32x128xbf16>
    %346 = arith.truncf %343 : vector<20x32xf32> to vector<20x32xbf16>
    %cst_139 = arith.constant dense<0.000000e+00> : vector<20x128xf32>
    %347 = tpu.matmul %346, %345, %cst_139 {dimension_numbers = #tpu.dot_dimension_numbers<[1], [0], [0], [1], [0, 0, 1, 1], [], []>} : vector<20x32xbf16>, vector<32x128xbf16>, vector<20x128xf32> -> vector<20x128xf32>
    %c1_140 = arith.constant 1 : index
    %c0_141 = arith.constant 0 : index
    %348 = vector.load %arg9[%c1_140, %c0_141] : memref<2x128xf32, #tpu.memory_space<vmem>>, vector<1x128xf32>
    %349 = vector.broadcast %348 : vector<1x128xf32> to vector<20x128xf32>
    %350 = arith.addf %347, %349 : vector<20x128xf32>
    %351 = arith.mulf %350, %350 : vector<20x128xf32>
    %352 = arith.mulf %350, %351 : vector<20x128xf32>
    %cst_142 = arith.constant 4.471500e-02 : f32
    %353 = vector.broadcast %cst_142 : f32 to vector<20x128xf32>
    %354 = arith.mulf %353, %352 : vector<20x128xf32>
    %355 = arith.addf %350, %354 : vector<20x128xf32>
    %cst_143 = arith.constant 0.797884583 : f32
    %356 = vector.broadcast %cst_143 : f32 to vector<20x128xf32>
    %357 = arith.mulf %356, %355 : vector<20x128xf32>
    %358 = math.tanh %357 : vector<20x128xf32>
    %cst_144 = arith.constant 1.000000e+00 : f32
    %359 = vector.broadcast %cst_144 : f32 to vector<20x128xf32>
    %360 = arith.addf %359, %358 : vector<20x128xf32>
    %cst_145 = arith.constant 5.000000e-01 : f32
    %361 = vector.broadcast %cst_145 : f32 to vector<20x128xf32>
    %362 = arith.mulf %361, %360 : vector<20x128xf32>
    %363 = arith.mulf %350, %362 : vector<20x128xf32>
    %c1_146 = arith.constant 1 : index
    %c0_147 = arith.constant 0 : index
    %c0_148 = arith.constant 0 : index
    %364 = vector.load %arg10[%c1_146, %c0_147, %c0_148] : memref<2x128x32xbf16, #tpu.memory_space<vmem>>, vector<1x128x32xbf16>
    %365 = vector.shape_cast %364 : vector<1x128x32xbf16> to vector<128x32xbf16>
    %366 = arith.truncf %363 : vector<20x128xf32> to vector<20x128xbf16>
    %cst_149 = arith.constant dense<0.000000e+00> : vector<20x32xf32>
    %367 = tpu.matmul %366, %365, %cst_149 {dimension_numbers = #tpu.dot_dimension_numbers<[1], [0], [0], [1], [0, 0, 1, 1], [], []>} : vector<20x128xbf16>, vector<128x32xbf16>, vector<20x32xf32> -> vector<20x32xf32>
    %368 = vector.broadcast %224 : vector<1x32xf32> to vector<20x32xf32>
    %369 = arith.addf %367, %368 : vector<20x32xf32>
    %370 = arith.addf %331, %369 : vector<20x32xf32>
    %c8 = arith.constant 8 : index
    %c0_150 = arith.constant 0 : index
    %371 = vector.load %arg4[%c8, %c0_150] : memref<9x32xf32, #tpu.memory_space<vmem>>, vector<1x32xf32>
    %372 = arith.mulf %370, %370 : vector<20x32xf32>
    %cst_151 = arith.constant dense<0.000000e+00> : vector<20xf32>
    %373 = vector.multi_reduction <add>, %372, %cst_151 [1] : vector<20x32xf32> to vector<20xf32>
    %374 = vector.shape_cast %373 : vector<20xf32> to vector<20x1xf32>
    %cst_152 = arith.constant 3.200000e+01 : f32
    %375 = vector.broadcast %cst_152 : f32 to vector<20x1xf32>
    %376 = arith.divf %374, %375 : vector<20x1xf32>
    %cst_153 = arith.constant 9.99999997E-7 : f32
    %377 = vector.broadcast %cst_153 : f32 to vector<20x1xf32>
    %378 = arith.addf %376, %377 : vector<20x1xf32>
    %379 = math.rsqrt %378 : vector<20x1xf32>
    %380 = vector.broadcast %379 : vector<20x1xf32> to vector<20x32xf32>
    %381 = arith.mulf %370, %380 : vector<20x32xf32>
    %382 = vector.broadcast %371 : vector<1x32xf32> to vector<20x32xf32>
    %383 = arith.mulf %381, %382 : vector<20x32xf32>
    %c0_154 = arith.constant 0 : index
    %c0_155 = arith.constant 0 : index
    %384 = vector.load %arg11[%c0_154, %c0_155] : memref<32x256xbf16, #tpu.memory_space<vmem>>, vector<32x256xbf16>
    %385 = arith.truncf %383 : vector<20x32xf32> to vector<20x32xbf16>
    %cst_156 = arith.constant dense<0.000000e+00> : vector<20x256xf32>
    %386 = tpu.matmul %385, %384, %cst_156 {dimension_numbers = #tpu.dot_dimension_numbers<[1], [0], [0], [1], [0, 0, 1, 1], [], []>} : vector<20x32xbf16>, vector<32x256xbf16>, vector<20x256xf32> -> vector<20x256xf32>
    %c0_157 = arith.constant 0 : index
    %c0_158 = arith.constant 0 : index
    %387 = vector.load %arg12[%c0_157, %c0_158] : memref<1x256xf32, #tpu.memory_space<vmem>>, vector<1x256xf32>
    %388 = vector.broadcast %387 : vector<1x256xf32> to vector<20x256xf32>
    %389 = arith.addf %386, %388 : vector<20x256xf32>
    %390 = vector.extract_strided_slice %389 {offsets = [1, 0], sizes = [4, 256], strides = [1, 1]} : vector<20x256xf32> to vector<4x256xf32>
    %c0_159 = arith.constant 0 : index
    %c0_160 = arith.constant 0 : index
    %391 = vector.load %arg13[%c0_159, %c0_160] : memref<16x256xf32, #tpu.memory_space<vmem>>, vector<4x256xf32>
    tpu.vector_store %arg13[%c0_159, %c0_160], %390 {strides = array<i32>} : memref<16x256xf32, #tpu.memory_space<vmem>>, vector<4x256xf32>,
    %392 = vector.extract_strided_slice %389 {offsets = [6, 0], sizes = [4, 256], strides = [1, 1]} : vector<20x256xf32> to vector<4x256xf32>
    %c4_161 = arith.constant 4 : index
    %c0_162 = arith.constant 0 : index
    %393 = vector.load %arg13[%c4_161, %c0_162] : memref<16x256xf32, #tpu.memory_space<vmem>>, vector<4x256xf32>
    tpu.vector_store %arg13[%c4_161, %c0_162], %392 {strides = array<i32>} : memref<16x256xf32, #tpu.memory_space<vmem>>, vector<4x256xf32>,
    %394 = vector.extract_strided_slice %389 {offsets = [11, 0], sizes = [4, 256], strides = [1, 1]} : vector<20x256xf32> to vector<4x256xf32>
    %c8_163 = arith.constant 8 : index
    %c0_164 = arith.constant 0 : index
    %395 = vector.load %arg13[%c8_163, %c0_164] : memref<16x256xf32, #tpu.memory_space<vmem>>, vector<4x256xf32>
    tpu.vector_store %arg13[%c8_163, %c0_164], %394 {strides = array<i32>} : memref<16x256xf32, #tpu.memory_space<vmem>>, vector<4x256xf32>,
    %396 = vector.extract_strided_slice %389 {offsets = [16, 0], sizes = [4, 256], strides = [1, 1]} : vector<20x256xf32> to vector<4x256xf32>
    %c12 = arith.constant 12 : index
    %c0_165 = arith.constant 0 : index
    %397 = vector.load %arg13[%c12, %c0_165] : memref<16x256xf32, #tpu.memory_space<vmem>>, vector<4x256xf32>
    tpu.vector_store %arg13[%c12, %c0_165], %396 {strides = array<i32>} : memref<16x256xf32, #tpu.memory_space<vmem>>, vector<4x256xf32>,
    return
  }
  func.func @transform_0(%arg0: i32) -> (i32, i32) {
    %c0_i32 = arith.constant 0 : i32
    %c0_i32_0 = arith.constant 0 : i32
    return %arg0, %c0_i32 : i32, i32
  }
  func.func @transform_1(%arg0: i32) -> (i32, i32) {
    %c0_i32 = arith.constant 0 : i32
    %c0_i32_0 = arith.constant 0 : i32
    return %arg0, %c0_i32 : i32, i32
  }
  func.func @transform_2(%arg0: i32) -> (i32, i32) {
    %c0_i32 = arith.constant 0 : i32
    %c0_i32_0 = arith.constant 0 : i32
    %c0_i32_1 = arith.constant 0 : i32
    return %c0_i32, %c0_i32_0 : i32, i32
  }
  func.func @transform_3(%arg0: i32) -> (i32, i32) {
    %c0_i32 = arith.constant 0 : i32
    %c0_i32_0 = arith.constant 0 : i32
    %c0_i32_1 = arith.constant 0 : i32
    return %c0_i32, %c0_i32_0 : i32, i32
  }
  func.func @transform_4(%arg0: i32) -> (i32, i32, i32) {
    %c0_i32 = arith.constant 0 : i32
    %c0_i32_0 = arith.constant 0 : i32
    %c0_i32_1 = arith.constant 0 : i32
    %c0_i32_2 = arith.constant 0 : i32
    return %c0_i32, %c0_i32_0, %c0_i32_1 : i32, i32, i32
  }
  func.func @transform_5(%arg0: i32) -> (i32, i32) {
    %c0_i32 = arith.constant 0 : i32
    %c0_i32_0 = arith.constant 0 : i32
    %c0_i32_1 = arith.constant 0 : i32
    return %c0_i32, %c0_i32_0 : i32, i32
  }
  func.func @transform_6(%arg0: i32) -> (i32, i32, i32) {
    %c0_i32 = arith.constant 0 : i32
    %c0_i32_0 = arith.constant 0 : i32
    %c0_i32_1 = arith.constant 0 : i32
    %c0_i32_2 = arith.constant 0 : i32
    return %c0_i32, %c0_i32_0, %c0_i32_1 : i32, i32, i32
  }
  func.func @transform_7(%arg0: i32) -> (i32, i32, i32) {
    %c0_i32 = arith.constant 0 : i32
    %c0_i32_0 = arith.constant 0 : i32
    %c0_i32_1 = arith.constant 0 : i32
    %c0_i32_2 = arith.constant 0 : i32
    return %c0_i32, %c0_i32_0, %c0_i32_1 : i32, i32, i32
  }
  func.func @transform_8(%arg0: i32) -> (i32, i32) {
    %c0_i32 = arith.constant 0 : i32
    %c0_i32_0 = arith.constant 0 : i32
    %c0_i32_1 = arith.constant 0 : i32
    return %c0_i32, %c0_i32_0 : i32, i32
  }
  func.func @transform_9(%arg0: i32) -> (i32, i32, i32) {
    %c0_i32 = arith.constant 0 : i32
    %c0_i32_0 = arith.constant 0 : i32
    %c0_i32_1 = arith.constant 0 : i32
    %c0_i32_2 = arith.constant 0 : i32
    return %c0_i32, %c0_i32_0, %c0_i32_1 : i32, i32, i32
  }
  func.func @transform_10(%arg0: i32) -> (i32, i32) {
    %c0_i32 = arith.constant 0 : i32
    %c0_i32_0 = arith.constant 0 : i32
    %c0_i32_1 = arith.constant 0 : i32
    return %c0_i32, %c0_i32_0 : i32, i32
  }
  func.func @transform_11(%arg0: i32) -> (i32, i32) {
    %c0_i32 = arith.constant 0 : i32
    %c0_i32_0 = arith.constant 0 : i32
    %c0_i32_1 = arith.constant 0 : i32
    return %c0_i32, %c0_i32_0 : i32, i32
  }
  func.func @transform_12(%arg0: i32) -> (i32, i32) {
    %c0_i32 = arith.constant 0 : i32
    %c0_i32_0 = arith.constant 0 : i32
    return %arg0, %c0_i32 : i32, i32
  }
}

</mosaic_0001>

<llo_original>
// kernel: terra_byte_forward.2
$region0: #{terra_byte_forward.2}
  #allocation0 [shape = 'u32[]', space=smem, size = 0x4, offset = 0x4, fixed_abs, tag = 'smem constant byte address 0x4 - core index']
  #allocation1 [shape = 'u32[144,128]{1,0:T(1,128)}', space=vmem, size = 0x12000, scoped, tag = 'internal scratch']
  #allocation2 [shape = 'f32[10,48]{1,0:T(8,128)}', space=vmem, size = 0x2000, scoped, tag = 'scratch operand']
  #allocation3 [shape = 'f32[10,64]{1,0:T(8,128)}', space=vmem, size = 0x2000, scoped, tag = 'scratch operand']
  %s0 = inlined_call_operand.vmem [shape: f32[8,128], index: 0, kind: input, shape index: {}]
  %s1 = inlined_call_operand.vmem [shape: f32[2,128], index: 1, kind: input, shape index: {}]
  %s2 = inlined_call_operand.vmem [shape: bf16[128,48], index: 2, kind: input, shape index: {}]
  %s3 = inlined_call_operand.vmem [shape: f32[3,48], index: 3, kind: input, shape index: {}]
  %s4 = inlined_call_operand.vmem [shape: f32[1,48], index: 4, kind: input, shape index: {}]
  %s5 = inlined_call_operand.vmem [shape: f32[9,48], index: 5, kind: input, shape index: {}]
  %s6 = inlined_call_operand.vmem [shape: bf16[2,48,192], index: 6, kind: input, shape index: {}]
  %s7 = inlined_call_operand.vmem [shape: f32[2,192], index: 7, kind: input, shape index: {}]
  %s8 = inlined_call_operand.vmem [shape: bf16[2,64,48], index: 8, kind: input, shape index: {}]
  %s9 = inlined_call_operand.vmem [shape: bf16[2,48,192], index: 9, kind: input, shape index: {}]
  %s10 = inlined_call_operand.vmem [shape: f32[2,192], index: 10, kind: input, shape index: {}]
  %s11 = inlined_call_operand.vmem [shape: bf16[2,192,48], index: 11, kind: input, shape index: {}]
  %s12 = inlined_call_operand.vmem [shape: bf16[48,128], index: 12, kind: input, shape index: {}]
  %s13 = inlined_call_operand.vmem [shape: f32[1,128], index: 13, kind: input, shape index: {}]
  %s14 = inlined_call_operand.vmem [shape: f32[8,128], index: 14, kind: output, shape index: {}]
  %s15 = sld [smem:[#allocation0]]
  $region66: #{terra_byte_forward.2} parent=0
    _
  %s17 = ssub.s32 1, %s15
  %s18 = scalar_select 0, %s17, %s15
  // Predicated region
  $region2: #{terra_byte_forward.2} parent=0 // pred_check
    _
  $region3: #{terra_byte_forward.2} parent=0 // pred_check_branch
    %20 = sbr.rel (0) target = $region5
  $region4: #{terra_byte_forward.2} parent=0 // pred_region
    _
  $region5: #{terra_byte_forward.2} parent=0 // pred_fallthru
    _
  // Predicated region
  $region6: #{terra_byte_forward.2} parent=0 // pred_check
    _
  $region7: #{terra_byte_forward.2} parent=0 // pred_check_branch
    %22 = sbr.rel (0) target = $region9
  $region8: #{terra_byte_forward.2} parent=0 // pred_region
    _
  $region9: #{terra_byte_forward.2} parent=0 // pred_fallthru
    _
  // Predicated region
  $region10: #{terra_byte_forward.2} parent=0 // pred_check
    _
  $region11: #{terra_byte_forward.2} parent=0 // pred_check_branch
    %24 = sbr.rel (0) target = $region13
  $region12: #{terra_byte_forward.2} parent=0 // pred_region
    _
  $region13: #{terra_byte_forward.2} parent=0 // pred_fallthru
    _
  // Predicated region
  $region14: #{terra_byte_forward.2} parent=0 // pred_check
    _
  $region15: #{terra_byte_forward.2} parent=0 // pred_check_branch
    %26 = sbr.rel (0) target = $region17
  $region16: #{terra_byte_forward.2} parent=0 // pred_region
    _
  $region17: #{terra_byte_forward.2} parent=0 // pred_fallthru
    _
  // Predicated region
  $region18: #{terra_byte_forward.2} parent=0 // pred_check
    _
  $region19: #{terra_byte_forward.2} parent=0 // pred_check_branch
    %28 = sbr.rel (0) target = $region21
  $region20: #{terra_byte_forward.2} parent=0 // pred_region
    _
  $region21: #{terra_byte_forward.2} parent=0 // pred_fallthru
    _
  // Predicated region
  $region22: #{terra_byte_forward.2} parent=0 // pred_check
    _
  $region23: #{terra_byte_forward.2} parent=0 // pred_check_branch
    %30 = sbr.rel (0) target = $region25
  $region24: #{terra_byte_forward.2} parent=0 // pred_region
    _
  $region25: #{terra_byte_forward.2} parent=0 // pred_fallthru
    _
  // Predicated region
  $region26: #{terra_byte_forward.2} parent=0 // pred_check
    _
  $region27: #{terra_byte_forward.2} parent=0 // pred_check_branch
    %32 = sbr.rel (0) target = $region29
  $region28: #{terra_byte_forward.2} parent=0 // pred_region
    _
  $region29: #{terra_byte_forward.2} parent=0 // pred_fallthru
    _
  // Predicated region
  $region30: #{terra_byte_forward.2} parent=0 // pred_check
    _
  $region31: #{terra_byte_forward.2} parent=0 // pred_check_branch
    %34 = sbr.rel (0) target = $region33
  $region32: #{terra_byte_forward.2} parent=0 // pred_region
    _
  $region33: #{terra_byte_forward.2} parent=0 // pred_fallthru
    _
  // Predicated region
  $region34: #{terra_byte_forward.2} parent=0 // pred_check
    _
  $region35: #{terra_byte_forward.2} parent=0 // pred_check_branch
    %36 = sbr.rel (0) target = $region37
  $region36: #{terra_byte_forward.2} parent=0 // pred_region
    _
  $region37: #{terra_byte_forward.2} parent=0 // pred_fallthru
    _
  // Predicated region
  $region38: #{terra_byte_forward.2} parent=0 // pred_check
    _
  $region39: #{terra_byte_forward.2} parent=0 // pred_check_branch
    %38 = sbr.rel (0) target = $region41
  $region40: #{terra_byte_forward.2} parent=0 // pred_region
    _
  $region41: #{terra_byte_forward.2} parent=0 // pred_fallthru
    _
  // Predicated region
  $region42: #{terra_byte_forward.2} parent=0 // pred_check
    _
  $region43: #{terra_byte_forward.2} parent=0 // pred_check_branch
    %40 = sbr.rel (0) target = $region45
  $region44: #{terra_byte_forward.2} parent=0 // pred_region
    _
  $region45: #{terra_byte_forward.2} parent=0 // pred_fallthru
    _
  // Predicated region
  $region46: #{terra_byte_forward.2} parent=0 // pred_check
    _
  $region47: #{terra_byte_forward.2} parent=0 // pred_check_branch
    %42 = sbr.rel (0) target = $region49
  $region48: #{terra_byte_forward.2} parent=0 // pred_region
    _
  $region49: #{terra_byte_forward.2} parent=0 // pred_fallthru
    _
  // Predicated region
  $region50: #{terra_byte_forward.2} parent=0 // pred_check
    _
  $region51: #{terra_byte_forward.2} parent=0 // pred_check_branch
    %44 = sbr.rel (0) target = $region53
  $region52: #{terra_byte_forward.2} parent=0 // pred_region
    _
  $region53: #{terra_byte_forward.2} parent=0 // pred_fallthru
    _
  // Predicated region
  $region54: #{terra_byte_forward.2} parent=0 // pred_check
    _
  $region55: #{terra_byte_forward.2} parent=0 // pred_check_branch
    %46 = sbr.rel (0) target = $region57
  $region56: #{terra_byte_forward.2} parent=0 // pred_region
    _
  $region57: #{terra_byte_forward.2} parent=0 // pred_fallthru
    _
  %v48 = vld [vmem:[%s0] sm:$0xff]
  %49 = vadd.xlane.f32.xlu0 %v48
  %v50 = vpop.xlane.xlu0 %49
  %v51 = vrcp.pop 128.0
  %v52 = vmul.f32 %v50, %v51
  %v53 = vsub.f32 %v48, %v52
  %v54 = vmul.f32 %v53, %v53
  %55 = vadd.xlane.f32.xlu0 %v54
  %v56 = vpop.xlane.xlu0 %55
  %v57 = vmul.f32 %v56, %v51
  %v58 = vadd.f32 %v57, 1e-05
  %v59 = vrsqrt.pop %v58
  %v60 = vmul.f32 %v53, %v59
  %v61 = vld [vmem:[%s1] sm:$0x1]
  %v62 = vlaneseq
  %v63 = vshrl.u32 %v62, 7
  %v64 = vsub.s32 0, %v63
  %v65 = vrot.slane %v61, %v64
  %v66 = vmul.f32 %v60, %v65
  %v67 = vld [vmem:[%s1 + $0x1] sm:$0x1]
  %v68 = vlaneseq
  %v69 = vshrl.u32 %v68, 7
  %v70 = vsub.s32 0, %v69
  %v71 = vrot.slane %v67, %v70
  %v72 = vadd.f32 %v66, %v71
  %v73 = vld [vmem:[%s2] sm:$0xf]
  %v74 = vld [vmem:[%s2 + $0x4] sm:$0xf]
  %v75 = vld [vmem:[%s2 + $0x8] sm:$0xf]
  %v76 = vld [vmem:[%s2 + $0xc] sm:$0xf]
  %v77 = vld [vmem:[%s2 + $0x10] sm:$0xf]
  %v78 = vld [vmem:[%s2 + $0x14] sm:$0xf]
  %v79 = vld [vmem:[%s2 + $0x18] sm:$0xf]
  %v80 = vld [vmem:[%s2 + $0x1c] sm:$0xf]
  %v81 = vld [vmem:[%s2 + $0x20] sm:$0xf]
  %v82 = vld [vmem:[%s2 + $0x24] sm:$0xf]
  %v83 = vld [vmem:[%s2 + $0x28] sm:$0xf]
  %v84 = vld [vmem:[%s2 + $0x2c] sm:$0xf]
  %v85 = vld [vmem:[%s2 + $0x30] sm:$0xf]
  %v86 = vld [vmem:[%s2 + $0x34] sm:$0xf]
  %v87 = vld [vmem:[%s2 + $0x38] sm:$0xf]
  %v88 = vld [vmem:[%s2 + $0x3c] sm:$0xf]
  %v89 = vpack.c.bf16 %v72, %v72
  %v90 = vld [vmem:[%s3] sm:$0x1]
  %v91 = vlaneseq
  %v92 = vshrl.u32 %v91, 7
  %v93 = vsub.s32 0, %v92
  %v94 = vrot.slane %v90, %v93
  %v111 = vunpack.c.l.b16 %v73
  %v112 = vunpack.c.l.b16 %v74
  %v113 = vunpack.c.l.b16 %v75
  %v114 = vunpack.c.l.b16 %v76
  %v115 = vunpack.c.l.b16 %v77
  %v116 = vunpack.c.l.b16 %v78
  %v117 = vunpack.c.l.b16 %v79
  %v118 = vunpack.c.l.b16 %v80
  %v119 = vunpack.c.l.b16 %v81
  %v120 = vunpack.c.l.b16 %v82
  %v121 = vunpack.c.l.b16 %v83
  %v122 = vunpack.c.l.b16 %v84
  %v123 = vunpack.c.l.b16 %v85
  %v124 = vunpack.c.l.b16 %v86
  %v125 = vunpack.c.l.b16 %v87
  %v126 = vunpack.c.l.b16 %v88
  %v127 = vpack.c.b16 %v112, %v111
  %v128 = vpack.c.b16 %v114, %v113
  %v129 = vpack.c.b16 %v116, %v115
  %v130 = vpack.c.b16 %v118, %v117
  %v131 = vpack.c.b16 %v120, %v119
  %v132 = vpack.c.b16 %v122, %v121
  %v133 = vpack.c.b16 %v124, %v123
  %v134 = vpack.c.b16 %v126, %v125
  %143 = vmatprep.subr.bf16.mxu0 0
  %144 = vmatpush1.bf16.msra.mxu0 %v134
  %145 = vmatprep.subr.bf16.mxu0 0
  %146 = vmatpush1.bf16.msra.mxu0 %v133
  %147 = vmatprep.subr.bf16.mxu0 0
  %148 = vmatpush1.bf16.msra.mxu0 %v132
  %149 = vmatprep.subr.bf16.mxu0 0
  %150 = vmatpush1.bf16.msra.mxu0 %v131
  %151 = vmatprep.subr.bf16.mxu0 0
  %152 = vmatpush1.bf16.msra.mxu0 %v130
  %153 = vmatprep.subr.bf16.mxu0 0
  %154 = vmatpush1.bf16.msra.mxu0 %v129
  %155 = vmatprep.subr.bf16.mxu0 0
  %156 = vmatpush1.bf16.msra.mxu0 %v128
  %157 = vmatprep.subr.bf16.mxu0 0
  %158 = vmatpush1.bf16.msra.mxu0 %v127
  %159 = vmatprep.subr.bf16.mxu0 0
  %160 = vmatpush2.bf16.msra.mxu0 0
  %161 = vmatprep.subr.bf16.mxu0 0
  %162 = vmatpush2.bf16.msra.mxu0 0
  %163 = vmatprep.subr.bf16.mxu0 0
  %164 = vmatpush2.bf16.msra.mxu0 0
  %165 = vmatprep.subr.bf16.mxu0 0
  %166 = vmatpush2.bf16.msra.mxu0 0
  %167 = vmatprep.subr.bf16.mxu0 0
  %168 = vmatpush2.bf16.msra.mxu0 0
  %169 = vmatprep.subr.bf16.mxu0 0
  %170 = vmatpush2.bf16.msra.mxu0 0
  %171 = vmatprep.subr.bf16.mxu0 0
  %172 = vmatpush2.bf16.msra.mxu0 0
  %173 = vmatprep.subr.bf16.mxu0 0
  %174 = vmatpush2.bf16.msra.mxu0 0
  %175 = vmatprep.mubr.bf16.mxu0 0
  %176 = vmatmul.mubr.bf16.gmra.mxu0 %v89
  %v177 = vpop.f32.mrf.mxu0
  %v178 = vadd.f32 %v94, %v177
  %v179 = vpop.f32.mrf.mxu0
  %v180 = vpop.f32.mrf.mxu0
  %v181 = vpop.f32.mrf.mxu0
  %182 = vdwg.mxu0
  %vm183 = vcmask 392192
  %v184 = vsel %vm183, %v178, 0.0
  %185 = vadd.xlane.f32.xlu0 %v184
  %v186 = vpop.xlane.xlu0 %185
  %v187 = vrcp.pop 48.0
  %v188 = vmul.f32 %v186, %v187
  %v189 = vsub.f32 %v178, %v188
  %v190 = vmul.f32 %v189, %v189
  %v191 = vsel %vm183, %v190, 0.0
  %192 = vadd.xlane.f32.xlu0 %v191
  %v193 = vpop.xlane.xlu0 %192
  %v194 = vmul.f32 %v193, %v187
  %v195 = vadd.f32 %v194, 1e-05
  %v196 = vrsqrt.pop %v195
  %v197 = vmul.f32 %v189, %v196
  %v198 = vld [vmem:[%s3 + $0x1] sm:$0x1]
  %v199 = vlaneseq
  %v200 = vshrl.u32 %v199, 7
  %v201 = vsub.s32 0, %v200
  %v202 = vrot.slane %v198, %v201
  %v203 = vmul.f32 %v197, %v202
  %v204 = vld [vmem:[%s3 + $0x2] sm:$0x1]
  %v205 = vlaneseq
  %v206 = vshrl.u32 %v205, 7
  %v207 = vsub.s32 0, %v206
  %v208 = vrot.slane %v204, %v207
  %v209 = vadd.f32 %v203, %v208
  %v210 = vld [vmem:[%s4] sm:$0x1]
  %vm211 = vcmask 385024
  %212 = vst.msk [vmem:[#allocation2] sm:$0x1] %vm211, %v210
  %vm213 = vcmask 388096
  %214 = vst.msk [vmem:[#allocation2 + $0x1] sm:$0xf] %vm213, %v209
  %215 = vst.msk [vmem:[#allocation2 + $0x5] sm:$0x1] %vm211, %v210
  %vm216 = vcmask 392196
  %217 = vst.msk [vmem:[#allocation2 + $0x2] sm:$0xf0] %vm216, %v209
  %v218 = vlaneseq
  %v219 = vshrl.u32 %v218, 7
  %v220 = vadd.s32 %v219, 8
  %v221 = vlaneseq
  %v222 = vand.u32 %v221, 127
  %vm223 = vcmp.ge.s32.totalorder %v219, 0
  %vm224 = vcmp.ge.s32.totalorder %v220, 0
  %vm225 = vcmp.lt.s32.totalorder %v219, 5
  %vm226 = vcmp.lt.s32.totalorder %v220, 5
  %vm227 = vmand %vm223, %vm225
  %vm228 = vmand %vm224, %vm226
  %vm229 = vcmp.ge.s32.totalorder %v222, 0
  %vm230 = vmand %vm227, %vm229
  %vm231 = vmand %vm228, %vm229
  %vm232 = vcmp.lt.s32.totalorder %v222, 5
  %vm233 = vmand %vm230, %vm232
  %vm234 = vmand %vm231, %vm232
  %vm235 = vcmp.ge.s32.totalorder %v219, 5
  %vm236 = vcmp.ge.s32.totalorder %v220, 5
  %vm237 = vcmp.lt.s32.totalorder %v219, 10
  %vm238 = vcmp.lt.s32.totalorder %v220, 10
  %vm239 = vmand %vm235, %vm237
  %vm240 = vmand %vm236, %vm238
  %vm241 = vcmp.ge.s32.totalorder %v222, 5
  %vm242 = vmand %vm239, %vm241
  %vm243 = vmand %vm240, %vm241
  %vm244 = vcmp.lt.s32.totalorder %v222, 10
  %vm245 = vmand %vm242, %vm244
  %vm246 = vmand %vm243, %vm244
  %vm247 = vmor %vm233, %vm245
  %vm248 = vmor %vm234, %vm246
  %vm249 = vcmp.le.s32.totalorder %v222, %v219
  %vm250 = vcmp.le.s32.totalorder %v222, %v220
  %vm251 = vmand %vm247, %vm249
  %vm252 = vmand %vm248, %vm250
  %v253 = vsel %vm251, 0.0, -1e+30
  %v254 = vsel %vm252, 0.0, -1e+30
  %v255 = vld [vmem:[#allocation2] sm:$0xff]
  %v256 = vld [vmem:[#allocation2 + $0x8] sm:$0x3]
  %v257 = vld [vmem:[%s5] sm:$0x1]
  %v258 = vld [vmem:[%s5 + $0x1] sm:$0x1]
  %v259 = vld [vmem:[%s5 + $0x2] sm:$0x1]
  %v260 = vld [vmem:[%s5 + $0x3] sm:$0x1]
  %v261 = vmul.f32 %v255, %v255
  %v262 = vmul.f32 %v256, %v256
  %v263 = vsel %vm183, %v261, 0.0
  %264 = vadd.xlane.f32.xlu0 %v263
  %v265 = vpop.xlane.xlu0 %264
  %vm266 = vcmask 386048
  %v267 = vsel %vm266, %v262, 0.0
  %268 = vadd.xlane.f32.xlu0 %v267
  %v269 = vpop.xlane.xlu0 %268
  %v270 = vmul.f32 %v265, %v187
  %v271 = vmul.f32 %v269, %v187
  %v272 = vadd.f32 %v270, 1e-06
  %v273 = vadd.f32 %v271, 1e-06
  %v274 = vrsqrt.pop %v272
  %v275 = vrsqrt.pop %v273
  %v276 = vmul.f32 %v255, %v274
  %v277 = vmul.f32 %v256, %v275
  %v278 = vlaneseq
  %v279 = vshrl.u32 %v278, 7
  %v280 = vsub.s32 0, %v279
  %v281 = vrot.slane %v257, %v280
  %v282 = vmul.f32 %v276, %v281
  %v283 = vmul.f32 %v277, %v281
  %v284 = vld [vmem:[%s6] sm:$0xff]
  %v285 = vld [vmem:[%s6 + $0x8] sm:$0xff]
  %v286 = vld [vmem:[%s6 + $0x10] sm:$0xff]
  %v287 = vld [vmem:[%s6 + $0x18] sm:$0xff]
  %v288 = vld [vmem:[%s6 + $0x20] sm:$0xff]
  %v289 = vld [vmem:[%s6 + $0x28] sm:$0xff]
  %v290 = vpack.c.bf16 %v283, %v282
  %v291 = vld [vmem:[%s7] ss:$2 sm:$0x3]
  %v293 = vlaneseq
  %v294 = vshrl.u32 %v293, 7
  %v295 = vsub.s32 0, %v294
  %v296 = vrot.slane %v291, %v295
  %v297 = vlaneseq
  %v298 = vshrl.u32 %v297, 7
  %v299 = vsub.s32 1, %v298
  %v300 = vrot.slane %v291, %v299
  %v309 = vunpack.c.l.b16 %v284
  %v310 = vunpack.c.h.b16 %v284
  %v311 = vunpack.c.l.b16 %v285
  %v312 = vunpack.c.h.b16 %v285
  %v313 = vunpack.c.l.b16 %v286
  %v314 = vunpack.c.h.b16 %v286
  %v315 = vunpack.c.l.b16 %v287
  %v316 = vunpack.c.h.b16 %v287
  %v317 = vunpack.c.l.b16 %v288
  %v318 = vunpack.c.h.b16 %v288
  %v319 = vunpack.c.l.b16 %v289
  %v320 = vunpack.c.h.b16 %v289
  %v321 = vpack.c.b16 %v311, %v309
  %v322 = vpack.c.b16 %v312, %v310
  %v323 = vpack.c.b16 %v315, %v313
  %v324 = vpack.c.b16 %v316, %v314
  %v325 = vpack.c.b16 %v319, %v317
  %v326 = vpack.c.b16 %v320, %v318
  %v334 = vsel %vm183, %v290, 0
  %336 = vmatprep.subr.bf16.mxu0 0
  %337 = vmatpush1.bf16.msra.mxu0 0
  %338 = vmatprep.subr.bf16.mxu0 0
  %339 = vmatpush1.bf16.msra.mxu0 0
  %340 = vmatprep.subr.bf16.mxu0 0
  %341 = vmatpush1.bf16.msra.mxu0 0
  %342 = vmatprep.subr.bf16.mxu0 0
  %343 = vmatpush1.bf16.msra.mxu0 0
  %344 = vmatprep.subr.bf16.mxu0 0
  %345 = vmatpush1.bf16.msra.mxu0 0
  %346 = vmatprep.subr.bf16.mxu0 %v326
  %347 = vmatpush1.bf16.msra.mxu0 %v325
  %348 = vmatprep.subr.bf16.mxu0 %v324
  %349 = vmatpush1.bf16.msra.mxu0 %v323
  %350 = vmatprep.subr.bf16.mxu0 %v322
  %351 = vmatpush1.bf16.msra.mxu0 %v321
  %352 = vmatprep.subr.bf16.mxu0 0
  %353 = vmatpush2.bf16.msra.mxu0 0
  %354 = vmatprep.subr.bf16.mxu0 0
  %355 = vmatpush2.bf16.msra.mxu0 0
  %356 = vmatprep.subr.bf16.mxu0 0
  %357 = vmatpush2.bf16.msra.mxu0 0
  %358 = vmatprep.subr.bf16.mxu0 0
  %359 = vmatpush2.bf16.msra.mxu0 0
  %360 = vmatprep.subr.bf16.mxu0 0
  %361 = vmatpush2.bf16.msra.mxu0 0
  %362 = vmatprep.subr.bf16.mxu0 0
  %363 = vmatpush2.bf16.msra.mxu0 0
  %364 = vmatprep.subr.bf16.mxu0 0
  %365 = vmatpush2.bf16.msra.mxu0 0
  %366 = vmatprep.subr.bf16.mxu0 0
  %367 = vmatpush2.bf16.msra.mxu0 0
  %368 = vmatprep.mubr.bf16.mxu0 0
  %369 = vmatmul.mubr.bf16.gmra.mxu0 %v334
  %v370 = vpop.f32.mrf.mxu0
  %v371 = vadd.f32 %v296, %v370
  %v372 = vpop.f32.mrf.mxu0
  %v373 = vadd.f32 %v300, %v372
  %v374 = vpop.f32.mrf.mxu0
  %v375 = vadd.f32 %v296, %v374
  %v376 = vpop.f32.mrf.mxu0
  %v377 = vadd.f32 %v300, %v376
  %378 = vdwg.mxu0
  %v379 = vpack.c.bf16 %v375, %v371
  %381 = vrot.lane.b32.xlu0 %v379, 64
  %v382 = vpop.permute.xlu0 %381
  %vm383 = vcmask 130048
  %v385 = vsel %vm383, %v379, 0
  %v388 = vsel %vm383, %v382, 0
  %390 = vmatprep.subr.bf16.mxu0 0
  %391 = vmatpush1.bf16.xpose.msra.mxu0 0
  %392 = vmatprep.subr.bf16.mxu0 0
  %393 = vmatpush1.bf16.xpose.msra.mxu0 0
  %394 = vmatprep.subr.bf16.mxu0 0
  %395 = vmatpush1.bf16.xpose.msra.mxu0 0
  %396 = vmatprep.subr.bf16.mxu0 0
  %397 = vmatpush1.bf16.xpose.msra.mxu0 0
  %398 = vmatprep.subr.bf16.mxu0 0
  %399 = vmatpush1.bf16.xpose.msra.mxu0 0
  %400 = vmatprep.subr.bf16.mxu0 0
  %401 = vmatpush1.bf16.xpose.msra.mxu0 0
  %402 = vmatprep.subr.bf16.mxu0 0
  %403 = vmatpush1.bf16.xpose.msra.mxu0 0
  %404 = vmatprep.subr.bf16.mxu0 0
  %405 = vmatpush1.bf16.xpose.msra.mxu0 %v388
  %406 = vmatprep.subr.bf16.mxu0 0
  %407 = vmatpush2.bf16.xpose.msra.mxu0 0
  %408 = vmatprep.subr.bf16.mxu0 0
  %409 = vmatpush2.bf16.xpose.msra.mxu0 0
  %410 = vmatprep.subr.bf16.mxu0 0
  %411 = vmatpush2.bf16.xpose.msra.mxu0 0
  %412 = vmatprep.subr.bf16.mxu0 0
  %413 = vmatpush2.bf16.xpose.msra.mxu0 0
  %414 = vmatprep.subr.bf16.mxu0 0
  %415 = vmatpush2.bf16.xpose.msra.mxu0 0
  %416 = vmatprep.subr.bf16.mxu0 0
  %417 = vmatpush2.bf16.xpose.msra.mxu0 0
  %418 = vmatprep.subr.bf16.mxu0 0
  %419 = vmatpush2.bf16.xpose.msra.mxu0 0
  %420 = vmatprep.subr.bf16.mxu0 0
  %421 = vmatpush2.bf16.xpose.msra.mxu0 0
  %422 = vmatprep.mubr.bf16.mxu0 0
  %423 = vmatmul.mubr.bf16.gmra.mxu0 %v385
  %v424 = vpop.f32.mrf.mxu0
  %v425 = vadd.f32 %v253, %v424
  %v426 = vpop.f32.mrf.mxu0
  %v427 = vpop.f32.mrf.mxu0
  %v428 = vadd.f32 %v254, %v427
  %v429 = vpop.f32.mrf.mxu0
  %430 = vdwg.mxu0
  %vm431 = vcmask 80896
  %v432 = vsel %vm431, %v425, -inf
  %433 = vmax.xlane.f32.xlu0 %v432
  %v434 = vpop.xlane.xlu0 %433
  %vm435 = vcmask 74752
  %v436 = vsel %vm435, %v428, -inf
  %437 = vmax.xlane.f32.xlu0 %v436
  %v438 = vpop.xlane.xlu0 %437
  %v439 = vsub.f32 %v425, %v434
  %v440 = vsub.f32 %v428, %v438
  %v441 = vmul.f32 %v439, 1.442695
  %v442 = vpow.pop %v441
  %v443 = vmul.f32 %v440, 1.442695
  %v444 = vpow.pop %v443
  %v445 = vsel %vm431, %v442, 0.0
  %446 = vadd.xlane.f32.xlu0 %v445
  %v447 = vpop.xlane.xlu0 %446
  %v448 = vsel %vm435, %v444, 0.0
  %449 = vadd.xlane.f32.xlu0 %v448
  %v450 = vpop.xlane.xlu0 %449
  %v451 = vrcp.pop %v447
  %v452 = vmul.f32 %v442, %v451
  %v453 = vrcp.pop %v450
  %v454 = vmul.f32 %v444, %v453
  %v455 = vpack.c.bf16 %v454, %v452
  %v456 = vpack.c.bf16 %v377, %v373
  %v458 = vsel %vm431, %v455, 0
  %vm460 = vcmask 1044480
  %v462 = vsel %vm460, %v456, 0
  %464 = vmatprep.subr.bf16.mxu0 0
  %465 = vmatpush1.bf16.msra.mxu0 0
  %466 = vmatprep.subr.bf16.mxu0 0
  %467 = vmatpush1.bf16.msra.mxu0 0
  %468 = vmatprep.subr.bf16.mxu0 0
  %469 = vmatpush1.bf16.msra.mxu0 0
  %470 = vmatprep.subr.bf16.mxu0 0
  %471 = vmatpush1.bf16.msra.mxu0 0
  %472 = vmatprep.subr.bf16.mxu0 0
  %473 = vmatpush1.bf16.msra.mxu0 0
  %474 = vmatprep.subr.bf16.mxu0 0
  %475 = vmatpush1.bf16.msra.mxu0 0
  %476 = vmatprep.subr.bf16.mxu0 0
  %477 = vmatpush1.bf16.msra.mxu0 0
  %478 = vmatprep.subr.bf16.mxu0 0
  %479 = vmatpush1.bf16.msra.mxu0 %v462
  %480 = vmatprep.subr.bf16.mxu0 0
  %481 = vmatpush2.bf16.msra.mxu0 0
  %482 = vmatprep.subr.bf16.mxu0 0
  %483 = vmatpush2.bf16.msra.mxu0 0
  %484 = vmatprep.subr.bf16.mxu0 0
  %485 = vmatpush2.bf16.msra.mxu0 0
  %486 = vmatprep.subr.bf16.mxu0 0
  %487 = vmatpush2.bf16.msra.mxu0 0
  %488 = vmatprep.subr.bf16.mxu0 0
  %489 = vmatpush2.bf16.msra.mxu0 0
  %490 = vmatprep.subr.bf16.mxu0 0
  %491 = vmatpush2.bf16.msra.mxu0 0
  %492 = vmatprep.subr.bf16.mxu0 0
  %493 = vmatpush2.bf16.msra.mxu0 0
  %494 = vmatprep.subr.bf16.mxu0 0
  %495 = vmatpush2.bf16.msra.mxu0 0
  %496 = vmatprep.mubr.bf16.mxu0 0
  %497 = vmatmul.mubr.bf16.gmra.mxu0 %v458
  %v498 = vpop.f32.mrf.mxu0
  %v499 = vadd.f32 0.0, %v498
  %v500 = vpop.f32.mrf.mxu0
  %v501 = vpop.f32.mrf.mxu0
  %v502 = vadd.f32 0.0, %v501
  %v503 = vpop.f32.mrf.mxu0
  %504 = vdwg.mxu0
  %505 = vst.msk [vmem:[#allocation3] sm:$0xff] %vm383, %v499
  %vm506 = vcmask 123904
  %507 = vst.msk [vmem:[#allocation3 + $0x8] sm:$0x3] %vm506, %v502
  %508 = vrot.lane.b32.xlu0 %v379, 112
  %v509 = vpop.permute.xlu0 %508
  %510 = vrot.lane.b32.xlu0 %v379, 48
  %v511 = vpop.permute.xlu0 %510
  %v513 = vsel %vm383, %v509, 0
  %v516 = vsel %vm383, %v511, 0
  %518 = vmatprep.subr.bf16.mxu0 0
  %519 = vmatpush1.bf16.xpose.msra.mxu0 0
  %520 = vmatprep.subr.bf16.mxu0 0
  %521 = vmatpush1.bf16.xpose.msra.mxu0 0
  %522 = vmatprep.subr.bf16.mxu0 0
  %523 = vmatpush1.bf16.xpose.msra.mxu0 0
  %524 = vmatprep.subr.bf16.mxu0 0
  %525 = vmatpush1.bf16.xpose.msra.mxu0 0
  %526 = vmatprep.subr.bf16.mxu0 0
  %527 = vmatpush1.bf16.xpose.msra.mxu0 0
  %528 = vmatprep.subr.bf16.mxu0 0
  %529 = vmatpush1.bf16.xpose.msra.mxu0 0
  %530 = vmatprep.subr.bf16.mxu0 0
  %531 = vmatpush1.bf16.xpose.msra.mxu0 0
  %532 = vmatprep.subr.bf16.mxu0 0
  %533 = vmatpush1.bf16.xpose.msra.mxu0 %v516
  %534 = vmatprep.subr.bf16.mxu0 0
  %535 = vmatpush2.bf16.xpose.msra.mxu0 0
  %536 = vmatprep.subr.bf16.mxu0 0
  %537 = vmatpush2.bf16.xpose.msra.mxu0 0
  %538 = vmatprep.subr.bf16.mxu0 0
  %539 = vmatpush2.bf16.xpose.msra.mxu0 0
  %540 = vmatprep.subr.bf16.mxu0 0
  %541 = vmatpush2.bf16.xpose.msra.mxu0 0
  %542 = vmatprep.subr.bf16.mxu0 0
  %543 = vmatpush2.bf16.xpose.msra.mxu0 0
  %544 = vmatprep.subr.bf16.mxu0 0
  %545 = vmatpush2.bf16.xpose.msra.mxu0 0
  %546 = vmatprep.subr.bf16.mxu0 0
  %547 = vmatpush2.bf16.xpose.msra.mxu0 0
  %548 = vmatprep.subr.bf16.mxu0 0
  %549 = vmatpush2.bf16.xpose.msra.mxu0 0
  %550 = vmatprep.mubr.bf16.mxu0 0
  %551 = vmatmul.mubr.bf16.gmra.mxu0 %v513
  %v552 = vpop.f32.mrf.mxu0
  %v553 = vadd.f32 %v253, %v552
  %v554 = vpop.f32.mrf.mxu0
  %v555 = vpop.f32.mrf.mxu0
  %v556 = vadd.f32 %v254, %v555
  %v557 = vpop.f32.mrf.mxu0
  %558 = vdwg.mxu0
  %v559 = vsel %vm431, %v553, -inf
  %560 = vmax.xlane.f32.xlu0 %v559
  %v561 = vpop.xlane.xlu0 %560
  %v562 = vsel %vm435, %v556, -inf
  %563 = vmax.xlane.f32.xlu0 %v562
  %v564 = vpop.xlane.xlu0 %563
  %v565 = vsub.f32 %v553, %v561
  %v566 = vsub.f32 %v556, %v564
  %v567 = vmul.f32 %v565, 1.442695
  %v568 = vpow.pop %v567
  %v569 = vmul.f32 %v566, 1.442695
  %v570 = vpow.pop %v569
  %v571 = vsel %vm431, %v568, 0.0
  %572 = vadd.xlane.f32.xlu0 %v571
  %v573 = vpop.xlane.xlu0 %572
  %v574 = vsel %vm435, %v570, 0.0
  %575 = vadd.xlane.f32.xlu0 %v574
  %v576 = vpop.xlane.xlu0 %575
  %v577 = vrcp.pop %v573
  %v578 = vmul.f32 %v568, %v577
  %v579 = vrcp.pop %v576
  %v580 = vmul.f32 %v570, %v579
  %v581 = vpack.c.bf16 %v580, %v578
  %583 = vrot.lane.b32.xlu0 %v456, 112
  %v584 = vpop.permute.xlu0 %583
  %v586 = vsel %vm431, %v581, 0
  %v589 = vsel %vm460, %v584, 0
  %591 = vmatprep.subr.bf16.mxu0 0
  %592 = vmatpush1.bf16.msra.mxu0 0
  %593 = vmatprep.subr.bf16.mxu0 0
  %594 = vmatpush1.bf16.msra.mxu0 0
  %595 = vmatprep.subr.bf16.mxu0 0
  %596 = vmatpush1.bf16.msra.mxu0 0
  %597 = vmatprep.subr.bf16.mxu0 0
  %598 = vmatpush1.bf16.msra.mxu0 0
  %599 = vmatprep.subr.bf16.mxu0 0
  %600 = vmatpush1.bf16.msra.mxu0 0
  %601 = vmatprep.subr.bf16.mxu0 0
  %602 = vmatpush1.bf16.msra.mxu0 0
  %603 = vmatprep.subr.bf16.mxu0 0
  %604 = vmatpush1.bf16.msra.mxu0 0
  %605 = vmatprep.subr.bf16.mxu0 0
  %606 = vmatpush1.bf16.msra.mxu0 %v589
  %607 = vmatprep.subr.bf16.mxu0 0
  %608 = vmatpush2.bf16.msra.mxu0 0
  %609 = vmatprep.subr.bf16.mxu0 0
  %610 = vmatpush2.bf16.msra.mxu0 0
  %611 = vmatprep.subr.bf16.mxu0 0
  %612 = vmatpush2.bf16.msra.mxu0 0
  %613 = vmatprep.subr.bf16.mxu0 0
  %614 = vmatpush2.bf16.msra.mxu0 0
  %615 = vmatprep.subr.bf16.mxu0 0
  %616 = vmatpush2.bf16.msra.mxu0 0
  %617 = vmatprep.subr.bf16.mxu0 0
  %618 = vmatpush2.bf16.msra.mxu0 0
  %619 = vmatprep.subr.bf16.mxu0 0
  %620 = vmatpush2.bf16.msra.mxu0 0
  %621 = vmatprep.subr.bf16.mxu0 0
  %622 = vmatpush2.bf16.msra.mxu0 0
  %623 = vmatprep.mubr.bf16.mxu0 0
  %624 = vmatmul.mubr.bf16.gmra.mxu0 %v586
  %v625 = vpop.f32.mrf.mxu0
  %v626 = vadd.f32 0.0, %v625
  %v627 = vpop.f32.mrf.mxu0
  %v628 = vpop.f32.mrf.mxu0
  %v629 = vadd.f32 0.0, %v628
  %v630 = vpop.f32.mrf.mxu0
  %631 = vdwg.mxu0
  %634 = vrot.lane.b32.xlu0 %v626, 16
  %v635 = vpop.permute.xlu0 %634
  %636 = vrot.lane.b32.xlu0 %v629, 16
  %v637 = vpop.permute.xlu0 %636
  %vm640 = vcmask 261248
  %641 = vst.msk [vmem:[#allocation3] sm:$0xff] %vm640, %v635
  %vm642 = vcmask 255104
  %643 = vst.msk [vmem:[#allocation3 + $0x8] sm:$0x3] %vm642, %v637
  %644 = vrot.lane.b32.xlu0 %v379, 96
  %v645 = vpop.permute.xlu0 %644
  %646 = vrot.lane.b32.xlu0 %v379, 32
  %v647 = vpop.permute.xlu0 %646
  %v649 = vsel %vm383, %v645, 0
  %v652 = vsel %vm383, %v647, 0
  %654 = vmatprep.subr.bf16.mxu0 0
  %655 = vmatpush1.bf16.xpose.msra.mxu0 0
  %656 = vmatprep.subr.bf16.mxu0 0
  %657 = vmatpush1.bf16.xpose.msra.mxu0 0
  %658 = vmatprep.subr.bf16.mxu0 0
  %659 = vmatpush1.bf16.xpose.msra.mxu0 0
  %660 = vmatprep.subr.bf16.mxu0 0
  %661 = vmatpush1.bf16.xpose.msra.mxu0 0
  %662 = vmatprep.subr.bf16.mxu0 0
  %663 = vmatpush1.bf16.xpose.msra.mxu0 0
  %664 = vmatprep.subr.bf16.mxu0 0
  %665 = vmatpush1.bf16.xpose.msra.mxu0 0
  %666 = vmatprep.subr.bf16.mxu0 0
  %667 = vmatpush1.bf16.xpose.msra.mxu0 0
  %668 = vmatprep.subr.bf16.mxu0 0
  %669 = vmatpush1.bf16.xpose.msra.mxu0 %v652
  %670 = vmatprep.subr.bf16.mxu0 0
  %671 = vmatpush2.bf16.xpose.msra.mxu0 0
  %672 = vmatprep.subr.bf16.mxu0 0
  %673 = vmatpush2.bf16.xpose.msra.mxu0 0
  %674 = vmatprep.subr.bf16.mxu0 0
  %675 = vmatpush2.bf16.xpose.msra.mxu0 0
  %676 = vmatprep.subr.bf16.mxu0 0
  %677 = vmatpush2.bf16.xpose.msra.mxu0 0
  %678 = vmatprep.subr.bf16.mxu0 0
  %679 = vmatpush2.bf16.xpose.msra.mxu0 0
  %680 = vmatprep.subr.bf16.mxu0 0
  %681 = vmatpush2.bf16.xpose.msra.mxu0 0
  %682 = vmatprep.subr.bf16.mxu0 0
  %683 = vmatpush2.bf16.xpose.msra.mxu0 0
  %684 = vmatprep.subr.bf16.mxu0 0
  %685 = vmatpush2.bf16.xpose.msra.mxu0 0
  %686 = vmatprep.mubr.bf16.mxu0 0
  %687 = vmatmul.mubr.bf16.gmra.mxu0 %v649
  %v688 = vpop.f32.mrf.mxu0
  %v689 = vadd.f32 %v253, %v688
  %v690 = vpop.f32.mrf.mxu0
  %v691 = vpop.f32.mrf.mxu0
  %v692 = vadd.f32 %v254, %v691
  %v693 = vpop.f32.mrf.mxu0
  %694 = vdwg.mxu0
  %v695 = vsel %vm431, %v689, -inf
  %696 = vmax.xlane.f32.xlu0 %v695
  %v697 = vpop.xlane.xlu0 %696
  %v698 = vsel %vm435, %v692, -inf
  %699 = vmax.xlane.f32.xlu0 %v698
  %v700 = vpop.xlane.xlu0 %699
  %v701 = vsub.f32 %v689, %v697
  %v702 = vsub.f32 %v692, %v700
  %v703 = vmul.f32 %v701, 1.442695
  %v704 = vpow.pop %v703
  %v705 = vmul.f32 %v702, 1.442695
  %v706 = vpow.pop %v705
  %v707 = vsel %vm431, %v704, 0.0
  %708 = vadd.xlane.f32.xlu0 %v707
  %v709 = vpop.xlane.xlu0 %708
  %v710 = vsel %vm435, %v706, 0.0
  %711 = vadd.xlane.f32.xlu0 %v710
  %v712 = vpop.xlane.xlu0 %711
  %v713 = vrcp.pop %v709
  %v714 = vmul.f32 %v704, %v713
  %v715 = vrcp.pop %v712
  %v716 = vmul.f32 %v706, %v715
  %v717 = vpack.c.bf16 %v716, %v714
  %718 = vrot.lane.b32.xlu0 %v456, 96
  %v719 = vpop.permute.xlu0 %718
  %v721 = vsel %vm431, %v717, 0
  %v724 = vsel %vm460, %v719, 0
  %726 = vmatprep.subr.bf16.mxu0 0
  %727 = vmatpush1.bf16.msra.mxu0 0
  %728 = vmatprep.subr.bf16.mxu0 0
  %729 = vmatpush1.bf16.msra.mxu0 0
  %730 = vmatprep.subr.bf16.mxu0 0
  %731 = vmatpush1.bf16.msra.mxu0 0
  %732 = vmatprep.subr.bf16.mxu0 0
  %733 = vmatpush1.bf16.msra.mxu0 0
  %734 = vmatprep.subr.bf16.mxu0 0
  %735 = vmatpush1.bf16.msra.mxu0 0
  %736 = vmatprep.subr.bf16.mxu0 0
  %737 = vmatpush1.bf16.msra.mxu0 0
  %738 = vmatprep.subr.bf16.mxu0 0
  %739 = vmatpush1.bf16.msra.mxu0 0
  %740 = vmatprep.subr.bf16.mxu0 0
  %741 = vmatpush1.bf16.msra.mxu0 %v724
  %742 = vmatprep.subr.bf16.mxu0 0
  %743 = vmatpush2.bf16.msra.mxu0 0
  %744 = vmatprep.subr.bf16.mxu0 0
  %745 = vmatpush2.bf16.msra.mxu0 0
  %746 = vmatprep.subr.bf16.mxu0 0
  %747 = vmatpush2.bf16.msra.mxu0 0
  %748 = vmatprep.subr.bf16.mxu0 0
  %749 = vmatpush2.bf16.msra.mxu0 0
  %750 = vmatprep.subr.bf16.mxu0 0
  %751 = vmatpush2.bf16.msra.mxu0 0
  %752 = vmatprep.subr.bf16.mxu0 0
  %753 = vmatpush2.bf16.msra.mxu0 0
  %754 = vmatprep.subr.bf16.mxu0 0
  %755 = vmatpush2.bf16.msra.mxu0 0
  %756 = vmatprep.subr.bf16.mxu0 0
  %757 = vmatpush2.bf16.msra.mxu0 0
  %758 = vmatprep.mubr.bf16.mxu0 0
  %759 = vmatmul.mubr.bf16.gmra.mxu0 %v721
  %v760 = vpop.f32.mrf.mxu0
  %v761 = vadd.f32 0.0, %v760
  %v762 = vpop.f32.mrf.mxu0
  %v763 = vpop.f32.mrf.mxu0
  %v764 = vadd.f32 0.0, %v763
  %v765 = vpop.f32.mrf.mxu0
  %766 = vdwg.mxu0
  %769 = vrot.lane.b32.xlu0 %v761, 32
  %v770 = vpop.permute.xlu0 %769
  %771 = vrot.lane.b32.xlu0 %v764, 32
  %v772 = vpop.permute.xlu0 %771
  %vm775 = vcmask 392448
  %776 = vst.msk [vmem:[#allocation3] sm:$0xff] %vm775, %v770
  %vm777 = vcmask 386304
  %778 = vst.msk [vmem:[#allocation3 + $0x8] sm:$0x3] %vm777, %v772
  %779 = vrot.lane.b32.xlu0 %v379, 80
  %v780 = vpop.permute.xlu0 %779
  %781 = vrot.lane.b32.xlu0 %v379, 16
  %v782 = vpop.permute.xlu0 %781
  %v784 = vsel %vm383, %v780, 0
  %v787 = vsel %vm383, %v782, 0
  %789 = vmatprep.subr.bf16.mxu0 0
  %790 = vmatpush1.bf16.xpose.msra.mxu0 0
  %791 = vmatprep.subr.bf16.mxu0 0
  %792 = vmatpush1.bf16.xpose.msra.mxu0 0
  %793 = vmatprep.subr.bf16.mxu0 0
  %794 = vmatpush1.bf16.xpose.msra.mxu0 0
  %795 = vmatprep.subr.bf16.mxu0 0
  %796 = vmatpush1.bf16.xpose.msra.mxu0 0
  %797 = vmatprep.subr.bf16.mxu0 0
  %798 = vmatpush1.bf16.xpose.msra.mxu0 0
  %799 = vmatprep.subr.bf16.mxu0 0
  %800 = vmatpush1.bf16.xpose.msra.mxu0 0
  %801 = vmatprep.subr.bf16.mxu0 0
  %802 = vmatpush1.bf16.xpose.msra.mxu0 0
  %803 = vmatprep.subr.bf16.mxu0 0
  %804 = vmatpush1.bf16.xpose.msra.mxu0 %v787
  %805 = vmatprep.subr.bf16.mxu0 0
  %806 = vmatpush2.bf16.xpose.msra.mxu0 0
  %807 = vmatprep.subr.bf16.mxu0 0
  %808 = vmatpush2.bf16.xpose.msra.mxu0 0
  %809 = vmatprep.subr.bf16.mxu0 0
  %810 = vmatpush2.bf16.xpose.msra.mxu0 0
  %811 = vmatprep.subr.bf16.mxu0 0
  %812 = vmatpush2.bf16.xpose.msra.mxu0 0
  %813 = vmatprep.subr.bf16.mxu0 0
  %814 = vmatpush2.bf16.xpose.msra.mxu0 0
  %815 = vmatprep.subr.bf16.mxu0 0
  %816 = vmatpush2.bf16.xpose.msra.mxu0 0
  %817 = vmatprep.subr.bf16.mxu0 0
  %818 = vmatpush2.bf16.xpose.msra.mxu0 0
  %819 = vmatprep.subr.bf16.mxu0 0
  %820 = vmatpush2.bf16.xpose.msra.mxu0 0
  %821 = vmatprep.mubr.bf16.mxu0 0
  %822 = vmatmul.mubr.bf16.gmra.mxu0 %v784
  %v823 = vpop.f32.mrf.mxu0
  %v824 = vadd.f32 %v253, %v823
  %v825 = vpop.f32.mrf.mxu0
  %v826 = vpop.f32.mrf.mxu0
  %v827 = vadd.f32 %v254, %v826
  %v828 = vpop.f32.mrf.mxu0
  %829 = vdwg.mxu0
  %v830 = vsel %vm431, %v824, -inf
  %831 = vmax.xlane.f32.xlu0 %v830
  %v832 = vpop.xlane.xlu0 %831
  %v833 = vsel %vm435, %v827, -inf
  %834 = vmax.xlane.f32.xlu0 %v833
  %v835 = vpop.xlane.xlu0 %834
  %v836 = vsub.f32 %v824, %v832
  %v837 = vsub.f32 %v827, %v835
  %v838 = vmul.f32 %v836, 1.442695
  %v839 = vpow.pop %v838
  %v840 = vmul.f32 %v837, 1.442695
  %v841 = vpow.pop %v840
  %v842 = vsel %vm431, %v839, 0.0
  %843 = vadd.xlane.f32.xlu0 %v842
  %v844 = vpop.xlane.xlu0 %843
  %v845 = vsel %vm435, %v841, 0.0
  %846 = vadd.xlane.f32.xlu0 %v845
  %v847 = vpop.xlane.xlu0 %846
  %v848 = vrcp.pop %v844
  %v849 = vmul.f32 %v839, %v848
  %v850 = vrcp.pop %v847
  %v851 = vmul.f32 %v841, %v850
  %v852 = vpack.c.bf16 %v851, %v849
  %853 = vrot.lane.b32.xlu0 %v456, 80
  %v854 = vpop.permute.xlu0 %853
  %v856 = vsel %vm431, %v852, 0
  %v859 = vsel %vm460, %v854, 0
  %861 = vmatprep.subr.bf16.mxu0 0
  %862 = vmatpush1.bf16.msra.mxu0 0
  %863 = vmatprep.subr.bf16.mxu0 0
  %864 = vmatpush1.bf16.msra.mxu0 0
  %865 = vmatprep.subr.bf16.mxu0 0
  %866 = vmatpush1.bf16.msra.mxu0 0
  %867 = vmatprep.subr.bf16.mxu0 0
  %868 = vmatpush1.bf16.msra.mxu0 0
  %869 = vmatprep.subr.bf16.mxu0 0
  %870 = vmatpush1.bf16.msra.mxu0 0
  %871 = vmatprep.subr.bf16.mxu0 0
  %872 = vmatpush1.bf16.msra.mxu0 0
  %873 = vmatprep.subr.bf16.mxu0 0
  %874 = vmatpush1.bf16.msra.mxu0 0
  %875 = vmatprep.subr.bf16.mxu0 0
  %876 = vmatpush1.bf16.msra.mxu0 %v859
  %877 = vmatprep.subr.bf16.mxu0 0
  %878 = vmatpush2.bf16.msra.mxu0 0
  %879 = vmatprep.subr.bf16.mxu0 0
  %880 = vmatpush2.bf16.msra.mxu0 0
  %881 = vmatprep.subr.bf16.mxu0 0
  %882 = vmatpush2.bf16.msra.mxu0 0
  %883 = vmatprep.subr.bf16.mxu0 0
  %884 = vmatpush2.bf16.msra.mxu0 0
  %885 = vmatprep.subr.bf16.mxu0 0
  %886 = vmatpush2.bf16.msra.mxu0 0
  %887 = vmatprep.subr.bf16.mxu0 0
  %888 = vmatpush2.bf16.msra.mxu0 0
  %889 = vmatprep.subr.bf16.mxu0 0
  %890 = vmatpush2.bf16.msra.mxu0 0
  %891 = vmatprep.subr.bf16.mxu0 0
  %892 = vmatpush2.bf16.msra.mxu0 0
  %893 = vmatprep.mubr.bf16.mxu0 0
  %894 = vmatmul.mubr.bf16.gmra.mxu0 %v856
  %v895 = vpop.f32.mrf.mxu0
  %v896 = vadd.f32 0.0, %v895
  %v897 = vpop.f32.mrf.mxu0
  %v898 = vpop.f32.mrf.mxu0
  %v899 = vadd.f32 0.0, %v898
  %v900 = vpop.f32.mrf.mxu0
  %901 = vdwg.mxu0
  %904 = vrot.lane.b32.xlu0 %v896, 48
  %v905 = vpop.permute.xlu0 %904
  %906 = vrot.lane.b32.xlu0 %v899, 48
  %v907 = vpop.permute.xlu0 %906
  %vm910 = vcmask 523648
  %911 = vst.msk [vmem:[#allocation3] sm:$0xff] %vm910, %v905
  %vm912 = vcmask 517504
  %913 = vst.msk [vmem:[#allocation3 + $0x8] sm:$0x3] %vm912, %v907
  %v914 = vld [vmem:[#allocation3] sm:$0xff]
  %v915 = vld [vmem:[#allocation3 + $0x8] sm:$0x3]
  %v916 = vld [vmem:[%s8] sm:$0xf]
  %v917 = vld [vmem:[%s8 + $0x4] sm:$0xf]
  %v918 = vld [vmem:[%s8 + $0x8] sm:$0xf]
  %v919 = vld [vmem:[%s8 + $0xc] sm:$0xf]
  %v920 = vld [vmem:[%s8 + $0x10] sm:$0xf]
  %v921 = vld [vmem:[%s8 + $0x14] sm:$0xf]
  %v922 = vld [vmem:[%s8 + $0x18] sm:$0xf]
  %v923 = vld [vmem:[%s8 + $0x1c] sm:$0xf]
  %v924 = vpack.c.bf16 %v915, %v914
  %v933 = vunpack.c.l.b16 %v916
  %v934 = vunpack.c.l.b16 %v917
  %v935 = vunpack.c.l.b16 %v918
  %v936 = vunpack.c.l.b16 %v919
  %v937 = vunpack.c.l.b16 %v920
  %v938 = vunpack.c.l.b16 %v921
  %v939 = vunpack.c.l.b16 %v922
  %v940 = vunpack.c.l.b16 %v923
  %v941 = vpack.c.b16 %v934, %v933
  %v942 = vpack.c.b16 %v936, %v935
  %v943 = vpack.c.b16 %v938, %v937
  %v944 = vpack.c.b16 %v940, %v939
  %vm949 = vcmask 523264
  %v951 = vsel %vm949, %v924, 0
  %953 = vmatprep.subr.bf16.mxu0 0
  %954 = vmatpush1.bf16.msra.mxu0 0
  %955 = vmatprep.subr.bf16.mxu0 0
  %956 = vmatpush1.bf16.msra.mxu0 0
  %957 = vmatprep.subr.bf16.mxu0 0
  %958 = vmatpush1.bf16.msra.mxu0 0
  %959 = vmatprep.subr.bf16.mxu0 0
  %960 = vmatpush1.bf16.msra.mxu0 0
  %961 = vmatprep.subr.bf16.mxu0 0
  %962 = vmatpush1.bf16.msra.mxu0 %v944
  %963 = vmatprep.subr.bf16.mxu0 0
  %964 = vmatpush1.bf16.msra.mxu0 %v943
  %965 = vmatprep.subr.bf16.mxu0 0
  %966 = vmatpush1.bf16.msra.mxu0 %v942
  %967 = vmatprep.subr.bf16.mxu0 0
  %968 = vmatpush1.bf16.msra.mxu0 %v941
  %969 = vmatprep.subr.bf16.mxu0 0
  %970 = vmatpush2.bf16.msra.mxu0 0
  %971 = vmatprep.subr.bf16.mxu0 0
  %972 = vmatpush2.bf16.msra.mxu0 0
  %973 = vmatprep.subr.bf16.mxu0 0
  %974 = vmatpush2.bf16.msra.mxu0 0
  %975 = vmatprep.subr.bf16.mxu0 0
  %976 = vmatpush2.bf16.msra.mxu0 0
  %977 = vmatprep.subr.bf16.mxu0 0
  %978 = vmatpush2.bf16.msra.mxu0 0
  %979 = vmatprep.subr.bf16.mxu0 0
  %980 = vmatpush2.bf16.msra.mxu0 0
  %981 = vmatprep.subr.bf16.mxu0 0
  %982 = vmatpush2.bf16.msra.mxu0 0
  %983 = vmatprep.subr.bf16.mxu0 0
  %984 = vmatpush2.bf16.msra.mxu0 0
  %985 = vmatprep.mubr.bf16.mxu0 0
  %986 = vmatmul.mubr.bf16.gmra.mxu0 %v951
  %v987 = vpop.f32.mrf.mxu0
  %v988 = vadd.f32 0.0, %v987
  %v989 = vpop.f32.mrf.mxu0
  %v990 = vpop.f32.mrf.mxu0
  %v991 = vadd.f32 0.0, %v990
  %v992 = vpop.f32.mrf.mxu0
  %993 = vdwg.mxu0
  %v994 = vadd.f32 %v255, %v988
  %v995 = vadd.f32 %v256, %v991
  %v996 = vlaneseq
  %v997 = vshrl.u32 %v996, 7
  %v998 = vsub.s32 0, %v997
  %v999 = vrot.slane %v258, %v998
  %v1000 = vadd.f32 %v994, %v999
  %v1001 = vadd.f32 %v995, %v999
  %v1002 = vmul.f32 %v1000, %v1000
  %v1003 = vmul.f32 %v1001, %v1001
  %v1004 = vsel %vm183, %v1002, 0.0
  %1005 = vadd.xlane.f32.xlu0 %v1004
  %v1006 = vpop.xlane.xlu0 %1005
  %v1007 = vsel %vm266, %v1003, 0.0
  %1008 = vadd.xlane.f32.xlu0 %v1007
  %v1009 = vpop.xlane.xlu0 %1008
  %v1010 = vmul.f32 %v1006, %v187
  %v1011 = vmul.f32 %v1009, %v187
  %v1012 = vadd.f32 %v1010, 1e-06
  %v1013 = vadd.f32 %v1011, 1e-06
  %v1014 = vrsqrt.pop %v1012
  %v1015 = vrsqrt.pop %v1013
  %v1016 = vmul.f32 %v1000, %v1014
  %v1017 = vmul.f32 %v1001, %v1015
  %v1018 = vlaneseq
  %v1019 = vshrl.u32 %v1018, 7
  %v1020 = vsub.s32 0, %v1019
  %v1021 = vrot.slane %v259, %v1020
  %v1022 = vmul.f32 %v1016, %v1021
  %v1023 = vmul.f32 %v1017, %v1021
  %v1024 = vld [vmem:[%s9] sm:$0xff]
  %v1025 = vld [vmem:[%s9 + $0x8] sm:$0xff]
  %v1026 = vld [vmem:[%s9 + $0x10] sm:$0xff]
  %v1027 = vld [vmem:[%s9 + $0x18] sm:$0xff]
  %v1028 = vld [vmem:[%s9 + $0x20] sm:$0xff]
  %v1029 = vld [vmem:[%s9 + $0x28] sm:$0xff]
  %v1030 = vpack.c.bf16 %v1023, %v1022
  %v1031 = vld [vmem:[%s10] ss:$2 sm:$0x3]
  %v1033 = vlaneseq
  %v1034 = vshrl.u32 %v1033, 7
  %v1035 = vsub.s32 0, %v1034
  %v1036 = vrot.slane %v1031, %v1035
  %v1037 = vlaneseq
  %v1038 = vshrl.u32 %v1037, 7
  %v1039 = vsub.s32 1, %v1038
  %v1040 = vrot.slane %v1031, %v1039
  %v1049 = vunpack.c.l.b16 %v1024
  %v1050 = vunpack.c.h.b16 %v1024
  %v1051 = vunpack.c.l.b16 %v1025
  %v1052 = vunpack.c.h.b16 %v1025
  %v1053 = vunpack.c.l.b16 %v1026
  %v1054 = vunpack.c.h.b16 %v1026
  %v1055 = vunpack.c.l.b16 %v1027
  %v1056 = vunpack.c.h.b16 %v1027
  %v1057 = vunpack.c.l.b16 %v1028
  %v1058 = vunpack.c.h.b16 %v1028
  %v1059 = vunpack.c.l.b16 %v1029
  %v1060 = vunpack.c.h.b16 %v1029
  %v1061 = vpack.c.b16 %v1051, %v1049
  %v1062 = vpack.c.b16 %v1052, %v1050
  %v1063 = vpack.c.b16 %v1055, %v1053
  %v1064 = vpack.c.b16 %v1056, %v1054
  %v1065 = vpack.c.b16 %v1059, %v1057
  %v1066 = vpack.c.b16 %v1060, %v1058
  %v1074 = vsel %vm183, %v1030, 0
  %1076 = vmatprep.subr.bf16.mxu0 0
  %1077 = vmatpush1.bf16.msra.mxu0 0
  %1078 = vmatprep.subr.bf16.mxu0 0
  %1079 = vmatpush1.bf16.msra.mxu0 0
  %1080 = vmatprep.subr.bf16.mxu0 0
  %1081 = vmatpush1.bf16.msra.mxu0 0
  %1082 = vmatprep.subr.bf16.mxu0 0
  %1083 = vmatpush1.bf16.msra.mxu0 0
  %1084 = vmatprep.subr.bf16.mxu0 0
  %1085 = vmatpush1.bf16.msra.mxu0 0
  %1086 = vmatprep.subr.bf16.mxu0 %v1066
  %1087 = vmatpush1.bf16.msra.mxu0 %v1065
  %1088 = vmatprep.subr.bf16.mxu0 %v1064
  %1089 = vmatpush1.bf16.msra.mxu0 %v1063
  %1090 = vmatprep.subr.bf16.mxu0 %v1062
  %1091 = vmatpush1.bf16.msra.mxu0 %v1061
  %1092 = vmatprep.subr.bf16.mxu0 0
  %1093 = vmatpush2.bf16.msra.mxu0 0
  %1094 = vmatprep.subr.bf16.mxu0 0
  %1095 = vmatpush2.bf16.msra.mxu0 0
  %1096 = vmatprep.subr.bf16.mxu0 0
  %1097 = vmatpush2.bf16.msra.mxu0 0
  %1098 = vmatprep.subr.bf16.mxu0 0
  %1099 = vmatpush2.bf16.msra.mxu0 0
  %1100 = vmatprep.subr.bf16.mxu0 0
  %1101 = vmatpush2.bf16.msra.mxu0 0
  %1102 = vmatprep.subr.bf16.mxu0 0
  %1103 = vmatpush2.bf16.msra.mxu0 0
  %1104 = vmatprep.subr.bf16.mxu0 0
  %1105 = vmatpush2.bf16.msra.mxu0 0
  %1106 = vmatprep.subr.bf16.mxu0 0
  %1107 = vmatpush2.bf16.msra.mxu0 0
  %1108 = vmatprep.mubr.bf16.mxu0 0
  %1109 = vmatmul.mubr.bf16.gmra.mxu0 %v1074
  %v1110 = vpop.f32.mrf.mxu0
  %v1111 = vadd.f32 %v1036, %v1110
  %v1112 = vpop.f32.mrf.mxu0
  %v1113 = vadd.f32 %v1040, %v1112
  %v1114 = vpop.f32.mrf.mxu0
  %v1115 = vadd.f32 %v1036, %v1114
  %v1116 = vpop.f32.mrf.mxu0
  %v1117 = vadd.f32 %v1040, %v1116
  %1118 = vdwg.mxu0
  %v1119 = vmul.f32 %v1111, %v1111
  %v1120 = vmul.f32 %v1113, %v1113
  %v1121 = vmul.f32 %v1115, %v1115
  %v1122 = vmul.f32 %v1117, %v1117
  %v1123 = vmul.f32 %v1111, %v1119
  %v1124 = vmul.f32 %v1113, %v1120
  %v1125 = vmul.f32 %v1115, %v1121
  %v1126 = vmul.f32 %v1117, %v1122
  %v1127 = vmul.f32 %v1123, 0.044715
  %v1128 = vmul.f32 %v1124, 0.044715
  %v1129 = vmul.f32 %v1125, 0.044715
  %v1130 = vmul.f32 %v1126, 0.044715
  %v1131 = vadd.f32 %v1111, %v1127
  %v1132 = vadd.f32 %v1113, %v1128
  %v1133 = vadd.f32 %v1115, %v1129
  %v1134 = vadd.f32 %v1117, %v1130
  %v1135 = vmul.f32 %v1131, 0.7978846
  %v1136 = vmul.f32 %v1132, 0.7978846
  %v1137 = vmul.f32 %v1133, 0.7978846
  %v1138 = vmul.f32 %v1134, 0.7978846
  %v1139 = vtanh.pop %v1135
  %v1140 = vtanh.pop %v1136
  %v1141 = vtanh.pop %v1137
  %v1142 = vtanh.pop %v1138
  %v1143 = vadd.f32 %v1139, 1.0
  %v1144 = vadd.f32 %v1140, 1.0
  %v1145 = vadd.f32 %v1141, 1.0
  %v1146 = vadd.f32 %v1142, 1.0
  %v1147 = vmul.f32 %v1143, 0.5
  %v1148 = vmul.f32 %v1144, 0.5
  %v1149 = vmul.f32 %v1145, 0.5
  %v1150 = vmul.f32 %v1146, 0.5
  %v1151 = vmul.f32 %v1111, %v1147
  %v1152 = vmul.f32 %v1113, %v1148
  %v1153 = vmul.f32 %v1115, %v1149
  %v1154 = vmul.f32 %v1117, %v1150
  %v1155 = vld [vmem:[%s11] sm:$0xf]
  %v1156 = vld [vmem:[%s11 + $0x4] sm:$0xf]
  %v1157 = vld [vmem:[%s11 + $0x8] sm:$0xf]
  %v1158 = vld [vmem:[%s11 + $0xc] sm:$0xf]
  %v1159 = vld [vmem:[%s11 + $0x10] sm:$0xf]
  %v1160 = vld [vmem:[%s11 + $0x14] sm:$0xf]
  %v1161 = vld [vmem:[%s11 + $0x18] sm:$0xf]
  %v1162 = vld [vmem:[%s11 + $0x1c] sm:$0xf]
  %v1163 = vld [vmem:[%s11 + $0x20] sm:$0xf]
  %v1164 = vld [vmem:[%s11 + $0x24] sm:$0xf]
  %v1165 = vld [vmem:[%s11 + $0x28] sm:$0xf]
  %v1166 = vld [vmem:[%s11 + $0x2c] sm:$0xf]
  %v1167 = vld [vmem:[%s11 + $0x30] sm:$0xf]
  %v1168 = vld [vmem:[%s11 + $0x34] sm:$0xf]
  %v1169 = vld [vmem:[%s11 + $0x38] sm:$0xf]
  %v1170 = vld [vmem:[%s11 + $0x3c] sm:$0xf]
  %v1171 = vld [vmem:[%s11 + $0x40] sm:$0xf]
  %v1172 = vld [vmem:[%s11 + $0x44] sm:$0xf]
  %v1173 = vld [vmem:[%s11 + $0x48] sm:$0xf]
  %v1174 = vld [vmem:[%s11 + $0x4c] sm:$0xf]
  %v1175 = vld [vmem:[%s11 + $0x50] sm:$0xf]
  %v1176 = vld [vmem:[%s11 + $0x54] sm:$0xf]
  %v1177 = vld [vmem:[%s11 + $0x58] sm:$0xf]
  %v1178 = vld [vmem:[%s11 + $0x5c] sm:$0xf]
  %v1179 = vpack.c.bf16 %v1153, %v1151
  %v1180 = vpack.c.bf16 %v1154, %v1152
  %v1181 = vlaneseq
  %v1182 = vshrl.u32 %v1181, 7
  %v1183 = vsub.s32 0, %v1182
  %v1184 = vrot.slane %v260, %v1183
  %v1209 = vunpack.c.l.b16 %v1155
  %v1210 = vunpack.c.l.b16 %v1156
  %v1211 = vunpack.c.l.b16 %v1157
  %v1212 = vunpack.c.l.b16 %v1158
  %v1213 = vunpack.c.l.b16 %v1159
  %v1214 = vunpack.c.l.b16 %v1160
  %v1215 = vunpack.c.l.b16 %v1161
  %v1216 = vunpack.c.l.b16 %v1162
  %v1217 = vunpack.c.l.b16 %v1163
  %v1218 = vunpack.c.l.b16 %v1164
  %v1219 = vunpack.c.l.b16 %v1165
  %v1220 = vunpack.c.l.b16 %v1166
  %v1221 = vunpack.c.l.b16 %v1167
  %v1222 = vunpack.c.l.b16 %v1168
  %v1223 = vunpack.c.l.b16 %v1169
  %v1224 = vunpack.c.l.b16 %v1170
  %v1225 = vunpack.c.l.b16 %v1171
  %v1226 = vunpack.c.l.b16 %v1172
  %v1227 = vunpack.c.l.b16 %v1173
  %v1228 = vunpack.c.l.b16 %v1174
  %v1229 = vunpack.c.l.b16 %v1175
  %v1230 = vunpack.c.l.b16 %v1176
  %v1231 = vunpack.c.l.b16 %v1177
  %v1232 = vunpack.c.l.b16 %v1178
  %v1233 = vpack.c.b16 %v1210, %v1209
  %v1234 = vpack.c.b16 %v1212, %v1211
  %v1235 = vpack.c.b16 %v1214, %v1213
  %v1236 = vpack.c.b16 %v1216, %v1215
  %v1237 = vpack.c.b16 %v1218, %v1217
  %v1238 = vpack.c.b16 %v1220, %v1219
  %v1239 = vpack.c.b16 %v1222, %v1221
  %v1240 = vpack.c.b16 %v1224, %v1223
  %v1241 = vpack.c.b16 %v1226, %v1225
  %v1242 = vpack.c.b16 %v1228, %v1227
  %v1243 = vpack.c.b16 %v1230, %v1229
  %v1244 = vpack.c.b16 %v1232, %v1231
  %v1258 = vsel %vm949, %v1180, 0
  %1260 = vmatprep.subr.bf16.mxu0 0
  %1261 = vmatpush1.bf16.msra.mxu0 %v1240
  %1262 = vmatprep.subr.bf16.mxu0 0
  %1263 = vmatpush1.bf16.msra.mxu0 %v1239
  %1264 = vmatprep.subr.bf16.mxu0 0
  %1265 = vmatpush1.bf16.msra.mxu0 %v1238
  %1266 = vmatprep.subr.bf16.mxu0 0
  %1267 = vmatpush1.bf16.msra.mxu0 %v1237
  %1268 = vmatprep.subr.bf16.mxu0 0
  %1269 = vmatpush1.bf16.msra.mxu0 %v1236
  %1270 = vmatprep.subr.bf16.mxu0 0
  %1271 = vmatpush1.bf16.msra.mxu0 %v1235
  %1272 = vmatprep.subr.bf16.mxu0 0
  %1273 = vmatpush1.bf16.msra.mxu0 %v1234
  %1274 = vmatprep.subr.bf16.mxu0 0
  %1275 = vmatpush1.bf16.msra.mxu0 %v1233
  %1276 = vmatprep.subr.bf16.mxu0 0
  %1277 = vmatpush2.bf16.msra.mxu0 0
  %1278 = vmatprep.subr.bf16.mxu0 0
  %1279 = vmatpush2.bf16.msra.mxu0 0
  %1280 = vmatprep.subr.bf16.mxu0 0
  %1281 = vmatpush2.bf16.msra.mxu0 0
  %1282 = vmatprep.subr.bf16.mxu0 0
  %1283 = vmatpush2.bf16.msra.mxu0 0
  %1284 = vmatprep.subr.bf16.mxu0 0
  %1285 = vmatpush2.bf16.msra.mxu0 %v1244
  %1286 = vmatprep.subr.bf16.mxu0 0
  %1287 = vmatpush2.bf16.msra.mxu0 %v1243
  %1288 = vmatprep.subr.bf16.mxu0 0
  %1289 = vmatpush2.bf16.msra.mxu0 %v1242
  %1290 = vmatprep.subr.bf16.mxu0 0
  %1291 = vmatpush2.bf16.msra.mxu0 %v1241
  %1292 = vmatprep.mubr.bf16.mxu0 %v1258
  %1293 = vmatmul.mubr.bf16.gmra.mxu0 %v1179
  %v1294 = vpop.f32.mrf.mxu0
  %v1295 = vadd.f32 %v1184, %v1294
  %v1296 = vpop.f32.mrf.mxu0
  %v1297 = vpop.f32.mrf.mxu0
  %v1298 = vadd.f32 %v1184, %v1297
  %v1299 = vpop.f32.mrf.mxu0
  %1300 = vdwg.mxu0
  %v1301 = vadd.f32 %v1000, %v1295
  %v1302 = vadd.f32 %v1001, %v1298
  %v1303 = vld [vmem:[%s5 + $0x4] sm:$0x1]
  %v1304 = vld [vmem:[%s5 + $0x5] sm:$0x1]
  %v1305 = vld [vmem:[%s5 + $0x6] sm:$0x1]
  %v1306 = vld [vmem:[%s5 + $0x7] sm:$0x1]
  %v1307 = vmul.f32 %v1301, %v1301
  %v1308 = vmul.f32 %v1302, %v1302
  %v1309 = vsel %vm183, %v1307, 0.0
  %1310 = vadd.xlane.f32.xlu0 %v1309
  %v1311 = vpop.xlane.xlu0 %1310
  %v1312 = vsel %vm266, %v1308, 0.0
  %1313 = vadd.xlane.f32.xlu0 %v1312
  %v1314 = vpop.xlane.xlu0 %1313
  %v1315 = vmul.f32 %v1311, %v187
  %v1316 = vmul.f32 %v1314, %v187
  %v1317 = vadd.f32 %v1315, 1e-06
  %v1318 = vadd.f32 %v1316, 1e-06
  %v1319 = vrsqrt.pop %v1317
  %v1320 = vrsqrt.pop %v1318
  %v1321 = vmul.f32 %v1301, %v1319
  %v1322 = vmul.f32 %v1302, %v1320
  %v1323 = vlaneseq
  %v1324 = vshrl.u32 %v1323, 7
  %v1325 = vsub.s32 0, %v1324
  %v1326 = vrot.slane %v1303, %v1325
  %v1327 = vmul.f32 %v1321, %v1326
  %v1328 = vmul.f32 %v1322, %v1326
  %s1329 = scalar_lea.vmem %s6, 48
  %v1330 = vld [vmem:[%s1329] sm:$0xff]
  %v1331 = vld [vmem:[%s1329 + $0x8] sm:$0xff]
  %v1332 = vld [vmem:[%s1329 + $0x10] sm:$0xff]
  %v1333 = vld [vmem:[%s1329 + $0x18] sm:$0xff]
  %v1334 = vld [vmem:[%s1329 + $0x20] sm:$0xff]
  %v1335 = vld [vmem:[%s1329 + $0x28] sm:$0xff]
  %v1336 = vpack.c.bf16 %v1328, %v1327
  %s1337 = scalar_lea.vmem %s7, 1
  %v1338 = vld [vmem:[%s1337] ss:$2 sm:$0x3]
  %v1340 = vlaneseq
  %v1341 = vshrl.u32 %v1340, 7
  %v1342 = vsub.s32 0, %v1341
  %v1343 = vrot.slane %v1338, %v1342
  %v1344 = vlaneseq
  %v1345 = vshrl.u32 %v1344, 7
  %v1346 = vsub.s32 1, %v1345
  %v1347 = vrot.slane %v1338, %v1346
  %v1356 = vunpack.c.l.b16 %v1330
  %v1357 = vunpack.c.h.b16 %v1330
  %v1358 = vunpack.c.l.b16 %v1331
  %v1359 = vunpack.c.h.b16 %v1331
  %v1360 = vunpack.c.l.b16 %v1332
  %v1361 = vunpack.c.h.b16 %v1332
  %v1362 = vunpack.c.l.b16 %v1333
  %v1363 = vunpack.c.h.b16 %v1333
  %v1364 = vunpack.c.l.b16 %v1334
  %v1365 = vunpack.c.h.b16 %v1334
  %v1366 = vunpack.c.l.b16 %v1335
  %v1367 = vunpack.c.h.b16 %v1335
  %v1368 = vpack.c.b16 %v1358, %v1356
  %v1369 = vpack.c.b16 %v1359, %v1357
  %v1370 = vpack.c.b16 %v1362, %v1360
  %v1371 = vpack.c.b16 %v1363, %v1361
  %v1372 = vpack.c.b16 %v1366, %v1364
  %v1373 = vpack.c.b16 %v1367, %v1365
  %v1381 = vsel %vm183, %v1336, 0
  %1383 = vmatprep.subr.bf16.mxu0 0
  %1384 = vmatpush1.bf16.msra.mxu0 0
  %1385 = vmatprep.subr.bf16.mxu0 0
  %1386 = vmatpush1.bf16.msra.mxu0 0
  %1387 = vmatprep.subr.bf16.mxu0 0
  %1388 = vmatpush1.bf16.msra.mxu0 0
  %1389 = vmatprep.subr.bf16.mxu0 0
  %1390 = vmatpush1.bf16.msra.mxu0 0
  %1391 = vmatprep.subr.bf16.mxu0 0
  %1392 = vmatpush1.bf16.msra.mxu0 0
  %1393 = vmatprep.subr.bf16.mxu0 %v1373
  %1394 = vmatpush1.bf16.msra.mxu0 %v1372
  %1395 = vmatprep.subr.bf16.mxu0 %v1371
  %1396 = vmatpush1.bf16.msra.mxu0 %v1370
  %1397 = vmatprep.subr.bf16.mxu0 %v1369
  %1398 = vmatpush1.bf16.msra.mxu0 %v1368
  %1399 = vmatprep.subr.bf16.mxu0 0
  %1400 = vmatpush2.bf16.msra.mxu0 0
  %1401 = vmatprep.subr.bf16.mxu0 0
  %1402 = vmatpush2.bf16.msra.mxu0 0
  %1403 = vmatprep.subr.bf16.mxu0 0
  %1404 = vmatpush2.bf16.msra.mxu0 0
  %1405 = vmatprep.subr.bf16.mxu0 0
  %1406 = vmatpush2.bf16.msra.mxu0 0
  %1407 = vmatprep.subr.bf16.mxu0 0
  %1408 = vmatpush2.bf16.msra.mxu0 0
  %1409 = vmatprep.subr.bf16.mxu0 0
  %1410 = vmatpush2.bf16.msra.mxu0 0
  %1411 = vmatprep.subr.bf16.mxu0 0
  %1412 = vmatpush2.bf16.msra.mxu0 0
  %1413 = vmatprep.subr.bf16.mxu0 0
  %1414 = vmatpush2.bf16.msra.mxu0 0
  %1415 = vmatprep.mubr.bf16.mxu0 0
  %1416 = vmatmul.mubr.bf16.gmra.mxu0 %v1381
  %v1417 = vpop.f32.mrf.mxu0
  %v1418 = vadd.f32 %v1343, %v1417
  %v1419 = vpop.f32.mrf.mxu0
  %v1420 = vadd.f32 %v1347, %v1419
  %v1421 = vpop.f32.mrf.mxu0
  %v1422 = vadd.f32 %v1343, %v1421
  %v1423 = vpop.f32.mrf.mxu0
  %v1424 = vadd.f32 %v1347, %v1423
  %1425 = vdwg.mxu0
  %v1426 = vpack.c.bf16 %v1422, %v1418
  %1428 = vrot.lane.b32.xlu0 %v1426, 64
  %v1429 = vpop.permute.xlu0 %1428
  %v1431 = vsel %vm383, %v1426, 0
  %v1434 = vsel %vm383, %v1429, 0
  %1436 = vmatprep.subr.bf16.mxu0 0
  %1437 = vmatpush1.bf16.xpose.msra.mxu0 0
  %1438 = vmatprep.subr.bf16.mxu0 0
  %1439 = vmatpush1.bf16.xpose.msra.mxu0 0
  %1440 = vmatprep.subr.bf16.mxu0 0
  %1441 = vmatpush1.bf16.xpose.msra.mxu0 0
  %1442 = vmatprep.subr.bf16.mxu0 0
  %1443 = vmatpush1.bf16.xpose.msra.mxu0 0
  %1444 = vmatprep.subr.bf16.mxu0 0
  %1445 = vmatpush1.bf16.xpose.msra.mxu0 0
  %1446 = vmatprep.subr.bf16.mxu0 0
  %1447 = vmatpush1.bf16.xpose.msra.mxu0 0
  %1448 = vmatprep.subr.bf16.mxu0 0
  %1449 = vmatpush1.bf16.xpose.msra.mxu0 0
  %1450 = vmatprep.subr.bf16.mxu0 0
  %1451 = vmatpush1.bf16.xpose.msra.mxu0 %v1434
  %1452 = vmatprep.subr.bf16.mxu0 0
  %1453 = vmatpush2.bf16.xpose.msra.mxu0 0
  %1454 = vmatprep.subr.bf16.mxu0 0
  %1455 = vmatpush2.bf16.xpose.msra.mxu0 0
  %1456 = vmatprep.subr.bf16.mxu0 0
  %1457 = vmatpush2.bf16.xpose.msra.mxu0 0
  %1458 = vmatprep.subr.bf16.mxu0 0
  %1459 = vmatpush2.bf16.xpose.msra.mxu0 0
  %1460 = vmatprep.subr.bf16.mxu0 0
  %1461 = vmatpush2.bf16.xpose.msra.mxu0 0
  %1462 = vmatprep.subr.bf16.mxu0 0
  %1463 = vmatpush2.bf16.xpose.msra.mxu0 0
  %1464 = vmatprep.subr.bf16.mxu0 0
  %1465 = vmatpush2.bf16.xpose.msra.mxu0 0
  %1466 = vmatprep.subr.bf16.mxu0 0
  %1467 = vmatpush2.bf16.xpose.msra.mxu0 0
  %1468 = vmatprep.mubr.bf16.mxu0 0
  %1469 = vmatmul.mubr.bf16.gmra.mxu0 %v1431
  %v1470 = vpop.f32.mrf.mxu0
  %v1471 = vadd.f32 %v253, %v1470
  %v1472 = vpop.f32.mrf.mxu0
  %v1473 = vpop.f32.mrf.mxu0
  %v1474 = vadd.f32 %v254, %v1473
  %v1475 = vpop.f32.mrf.mxu0
  %1476 = vdwg.mxu0
  %v1477 = vsel %vm431, %v1471, -inf
  %1478 = vmax.xlane.f32.xlu0 %v1477
  %v1479 = vpop.xlane.xlu0 %1478
  %v1480 = vsel %vm435, %v1474, -inf
  %1481 = vmax.xlane.f32.xlu0 %v1480
  %v1482 = vpop.xlane.xlu0 %1481
  %v1483 = vsub.f32 %v1471, %v1479
  %v1484 = vsub.f32 %v1474, %v1482
  %v1485 = vmul.f32 %v1483, 1.442695
  %v1486 = vpow.pop %v1485
  %v1487 = vmul.f32 %v1484, 1.442695
  %v1488 = vpow.pop %v1487
  %v1489 = vsel %vm431, %v1486, 0.0
  %1490 = vadd.xlane.f32.xlu0 %v1489
  %v1491 = vpop.xlane.xlu0 %1490
  %v1492 = vsel %vm435, %v1488, 0.0
  %1493 = vadd.xlane.f32.xlu0 %v1492
  %v1494 = vpop.xlane.xlu0 %1493
  %v1495 = vrcp.pop %v1491
  %v1496 = vmul.f32 %v1486, %v1495
  %v1497 = vrcp.pop %v1494
  %v1498 = vmul.f32 %v1488, %v1497
  %v1499 = vpack.c.bf16 %v1498, %v1496
  %v1500 = vpack.c.bf16 %v1424, %v1420
  %v1502 = vsel %vm431, %v1499, 0
  %v1505 = vsel %vm460, %v1500, 0
  %1507 = vmatprep.subr.bf16.mxu0 0
  %1508 = vmatpush1.bf16.msra.mxu0 0
  %1509 = vmatprep.subr.bf16.mxu0 0
  %1510 = vmatpush1.bf16.msra.mxu0 0
  %1511 = vmatprep.subr.bf16.mxu0 0
  %1512 = vmatpush1.bf16.msra.mxu0 0
  %1513 = vmatprep.subr.bf16.mxu0 0
  %1514 = vmatpush1.bf16.msra.mxu0 0
  %1515 = vmatprep.subr.bf16.mxu0 0
  %1516 = vmatpush1.bf16.msra.mxu0 0
  %1517 = vmatprep.subr.bf16.mxu0 0
  %1518 = vmatpush1.bf16.msra.mxu0 0
  %1519 = vmatprep.subr.bf16.mxu0 0
  %1520 = vmatpush1.bf16.msra.mxu0 0
  %1521 = vmatprep.subr.bf16.mxu0 0
  %1522 = vmatpush1.bf16.msra.mxu0 %v1505
  %1523 = vmatprep.subr.bf16.mxu0 0
  %1524 = vmatpush2.bf16.msra.mxu0 0
  %1525 = vmatprep.subr.bf16.mxu0 0
  %1526 = vmatpush2.bf16.msra.mxu0 0
  %1527 = vmatprep.subr.bf16.mxu0 0
  %1528 = vmatpush2.bf16.msra.mxu0 0
  %1529 = vmatprep.subr.bf16.mxu0 0
  %1530 = vmatpush2.bf16.msra.mxu0 0
  %1531 = vmatprep.subr.bf16.mxu0 0
  %1532 = vmatpush2.bf16.msra.mxu0 0
  %1533 = vmatprep.subr.bf16.mxu0 0
  %1534 = vmatpush2.bf16.msra.mxu0 0
  %1535 = vmatprep.subr.bf16.mxu0 0
  %1536 = vmatpush2.bf16.msra.mxu0 0
  %1537 = vmatprep.subr.bf16.mxu0 0
  %1538 = vmatpush2.bf16.msra.mxu0 0
  %1539 = vmatprep.mubr.bf16.mxu0 0
  %1540 = vmatmul.mubr.bf16.gmra.mxu0 %v1502
  %v1541 = vpop.f32.mrf.mxu0
  %v1542 = vadd.f32 0.0, %v1541
  %v1543 = vpop.f32.mrf.mxu0
  %v1544 = vpop.f32.mrf.mxu0
  %v1545 = vadd.f32 0.0, %v1544
  %v1546 = vpop.f32.mrf.mxu0
  %1547 = vdwg.mxu0
  %1548 = vst.msk [vmem:[#allocation3] sm:$0xff] %vm383, %v1542
  %1549 = vst.msk [vmem:[#allocation3 + $0x8] sm:$0x3] %vm506, %v1545
  %1550 = vrot.lane.b32.xlu0 %v1426, 112
  %v1551 = vpop.permute.xlu0 %1550
  %1552 = vrot.lane.b32.xlu0 %v1426, 48
  %v1553 = vpop.permute.xlu0 %1552
  %v1555 = vsel %vm383, %v1551, 0
  %v1558 = vsel %vm383, %v1553, 0
  %1560 = vmatprep.subr.bf16.mxu0 0
  %1561 = vmatpush1.bf16.xpose.msra.mxu0 0
  %1562 = vmatprep.subr.bf16.mxu0 0
  %1563 = vmatpush1.bf16.xpose.msra.mxu0 0
  %1564 = vmatprep.subr.bf16.mxu0 0
  %1565 = vmatpush1.bf16.xpose.msra.mxu0 0
  %1566 = vmatprep.subr.bf16.mxu0 0
  %1567 = vmatpush1.bf16.xpose.msra.mxu0 0
  %1568 = vmatprep.subr.bf16.mxu0 0
  %1569 = vmatpush1.bf16.xpose.msra.mxu0 0
  %1570 = vmatprep.subr.bf16.mxu0 0
  %1571 = vmatpush1.bf16.xpose.msra.mxu0 0
  %1572 = vmatprep.subr.bf16.mxu0 0
  %1573 = vmatpush1.bf16.xpose.msra.mxu0 0
  %1574 = vmatprep.subr.bf16.mxu0 0
  %1575 = vmatpush1.bf16.xpose.msra.mxu0 %v1558
  %1576 = vmatprep.subr.bf16.mxu0 0
  %1577 = vmatpush2.bf16.xpose.msra.mxu0 0
  %1578 = vmatprep.subr.bf16.mxu0 0
  %1579 = vmatpush2.bf16.xpose.msra.mxu0 0
  %1580 = vmatprep.subr.bf16.mxu0 0
  %1581 = vmatpush2.bf16.xpose.msra.mxu0 0
  %1582 = vmatprep.subr.bf16.mxu0 0
  %1583 = vmatpush2.bf16.xpose.msra.mxu0 0
  %1584 = vmatprep.subr.bf16.mxu0 0
  %1585 = vmatpush2.bf16.xpose.msra.mxu0 0
  %1586 = vmatprep.subr.bf16.mxu0 0
  %1587 = vmatpush2.bf16.xpose.msra.mxu0 0
  %1588 = vmatprep.subr.bf16.mxu0 0
  %1589 = vmatpush2.bf16.xpose.msra.mxu0 0
  %1590 = vmatprep.subr.bf16.mxu0 0
  %1591 = vmatpush2.bf16.xpose.msra.mxu0 0
  %1592 = vmatprep.mubr.bf16.mxu0 0
  %1593 = vmatmul.mubr.bf16.gmra.mxu0 %v1555
  %v1594 = vpop.f32.mrf.mxu0
  %v1595 = vadd.f32 %v253, %v1594
  %v1596 = vpop.f32.mrf.mxu0
  %v1597 = vpop.f32.mrf.mxu0
  %v1598 = vadd.f32 %v254, %v1597
  %v1599 = vpop.f32.mrf.mxu0
  %1600 = vdwg.mxu0
  %v1601 = vsel %vm431, %v1595, -inf
  %1602 = vmax.xlane.f32.xlu0 %v1601
  %v1603 = vpop.xlane.xlu0 %1602
  %v1604 = vsel %vm435, %v1598, -inf
  %1605 = vmax.xlane.f32.xlu0 %v1604
  %v1606 = vpop.xlane.xlu0 %1605
  %v1607 = vsub.f32 %v1595, %v1603
  %v1608 = vsub.f32 %v1598, %v1606
  %v1609 = vmul.f32 %v1607, 1.442695
  %v1610 = vpow.pop %v1609
  %v1611 = vmul.f32 %v1608, 1.442695
  %v1612 = vpow.pop %v1611
  %v1613 = vsel %vm431, %v1610, 0.0
  %1614 = vadd.xlane.f32.xlu0 %v1613
  %v1615 = vpop.xlane.xlu0 %1614
  %v1616 = vsel %vm435, %v1612, 0.0
  %1617 = vadd.xlane.f32.xlu0 %v1616
  %v1618 = vpop.xlane.xlu0 %1617
  %v1619 = vrcp.pop %v1615
  %v1620 = vmul.f32 %v1610, %v1619
  %v1621 = vrcp.pop %v1618
  %v1622 = vmul.f32 %v1612, %v1621
  %v1623 = vpack.c.bf16 %v1622, %v1620
  %1625 = vrot.lane.b32.xlu0 %v1500, 112
  %v1626 = vpop.permute.xlu0 %1625
  %v1628 = vsel %vm431, %v1623, 0
  %v1631 = vsel %vm460, %v1626, 0
  %1633 = vmatprep.subr.bf16.mxu0 0
  %1634 = vmatpush1.bf16.msra.mxu0 0
  %1635 = vmatprep.subr.bf16.mxu0 0
  %1636 = vmatpush1.bf16.msra.mxu0 0
  %1637 = vmatprep.subr.bf16.mxu0 0
  %1638 = vmatpush1.bf16.msra.mxu0 0
  %1639 = vmatprep.subr.bf16.mxu0 0
  %1640 = vmatpush1.bf16.msra.mxu0 0
  %1641 = vmatprep.subr.bf16.mxu0 0
  %1642 = vmatpush1.bf16.msra.mxu0 0
  %1643 = vmatprep.subr.bf16.mxu0 0
  %1644 = vmatpush1.bf16.msra.mxu0 0
  %1645 = vmatprep.subr.bf16.mxu0 0
  %1646 = vmatpush1.bf16.msra.mxu0 0
  %1647 = vmatprep.subr.bf16.mxu0 0
  %1648 = vmatpush1.bf16.msra.mxu0 %v1631
  %1649 = vmatprep.subr.bf16.mxu0 0
  %1650 = vmatpush2.bf16.msra.mxu0 0
  %1651 = vmatprep.subr.bf16.mxu0 0
  %1652 = vmatpush2.bf16.msra.mxu0 0
  %1653 = vmatprep.subr.bf16.mxu0 0
  %1654 = vmatpush2.bf16.msra.mxu0 0
  %1655 = vmatprep.subr.bf16.mxu0 0
  %1656 = vmatpush2.bf16.msra.mxu0 0
  %1657 = vmatprep.subr.bf16.mxu0 0
  %1658 = vmatpush2.bf16.msra.mxu0 0
  %1659 = vmatprep.subr.bf16.mxu0 0
  %1660 = vmatpush2.bf16.msra.mxu0 0
  %1661 = vmatprep.subr.bf16.mxu0 0
  %1662 = vmatpush2.bf16.msra.mxu0 0
  %1663 = vmatprep.subr.bf16.mxu0 0
  %1664 = vmatpush2.bf16.msra.mxu0 0
  %1665 = vmatprep.mubr.bf16.mxu0 0
  %1666 = vmatmul.mubr.bf16.gmra.mxu0 %v1628
  %v1667 = vpop.f32.mrf.mxu0
  %v1668 = vadd.f32 0.0, %v1667
  %v1669 = vpop.f32.mrf.mxu0
  %v1670 = vpop.f32.mrf.mxu0
  %v1671 = vadd.f32 0.0, %v1670
  %v1672 = vpop.f32.mrf.mxu0
  %1673 = vdwg.mxu0
  %1676 = vrot.lane.b32.xlu0 %v1668, 16
  %v1677 = vpop.permute.xlu0 %1676
  %1678 = vrot.lane.b32.xlu0 %v1671, 16
  %v1679 = vpop.permute.xlu0 %1678
  %1682 = vst.msk [vmem:[#allocation3] sm:$0xff] %vm640, %v1677
  %1683 = vst.msk [vmem:[#allocation3 + $0x8] sm:$0x3] %vm642, %v1679
  %1684 = vrot.lane.b32.xlu0 %v1426, 96
  %v1685 = vpop.permute.xlu0 %1684
  %1686 = vrot.lane.b32.xlu0 %v1426, 32
  %v1687 = vpop.permute.xlu0 %1686
  %v1689 = vsel %vm383, %v1685, 0
  %v1692 = vsel %vm383, %v1687, 0
  %1694 = vmatprep.subr.bf16.mxu0 0
  %1695 = vmatpush1.bf16.xpose.msra.mxu0 0
  %1696 = vmatprep.subr.bf16.mxu0 0
  %1697 = vmatpush1.bf16.xpose.msra.mxu0 0
  %1698 = vmatprep.subr.bf16.mxu0 0
  %1699 = vmatpush1.bf16.xpose.msra.mxu0 0
  %1700 = vmatprep.subr.bf16.mxu0 0
  %1701 = vmatpush1.bf16.xpose.msra.mxu0 0
  %1702 = vmatprep.subr.bf16.mxu0 0
  %1703 = vmatpush1.bf16.xpose.msra.mxu0 0
  %1704 = vmatprep.subr.bf16.mxu0 0
  %1705 = vmatpush1.bf16.xpose.msra.mxu0 0
  %1706 = vmatprep.subr.bf16.mxu0 0
  %1707 = vmatpush1.bf16.xpose.msra.mxu0 0
  %1708 = vmatprep.subr.bf16.mxu0 0
  %1709 = vmatpush1.bf16.xpose.msra.mxu0 %v1692
  %1710 = vmatprep.subr.bf16.mxu0 0
  %1711 = vmatpush2.bf16.xpose.msra.mxu0 0
  %1712 = vmatprep.subr.bf16.mxu0 0
  %1713 = vmatpush2.bf16.xpose.msra.mxu0 0
  %1714 = vmatprep.subr.bf16.mxu0 0
  %1715 = vmatpush2.bf16.xpose.msra.mxu0 0
  %1716 = vmatprep.subr.bf16.mxu0 0
  %1717 = vmatpush2.bf16.xpose.msra.mxu0 0
  %1718 = vmatprep.subr.bf16.mxu0 0
  %1719 = vmatpush2.bf16.xpose.msra.mxu0 0
  %1720 = vmatprep.subr.bf16.mxu0 0
  %1721 = vmatpush2.bf16.xpose.msra.mxu0 0
  %1722 = vmatprep.subr.bf16.mxu0 0
  %1723 = vmatpush2.bf16.xpose.msra.mxu0 0
  %1724 = vmatprep.subr.bf16.mxu0 0
  %1725 = vmatpush2.bf16.xpose.msra.mxu0 0
  %1726 = vmatprep.mubr.bf16.mxu0 0
  %1727 = vmatmul.mubr.bf16.gmra.mxu0 %v1689
  %v1728 = vpop.f32.mrf.mxu0
  %v1729 = vadd.f32 %v253, %v1728
  %v1730 = vpop.f32.mrf.mxu0
  %v1731 = vpop.f32.mrf.mxu0
  %v1732 = vadd.f32 %v254, %v1731
  %v1733 = vpop.f32.mrf.mxu0
  %1734 = vdwg.mxu0
  %v1735 = vsel %vm431, %v1729, -inf
  %1736 = vmax.xlane.f32.xlu0 %v1735
  %v1737 = vpop.xlane.xlu0 %1736
  %v1738 = vsel %vm435, %v1732, -inf
  %1739 = vmax.xlane.f32.xlu0 %v1738
  %v1740 = vpop.xlane.xlu0 %1739
  %v1741 = vsub.f32 %v1729, %v1737
  %v1742 = vsub.f32 %v1732, %v1740
  %v1743 = vmul.f32 %v1741, 1.442695
  %v1744 = vpow.pop %v1743
  %v1745 = vmul.f32 %v1742, 1.442695
  %v1746 = vpow.pop %v1745
  %v1747 = vsel %vm431, %v1744, 0.0
  %1748 = vadd.xlane.f32.xlu0 %v1747
  %v1749 = vpop.xlane.xlu0 %1748
  %v1750 = vsel %vm435, %v1746, 0.0
  %1751 = vadd.xlane.f32.xlu0 %v1750
  %v1752 = vpop.xlane.xlu0 %1751
  %v1753 = vrcp.pop %v1749
  %v1754 = vmul.f32 %v1744, %v1753
  %v1755 = vrcp.pop %v1752
  %v1756 = vmul.f32 %v1746, %v1755
  %v1757 = vpack.c.bf16 %v1756, %v1754
  %1758 = vrot.lane.b32.xlu0 %v1500, 96
  %v1759 = vpop.permute.xlu0 %1758
  %v1761 = vsel %vm431, %v1757, 0
  %v1764 = vsel %vm460, %v1759, 0
  %1766 = vmatprep.subr.bf16.mxu0 0
  %1767 = vmatpush1.bf16.msra.mxu0 0
  %1768 = vmatprep.subr.bf16.mxu0 0
  %1769 = vmatpush1.bf16.msra.mxu0 0
  %1770 = vmatprep.subr.bf16.mxu0 0
  %1771 = vmatpush1.bf16.msra.mxu0 0
  %1772 = vmatprep.subr.bf16.mxu0 0
  %1773 = vmatpush1.bf16.msra.mxu0 0
  %1774 = vmatprep.subr.bf16.mxu0 0
  %1775 = vmatpush1.bf16.msra.mxu0 0
  %1776 = vmatprep.subr.bf16.mxu0 0
  %1777 = vmatpush1.bf16.msra.mxu0 0
  %1778 = vmatprep.subr.bf16.mxu0 0
  %1779 = vmatpush1.bf16.msra.mxu0 0
  %1780 = vmatprep.subr.bf16.mxu0 0
  %1781 = vmatpush1.bf16.msra.mxu0 %v1764
  %1782 = vmatprep.subr.bf16.mxu0 0
  %1783 = vmatpush2.bf16.msra.mxu0 0
  %1784 = vmatprep.subr.bf16.mxu0 0
  %1785 = vmatpush2.bf16.msra.mxu0 0
  %1786 = vmatprep.subr.bf16.mxu0 0
  %1787 = vmatpush2.bf16.msra.mxu0 0
  %1788 = vmatprep.subr.bf16.mxu0 0
  %1789 = vmatpush2.bf16.msra.mxu0 0
  %1790 = vmatprep.subr.bf16.mxu0 0
  %1791 = vmatpush2.bf16.msra.mxu0 0
  %1792 = vmatprep.subr.bf16.mxu0 0
  %1793 = vmatpush2.bf16.msra.mxu0 0
  %1794 = vmatprep.subr.bf16.mxu0 0
  %1795 = vmatpush2.bf16.msra.mxu0 0
  %1796 = vmatprep.subr.bf16.mxu0 0
  %1797 = vmatpush2.bf16.msra.mxu0 0
  %1798 = vmatprep.mubr.bf16.mxu0 0
  %1799 = vmatmul.mubr.bf16.gmra.mxu0 %v1761
  %v1800 = vpop.f32.mrf.mxu0
  %v1801 = vadd.f32 0.0, %v1800
  %v1802 = vpop.f32.mrf.mxu0
  %v1803 = vpop.f32.mrf.mxu0
  %v1804 = vadd.f32 0.0, %v1803
  %v1805 = vpop.f32.mrf.mxu0
  %1806 = vdwg.mxu0
  %1809 = vrot.lane.b32.xlu0 %v1801, 32
  %v1810 = vpop.permute.xlu0 %1809
  %1811 = vrot.lane.b32.xlu0 %v1804, 32
  %v1812 = vpop.permute.xlu0 %1811
  %1815 = vst.msk [vmem:[#allocation3] sm:$0xff] %vm775, %v1810
  %1816 = vst.msk [vmem:[#allocation3 + $0x8] sm:$0x3] %vm777, %v1812
  %1817 = vrot.lane.b32.xlu0 %v1426, 80
  %v1818 = vpop.permute.xlu0 %1817
  %1819 = vrot.lane.b32.xlu0 %v1426, 16
  %v1820 = vpop.permute.xlu0 %1819
  %v1822 = vsel %vm383, %v1818, 0
  %v1825 = vsel %vm383, %v1820, 0
  %1827 = vmatprep.subr.bf16.mxu0 0
  %1828 = vmatpush1.bf16.xpose.msra.mxu0 0
  %1829 = vmatprep.subr.bf16.mxu0 0
  %1830 = vmatpush1.bf16.xpose.msra.mxu0 0
  %1831 = vmatprep.subr.bf16.mxu0 0
  %1832 = vmatpush1.bf16.xpose.msra.mxu0 0
  %1833 = vmatprep.subr.bf16.mxu0 0
  %1834 = vmatpush1.bf16.xpose.msra.mxu0 0
  %1835 = vmatprep.subr.bf16.mxu0 0
  %1836 = vmatpush1.bf16.xpose.msra.mxu0 0
  %1837 = vmatprep.subr.bf16.mxu0 0
  %1838 = vmatpush1.bf16.xpose.msra.mxu0 0
  %1839 = vmatprep.subr.bf16.mxu0 0
  %1840 = vmatpush1.bf16.xpose.msra.mxu0 0
  %1841 = vmatprep.subr.bf16.mxu0 0
  %1842 = vmatpush1.bf16.xpose.msra.mxu0 %v1825
  %1843 = vmatprep.subr.bf16.mxu0 0
  %1844 = vmatpush2.bf16.xpose.msra.mxu0 0
  %1845 = vmatprep.subr.bf16.mxu0 0
  %1846 = vmatpush2.bf16.xpose.msra.mxu0 0
  %1847 = vmatprep.subr.bf16.mxu0 0
  %1848 = vmatpush2.bf16.xpose.msra.mxu0 0
  %1849 = vmatprep.subr.bf16.mxu0 0
  %1850 = vmatpush2.bf16.xpose.msra.mxu0 0
  %1851 = vmatprep.subr.bf16.mxu0 0
  %1852 = vmatpush2.bf16.xpose.msra.mxu0 0
  %1853 = vmatprep.subr.bf16.mxu0 0
  %1854 = vmatpush2.bf16.xpose.msra.mxu0 0
  %1855 = vmatprep.subr.bf16.mxu0 0
  %1856 = vmatpush2.bf16.xpose.msra.mxu0 0
  %1857 = vmatprep.subr.bf16.mxu0 0
  %1858 = vmatpush2.bf16.xpose.msra.mxu0 0
  %1859 = vmatprep.mubr.bf16.mxu0 0
  %1860 = vmatmul.mubr.bf16.gmra.mxu0 %v1822
  %v1861 = vpop.f32.mrf.mxu0
  %v1862 = vadd.f32 %v253, %v1861
  %v1863 = vpop.f32.mrf.mxu0
  %v1864 = vpop.f32.mrf.mxu0
  %v1865 = vadd.f32 %v254, %v1864
  %v1866 = vpop.f32.mrf.mxu0
  %1867 = vdwg.mxu0
  %v1868 = vsel %vm431, %v1862, -inf
  %1869 = vmax.xlane.f32.xlu0 %v1868
  %v1870 = vpop.xlane.xlu0 %1869
  %v1871 = vsel %vm435, %v1865, -inf
  %1872 = vmax.xlane.f32.xlu0 %v1871
  %v1873 = vpop.xlane.xlu0 %1872
  %v1874 = vsub.f32 %v1862, %v1870
  %v1875 = vsub.f32 %v1865, %v1873
  %v1876 = vmul.f32 %v1874, 1.442695
  %v1877 = vpow.pop %v1876
  %v1878 = vmul.f32 %v1875, 1.442695
  %v1879 = vpow.pop %v1878
  %v1880 = vsel %vm431, %v1877, 0.0
  %1881 = vadd.xlane.f32.xlu0 %v1880
  %v1882 = vpop.xlane.xlu0 %1881
  %v1883 = vsel %vm435, %v1879, 0.0
  %1884 = vadd.xlane.f32.xlu0 %v1883
  %v1885 = vpop.xlane.xlu0 %1884
  %v1886 = vrcp.pop %v1882
  %v1887 = vmul.f32 %v1877, %v1886
  %v1888 = vrcp.pop %v1885
  %v1889 = vmul.f32 %v1879, %v1888
  %v1890 = vpack.c.bf16 %v1889, %v1887
  %1891 = vrot.lane.b32.xlu0 %v1500, 80
  %v1892 = vpop.permute.xlu0 %1891
  %v1894 = vsel %vm431, %v1890, 0
  %v1897 = vsel %vm460, %v1892, 0
  %1899 = vmatprep.subr.bf16.mxu0 0
  %1900 = vmatpush1.bf16.msra.mxu0 0
  %1901 = vmatprep.subr.bf16.mxu0 0
  %1902 = vmatpush1.bf16.msra.mxu0 0
  %1903 = vmatprep.subr.bf16.mxu0 0
  %1904 = vmatpush1.bf16.msra.mxu0 0
  %1905 = vmatprep.subr.bf16.mxu0 0
  %1906 = vmatpush1.bf16.msra.mxu0 0
  %1907 = vmatprep.subr.bf16.mxu0 0
  %1908 = vmatpush1.bf16.msra.mxu0 0
  %1909 = vmatprep.subr.bf16.mxu0 0
  %1910 = vmatpush1.bf16.msra.mxu0 0
  %1911 = vmatprep.subr.bf16.mxu0 0
  %1912 = vmatpush1.bf16.msra.mxu0 0
  %1913 = vmatprep.subr.bf16.mxu0 0
  %1914 = vmatpush1.bf16.msra.mxu0 %v1897
  %1915 = vmatprep.subr.bf16.mxu0 0
  %1916 = vmatpush2.bf16.msra.mxu0 0
  %1917 = vmatprep.subr.bf16.mxu0 0
  %1918 = vmatpush2.bf16.msra.mxu0 0
  %1919 = vmatprep.subr.bf16.mxu0 0
  %1920 = vmatpush2.bf16.msra.mxu0 0
  %1921 = vmatprep.subr.bf16.mxu0 0
  %1922 = vmatpush2.bf16.msra.mxu0 0
  %1923 = vmatprep.subr.bf16.mxu0 0
  %1924 = vmatpush2.bf16.msra.mxu0 0
  %1925 = vmatprep.subr.bf16.mxu0 0
  %1926 = vmatpush2.bf16.msra.mxu0 0
  %1927 = vmatprep.subr.bf16.mxu0 0
  %1928 = vmatpush2.bf16.msra.mxu0 0
  %1929 = vmatprep.subr.bf16.mxu0 0
  %1930 = vmatpush2.bf16.msra.mxu0 0
  %1931 = vmatprep.mubr.bf16.mxu0 0
  %1932 = vmatmul.mubr.bf16.gmra.mxu0 %v1894
  %v1933 = vpop.f32.mrf.mxu0
  %v1934 = vadd.f32 0.0, %v1933
  %v1935 = vpop.f32.mrf.mxu0
  %v1936 = vpop.f32.mrf.mxu0
  %v1937 = vadd.f32 0.0, %v1936
  %v1938 = vpop.f32.mrf.mxu0
  %1939 = vdwg.mxu0
  %1942 = vrot.lane.b32.xlu0 %v1934, 48
  %v1943 = vpop.permute.xlu0 %1942
  %1944 = vrot.lane.b32.xlu0 %v1937, 48
  %v1945 = vpop.permute.xlu0 %1944
  %1948 = vst.msk [vmem:[#allocation3] sm:$0xff] %vm910, %v1943
  %1949 = vst.msk [vmem:[#allocation3 + $0x8] sm:$0x3] %vm912, %v1945
  %v1950 = vld [vmem:[#allocation3] sm:$0xff]
  %v1951 = vld [vmem:[#allocation3 + $0x8] sm:$0x3]
  %s1952 = scalar_lea.vmem %s8, 32
  %v1953 = vld [vmem:[%s1952] sm:$0xf]
  %v1954 = vld [vmem:[%s1952 + $0x4] sm:$0xf]
  %v1955 = vld [vmem:[%s1952 + $0x8] sm:$0xf]
  %v1956 = vld [vmem:[%s1952 + $0xc] sm:$0xf]
  %v1957 = vld [vmem:[%s1952 + $0x10] sm:$0xf]
  %v1958 = vld [vmem:[%s1952 + $0x14] sm:$0xf]
  %v1959 = vld [vmem:[%s1952 + $0x18] sm:$0xf]
  %v1960 = vld [vmem:[%s1952 + $0x1c] sm:$0xf]
  %v1961 = vpack.c.bf16 %v1951, %v1950
  %v1970 = vunpack.c.l.b16 %v1953
  %v1971 = vunpack.c.l.b16 %v1954
  %v1972 = vunpack.c.l.b16 %v1955
  %v1973 = vunpack.c.l.b16 %v1956
  %v1974 = vunpack.c.l.b16 %v1957
  %v1975 = vunpack.c.l.b16 %v1958
  %v1976 = vunpack.c.l.b16 %v1959
  %v1977 = vunpack.c.l.b16 %v1960
  %v1978 = vpack.c.b16 %v1971, %v1970
  %v1979 = vpack.c.b16 %v1973, %v1972
  %v1980 = vpack.c.b16 %v1975, %v1974
  %v1981 = vpack.c.b16 %v1977, %v1976
  %v1987 = vsel %vm949, %v1961, 0
  %1989 = vmatprep.subr.bf16.mxu0 0
  %1990 = vmatpush1.bf16.msra.mxu0 0
  %1991 = vmatprep.subr.bf16.mxu0 0
  %1992 = vmatpush1.bf16.msra.mxu0 0
  %1993 = vmatprep.subr.bf16.mxu0 0
  %1994 = vmatpush1.bf16.msra.mxu0 0
  %1995 = vmatprep.subr.bf16.mxu0 0
  %1996 = vmatpush1.bf16.msra.mxu0 0
  %1997 = vmatprep.subr.bf16.mxu0 0
  %1998 = vmatpush1.bf16.msra.mxu0 %v1981
  %1999 = vmatprep.subr.bf16.mxu0 0
  %2000 = vmatpush1.bf16.msra.mxu0 %v1980
  %2001 = vmatprep.subr.bf16.mxu0 0
  %2002 = vmatpush1.bf16.msra.mxu0 %v1979
  %2003 = vmatprep.subr.bf16.mxu0 0
  %2004 = vmatpush1.bf16.msra.mxu0 %v1978
  %2005 = vmatprep.subr.bf16.mxu0 0
  %2006 = vmatpush2.bf16.msra.mxu0 0
  %2007 = vmatprep.subr.bf16.mxu0 0
  %2008 = vmatpush2.bf16.msra.mxu0 0
  %2009 = vmatprep.subr.bf16.mxu0 0
  %2010 = vmatpush2.bf16.msra.mxu0 0
  %2011 = vmatprep.subr.bf16.mxu0 0
  %2012 = vmatpush2.bf16.msra.mxu0 0
  %2013 = vmatprep.subr.bf16.mxu0 0
  %2014 = vmatpush2.bf16.msra.mxu0 0
  %2015 = vmatprep.subr.bf16.mxu0 0
  %2016 = vmatpush2.bf16.msra.mxu0 0
  %2017 = vmatprep.subr.bf16.mxu0 0
  %2018 = vmatpush2.bf16.msra.mxu0 0
  %2019 = vmatprep.subr.bf16.mxu0 0
  %2020 = vmatpush2.bf16.msra.mxu0 0
  %2021 = vmatprep.mubr.bf16.mxu0 0
  %2022 = vmatmul.mubr.bf16.gmra.mxu0 %v1987
  %v2023 = vpop.f32.mrf.mxu0
  %v2024 = vadd.f32 0.0, %v2023
  %v2025 = vpop.f32.mrf.mxu0
  %v2026 = vpop.f32.mrf.mxu0
  %v2027 = vadd.f32 0.0, %v2026
  %v2028 = vpop.f32.mrf.mxu0
  %2029 = vdwg.mxu0
  %v2030 = vadd.f32 %v1301, %v2024
  %v2031 = vadd.f32 %v1302, %v2027
  %v2032 = vlaneseq
  %v2033 = vshrl.u32 %v2032, 7
  %v2034 = vsub.s32 0, %v2033
  %v2035 = vrot.slane %v1304, %v2034
  %v2036 = vadd.f32 %v2030, %v2035
  %v2037 = vadd.f32 %v2031, %v2035
  %v2038 = vmul.f32 %v2036, %v2036
  %v2039 = vmul.f32 %v2037, %v2037
  %v2040 = vsel %vm183, %v2038, 0.0
  %2041 = vadd.xlane.f32.xlu0 %v2040
  %v2042 = vpop.xlane.xlu0 %2041
  %v2043 = vsel %vm266, %v2039, 0.0
  %2044 = vadd.xlane.f32.xlu0 %v2043
  %v2045 = vpop.xlane.xlu0 %2044
  %v2046 = vmul.f32 %v2042, %v187
  %v2047 = vmul.f32 %v2045, %v187
  %v2048 = vadd.f32 %v2046, 1e-06
  %v2049 = vadd.f32 %v2047, 1e-06
  %v2050 = vrsqrt.pop %v2048
  %v2051 = vrsqrt.pop %v2049
  %v2052 = vmul.f32 %v2036, %v2050
  %v2053 = vmul.f32 %v2037, %v2051
  %v2054 = vlaneseq
  %v2055 = vshrl.u32 %v2054, 7
  %v2056 = vsub.s32 0, %v2055
  %v2057 = vrot.slane %v1305, %v2056
  %v2058 = vmul.f32 %v2052, %v2057
  %v2059 = vmul.f32 %v2053, %v2057
  %s2060 = scalar_lea.vmem %s9, 48
  %v2061 = vld [vmem:[%s2060] sm:$0xff]
  %v2062 = vld [vmem:[%s2060 + $0x8] sm:$0xff]
  %v2063 = vld [vmem:[%s2060 + $0x10] sm:$0xff]
  %v2064 = vld [vmem:[%s2060 + $0x18] sm:$0xff]
  %v2065 = vld [vmem:[%s2060 + $0x20] sm:$0xff]
  %v2066 = vld [vmem:[%s2060 + $0x28] sm:$0xff]
  %v2067 = vpack.c.bf16 %v2059, %v2058
  %s2068 = scalar_lea.vmem %s10, 1
  %v2069 = vld [vmem:[%s2068] ss:$2 sm:$0x3]
  %v2071 = vlaneseq
  %v2072 = vshrl.u32 %v2071, 7
  %v2073 = vsub.s32 0, %v2072
  %v2074 = vrot.slane %v2069, %v2073
  %v2075 = vlaneseq
  %v2076 = vshrl.u32 %v2075, 7
  %v2077 = vsub.s32 1, %v2076
  %v2078 = vrot.slane %v2069, %v2077
  %v2087 = vunpack.c.l.b16 %v2061
  %v2088 = vunpack.c.h.b16 %v2061
  %v2089 = vunpack.c.l.b16 %v2062
  %v2090 = vunpack.c.h.b16 %v2062
  %v2091 = vunpack.c.l.b16 %v2063
  %v2092 = vunpack.c.h.b16 %v2063
  %v2093 = vunpack.c.l.b16 %v2064
  %v2094 = vunpack.c.h.b16 %v2064
  %v2095 = vunpack.c.l.b16 %v2065
  %v2096 = vunpack.c.h.b16 %v2065
  %v2097 = vunpack.c.l.b16 %v2066
  %v2098 = vunpack.c.h.b16 %v2066
  %v2099 = vpack.c.b16 %v2089, %v2087
  %v2100 = vpack.c.b16 %v2090, %v2088
  %v2101 = vpack.c.b16 %v2093, %v2091
  %v2102 = vpack.c.b16 %v2094, %v2092
  %v2103 = vpack.c.b16 %v2097, %v2095
  %v2104 = vpack.c.b16 %v2098, %v2096
  %v2112 = vsel %vm183, %v2067, 0
  %2114 = vmatprep.subr.bf16.mxu0 0
  %2115 = vmatpush1.bf16.msra.mxu0 0
  %2116 = vmatprep.subr.bf16.mxu0 0
  %2117 = vmatpush1.bf16.msra.mxu0 0
  %2118 = vmatprep.subr.bf16.mxu0 0
  %2119 = vmatpush1.bf16.msra.mxu0 0
  %2120 = vmatprep.subr.bf16.mxu0 0
  %2121 = vmatpush1.bf16.msra.mxu0 0
  %2122 = vmatprep.subr.bf16.mxu0 0
  %2123 = vmatpush1.bf16.msra.mxu0 0
  %2124 = vmatprep.subr.bf16.mxu0 %v2104
  %2125 = vmatpush1.bf16.msra.mxu0 %v2103
  %2126 = vmatprep.subr.bf16.mxu0 %v2102
  %2127 = vmatpush1.bf16.msra.mxu0 %v2101
  %2128 = vmatprep.subr.bf16.mxu0 %v2100
  %2129 = vmatpush1.bf16.msra.mxu0 %v2099
  %2130 = vmatprep.subr.bf16.mxu0 0
  %2131 = vmatpush2.bf16.msra.mxu0 0
  %2132 = vmatprep.subr.bf16.mxu0 0
  %2133 = vmatpush2.bf16.msra.mxu0 0
  %2134 = vmatprep.subr.bf16.mxu0 0
  %2135 = vmatpush2.bf16.msra.mxu0 0
  %2136 = vmatprep.subr.bf16.mxu0 0
  %2137 = vmatpush2.bf16.msra.mxu0 0
  %2138 = vmatprep.subr.bf16.mxu0 0
  %2139 = vmatpush2.bf16.msra.mxu0 0
  %2140 = vmatprep.subr.bf16.mxu0 0
  %2141 = vmatpush2.bf16.msra.mxu0 0
  %2142 = vmatprep.subr.bf16.mxu0 0
  %2143 = vmatpush2.bf16.msra.mxu0 0
  %2144 = vmatprep.subr.bf16.mxu0 0
  %2145 = vmatpush2.bf16.msra.mxu0 0
  %2146 = vmatprep.mubr.bf16.mxu0 0
  %2147 = vmatmul.mubr.bf16.gmra.mxu0 %v2112
  %v2148 = vpop.f32.mrf.mxu0
  %v2149 = vadd.f32 %v2074, %v2148
  %v2150 = vpop.f32.mrf.mxu0
  %v2151 = vadd.f32 %v2078, %v2150
  %v2152 = vpop.f32.mrf.mxu0
  %v2153 = vadd.f32 %v2074, %v2152
  %v2154 = vpop.f32.mrf.mxu0
  %v2155 = vadd.f32 %v2078, %v2154
  %2156 = vdwg.mxu0
  %v2157 = vmul.f32 %v2149, %v2149
  %v2158 = vmul.f32 %v2151, %v2151
  %v2159 = vmul.f32 %v2153, %v2153
  %v2160 = vmul.f32 %v2155, %v2155
  %v2161 = vmul.f32 %v2149, %v2157
  %v2162 = vmul.f32 %v2151, %v2158
  %v2163 = vmul.f32 %v2153, %v2159
  %v2164 = vmul.f32 %v2155, %v2160
  %v2165 = vmul.f32 %v2161, 0.044715
  %v2166 = vmul.f32 %v2162, 0.044715
  %v2167 = vmul.f32 %v2163, 0.044715
  %v2168 = vmul.f32 %v2164, 0.044715
  %v2169 = vadd.f32 %v2149, %v2165
  %v2170 = vadd.f32 %v2151, %v2166
  %v2171 = vadd.f32 %v2153, %v2167
  %v2172 = vadd.f32 %v2155, %v2168
  %v2173 = vmul.f32 %v2169, 0.7978846
  %v2174 = vmul.f32 %v2170, 0.7978846
  %v2175 = vmul.f32 %v2171, 0.7978846
  %v2176 = vmul.f32 %v2172, 0.7978846
  %v2177 = vtanh.pop %v2173
  %v2178 = vtanh.pop %v2174
  %v2179 = vtanh.pop %v2175
  %v2180 = vtanh.pop %v2176
  %v2181 = vadd.f32 %v2177, 1.0
  %v2182 = vadd.f32 %v2178, 1.0
  %v2183 = vadd.f32 %v2179, 1.0
  %v2184 = vadd.f32 %v2180, 1.0
  %v2185 = vmul.f32 %v2181, 0.5
  %v2186 = vmul.f32 %v2182, 0.5
  %v2187 = vmul.f32 %v2183, 0.5
  %v2188 = vmul.f32 %v2184, 0.5
  %v2189 = vmul.f32 %v2149, %v2185
  %v2190 = vmul.f32 %v2151, %v2186
  %v2191 = vmul.f32 %v2153, %v2187
  %v2192 = vmul.f32 %v2155, %v2188
  %s2193 = scalar_lea.vmem %s11, 96
  %v2194 = vld [vmem:[%s2193] sm:$0xf]
  %v2195 = vld [vmem:[%s2193 + $0x4] sm:$0xf]
  %v2196 = vld [vmem:[%s2193 + $0x8] sm:$0xf]
  %v2197 = vld [vmem:[%s2193 + $0xc] sm:$0xf]
  %v2198 = vld [vmem:[%s2193 + $0x10] sm:$0xf]
  %v2199 = vld [vmem:[%s2193 + $0x14] sm:$0xf]
  %v2200 = vld [vmem:[%s2193 + $0x18] sm:$0xf]
  %v2201 = vld [vmem:[%s2193 + $0x1c] sm:$0xf]
  %v2202 = vld [vmem:[%s2193 + $0x20] sm:$0xf]
  %v2203 = vld [vmem:[%s2193 + $0x24] sm:$0xf]
  %v2204 = vld [vmem:[%s2193 + $0x28] sm:$0xf]
  %v2205 = vld [vmem:[%s2193 + $0x2c] sm:$0xf]
  %v2206 = vld [vmem:[%s2193 + $0x30] sm:$0xf]
  %v2207 = vld [vmem:[%s2193 + $0x34] sm:$0xf]
  %v2208 = vld [vmem:[%s2193 + $0x38] sm:$0xf]
  %v2209 = vld [vmem:[%s2193 + $0x3c] sm:$0xf]
  %v2210 = vld [vmem:[%s2193 + $0x40] sm:$0xf]
  %v2211 = vld [vmem:[%s2193 + $0x44] sm:$0xf]
  %v2212 = vld [vmem:[%s2193 + $0x48] sm:$0xf]
  %v2213 = vld [vmem:[%s2193 + $0x4c] sm:$0xf]
  %v2214 = vld [vmem:[%s2193 + $0x50] sm:$0xf]
  %v2215 = vld [vmem:[%s2193 + $0x54] sm:$0xf]
  %v2216 = vld [vmem:[%s2193 + $0x58] sm:$0xf]
  %v2217 = vld [vmem:[%s2193 + $0x5c] sm:$0xf]
  %v2218 = vpack.c.bf16 %v2191, %v2189
  %v2219 = vpack.c.bf16 %v2192, %v2190
  %v2220 = vlaneseq
  %v2221 = vshrl.u32 %v2220, 7
  %v2222 = vsub.s32 0, %v2221
  %v2223 = vrot.slane %v1306, %v2222
  %v2248 = vunpack.c.l.b16 %v2194
  %v2249 = vunpack.c.l.b16 %v2195
  %v2250 = vunpack.c.l.b16 %v2196
  %v2251 = vunpack.c.l.b16 %v2197
  %v2252 = vunpack.c.l.b16 %v2198
  %v2253 = vunpack.c.l.b16 %v2199
  %v2254 = vunpack.c.l.b16 %v2200
  %v2255 = vunpack.c.l.b16 %v2201
  %v2256 = vunpack.c.l.b16 %v2202
  %v2257 = vunpack.c.l.b16 %v2203
  %v2258 = vunpack.c.l.b16 %v2204
  %v2259 = vunpack.c.l.b16 %v2205
  %v2260 = vunpack.c.l.b16 %v2206
  %v2261 = vunpack.c.l.b16 %v2207
  %v2262 = vunpack.c.l.b16 %v2208
  %v2263 = vunpack.c.l.b16 %v2209
  %v2264 = vunpack.c.l.b16 %v2210
  %v2265 = vunpack.c.l.b16 %v2211
  %v2266 = vunpack.c.l.b16 %v2212
  %v2267 = vunpack.c.l.b16 %v2213
  %v2268 = vunpack.c.l.b16 %v2214
  %v2269 = vunpack.c.l.b16 %v2215
  %v2270 = vunpack.c.l.b16 %v2216
  %v2271 = vunpack.c.l.b16 %v2217
  %v2272 = vpack.c.b16 %v2249, %v2248
  %v2273 = vpack.c.b16 %v2251, %v2250
  %v2274 = vpack.c.b16 %v2253, %v2252
  %v2275 = vpack.c.b16 %v2255, %v2254
  %v2276 = vpack.c.b16 %v2257, %v2256
  %v2277 = vpack.c.b16 %v2259, %v2258
  %v2278 = vpack.c.b16 %v2261, %v2260
  %v2279 = vpack.c.b16 %v2263, %v2262
  %v2280 = vpack.c.b16 %v2265, %v2264
  %v2281 = vpack.c.b16 %v2267, %v2266
  %v2282 = vpack.c.b16 %v2269, %v2268
  %v2283 = vpack.c.b16 %v2271, %v2270
  %v2297 = vsel %vm949, %v2219, 0
  %2299 = vmatprep.subr.bf16.mxu0 0
  %2300 = vmatpush1.bf16.msra.mxu0 %v2279
  %2301 = vmatprep.subr.bf16.mxu0 0
  %2302 = vmatpush1.bf16.msra.mxu0 %v2278
  %2303 = vmatprep.subr.bf16.mxu0 0
  %2304 = vmatpush1.bf16.msra.mxu0 %v2277
  %2305 = vmatprep.subr.bf16.mxu0 0
  %2306 = vmatpush1.bf16.msra.mxu0 %v2276
  %2307 = vmatprep.subr.bf16.mxu0 0
  %2308 = vmatpush1.bf16.msra.mxu0 %v2275
  %2309 = vmatprep.subr.bf16.mxu0 0
  %2310 = vmatpush1.bf16.msra.mxu0 %v2274
  %2311 = vmatprep.subr.bf16.mxu0 0
  %2312 = vmatpush1.bf16.msra.mxu0 %v2273
  %2313 = vmatprep.subr.bf16.mxu0 0
  %2314 = vmatpush1.bf16.msra.mxu0 %v2272
  %2315 = vmatprep.subr.bf16.mxu0 0
  %2316 = vmatpush2.bf16.msra.mxu0 0
  %2317 = vmatprep.subr.bf16.mxu0 0
  %2318 = vmatpush2.bf16.msra.mxu0 0
  %2319 = vmatprep.subr.bf16.mxu0 0
  %2320 = vmatpush2.bf16.msra.mxu0 0
  %2321 = vmatprep.subr.bf16.mxu0 0
  %2322 = vmatpush2.bf16.msra.mxu0 0
  %2323 = vmatprep.subr.bf16.mxu0 0
  %2324 = vmatpush2.bf16.msra.mxu0 %v2283
  %2325 = vmatprep.subr.bf16.mxu0 0
  %2326 = vmatpush2.bf16.msra.mxu0 %v2282
  %2327 = vmatprep.subr.bf16.mxu0 0
  %2328 = vmatpush2.bf16.msra.mxu0 %v2281
  %2329 = vmatprep.subr.bf16.mxu0 0
  %2330 = vmatpush2.bf16.msra.mxu0 %v2280
  %2331 = vmatprep.mubr.bf16.mxu0 %v2297
  %2332 = vmatmul.mubr.bf16.gmra.mxu0 %v2218
  %v2333 = vpop.f32.mrf.mxu0
  %v2334 = vadd.f32 %v2223, %v2333
  %v2335 = vpop.f32.mrf.mxu0
  %v2336 = vpop.f32.mrf.mxu0
  %v2337 = vadd.f32 %v2223, %v2336
  %v2338 = vpop.f32.mrf.mxu0
  %2339 = vdwg.mxu0
  %v2340 = vadd.f32 %v2036, %v2334
  %v2341 = vadd.f32 %v2037, %v2337
  %v2342 = vld [vmem:[%s5 + $0x8] sm:$0x1]
  %v2343 = vmul.f32 %v2340, %v2340
  %v2344 = vmul.f32 %v2341, %v2341
  %v2345 = vsel %vm183, %v2343, 0.0
  %2346 = vadd.xlane.f32.xlu0 %v2345
  %v2347 = vpop.xlane.xlu0 %2346
  %v2348 = vsel %vm266, %v2344, 0.0
  %2349 = vadd.xlane.f32.xlu0 %v2348
  %v2350 = vpop.xlane.xlu0 %2349
  %v2351 = vmul.f32 %v2347, %v187
  %v2352 = vmul.f32 %v2350, %v187
  %v2353 = vadd.f32 %v2351, 1e-06
  %v2354 = vadd.f32 %v2352, 1e-06
  %v2355 = vrsqrt.pop %v2353
  %v2356 = vrsqrt.pop %v2354
  %v2357 = vmul.f32 %v2340, %v2355
  %v2358 = vmul.f32 %v2341, %v2356
  %v2359 = vlaneseq
  %v2360 = vshrl.u32 %v2359, 7
  %v2361 = vsub.s32 0, %v2360
  %v2362 = vrot.slane %v2342, %v2361
  %v2363 = vmul.f32 %v2357, %v2362
  %v2364 = vmul.f32 %v2358, %v2362
  %v2365 = vld [vmem:[%s12] sm:$0xf]
  %v2366 = vld [vmem:[%s12 + $0x4] sm:$0xf]
  %v2367 = vld [vmem:[%s12 + $0x8] sm:$0xf]
  %v2368 = vld [vmem:[%s12 + $0xc] sm:$0xf]
  %v2369 = vld [vmem:[%s12 + $0x10] sm:$0xf]
  %v2370 = vld [vmem:[%s12 + $0x14] sm:$0xf]
  %v2371 = vpack.c.bf16 %v2364, %v2363
  %v2372 = vld [vmem:[%s13] sm:$0x1]
  %v2374 = vlaneseq
  %v2375 = vshrl.u32 %v2374, 7
  %v2376 = vsub.s32 0, %v2375
  %v2377 = vrot.slane %v2372, %v2376
  %v2385 = vunpack.c.l.b16 %v2365
  %v2386 = vunpack.c.l.b16 %v2366
  %v2387 = vunpack.c.l.b16 %v2367
  %v2388 = vunpack.c.l.b16 %v2368
  %v2389 = vunpack.c.l.b16 %v2369
  %v2390 = vunpack.c.l.b16 %v2370
  %v2391 = vpack.c.b16 %v2386, %v2385
  %v2392 = vpack.c.b16 %v2388, %v2387
  %v2393 = vpack.c.b16 %v2390, %v2389
  %v2398 = vsel %vm183, %v2371, 0
  %2400 = vmatprep.subr.bf16.mxu0 0
  %2401 = vmatpush1.bf16.msra.mxu0 0
  %2402 = vmatprep.subr.bf16.mxu0 0
  %2403 = vmatpush1.bf16.msra.mxu0 0
  %2404 = vmatprep.subr.bf16.mxu0 0
  %2405 = vmatpush1.bf16.msra.mxu0 0
  %2406 = vmatprep.subr.bf16.mxu0 0
  %2407 = vmatpush1.bf16.msra.mxu0 0
  %2408 = vmatprep.subr.bf16.mxu0 0
  %2409 = vmatpush1.bf16.msra.mxu0 0
  %2410 = vmatprep.subr.bf16.mxu0 0
  %2411 = vmatpush1.bf16.msra.mxu0 %v2393
  %2412 = vmatprep.subr.bf16.mxu0 0
  %2413 = vmatpush1.bf16.msra.mxu0 %v2392
  %2414 = vmatprep.subr.bf16.mxu0 0
  %2415 = vmatpush1.bf16.msra.mxu0 %v2391
  %2416 = vmatprep.subr.bf16.mxu0 0
  %2417 = vmatpush2.bf16.msra.mxu0 0
  %2418 = vmatprep.subr.bf16.mxu0 0
  %2419 = vmatpush2.bf16.msra.mxu0 0
  %2420 = vmatprep.subr.bf16.mxu0 0
  %2421 = vmatpush2.bf16.msra.mxu0 0
  %2422 = vmatprep.subr.bf16.mxu0 0
  %2423 = vmatpush2.bf16.msra.mxu0 0
  %2424 = vmatprep.subr.bf16.mxu0 0
  %2425 = vmatpush2.bf16.msra.mxu0 0
  %2426 = vmatprep.subr.bf16.mxu0 0
  %2427 = vmatpush2.bf16.msra.mxu0 0
  %2428 = vmatprep.subr.bf16.mxu0 0
  %2429 = vmatpush2.bf16.msra.mxu0 0
  %2430 = vmatprep.subr.bf16.mxu0 0
  %2431 = vmatpush2.bf16.msra.mxu0 0
  %2432 = vmatprep.mubr.bf16.mxu0 0
  %2433 = vmatmul.mubr.bf16.gmra.mxu0 %v2398
  %v2434 = vpop.f32.mrf.mxu0
  %v2435 = vadd.f32 %v2377, %v2434
  %v2436 = vpop.f32.mrf.mxu0
  %v2437 = vpop.f32.mrf.mxu0
  %v2438 = vadd.f32 %v2377, %v2437
  %v2439 = vpop.f32.mrf.mxu0
  %2440 = vdwg.mxu0
  %2441 = vst [vmem:[%s14] sm:$0xf] %v2435
  %2442 = vst [vmem:[%s14 - $0x1] sm:$0xe0] %v2435
  %2443 = vst [vmem:[%s14 + $0x7] sm:$0x1] %v2438
  // Predicated region
  $region58: #{terra_byte_forward.2} parent=0 // pred_check
    _
  $region59: #{terra_byte_forward.2} parent=0 // pred_check_branch
    %2445 = sbr.rel (0) target = $region61
  $region60: #{terra_byte_forward.2} parent=0 // pred_region
    _
  $region61: #{terra_byte_forward.2} parent=0 // pred_fallthru
    _
  // Predicated region
  $region62: #{terra_byte_forward.2} parent=0 // pred_check
    _
  $region63: #{terra_byte_forward.2} parent=0 // pred_check_branch
    %2447 = sbr.rel (0) target = $region65
  $region64: #{terra_byte_forward.2} parent=0 // pred_region
    _
  $region65: #{terra_byte_forward.2} parent=0 // pred_fallthru
    _

// kernel: terra_byte_forward.3
$region0: #{terra_byte_forward.3}
  #allocation0 [shape = 'u32[]', space=smem, size = 0x4, offset = 0x4, fixed_abs, tag = 'smem constant byte address 0x4 - core index']
  #allocation1 [shape = 'u32[144,128]{1,0:T(1,128)}', space=vmem, size = 0x12000, scoped, tag = 'internal scratch']
  #allocation2 [shape = 'f32[20,32]{1,0:T(8,128)}', space=vmem, size = 0x3000, scoped, tag = 'scratch operand']
  #allocation3 [shape = 'f32[20,64]{1,0:T(8,128)}', space=vmem, size = 0x3000, scoped, tag = 'scratch operand']
  %s0 = inlined_call_operand.vmem [shape: f32[32,32], index: 0, kind: input, shape index: {}]
  %s1 = inlined_call_operand.vmem [shape: f32[32,32], index: 1, kind: input, shape index: {}]
  %s2 = inlined_call_operand.vmem [shape: f32[1,32], index: 2, kind: input, shape index: {}]
  %s3 = inlined_call_operand.vmem [shape: f32[9,32], index: 3, kind: input, shape index: {}]
  %s4 = inlined_call_operand.vmem [shape: bf16[2,32,192], index: 4, kind: input, shape index: {}]
  %s5 = inlined_call_operand.vmem [shape: f32[2,192], index: 5, kind: input, shape index: {}]
  %s6 = inlined_call_operand.vmem [shape: bf16[2,64,32], index: 6, kind: input, shape index: {}]
  %s7 = inlined_call_operand.vmem [shape: bf16[2,32,128], index: 7, kind: input, shape index: {}]
  %s8 = inlined_call_operand.vmem [shape: f32[2,128], index: 8, kind: input, shape index: {}]
  %s9 = inlined_call_operand.vmem [shape: bf16[2,128,32], index: 9, kind: input, shape index: {}]
  %s10 = inlined_call_operand.vmem [shape: bf16[32,256], index: 10, kind: input, shape index: {}]
  %s11 = inlined_call_operand.vmem [shape: f32[1,256], index: 11, kind: input, shape index: {}]
  %s12 = inlined_call_operand.vmem [shape: f32[32,256], index: 12, kind: output, shape index: {}]
  %s13 = sld [smem:[#allocation0]]
  $region81: #{terra_byte_forward.3} parent=0
    _
  %s15 = ssub.s32 1, %s13
  %s16 = scalar_select 0, %s15, %s13
  loop: start=0, step=1, limit=4
  $region2: #{terra_byte_forward.3} parent=0 // loop_pre_header
    _
  $region3: #{terra_byte_forward.3} parent=0 // loop_header
    %s18 = sphi 0, %s22
    %p19 = scmp.ge.s32.totalorder %s18, 4
    %s28 = sphi 0, %s30
    %s31 = sphi 0, %s28
    %s32 = sphi 0, %s31
    %s48 = sphi 0, %s32
    %s54 = sphi 0, %s56
    %s57 = sphi 0, %s54
    %s58 = sphi 0, %s57
    %s74 = sphi 0, %s58
    %s78 = sphi 0, %s78
    %s80 = sphi 0, %s78
    %s81 = sphi 0, %s80
    %s95 = sphi 0, %s81
    %s99 = sphi 0, %s99
    %s101 = sphi 0, %s99
    %s102 = sphi 0, %s101
    %s116 = sphi 0, %s102
    %s120 = sphi 0, %s120
    %s122 = sphi 0, %s120
    %s123 = sphi 0, %s122
    %s137 = sphi 0, %s123
    %s141 = sphi 0, %s141
    %s143 = sphi 0, %s141
    %s144 = sphi 0, %s143
    %s158 = sphi 0, %s144
    %s162 = sphi 0, %s162
    %s164 = sphi 0, %s162
    %s165 = sphi 0, %s164
    %s179 = sphi 0, %s165
    %s183 = sphi 0, %s183
    %s185 = sphi 0, %s183
    %s186 = sphi 0, %s185
    %s200 = sphi 0, %s186
    %s204 = sphi 0, %s204
    %s206 = sphi 0, %s204
    %s207 = sphi 0, %s206
    %s221 = sphi 0, %s207
    %s225 = sphi 0, %s225
    %s227 = sphi 0, %s225
    %s228 = sphi 0, %s227
    %s242 = sphi 0, %s228
    %s246 = sphi 0, %s246
    %s248 = sphi 0, %s246
    %s249 = sphi 0, %s248
    %s263 = sphi 0, %s249
    %s267 = sphi 0, %s267
    %s269 = sphi 0, %s267
    %s270 = sphi 0, %s269
    %s284 = sphi 0, %s270
    %s290 = sphi 0, %s292
    %s293 = sphi 0, %s290
    %s294 = sphi 0, %s293
    %s310 = sphi 0, %s294
  $region4: #{terra_byte_forward.3} parent=0 // loop_header_branch
    %21 = sbr.rel (%p19) target = $region8
  $region5: #{terra_byte_forward.3} parent=0 // loop_body
    %s23 = ssub.s32 %s18, 1
    %s24 = ssub.s32 %s18, 2
    %s25 = sadd.s32 %s18, 1
    %s26 = ssub.s32 %s18, %s25
    %p27 = scmp.eq.s32.totalorder %s26, 0
    %s29 = sadd.s32 %s28, 1
    %s30 = scalar_select %p27, %s28, %s29
    %p33 = pneg %p27
    %p34 = scmp.eq.s32.totalorder %s18, 1
    %p35 = por %p33, %p34
    %p36 = scmp.ne.s32.totalorder %s28, %s31
    %p37 = scmp.eq.s32.totalorder %s18, 0
    %p38 = por %p36, %p37
    %p39 = scmp.ne.s32.totalorder %s28, %s31
    %p40 = scmp.eq.s32.totalorder %s23, 1
    %p41 = por %p39, %p40
    %p42 = scmp.ne.s32.totalorder %s31, %s32
    %p43 = scmp.eq.s32.totalorder %s23, 0
    %p44 = por %p42, %p43
    %p45 = scmp.ne.s32.totalorder %s31, %s32
    %p46 = scmp.eq.s32.totalorder %s24, 1
    %p47 = por %p45, %p46
    %p49 = scmp.ne.s32.totalorder %s32, %s48
    %p50 = scmp.eq.s32.totalorder %s24, 0
    %p51 = por %p49, %p50
    %s52 = ssub.s32 %s18, %s25
    %p53 = scmp.eq.s32.totalorder %s52, 0
    %s55 = sadd.s32 %s54, 1
    %s56 = scalar_select %p53, %s54, %s55
    %p59 = pneg %p53
    %p60 = scmp.eq.s32.totalorder %s18, 1
    %p61 = por %p59, %p60
    %p62 = scmp.ne.s32.totalorder %s54, %s57
    %p63 = scmp.eq.s32.totalorder %s18, 0
    %p64 = por %p62, %p63
    %p65 = scmp.ne.s32.totalorder %s54, %s57
    %p66 = scmp.eq.s32.totalorder %s23, 1
    %p67 = por %p65, %p66
    %p68 = scmp.ne.s32.totalorder %s57, %s58
    %p69 = scmp.eq.s32.totalorder %s23, 0
    %p70 = por %p68, %p69
    %p71 = scmp.ne.s32.totalorder %s57, %s58
    %p72 = scmp.eq.s32.totalorder %s24, 1
    %p73 = por %p71, %p72
    %p75 = scmp.ne.s32.totalorder %s58, %s74
    %p76 = scmp.eq.s32.totalorder %s24, 0
    %p77 = por %p75, %p76
    %s79 = sadd.s32 %s78, 1
    %p82 = scmp.eq.s32.totalorder %s18, 1
    %p83 = scmp.ne.s32.totalorder %s78, %s80
    %p84 = scmp.eq.s32.totalorder %s18, 0
    %p85 = por %p83, %p84
    %p86 = scmp.ne.s32.totalorder %s78, %s80
    %p87 = scmp.eq.s32.totalorder %s23, 1
    %p88 = por %p86, %p87
    %p89 = scmp.ne.s32.totalorder %s80, %s81
    %p90 = scmp.eq.s32.totalorder %s23, 0
    %p91 = por %p89, %p90
    %p92 = scmp.ne.s32.totalorder %s80, %s81
    %p93 = scmp.eq.s32.totalorder %s24, 1
    %p94 = por %p92, %p93
    %p96 = scmp.ne.s32.totalorder %s81, %s95
    %p97 = scmp.eq.s32.totalorder %s24, 0
    %p98 = por %p96, %p97
    %s100 = sadd.s32 %s99, 1
    %p103 = scmp.eq.s32.totalorder %s18, 1
    %p104 = scmp.ne.s32.totalorder %s99, %s101
    %p105 = scmp.eq.s32.totalorder %s18, 0
    %p106 = por %p104, %p105
    %p107 = scmp.ne.s32.totalorder %s99, %s101
    %p108 = scmp.eq.s32.totalorder %s23, 1
    %p109 = por %p107, %p108
    %p110 = scmp.ne.s32.totalorder %s101, %s102
    %p111 = scmp.eq.s32.totalorder %s23, 0
    %p112 = por %p110, %p111
    %p113 = scmp.ne.s32.totalorder %s101, %s102
    %p114 = scmp.eq.s32.totalorder %s24, 1
    %p115 = por %p113, %p114
    %p117 = scmp.ne.s32.totalorder %s102, %s116
    %p118 = scmp.eq.s32.totalorder %s24, 0
    %p119 = por %p117, %p118
    %s121 = sadd.s32 %s120, 1
    %p124 = scmp.eq.s32.totalorder %s18, 1
    %p125 = scmp.ne.s32.totalorder %s120, %s122
    %p126 = scmp.eq.s32.totalorder %s18, 0
    %p127 = por %p125, %p126
    %p128 = scmp.ne.s32.totalorder %s120, %s122
    %p129 = scmp.eq.s32.totalorder %s23, 1
    %p130 = por %p128, %p129
    %p131 = scmp.ne.s32.totalorder %s122, %s123
    %p132 = scmp.eq.s32.totalorder %s23, 0
    %p133 = por %p131, %p132
    %p134 = scmp.ne.s32.totalorder %s122, %s123
    %p135 = scmp.eq.s32.totalorder %s24, 1
    %p136 = por %p134, %p135
    %p138 = scmp.ne.s32.totalorder %s123, %s137
    %p139 = scmp.eq.s32.totalorder %s24, 0
    %p140 = por %p138, %p139
    %s142 = sadd.s32 %s141, 1
    %p145 = scmp.eq.s32.totalorder %s18, 1
    %p146 = scmp.ne.s32.totalorder %s141, %s143
    %p147 = scmp.eq.s32.totalorder %s18, 0
    %p148 = por %p146, %p147
    %p149 = scmp.ne.s32.totalorder %s141, %s143
    %p150 = scmp.eq.s32.totalorder %s23, 1
    %p151 = por %p149, %p150
    %p152 = scmp.ne.s32.totalorder %s143, %s144
    %p153 = scmp.eq.s32.totalorder %s23, 0
    %p154 = por %p152, %p153
    %p155 = scmp.ne.s32.totalorder %s143, %s144
    %p156 = scmp.eq.s32.totalorder %s24, 1
    %p157 = por %p155, %p156
    %p159 = scmp.ne.s32.totalorder %s144, %s158
    %p160 = scmp.eq.s32.totalorder %s24, 0
    %p161 = por %p159, %p160
    %s163 = sadd.s32 %s162, 1
    %p166 = scmp.eq.s32.totalorder %s18, 1
    %p167 = scmp.ne.s32.totalorder %s162, %s164
    %p168 = scmp.eq.s32.totalorder %s18, 0
    %p169 = por %p167, %p168
    %p170 = scmp.ne.s32.totalorder %s162, %s164
    %p171 = scmp.eq.s32.totalorder %s23, 1
    %p172 = por %p170, %p171
    %p173 = scmp.ne.s32.totalorder %s164, %s165
    %p174 = scmp.eq.s32.totalorder %s23, 0
    %p175 = por %p173, %p174
    %p176 = scmp.ne.s32.totalorder %s164, %s165
    %p177 = scmp.eq.s32.totalorder %s24, 1
    %p178 = por %p176, %p177
    %p180 = scmp.ne.s32.totalorder %s165, %s179
    %p181 = scmp.eq.s32.totalorder %s24, 0
    %p182 = por %p180, %p181
    %s184 = sadd.s32 %s183, 1
    %p187 = scmp.eq.s32.totalorder %s18, 1
    %p188 = scmp.ne.s32.totalorder %s183, %s185
    %p189 = scmp.eq.s32.totalorder %s18, 0
    %p190 = por %p188, %p189
    %p191 = scmp.ne.s32.totalorder %s183, %s185
    %p192 = scmp.eq.s32.totalorder %s23, 1
    %p193 = por %p191, %p192
    %p194 = scmp.ne.s32.totalorder %s185, %s186
    %p195 = scmp.eq.s32.totalorder %s23, 0
    %p196 = por %p194, %p195
    %p197 = scmp.ne.s32.totalorder %s185, %s186
    %p198 = scmp.eq.s32.totalorder %s24, 1
    %p199 = por %p197, %p198
    %p201 = scmp.ne.s32.totalorder %s186, %s200
    %p202 = scmp.eq.s32.totalorder %s24, 0
    %p203 = por %p201, %p202
    %s205 = sadd.s32 %s204, 1
    %p208 = scmp.eq.s32.totalorder %s18, 1
    %p209 = scmp.ne.s32.totalorder %s204, %s206
    %p210 = scmp.eq.s32.totalorder %s18, 0
    %p211 = por %p209, %p210
    %p212 = scmp.ne.s32.totalorder %s204, %s206
    %p213 = scmp.eq.s32.totalorder %s23, 1
    %p214 = por %p212, %p213
    %p215 = scmp.ne.s32.totalorder %s206, %s207
    %p216 = scmp.eq.s32.totalorder %s23, 0
    %p217 = por %p215, %p216
    %p218 = scmp.ne.s32.totalorder %s206, %s207
    %p219 = scmp.eq.s32.totalorder %s24, 1
    %p220 = por %p218, %p219
    %p222 = scmp.ne.s32.totalorder %s207, %s221
    %p223 = scmp.eq.s32.totalorder %s24, 0
    %p224 = por %p222, %p223
    %s226 = sadd.s32 %s225, 1
    %p229 = scmp.eq.s32.totalorder %s18, 1
    %p230 = scmp.ne.s32.totalorder %s225, %s227
    %p231 = scmp.eq.s32.totalorder %s18, 0
    %p232 = por %p230, %p231
    %p233 = scmp.ne.s32.totalorder %s225, %s227
    %p234 = scmp.eq.s32.totalorder %s23, 1
    %p235 = por %p233, %p234
    %p236 = scmp.ne.s32.totalorder %s227, %s228
    %p237 = scmp.eq.s32.totalorder %s23, 0
    %p238 = por %p236, %p237
    %p239 = scmp.ne.s32.totalorder %s227, %s228
    %p240 = scmp.eq.s32.totalorder %s24, 1
    %p241 = por %p239, %p240
    %p243 = scmp.ne.s32.totalorder %s228, %s242
    %p244 = scmp.eq.s32.totalorder %s24, 0
    %p245 = por %p243, %p244
    %s247 = sadd.s32 %s246, 1
    %p250 = scmp.eq.s32.totalorder %s18, 1
    %p251 = scmp.ne.s32.totalorder %s246, %s248
    %p252 = scmp.eq.s32.totalorder %s18, 0
    %p253 = por %p251, %p252
    %p254 = scmp.ne.s32.totalorder %s246, %s248
    %p255 = scmp.eq.s32.totalorder %s23, 1
    %p256 = por %p254, %p255
    %p257 = scmp.ne.s32.totalorder %s248, %s249
    %p258 = scmp.eq.s32.totalorder %s23, 0
    %p259 = por %p257, %p258
    %p260 = scmp.ne.s32.totalorder %s248, %s249
    %p261 = scmp.eq.s32.totalorder %s24, 1
    %p262 = por %p260, %p261
    %p264 = scmp.ne.s32.totalorder %s249, %s263
    %p265 = scmp.eq.s32.totalorder %s24, 0
    %p266 = por %p264, %p265
    %s268 = sadd.s32 %s267, 1
    %p271 = scmp.eq.s32.totalorder %s18, 1
    %p272 = scmp.ne.s32.totalorder %s267, %s269
    %p273 = scmp.eq.s32.totalorder %s18, 0
    %p274 = por %p272, %p273
    %p275 = scmp.ne.s32.totalorder %s267, %s269
    %p276 = scmp.eq.s32.totalorder %s23, 1
    %p277 = por %p275, %p276
    %p278 = scmp.ne.s32.totalorder %s269, %s270
    %p279 = scmp.eq.s32.totalorder %s23, 0
    %p280 = por %p278, %p279
    %p281 = scmp.ne.s32.totalorder %s269, %s270
    %p282 = scmp.eq.s32.totalorder %s24, 1
    %p283 = por %p281, %p282
    %p285 = scmp.ne.s32.totalorder %s270, %s284
    %p286 = scmp.eq.s32.totalorder %s24, 0
    %p287 = por %p285, %p286
    %s288 = ssub.s32 %s18, %s25
    %p289 = scmp.eq.s32.totalorder %s288, 0
    %s291 = sadd.s32 %s290, 1
    %s292 = scalar_select %p289, %s290, %s291
    %p295 = pneg %p289
    %p296 = scmp.eq.s32.totalorder %s18, 1
    %p297 = por %p295, %p296
    %p298 = scmp.ne.s32.totalorder %s290, %s293
    %p299 = scmp.eq.s32.totalorder %s18, 0
    %p300 = por %p298, %p299
    %p301 = scmp.ne.s32.totalorder %s290, %s293
    %p302 = scmp.eq.s32.totalorder %s23, 1
    %p303 = por %p301, %p302
    %p304 = scmp.ne.s32.totalorder %s293, %s294
    %p305 = scmp.eq.s32.totalorder %s23, 0
    %p306 = por %p304, %p305
    %p307 = scmp.ne.s32.totalorder %s293, %s294
    %p308 = scmp.eq.s32.totalorder %s24, 1
    %p309 = por %p307, %p308
    %p311 = scmp.ne.s32.totalorder %s294, %s310
    %p312 = scmp.eq.s32.totalorder %s24, 0
    %p313 = por %p311, %p312
    %p314 = scmp.le.s32.totalorder 1, %s18
    %p315 = scmp.lt.s32.totalorder %s18, 3
    %p316 = pnand %p314, %p315
    %p317 = pneg %p316
    // Predicated region
    $region9: #{terra_byte_forward.3} parent=5 // pred_check
      _
    $region10: #{terra_byte_forward.3} parent=5 // pred_check_branch
      %319 = sbr.rel (%p316) target = $region12
    $region11: #{terra_byte_forward.3} parent=5 // pred_region
      %s320 = ssub.s32 %s18, 1
      // Predicated region
      $region13: #{terra_byte_forward.3} parent=11 // pred_check
        %p321 = pneg %p91
      $region14: #{terra_byte_forward.3} parent=11 // pred_check_branch
        %323 = sbr.rel (%p321) target = $region16
      $region15: #{terra_byte_forward.3} parent=11 // pred_region
        _
      $region16: #{terra_byte_forward.3} parent=11 // pred_fallthru
        _
      // Predicated region
      $region17: #{terra_byte_forward.3} parent=11 // pred_check
        %p324 = pneg %p112
      $region18: #{terra_byte_forward.3} parent=11 // pred_check_branch
        %326 = sbr.rel (%p324) target = $region20
      $region19: #{terra_byte_forward.3} parent=11 // pred_region
        _
      $region20: #{terra_byte_forward.3} parent=11 // pred_fallthru
        _
      // Predicated region
      $region21: #{terra_byte_forward.3} parent=11 // pred_check
        %p327 = pneg %p133
      $region22: #{terra_byte_forward.3} parent=11 // pred_check_branch
        %329 = sbr.rel (%p327) target = $region24
      $region23: #{terra_byte_forward.3} parent=11 // pred_region
        _
      $region24: #{terra_byte_forward.3} parent=11 // pred_fallthru
        _
      // Predicated region
      $region25: #{terra_byte_forward.3} parent=11 // pred_check
        %p330 = pneg %p154
      $region26: #{terra_byte_forward.3} parent=11 // pred_check_branch
        %332 = sbr.rel (%p330) target = $region28
      $region27: #{terra_byte_forward.3} parent=11 // pred_region
        _
      $region28: #{terra_byte_forward.3} parent=11 // pred_fallthru
        _
      // Predicated region
      $region29: #{terra_byte_forward.3} parent=11 // pred_check
        %p333 = pneg %p175
      $region30: #{terra_byte_forward.3} parent=11 // pred_check_branch
        %335 = sbr.rel (%p333) target = $region32
      $region31: #{terra_byte_forward.3} parent=11 // pred_region
        _
      $region32: #{terra_byte_forward.3} parent=11 // pred_fallthru
        _
      // Predicated region
      $region33: #{terra_byte_forward.3} parent=11 // pred_check
        %p336 = pneg %p196
      $region34: #{terra_byte_forward.3} parent=11 // pred_check_branch
        %338 = sbr.rel (%p336) target = $region36
      $region35: #{terra_byte_forward.3} parent=11 // pred_region
        _
      $region36: #{terra_byte_forward.3} parent=11 // pred_fallthru
        _
      // Predicated region
      $region37: #{terra_byte_forward.3} parent=11 // pred_check
        %p339 = pneg %p217
      $region38: #{terra_byte_forward.3} parent=11 // pred_check_branch
        %341 = sbr.rel (%p339) target = $region40
      $region39: #{terra_byte_forward.3} parent=11 // pred_region
        _
      $region40: #{terra_byte_forward.3} parent=11 // pred_fallthru
        _
      // Predicated region
      $region41: #{terra_byte_forward.3} parent=11 // pred_check
        %p342 = pneg %p238
      $region42: #{terra_byte_forward.3} parent=11 // pred_check_branch
        %344 = sbr.rel (%p342) target = $region44
      $region43: #{terra_byte_forward.3} parent=11 // pred_region
        _
      $region44: #{terra_byte_forward.3} parent=11 // pred_fallthru
        _
      // Predicated region
      $region45: #{terra_byte_forward.3} parent=11 // pred_check
        %p345 = pneg %p259
      $region46: #{terra_byte_forward.3} parent=11 // pred_check_branch
        %347 = sbr.rel (%p345) target = $region48
      $region47: #{terra_byte_forward.3} parent=11 // pred_region
        _
      $region48: #{terra_byte_forward.3} parent=11 // pred_fallthru
        _
      // Predicated region
      $region49: #{terra_byte_forward.3} parent=11 // pred_check
        %p348 = pneg %p280
      $region50: #{terra_byte_forward.3} parent=11 // pred_check_branch
        %350 = sbr.rel (%p348) target = $region52
      $region51: #{terra_byte_forward.3} parent=11 // pred_region
        _
      $region52: #{terra_byte_forward.3} parent=11 // pred_fallthru
        _
    $region12: #{terra_byte_forward.3} parent=5 // pred_fallthru
      _
    %p351 = scmp.lt.s32.totalorder %s18, 2
    // Predicated region
    $region53: #{terra_byte_forward.3} parent=5 // pred_check
      %p352 = pneg %p351
    $region54: #{terra_byte_forward.3} parent=5 // pred_check_branch
      %354 = sbr.rel (%p352) target = $region56
    $region55: #{terra_byte_forward.3} parent=5 // pred_region
      // Predicated region
      $region57: #{terra_byte_forward.3} parent=55 // pred_check
        %p355 = pneg %p38
      $region58: #{terra_byte_forward.3} parent=55 // pred_check_branch
        %357 = sbr.rel (%p355) target = $region60
      $region59: #{terra_byte_forward.3} parent=55 // pred_region
        %s358 = smul.u32 2, %s18
        %p359 = scmp.lt.s32.totalorder %s358, 3
        %s360 = scalar_select %p359, %s358, 3
        %s361 = smul.addr %s360, 8
        %s362 = scalar_lea.vmem %s0, %s361
        %s363 = smul.u32 2, %s18
      $region60: #{terra_byte_forward.3} parent=55 // pred_fallthru
        _
      // Predicated region
      $region61: #{terra_byte_forward.3} parent=55 // pred_check
        %p364 = pneg %p64
      $region62: #{terra_byte_forward.3} parent=55 // pred_check_branch
        %366 = sbr.rel (%p364) target = $region64
      $region63: #{terra_byte_forward.3} parent=55 // pred_region
        %s367 = smul.u32 2, %s18
        %p368 = scmp.lt.s32.totalorder %s367, 3
        %s369 = scalar_select %p368, %s367, 3
        %s370 = smul.addr %s369, 8
        %s371 = scalar_lea.vmem %s1, %s370
        %s372 = smul.u32 2, %s18
      $region64: #{terra_byte_forward.3} parent=55 // pred_fallthru
        _
    $region56: #{terra_byte_forward.3} parent=5 // pred_fallthru
      _
    %p373 = scmp.le.s32.totalorder 1, %s18
    %p374 = scmp.lt.s32.totalorder %s18, 3
    %p375 = pnand %p373, %p374
    %p376 = pneg %p375
    // Predicated region
    $region65: #{terra_byte_forward.3} parent=5 // pred_check
      _
    $region66: #{terra_byte_forward.3} parent=5 // pred_check_branch
      %378 = sbr.rel (%p375) target = $region68
    $region67: #{terra_byte_forward.3} parent=5 // pred_region
      %s379 = ssub.s32 %s18, 1
      %s380 = smul.u32 2, %s23
      %p381 = scmp.lt.s32.totalorder %s380, 3
      %s382 = scalar_select %p381, %s380, 3
      %s383 = smul.addr %s382, 8
      %s384 = scalar_lea.vmem %s0, %s383
      %p385 = pneg %p44
      %p386 = pneg %p41
      %s387 = smul.u32 2, %s23
      %p388 = scmp.lt.s32.totalorder %s387, 3
      %s389 = scalar_select %p388, %s387, 3
      %s390 = smul.addr %s389, 8
      %s391 = scalar_lea.vmem %s1, %s390
      %p392 = pneg %p70
      %p393 = pneg %p67
      %p394 = pneg %p91
      %p395 = pneg %p88
      %p396 = pneg %p112
      %p397 = pneg %p109
      %p398 = pneg %p133
      %p399 = pneg %p130
      %p400 = pneg %p154
      %p401 = pneg %p151
      %p402 = pneg %p175
      %p403 = pneg %p172
      %p404 = pneg %p196
      %p405 = pneg %p193
      %p406 = pneg %p217
      %p407 = pneg %p214
      %p408 = pneg %p238
      %p409 = pneg %p235
      %p410 = pneg %p259
      %p411 = pneg %p256
      %p412 = pneg %p280
      %p413 = pneg %p277
      %p414 = pneg %p306
      %p415 = pneg %p303
      %s416 = smul.u32 2, %s23
      %p417 = scmp.lt.s32.totalorder %s416, 3
      %s418 = scalar_select %p417, %s416, 3
      %s419 = smul.addr %s418, 2
      %s420 = smul.addr %s419, 8
      %s421 = scalar_lea.vmem %s12, %s420
      %s422 = smul.u32 2, %s23
      %p423 = scmp.lt.s32.totalorder %s422, 3
      %s424 = scalar_select %p423, %s422, 3
      %s425 = smul.addr %s424, 8
      %s426 = scalar_lea.vmem %s0, %s425
      %s427 = smul.u32 2, %s23
      %s428 = smul.u32 2, %s23
      %p429 = scmp.lt.s32.totalorder %s428, 3
      %s430 = scalar_select %p429, %s428, 3
      %s431 = smul.addr %s430, 8
      %s432 = scalar_lea.vmem %s1, %s431
      %s433 = smul.u32 2, %s23
      %s434 = smul.u32 2, %s23
      %p435 = scmp.lt.s32.totalorder %s434, 3
      %s436 = scalar_select %p435, %s434, 3
      %s437 = smul.addr %s436, 2
      %s438 = smul.addr %s437, 8
      %s439 = scalar_lea.vmem %s12, %s438
      %s440 = smul.u32 2, %s23
      %v442 = vld [vmem:[%s426] sm:$0xff]
      %v443 = vld [vmem:[%s426 + $0x8] sm:$0xff]
      %v444 = vld [vmem:[%s432] sm:$0xff]
      %v445 = vld [vmem:[%s432 + $0x8] sm:$0xff]
      %v446 = vadd.f32 %v442, %v444
      %v447 = vadd.f32 %v443, %v445
      %v448 = vld [vmem:[%s2] sm:$0x1]
      %vm449 = vcmask 253952
      %450 = vst.msk [vmem:[#allocation2] sm:$0x1] %vm449, %v448
      %vm451 = vcmask 257024
      %452 = vst.msk [vmem:[#allocation2 + $0x1] sm:$0xf] %vm451, %v446
      %453 = vst.msk [vmem:[#allocation2 + $0x5] sm:$0x1] %vm449, %v448
      %vm454 = vcmask 261124
      %455 = vst.msk [vmem:[#allocation2 + $0x2] sm:$0xf0] %vm454, %v446
      %456 = vst.msk [vmem:[#allocation2 + $0xa] sm:$0x1] %vm449, %v448
      %457 = vst.msk [vmem:[#allocation2 + $0xb] sm:$0xf] %vm451, %v447
      %458 = vst.msk [vmem:[#allocation2 + $0xf] sm:$0x1] %vm449, %v448
      %459 = vst.msk [vmem:[#allocation2 + $0xc] sm:$0xf0] %vm454, %v447
      %v460 = vlaneseq
      %v461 = vshrl.u32 %v460, 7
      %v462 = vadd.s32 %v461, 8
      %v463 = vadd.s32 %v461, 16
      %v464 = vlaneseq
      %v465 = vand.u32 %v464, 127
      %vm466 = vcmp.ge.s32.totalorder %v461, 0
      %vm467 = vcmp.ge.s32.totalorder %v462, 0
      %vm468 = vcmp.ge.s32.totalorder %v463, 0
      %vm469 = vcmp.lt.s32.totalorder %v461, 5
      %vm470 = vcmp.lt.s32.totalorder %v462, 5
      %vm471 = vcmp.lt.s32.totalorder %v463, 5
      %vm472 = vmand %vm466, %vm469
      %vm473 = vmand %vm467, %vm470
      %vm474 = vmand %vm468, %vm471
      %vm475 = vcmp.ge.s32.totalorder %v465, 0
      %vm476 = vmand %vm472, %vm475
      %vm477 = vmand %vm473, %vm475
      %vm478 = vmand %vm474, %vm475
      %vm479 = vcmp.lt.s32.totalorder %v465, 5
      %vm480 = vmand %vm476, %vm479
      %vm481 = vmand %vm477, %vm479
      %vm482 = vmand %vm478, %vm479
      %vm483 = vcmp.ge.s32.totalorder %v461, 5
      %vm484 = vcmp.ge.s32.totalorder %v462, 5
      %vm485 = vcmp.ge.s32.totalorder %v463, 5
      %vm486 = vcmp.lt.s32.totalorder %v461, 10
      %vm487 = vcmp.lt.s32.totalorder %v462, 10
      %vm488 = vcmp.lt.s32.totalorder %v463, 10
      %vm489 = vmand %vm483, %vm486
      %vm490 = vmand %vm484, %vm487
      %vm491 = vmand %vm485, %vm488
      %vm492 = vcmp.ge.s32.totalorder %v465, 5
      %vm493 = vmand %vm489, %vm492
      %vm494 = vmand %vm490, %vm492
      %vm495 = vmand %vm491, %vm492
      %vm496 = vcmp.lt.s32.totalorder %v465, 10
      %vm497 = vmand %vm493, %vm496
      %vm498 = vmand %vm494, %vm496
      %vm499 = vmand %vm495, %vm496
      %vm500 = vmor %vm480, %vm497
      %vm501 = vmor %vm481, %vm498
      %vm502 = vmor %vm482, %vm499
      %vm503 = vcmp.ge.s32.totalorder %v461, 10
      %vm504 = vcmp.ge.s32.totalorder %v462, 10
      %vm505 = vcmp.ge.s32.totalorder %v463, 10
      %vm506 = vcmp.lt.s32.totalorder %v461, 15
      %vm507 = vcmp.lt.s32.totalorder %v462, 15
      %vm508 = vcmp.lt.s32.totalorder %v463, 15
      %vm509 = vmand %vm503, %vm506
      %vm510 = vmand %vm504, %vm507
      %vm511 = vmand %vm505, %vm508
      %vm512 = vcmp.ge.s32.totalorder %v465, 10
      %vm513 = vmand %vm509, %vm512
      %vm514 = vmand %vm510, %vm512
      %vm515 = vmand %vm511, %vm512
      %vm516 = vcmp.lt.s32.totalorder %v465, 15
      %vm517 = vmand %vm513, %vm516
      %vm518 = vmand %vm514, %vm516
      %vm519 = vmand %vm515, %vm516
      %vm520 = vmor %vm500, %vm517
      %vm521 = vmor %vm501, %vm518
      %vm522 = vmor %vm502, %vm519
      %vm523 = vcmp.ge.s32.totalorder %v461, 15
      %vm524 = vcmp.ge.s32.totalorder %v462, 15
      %vm525 = vcmp.ge.s32.totalorder %v463, 15
      %vm526 = vcmp.lt.s32.totalorder %v461, 20
      %vm527 = vcmp.lt.s32.totalorder %v462, 20
      %vm528 = vcmp.lt.s32.totalorder %v463, 20
      %vm529 = vmand %vm523, %vm526
      %vm530 = vmand %vm524, %vm527
      %vm531 = vmand %vm525, %vm528
      %vm532 = vcmp.ge.s32.totalorder %v465, 15
      %vm533 = vmand %vm529, %vm532
      %vm534 = vmand %vm530, %vm532
      %vm535 = vmand %vm531, %vm532
      %vm536 = vcmp.lt.s32.totalorder %v465, 20
      %vm537 = vmand %vm533, %vm536
      %vm538 = vmand %vm534, %vm536
      %vm539 = vmand %vm535, %vm536
      %vm540 = vmor %vm520, %vm537
      %vm541 = vmor %vm521, %vm538
      %vm542 = vmor %vm522, %vm539
      %vm543 = vcmp.le.s32.totalorder %v465, %v461
      %vm544 = vcmp.le.s32.totalorder %v465, %v462
      %vm545 = vcmp.le.s32.totalorder %v465, %v463
      %vm546 = vmand %vm540, %vm543
      %vm547 = vmand %vm541, %vm544
      %vm548 = vmand %vm542, %vm545
      %v549 = vsel %vm546, 0.0, -1e+30
      %v550 = vsel %vm547, 0.0, -1e+30
      %v551 = vsel %vm548, 0.0, -1e+30
      %v552 = vld [vmem:[#allocation2] sm:$0xff]
      %v553 = vld [vmem:[#allocation2 + $0x8] sm:$0xff]
      %v554 = vld [vmem:[#allocation2 + $0x10] sm:$0xf]
      %v555 = vld [vmem:[%s3] sm:$0x1]
      %v556 = vld [vmem:[%s3 + $0x1] sm:$0x1]
      %v557 = vld [vmem:[%s3 + $0x2] sm:$0x1]
      %v558 = vld [vmem:[%s3 + $0x3] sm:$0x1]
      %v559 = vmul.f32 %v552, %v552
      %v560 = vmul.f32 %v553, %v553
      %v561 = vmul.f32 %v554, %v554
      %vm562 = vcmask 261120
      %v563 = vsel %vm562, %v559, 0.0
      %564 = vadd.xlane.f32.xlu0 %v563
      %v565 = vpop.xlane.xlu0 %564
      %v566 = vsel %vm562, %v560, 0.0
      %567 = vadd.xlane.f32.xlu0 %v566
      %v568 = vpop.xlane.xlu0 %567
      %v569 = vsel %vm451, %v561, 0.0
      %570 = vadd.xlane.f32.xlu0 %v569
      %v571 = vpop.xlane.xlu0 %570
      %v572 = vrcp.pop 32.0
      %v573 = vmul.f32 %v565, %v572
      %v574 = vmul.f32 %v568, %v572
      %v575 = vmul.f32 %v571, %v572
      %v576 = vadd.f32 %v573, 1e-06
      %v577 = vadd.f32 %v574, 1e-06
      %v578 = vadd.f32 %v575, 1e-06
      %v579 = vrsqrt.pop %v576
      %v580 = vrsqrt.pop %v577
      %v581 = vrsqrt.pop %v578
      %v582 = vmul.f32 %v552, %v579
      %v583 = vmul.f32 %v553, %v580
      %v584 = vmul.f32 %v554, %v581
      %v585 = vlaneseq
      %v586 = vshrl.u32 %v585, 7
      %v587 = vsub.s32 0, %v586
      %v588 = vrot.slane %v555, %v587
      %v589 = vmul.f32 %v582, %v588
      %v590 = vmul.f32 %v583, %v588
      %v591 = vmul.f32 %v584, %v588
      %v592 = vld [vmem:[%s4] sm:$0xff]
      %v593 = vld [vmem:[%s4 + $0x8] sm:$0xff]
      %v594 = vld [vmem:[%s4 + $0x10] sm:$0xff]
      %v595 = vld [vmem:[%s4 + $0x18] sm:$0xff]
      %v596 = vpack.c.bf16 %v590, %v589
      %v597 = vpack.c.bf16 %v591, %v591
      %v598 = vld [vmem:[%s5] ss:$2 sm:$0x3]
      %v600 = vlaneseq
      %v601 = vshrl.u32 %v600, 7
      %v602 = vsub.s32 0, %v601
      %v603 = vrot.slane %v598, %v602
      %v604 = vlaneseq
      %v605 = vshrl.u32 %v604, 7
      %v606 = vsub.s32 1, %v605
      %v607 = vrot.slane %v598, %v606
      %v614 = vunpack.c.l.b16 %v592
      %v615 = vunpack.c.h.b16 %v592
      %v616 = vunpack.c.l.b16 %v593
      %v617 = vunpack.c.h.b16 %v593
      %v618 = vunpack.c.l.b16 %v594
      %v619 = vunpack.c.h.b16 %v594
      %v620 = vunpack.c.l.b16 %v595
      %v621 = vunpack.c.h.b16 %v595
      %v622 = vpack.c.b16 %v616, %v614
      %v623 = vpack.c.b16 %v617, %v615
      %v624 = vpack.c.b16 %v620, %v618
      %v625 = vpack.c.b16 %v621, %v619
      %v631 = vsel %vm562, %v596, 0
      %v634 = vsel %vm562, %v597, 0
      %636 = vmatprep.subr.bf16.mxu0 0
      %637 = vmatpush1.bf16.msra.mxu0 0
      %638 = vmatprep.subr.bf16.mxu0 0
      %639 = vmatpush1.bf16.msra.mxu0 0
      %640 = vmatprep.subr.bf16.mxu0 0
      %641 = vmatpush1.bf16.msra.mxu0 0
      %642 = vmatprep.subr.bf16.mxu0 0
      %643 = vmatpush1.bf16.msra.mxu0 0
      %644 = vmatprep.subr.bf16.mxu0 0
      %645 = vmatpush1.bf16.msra.mxu0 0
      %646 = vmatprep.subr.bf16.mxu0 0
      %647 = vmatpush1.bf16.msra.mxu0 0
      %648 = vmatprep.subr.bf16.mxu0 %v625
      %649 = vmatpush1.bf16.msra.mxu0 %v624
      %650 = vmatprep.subr.bf16.mxu0 %v623
      %651 = vmatpush1.bf16.msra.mxu0 %v622
      %652 = vmatprep.subr.bf16.mxu0 0
      %653 = vmatpush2.bf16.msra.mxu0 0
      %654 = vmatprep.subr.bf16.mxu0 0
      %655 = vmatpush2.bf16.msra.mxu0 0
      %656 = vmatprep.subr.bf16.mxu0 0
      %657 = vmatpush2.bf16.msra.mxu0 0
      %658 = vmatprep.subr.bf16.mxu0 0
      %659 = vmatpush2.bf16.msra.mxu0 0
      %660 = vmatprep.subr.bf16.mxu0 0
      %661 = vmatpush2.bf16.msra.mxu0 0
      %662 = vmatprep.subr.bf16.mxu0 0
      %663 = vmatpush2.bf16.msra.mxu0 0
      %664 = vmatprep.subr.bf16.mxu0 0
      %665 = vmatpush2.bf16.msra.mxu0 0
      %666 = vmatprep.subr.bf16.mxu0 0
      %667 = vmatpush2.bf16.msra.mxu0 0
      %668 = vmatprep.mubr.bf16.mxu0 0
      %669 = vmatmul.mubr.bf16.gmra.mxu0 %v631
      %v670 = vpop.f32.mrf.mxu0
      %v671 = vadd.f32 %v603, %v670
      %v672 = vpop.f32.mrf.mxu0
      %v673 = vadd.f32 %v607, %v672
      %v674 = vpop.f32.mrf.mxu0
      %v675 = vadd.f32 %v603, %v674
      %v676 = vpop.f32.mrf.mxu0
      %v677 = vadd.f32 %v607, %v676
      %678 = vmatprep.mubr.bf16.mxu0 0
      %679 = vmatmul.mubr.bf16.gmra.mxu0 %v634
      %v680 = vpop.f32.mrf.mxu0
      %v681 = vadd.f32 %v603, %v680
      %v682 = vpop.f32.mrf.mxu0
      %v683 = vadd.f32 %v607, %v682
      %v684 = vpop.f32.mrf.mxu0
      %v685 = vpop.f32.mrf.mxu0
      %686 = vdwg.mxu0
      %v687 = vpack.c.bf16 %v675, %v671
      %v688 = vpack.c.bf16 %v681, %v681
      %691 = vrot.lane.b32.xlu0 %v687, 64
      %v692 = vpop.permute.xlu0 %691
      %693 = vrot.lane.b32.xlu0 %v688, 64
      %v694 = vpop.permute.xlu0 %693
      %vm695 = vcmask 130048
      %v697 = vsel %vm695, %v687, 0
      %v700 = vsel %vm695, %v688, 0
      %v703 = vsel %vm695, %v692, 0
      %v706 = vsel %vm695, %v694, 0
      %708 = vmatprep.subr.bf16.mxu0 0
      %709 = vmatpush1.bf16.xpose.msra.mxu0 0
      %710 = vmatprep.subr.bf16.mxu0 0
      %711 = vmatpush1.bf16.xpose.msra.mxu0 0
      %712 = vmatprep.subr.bf16.mxu0 0
      %713 = vmatpush1.bf16.xpose.msra.mxu0 0
      %714 = vmatprep.subr.bf16.mxu0 0
      %715 = vmatpush1.bf16.xpose.msra.mxu0 0
      %716 = vmatprep.subr.bf16.mxu0 0
      %717 = vmatpush1.bf16.xpose.msra.mxu0 0
      %718 = vmatprep.subr.bf16.mxu0 0
      %719 = vmatpush1.bf16.xpose.msra.mxu0 0
      %720 = vmatprep.subr.bf16.mxu0 0
      %721 = vmatpush1.bf16.xpose.msra.mxu0 %v706
      %722 = vmatprep.subr.bf16.mxu0 0
      %723 = vmatpush1.bf16.xpose.msra.mxu0 %v703
      %724 = vmatprep.subr.bf16.mxu0 0
      %725 = vmatpush2.bf16.xpose.msra.mxu0 0
      %726 = vmatprep.subr.bf16.mxu0 0
      %727 = vmatpush2.bf16.xpose.msra.mxu0 0
      %728 = vmatprep.subr.bf16.mxu0 0
      %729 = vmatpush2.bf16.xpose.msra.mxu0 0
      %730 = vmatprep.subr.bf16.mxu0 0
      %731 = vmatpush2.bf16.xpose.msra.mxu0 0
      %732 = vmatprep.subr.bf16.mxu0 0
      %733 = vmatpush2.bf16.xpose.msra.mxu0 0
      %734 = vmatprep.subr.bf16.mxu0 0
      %735 = vmatpush2.bf16.xpose.msra.mxu0 0
      %736 = vmatprep.subr.bf16.mxu0 0
      %737 = vmatpush2.bf16.xpose.msra.mxu0 0
      %738 = vmatprep.subr.bf16.mxu0 0
      %739 = vmatpush2.bf16.xpose.msra.mxu0 0
      %740 = vmatprep.mubr.bf16.mxu0 0
      %741 = vmatmul.mubr.bf16.gmra.mxu0 %v697
      %v742 = vpop.f32.mrf.mxu0
      %v743 = vadd.f32 %v549, %v742
      %v744 = vpop.f32.mrf.mxu0
      %v745 = vpop.f32.mrf.mxu0
      %v746 = vadd.f32 %v550, %v745
      %v747 = vpop.f32.mrf.mxu0
      %748 = vmatprep.mubr.bf16.mxu0 0
      %749 = vmatmul.mubr.bf16.gmra.mxu0 %v700
      %v750 = vpop.f32.mrf.mxu0
      %v751 = vadd.f32 %v551, %v750
      %v752 = vpop.f32.mrf.mxu0
      %v753 = vpop.f32.mrf.mxu0
      %v754 = vpop.f32.mrf.mxu0
      %755 = vdwg.mxu0
      %vm756 = vcmask 162816
      %v757 = vsel %vm756, %v743, -inf
      %758 = vmax.xlane.f32.xlu0 %v757
      %v759 = vpop.xlane.xlu0 %758
      %v760 = vsel %vm756, %v746, -inf
      %761 = vmax.xlane.f32.xlu0 %v760
      %v762 = vpop.xlane.xlu0 %761
      %vm763 = vcmask 158720
      %v764 = vsel %vm763, %v751, -inf
      %765 = vmax.xlane.f32.xlu0 %v764
      %v766 = vpop.xlane.xlu0 %765
      %v767 = vsub.f32 %v743, %v759
      %v768 = vsub.f32 %v746, %v762
      %v769 = vsub.f32 %v751, %v766
      %v770 = vmul.f32 %v767, 1.442695
      %v771 = vpow.pop %v770
      %v772 = vmul.f32 %v768, 1.442695
      %v773 = vpow.pop %v772
      %v774 = vmul.f32 %v769, 1.442695
      %v775 = vpow.pop %v774
      %v776 = vsel %vm756, %v771, 0.0
      %777 = vadd.xlane.f32.xlu0 %v776
      %v778 = vpop.xlane.xlu0 %777
      %v779 = vsel %vm756, %v773, 0.0
      %780 = vadd.xlane.f32.xlu0 %v779
      %v781 = vpop.xlane.xlu0 %780
      %v782 = vsel %vm763, %v775, 0.0
      %783 = vadd.xlane.f32.xlu0 %v782
      %v784 = vpop.xlane.xlu0 %783
      %v785 = vrcp.pop %v778
      %v786 = vmul.f32 %v771, %v785
      %v787 = vrcp.pop %v781
      %v788 = vmul.f32 %v773, %v787
      %v789 = vrcp.pop %v784
      %v790 = vmul.f32 %v775, %v789
      %v791 = vpack.c.bf16 %v788, %v786
      %v792 = vpack.c.bf16 %v790, %v790
      %v793 = vpack.c.bf16 %v677, %v673
      %v794 = vpack.c.bf16 %v683, %v683
      %v796 = vsel %vm756, %v791, 0
      %v799 = vsel %vm756, %v792, 0
      %vm801 = vcmask 1041408
      %v803 = vsel %vm801, %v794, 0
      %805 = vmatprep.subr.bf16.mxu0 0
      %806 = vmatpush1.bf16.msra.mxu0 0
      %807 = vmatprep.subr.bf16.mxu0 0
      %808 = vmatpush1.bf16.msra.mxu0 0
      %809 = vmatprep.subr.bf16.mxu0 0
      %810 = vmatpush1.bf16.msra.mxu0 0
      %811 = vmatprep.subr.bf16.mxu0 0
      %812 = vmatpush1.bf16.msra.mxu0 0
      %813 = vmatprep.subr.bf16.mxu0 0
      %814 = vmatpush1.bf16.msra.mxu0 0
      %815 = vmatprep.subr.bf16.mxu0 0
      %816 = vmatpush1.bf16.msra.mxu0 0
      %817 = vmatprep.subr.bf16.mxu0 0
      %818 = vmatpush1.bf16.msra.mxu0 %v803
      %819 = vmatprep.subr.bf16.mxu0 0
      %820 = vmatpush1.bf16.msra.mxu0 %v793
      %821 = vmatprep.subr.bf16.mxu0 0
      %822 = vmatpush2.bf16.msra.mxu0 0
      %823 = vmatprep.subr.bf16.mxu0 0
      %824 = vmatpush2.bf16.msra.mxu0 0
      %825 = vmatprep.subr.bf16.mxu0 0
      %826 = vmatpush2.bf16.msra.mxu0 0
      %827 = vmatprep.subr.bf16.mxu0 0
      %828 = vmatpush2.bf16.msra.mxu0 0
      %829 = vmatprep.subr.bf16.mxu0 0
      %830 = vmatpush2.bf16.msra.mxu0 0
      %831 = vmatprep.subr.bf16.mxu0 0
      %832 = vmatpush2.bf16.msra.mxu0 0
      %833 = vmatprep.subr.bf16.mxu0 0
      %834 = vmatpush2.bf16.msra.mxu0 0
      %835 = vmatprep.subr.bf16.mxu0 0
      %836 = vmatpush2.bf16.msra.mxu0 0
      %837 = vmatprep.mubr.bf16.mxu0 0
      %838 = vmatmul.mubr.bf16.gmra.mxu0 %v796
      %v839 = vpop.f32.mrf.mxu0
      %v840 = vadd.f32 0.0, %v839
      %v841 = vpop.f32.mrf.mxu0
      %v842 = vpop.f32.mrf.mxu0
      %v843 = vadd.f32 0.0, %v842
      %v844 = vpop.f32.mrf.mxu0
      %845 = vmatprep.mubr.bf16.mxu0 0
      %846 = vmatmul.mubr.bf16.gmra.mxu0 %v799
      %v847 = vpop.f32.mrf.mxu0
      %v848 = vadd.f32 0.0, %v847
      %v849 = vpop.f32.mrf.mxu0
      %v850 = vpop.f32.mrf.mxu0
      %v851 = vpop.f32.mrf.mxu0
      %852 = vdwg.mxu0
      %853 = vst.msk [vmem:[#allocation3] sm:$0xff] %vm695, %v840
      %854 = vst.msk [vmem:[#allocation3 + $0x8] sm:$0xff] %vm695, %v843
      %vm855 = vcmask 125952
      %856 = vst.msk [vmem:[#allocation3 + $0x10] sm:$0xf] %vm855, %v848
      %857 = vrot.lane.b32.xlu0 %v687, 112
      %v858 = vpop.permute.xlu0 %857
      %859 = vrot.lane.b32.xlu0 %v688, 112
      %v860 = vpop.permute.xlu0 %859
      %861 = vrot.lane.b32.xlu0 %v687, 48
      %v862 = vpop.permute.xlu0 %861
      %863 = vrot.lane.b32.xlu0 %v688, 48
      %v864 = vpop.permute.xlu0 %863
      %v866 = vsel %vm695, %v858, 0
      %v869 = vsel %vm695, %v860, 0
      %v872 = vsel %vm695, %v862, 0
      %v875 = vsel %vm695, %v864, 0
      %877 = vmatprep.subr.bf16.mxu0 0
      %878 = vmatpush1.bf16.xpose.msra.mxu0 0
      %879 = vmatprep.subr.bf16.mxu0 0
      %880 = vmatpush1.bf16.xpose.msra.mxu0 0
      %881 = vmatprep.subr.bf16.mxu0 0
      %882 = vmatpush1.bf16.xpose.msra.mxu0 0
      %883 = vmatprep.subr.bf16.mxu0 0
      %884 = vmatpush1.bf16.xpose.msra.mxu0 0
      %885 = vmatprep.subr.bf16.mxu0 0
      %886 = vmatpush1.bf16.xpose.msra.mxu0 0
      %887 = vmatprep.subr.bf16.mxu0 0
      %888 = vmatpush1.bf16.xpose.msra.mxu0 0
      %889 = vmatprep.subr.bf16.mxu0 0
      %890 = vmatpush1.bf16.xpose.msra.mxu0 %v875
      %891 = vmatprep.subr.bf16.mxu0 0
      %892 = vmatpush1.bf16.xpose.msra.mxu0 %v872
      %893 = vmatprep.subr.bf16.mxu0 0
      %894 = vmatpush2.bf16.xpose.msra.mxu0 0
      %895 = vmatprep.subr.bf16.mxu0 0
      %896 = vmatpush2.bf16.xpose.msra.mxu0 0
      %897 = vmatprep.subr.bf16.mxu0 0
      %898 = vmatpush2.bf16.xpose.msra.mxu0 0
      %899 = vmatprep.subr.bf16.mxu0 0
      %900 = vmatpush2.bf16.xpose.msra.mxu0 0
      %901 = vmatprep.subr.bf16.mxu0 0
      %902 = vmatpush2.bf16.xpose.msra.mxu0 0
      %903 = vmatprep.subr.bf16.mxu0 0
      %904 = vmatpush2.bf16.xpose.msra.mxu0 0
      %905 = vmatprep.subr.bf16.mxu0 0
      %906 = vmatpush2.bf16.xpose.msra.mxu0 0
      %907 = vmatprep.subr.bf16.mxu0 0
      %908 = vmatpush2.bf16.xpose.msra.mxu0 0
      %909 = vmatprep.mubr.bf16.mxu0 0
      %910 = vmatmul.mubr.bf16.gmra.mxu0 %v866
      %v911 = vpop.f32.mrf.mxu0
      %v912 = vadd.f32 %v549, %v911
      %v913 = vpop.f32.mrf.mxu0
      %v914 = vpop.f32.mrf.mxu0
      %v915 = vadd.f32 %v550, %v914
      %v916 = vpop.f32.mrf.mxu0
      %917 = vmatprep.mubr.bf16.mxu0 0
      %918 = vmatmul.mubr.bf16.gmra.mxu0 %v869
      %v919 = vpop.f32.mrf.mxu0
      %v920 = vadd.f32 %v551, %v919
      %v921 = vpop.f32.mrf.mxu0
      %v922 = vpop.f32.mrf.mxu0
      %v923 = vpop.f32.mrf.mxu0
      %924 = vdwg.mxu0
      %v925 = vsel %vm756, %v912, -inf
      %926 = vmax.xlane.f32.xlu0 %v925
      %v927 = vpop.xlane.xlu0 %926
      %v928 = vsel %vm756, %v915, -inf
      %929 = vmax.xlane.f32.xlu0 %v928
      %v930 = vpop.xlane.xlu0 %929
      %v931 = vsel %vm763, %v920, -inf
      %932 = vmax.xlane.f32.xlu0 %v931
      %v933 = vpop.xlane.xlu0 %932
      %v934 = vsub.f32 %v912, %v927
      %v935 = vsub.f32 %v915, %v930
      %v936 = vsub.f32 %v920, %v933
      %v937 = vmul.f32 %v934, 1.442695
      %v938 = vpow.pop %v937
      %v939 = vmul.f32 %v935, 1.442695
      %v940 = vpow.pop %v939
      %v941 = vmul.f32 %v936, 1.442695
      %v942 = vpow.pop %v941
      %v943 = vsel %vm756, %v938, 0.0
      %944 = vadd.xlane.f32.xlu0 %v943
      %v945 = vpop.xlane.xlu0 %944
      %v946 = vsel %vm756, %v940, 0.0
      %947 = vadd.xlane.f32.xlu0 %v946
      %v948 = vpop.xlane.xlu0 %947
      %v949 = vsel %vm763, %v942, 0.0
      %950 = vadd.xlane.f32.xlu0 %v949
      %v951 = vpop.xlane.xlu0 %950
      %v952 = vrcp.pop %v945
      %v953 = vmul.f32 %v938, %v952
      %v954 = vrcp.pop %v948
      %v955 = vmul.f32 %v940, %v954
      %v956 = vrcp.pop %v951
      %v957 = vmul.f32 %v942, %v956
      %v958 = vpack.c.bf16 %v955, %v953
      %v959 = vpack.c.bf16 %v957, %v957
      %962 = vrot.lane.b32.xlu0 %v793, 112
      %v963 = vpop.permute.xlu0 %962
      %964 = vrot.lane.b32.xlu0 %v794, 112
      %v965 = vpop.permute.xlu0 %964
      %v968 = vsel %vm756, %v958, 0
      %v971 = vsel %vm756, %v959, 0
      %v974 = vsel %vm801, %v965, 0
      %976 = vmatprep.subr.bf16.mxu0 0
      %977 = vmatpush1.bf16.msra.mxu0 0
      %978 = vmatprep.subr.bf16.mxu0 0
      %979 = vmatpush1.bf16.msra.mxu0 0
      %980 = vmatprep.subr.bf16.mxu0 0
      %981 = vmatpush1.bf16.msra.mxu0 0
      %982 = vmatprep.subr.bf16.mxu0 0
      %983 = vmatpush1.bf16.msra.mxu0 0
      %984 = vmatprep.subr.bf16.mxu0 0
      %985 = vmatpush1.bf16.msra.mxu0 0
      %986 = vmatprep.subr.bf16.mxu0 0
      %987 = vmatpush1.bf16.msra.mxu0 0
      %988 = vmatprep.subr.bf16.mxu0 0
      %989 = vmatpush1.bf16.msra.mxu0 %v974
      %990 = vmatprep.subr.bf16.mxu0 0
      %991 = vmatpush1.bf16.msra.mxu0 %v963
      %992 = vmatprep.subr.bf16.mxu0 0
      %993 = vmatpush2.bf16.msra.mxu0 0
      %994 = vmatprep.subr.bf16.mxu0 0
      %995 = vmatpush2.bf16.msra.mxu0 0
      %996 = vmatprep.subr.bf16.mxu0 0
      %997 = vmatpush2.bf16.msra.mxu0 0
      %998 = vmatprep.subr.bf16.mxu0 0
      %999 = vmatpush2.bf16.msra.mxu0 0
      %1000 = vmatprep.subr.bf16.mxu0 0
      %1001 = vmatpush2.bf16.msra.mxu0 0
      %1002 = vmatprep.subr.bf16.mxu0 0
      %1003 = vmatpush2.bf16.msra.mxu0 0
      %1004 = vmatprep.subr.bf16.mxu0 0
      %1005 = vmatpush2.bf16.msra.mxu0 0
      %1006 = vmatprep.subr.bf16.mxu0 0
      %1007 = vmatpush2.bf16.msra.mxu0 0
      %1008 = vmatprep.mubr.bf16.mxu0 0
      %1009 = vmatmul.mubr.bf16.gmra.mxu0 %v968
      %v1010 = vpop.f32.mrf.mxu0
      %v1011 = vadd.f32 0.0, %v1010
      %v1012 = vpop.f32.mrf.mxu0
      %v1013 = vpop.f32.mrf.mxu0
      %v1014 = vadd.f32 0.0, %v1013
      %v1015 = vpop.f32.mrf.mxu0
      %1016 = vmatprep.mubr.bf16.mxu0 0
      %1017 = vmatmul.mubr.bf16.gmra.mxu0 %v971
      %v1018 = vpop.f32.mrf.mxu0
      %v1019 = vadd.f32 0.0, %v1018
      %v1020 = vpop.f32.mrf.mxu0
      %v1021 = vpop.f32.mrf.mxu0
      %v1022 = vpop.f32.mrf.mxu0
      %1023 = vdwg.mxu0
      %1027 = vrot.lane.b32.xlu0 %v1011, 16
      %v1028 = vpop.permute.xlu0 %1027
      %1029 = vrot.lane.b32.xlu0 %v1014, 16
      %v1030 = vpop.permute.xlu0 %1029
      %1031 = vrot.lane.b32.xlu0 %v1019, 16
      %v1032 = vpop.permute.xlu0 %1031
      %vm1036 = vcmask 261248
      %1037 = vst.msk [vmem:[#allocation3] sm:$0xff] %vm1036, %v1028
      %1038 = vst.msk [vmem:[#allocation3 + $0x8] sm:$0xff] %vm1036, %v1030
      %vm1039 = vcmask 257152
      %1040 = vst.msk [vmem:[#allocation3 + $0x10] sm:$0xf] %vm1039, %v1032
      %1041 = vrot.lane.b32.xlu0 %v687, 96
      %v1042 = vpop.permute.xlu0 %1041
      %1043 = vrot.lane.b32.xlu0 %v688, 96
      %v1044 = vpop.permute.xlu0 %1043
      %1045 = vrot.lane.b32.xlu0 %v687, 32
      %v1046 = vpop.permute.xlu0 %1045
      %1047 = vrot.lane.b32.xlu0 %v688, 32
      %v1048 = vpop.permute.xlu0 %1047
      %v1050 = vsel %vm695, %v1042, 0
      %v1053 = vsel %vm695, %v1044, 0
      %v1056 = vsel %vm695, %v1046, 0
      %v1059 = vsel %vm695, %v1048, 0
      %1061 = vmatprep.subr.bf16.mxu0 0
      %1062 = vmatpush1.bf16.xpose.msra.mxu0 0
      %1063 = vmatprep.subr.bf16.mxu0 0
      %1064 = vmatpush1.bf16.xpose.msra.mxu0 0
      %1065 = vmatprep.subr.bf16.mxu0 0
      %1066 = vmatpush1.bf16.xpose.msra.mxu0 0
      %1067 = vmatprep.subr.bf16.mxu0 0
      %1068 = vmatpush1.bf16.xpose.msra.mxu0 0
      %1069 = vmatprep.subr.bf16.mxu0 0
      %1070 = vmatpush1.bf16.xpose.msra.mxu0 0
      %1071 = vmatprep.subr.bf16.mxu0 0
      %1072 = vmatpush1.bf16.xpose.msra.mxu0 0
      %1073 = vmatprep.subr.bf16.mxu0 0
      %1074 = vmatpush1.bf16.xpose.msra.mxu0 %v1059
      %1075 = vmatprep.subr.bf16.mxu0 0
      %1076 = vmatpush1.bf16.xpose.msra.mxu0 %v1056
      %1077 = vmatprep.subr.bf16.mxu0 0
      %1078 = vmatpush2.bf16.xpose.msra.mxu0 0
      %1079 = vmatprep.subr.bf16.mxu0 0
      %1080 = vmatpush2.bf16.xpose.msra.mxu0 0
      %1081 = vmatprep.subr.bf16.mxu0 0
      %1082 = vmatpush2.bf16.xpose.msra.mxu0 0
      %1083 = vmatprep.subr.bf16.mxu0 0
      %1084 = vmatpush2.bf16.xpose.msra.mxu0 0
      %1085 = vmatprep.subr.bf16.mxu0 0
      %1086 = vmatpush2.bf16.xpose.msra.mxu0 0
      %1087 = vmatprep.subr.bf16.mxu0 0
      %1088 = vmatpush2.bf16.xpose.msra.mxu0 0
      %1089 = vmatprep.subr.bf16.mxu0 0
      %1090 = vmatpush2.bf16.xpose.msra.mxu0 0
      %1091 = vmatprep.subr.bf16.mxu0 0
      %1092 = vmatpush2.bf16.xpose.msra.mxu0 0
      %1093 = vmatprep.mubr.bf16.mxu0 0
      %1094 = vmatmul.mubr.bf16.gmra.mxu0 %v1050
      %v1095 = vpop.f32.mrf.mxu0
      %v1096 = vadd.f32 %v549, %v1095
      %v1097 = vpop.f32.mrf.mxu0
      %v1098 = vpop.f32.mrf.mxu0
      %v1099 = vadd.f32 %v550, %v1098
      %v1100 = vpop.f32.mrf.mxu0
      %1101 = vmatprep.mubr.bf16.mxu0 0
      %1102 = vmatmul.mubr.bf16.gmra.mxu0 %v1053
      %v1103 = vpop.f32.mrf.mxu0
      %v1104 = vadd.f32 %v551, %v1103
      %v1105 = vpop.f32.mrf.mxu0
      %v1106 = vpop.f32.mrf.mxu0
      %v1107 = vpop.f32.mrf.mxu0
      %1108 = vdwg.mxu0
      %v1109 = vsel %vm756, %v1096, -inf
      %1110 = vmax.xlane.f32.xlu0 %v1109
      %v1111 = vpop.xlane.xlu0 %1110
      %v1112 = vsel %vm756, %v1099, -inf
      %1113 = vmax.xlane.f32.xlu0 %v1112
      %v1114 = vpop.xlane.xlu0 %1113
      %v1115 = vsel %vm763, %v1104, -inf
      %1116 = vmax.xlane.f32.xlu0 %v1115
      %v1117 = vpop.xlane.xlu0 %1116
      %v1118 = vsub.f32 %v1096, %v1111
      %v1119 = vsub.f32 %v1099, %v1114
      %v1120 = vsub.f32 %v1104, %v1117
      %v1121 = vmul.f32 %v1118, 1.442695
      %v1122 = vpow.pop %v1121
      %v1123 = vmul.f32 %v1119, 1.442695
      %v1124 = vpow.pop %v1123
      %v1125 = vmul.f32 %v1120, 1.442695
      %v1126 = vpow.pop %v1125
      %v1127 = vsel %vm756, %v1122, 0.0
      %1128 = vadd.xlane.f32.xlu0 %v1127
      %v1129 = vpop.xlane.xlu0 %1128
      %v1130 = vsel %vm756, %v1124, 0.0
      %1131 = vadd.xlane.f32.xlu0 %v1130
      %v1132 = vpop.xlane.xlu0 %1131
      %v1133 = vsel %vm763, %v1126, 0.0
      %1134 = vadd.xlane.f32.xlu0 %v1133
      %v1135 = vpop.xlane.xlu0 %1134
      %v1136 = vrcp.pop %v1129
      %v1137 = vmul.f32 %v1122, %v1136
      %v1138 = vrcp.pop %v1132
      %v1139 = vmul.f32 %v1124, %v1138
      %v1140 = vrcp.pop %v1135
      %v1141 = vmul.f32 %v1126, %v1140
      %v1142 = vpack.c.bf16 %v1139, %v1137
      %v1143 = vpack.c.bf16 %v1141, %v1141
      %1144 = vrot.lane.b32.xlu0 %v793, 96
      %v1145 = vpop.permute.xlu0 %1144
      %1146 = vrot.lane.b32.xlu0 %v794, 96
      %v1147 = vpop.permute.xlu0 %1146
      %v1150 = vsel %vm756, %v1142, 0
      %v1153 = vsel %vm756, %v1143, 0
      %v1156 = vsel %vm801, %v1147, 0
      %1158 = vmatprep.subr.bf16.mxu0 0
      %1159 = vmatpush1.bf16.msra.mxu0 0
      %1160 = vmatprep.subr.bf16.mxu0 0
      %1161 = vmatpush1.bf16.msra.mxu0 0
      %1162 = vmatprep.subr.bf16.mxu0 0
      %1163 = vmatpush1.bf16.msra.mxu0 0
      %1164 = vmatprep.subr.bf16.mxu0 0
      %1165 = vmatpush1.bf16.msra.mxu0 0
      %1166 = vmatprep.subr.bf16.mxu0 0
      %1167 = vmatpush1.bf16.msra.mxu0 0
      %1168 = vmatprep.subr.bf16.mxu0 0
      %1169 = vmatpush1.bf16.msra.mxu0 0
      %1170 = vmatprep.subr.bf16.mxu0 0
      %1171 = vmatpush1.bf16.msra.mxu0 %v1156
      %1172 = vmatprep.subr.bf16.mxu0 0
      %1173 = vmatpush1.bf16.msra.mxu0 %v1145
      %1174 = vmatprep.subr.bf16.mxu0 0
      %1175 = vmatpush2.bf16.msra.mxu0 0
      %1176 = vmatprep.subr.bf16.mxu0 0
      %1177 = vmatpush2.bf16.msra.mxu0 0
      %1178 = vmatprep.subr.bf16.mxu0 0
      %1179 = vmatpush2.bf16.msra.mxu0 0
      %1180 = vmatprep.subr.bf16.mxu0 0
      %1181 = vmatpush2.bf16.msra.mxu0 0
      %1182 = vmatprep.subr.bf16.mxu0 0
      %1183 = vmatpush2.bf16.msra.mxu0 0
      %1184 = vmatprep.subr.bf16.mxu0 0
      %1185 = vmatpush2.bf16.msra.mxu0 0
      %1186 = vmatprep.subr.bf16.mxu0 0
      %1187 = vmatpush2.bf16.msra.mxu0 0
      %1188 = vmatprep.subr.bf16.mxu0 0
      %1189 = vmatpush2.bf16.msra.mxu0 0
      %1190 = vmatprep.mubr.bf16.mxu0 0
      %1191 = vmatmul.mubr.bf16.gmra.mxu0 %v1150
      %v1192 = vpop.f32.mrf.mxu0
      %v1193 = vadd.f32 0.0, %v1192
      %v1194 = vpop.f32.mrf.mxu0
      %v1195 = vpop.f32.mrf.mxu0
      %v1196 = vadd.f32 0.0, %v1195
      %v1197 = vpop.f32.mrf.mxu0
      %1198 = vmatprep.mubr.bf16.mxu0 0
      %1199 = vmatmul.mubr.bf16.gmra.mxu0 %v1153
      %v1200 = vpop.f32.mrf.mxu0
      %v1201 = vadd.f32 0.0, %v1200
      %v1202 = vpop.f32.mrf.mxu0
      %v1203 = vpop.f32.mrf.mxu0
      %v1204 = vpop.f32.mrf.mxu0
      %1205 = vdwg.mxu0
      %1209 = vrot.lane.b32.xlu0 %v1193, 32
      %v1210 = vpop.permute.xlu0 %1209
      %1211 = vrot.lane.b32.xlu0 %v1196, 32
      %v1212 = vpop.permute.xlu0 %1211
      %1213 = vrot.lane.b32.xlu0 %v1201, 32
      %v1214 = vpop.permute.xlu0 %1213
      %vm1218 = vcmask 392448
      %1219 = vst.msk [vmem:[#allocation3] sm:$0xff] %vm1218, %v1210
      %1220 = vst.msk [vmem:[#allocation3 + $0x8] sm:$0xff] %vm1218, %v1212
      %vm1221 = vcmask 388352
      %1222 = vst.msk [vmem:[#allocation3 + $0x10] sm:$0xf] %vm1221, %v1214
      %1223 = vrot.lane.b32.xlu0 %v687, 80
      %v1224 = vpop.permute.xlu0 %1223
      %1225 = vrot.lane.b32.xlu0 %v688, 80
      %v1226 = vpop.permute.xlu0 %1225
      %1227 = vrot.lane.b32.xlu0 %v687, 16
      %v1228 = vpop.permute.xlu0 %1227
      %1229 = vrot.lane.b32.xlu0 %v688, 16
      %v1230 = vpop.permute.xlu0 %1229
      %v1232 = vsel %vm695, %v1224, 0
      %v1235 = vsel %vm695, %v1226, 0
      %v1238 = vsel %vm695, %v1228, 0
      %v1241 = vsel %vm695, %v1230, 0
      %1243 = vmatprep.subr.bf16.mxu0 0
      %1244 = vmatpush1.bf16.xpose.msra.mxu0 0
      %1245 = vmatprep.subr.bf16.mxu0 0
      %1246 = vmatpush1.bf16.xpose.msra.mxu0 0
      %1247 = vmatprep.subr.bf16.mxu0 0
      %1248 = vmatpush1.bf16.xpose.msra.mxu0 0
      %1249 = vmatprep.subr.bf16.mxu0 0
      %1250 = vmatpush1.bf16.xpose.msra.mxu0 0
      %1251 = vmatprep.subr.bf16.mxu0 0
      %1252 = vmatpush1.bf16.xpose.msra.mxu0 0
      %1253 = vmatprep.subr.bf16.mxu0 0
      %1254 = vmatpush1.bf16.xpose.msra.mxu0 0
      %1255 = vmatprep.subr.bf16.mxu0 0
      %1256 = vmatpush1.bf16.xpose.msra.mxu0 %v1241
      %1257 = vmatprep.subr.bf16.mxu0 0
      %1258 = vmatpush1.bf16.xpose.msra.mxu0 %v1238
      %1259 = vmatprep.subr.bf16.mxu0 0
      %1260 = vmatpush2.bf16.xpose.msra.mxu0 0
      %1261 = vmatprep.subr.bf16.mxu0 0
      %1262 = vmatpush2.bf16.xpose.msra.mxu0 0
      %1263 = vmatprep.subr.bf16.mxu0 0
      %1264 = vmatpush2.bf16.xpose.msra.mxu0 0
      %1265 = vmatprep.subr.bf16.mxu0 0
      %1266 = vmatpush2.bf16.xpose.msra.mxu0 0
      %1267 = vmatprep.subr.bf16.mxu0 0
      %1268 = vmatpush2.bf16.xpose.msra.mxu0 0
      %1269 = vmatprep.subr.bf16.mxu0 0
      %1270 = vmatpush2.bf16.xpose.msra.mxu0 0
      %1271 = vmatprep.subr.bf16.mxu0 0
      %1272 = vmatpush2.bf16.xpose.msra.mxu0 0
      %1273 = vmatprep.subr.bf16.mxu0 0
      %1274 = vmatpush2.bf16.xpose.msra.mxu0 0
      %1275 = vmatprep.mubr.bf16.mxu0 0
      %1276 = vmatmul.mubr.bf16.gmra.mxu0 %v1232
      %v1277 = vpop.f32.mrf.mxu0
      %v1278 = vadd.f32 %v549, %v1277
      %v1279 = vpop.f32.mrf.mxu0
      %v1280 = vpop.f32.mrf.mxu0
      %v1281 = vadd.f32 %v550, %v1280
      %v1282 = vpop.f32.mrf.mxu0
      %1283 = vmatprep.mubr.bf16.mxu0 0
      %1284 = vmatmul.mubr.bf16.gmra.mxu0 %v1235
      %v1285 = vpop.f32.mrf.mxu0
      %v1286 = vadd.f32 %v551, %v1285
      %v1287 = vpop.f32.mrf.mxu0
      %v1288 = vpop.f32.mrf.mxu0
      %v1289 = vpop.f32.mrf.mxu0
      %1290 = vdwg.mxu0
      %v1291 = vsel %vm756, %v1278, -inf
      %1292 = vmax.xlane.f32.xlu0 %v1291
      %v1293 = vpop.xlane.xlu0 %1292
      %v1294 = vsel %vm756, %v1281, -inf
      %1295 = vmax.xlane.f32.xlu0 %v1294
      %v1296 = vpop.xlane.xlu0 %1295
      %v1297 = vsel %vm763, %v1286, -inf
      %1298 = vmax.xlane.f32.xlu0 %v1297
      %v1299 = vpop.xlane.xlu0 %1298
      %v1300 = vsub.f32 %v1278, %v1293
      %v1301 = vsub.f32 %v1281, %v1296
      %v1302 = vsub.f32 %v1286, %v1299
      %v1303 = vmul.f32 %v1300, 1.442695
      %v1304 = vpow.pop %v1303
      %v1305 = vmul.f32 %v1301, 1.442695
      %v1306 = vpow.pop %v1305
      %v1307 = vmul.f32 %v1302, 1.442695
      %v1308 = vpow.pop %v1307
      %v1309 = vsel %vm756, %v1304, 0.0
      %1310 = vadd.xlane.f32.xlu0 %v1309
      %v1311 = vpop.xlane.xlu0 %1310
      %v1312 = vsel %vm756, %v1306, 0.0
      %1313 = vadd.xlane.f32.xlu0 %v1312
      %v1314 = vpop.xlane.xlu0 %1313
      %v1315 = vsel %vm763, %v1308, 0.0
      %1316 = vadd.xlane.f32.xlu0 %v1315
      %v1317 = vpop.xlane.xlu0 %1316
      %v1318 = vrcp.pop %v1311
      %v1319 = vmul.f32 %v1304, %v1318
      %v1320 = vrcp.pop %v1314
      %v1321 = vmul.f32 %v1306, %v1320
      %v1322 = vrcp.pop %v1317
      %v1323 = vmul.f32 %v1308, %v1322
      %v1324 = vpack.c.bf16 %v1321, %v1319
      %v1325 = vpack.c.bf16 %v1323, %v1323
      %1326 = vrot.lane.b32.xlu0 %v793, 80
      %v1327 = vpop.permute.xlu0 %1326
      %1328 = vrot.lane.b32.xlu0 %v794, 80
      %v1329 = vpop.permute.xlu0 %1328
      %v1332 = vsel %vm756, %v1324, 0
      %v1335 = vsel %vm756, %v1325, 0
      %v1338 = vsel %vm801, %v1329, 0
      %1340 = vmatprep.subr.bf16.mxu0 0
      %1341 = vmatpush1.bf16.msra.mxu0 0
      %1342 = vmatprep.subr.bf16.mxu0 0
      %1343 = vmatpush1.bf16.msra.mxu0 0
      %1344 = vmatprep.subr.bf16.mxu0 0
      %1345 = vmatpush1.bf16.msra.mxu0 0
      %1346 = vmatprep.subr.bf16.mxu0 0
      %1347 = vmatpush1.bf16.msra.mxu0 0
      %1348 = vmatprep.subr.bf16.mxu0 0
      %1349 = vmatpush1.bf16.msra.mxu0 0
      %1350 = vmatprep.subr.bf16.mxu0 0
      %1351 = vmatpush1.bf16.msra.mxu0 0
      %1352 = vmatprep.subr.bf16.mxu0 0
      %1353 = vmatpush1.bf16.msra.mxu0 %v1338
      %1354 = vmatprep.subr.bf16.mxu0 0
      %1355 = vmatpush1.bf16.msra.mxu0 %v1327
      %1356 = vmatprep.subr.bf16.mxu0 0
      %1357 = vmatpush2.bf16.msra.mxu0 0
      %1358 = vmatprep.subr.bf16.mxu0 0
      %1359 = vmatpush2.bf16.msra.mxu0 0
      %1360 = vmatprep.subr.bf16.mxu0 0
      %1361 = vmatpush2.bf16.msra.mxu0 0
      %1362 = vmatprep.subr.bf16.mxu0 0
      %1363 = vmatpush2.bf16.msra.mxu0 0
      %1364 = vmatprep.subr.bf16.mxu0 0
      %1365 = vmatpush2.bf16.msra.mxu0 0
      %1366 = vmatprep.subr.bf16.mxu0 0
      %1367 = vmatpush2.bf16.msra.mxu0 0
      %1368 = vmatprep.subr.bf16.mxu0 0
      %1369 = vmatpush2.bf16.msra.mxu0 0
      %1370 = vmatprep.subr.bf16.mxu0 0
      %1371 = vmatpush2.bf16.msra.mxu0 0
      %1372 = vmatprep.mubr.bf16.mxu0 0
      %1373 = vmatmul.mubr.bf16.gmra.mxu0 %v1332
      %v1374 = vpop.f32.mrf.mxu0
      %v1375 = vadd.f32 0.0, %v1374
      %v1376 = vpop.f32.mrf.mxu0
      %v1377 = vpop.f32.mrf.mxu0
      %v1378 = vadd.f32 0.0, %v1377
      %v1379 = vpop.f32.mrf.mxu0
      %1380 = vmatprep.mubr.bf16.mxu0 0
      %1381 = vmatmul.mubr.bf16.gmra.mxu0 %v1335
      %v1382 = vpop.f32.mrf.mxu0
      %v1383 = vadd.f32 0.0, %v1382
      %v1384 = vpop.f32.mrf.mxu0
      %v1385 = vpop.f32.mrf.mxu0
      %v1386 = vpop.f32.mrf.mxu0
      %1387 = vdwg.mxu0
      %1391 = vrot.lane.b32.xlu0 %v1375, 48
      %v1392 = vpop.permute.xlu0 %1391
      %1393 = vrot.lane.b32.xlu0 %v1378, 48
      %v1394 = vpop.permute.xlu0 %1393
      %1395 = vrot.lane.b32.xlu0 %v1383, 48
      %v1396 = vpop.permute.xlu0 %1395
      %vm1400 = vcmask 523648
      %1401 = vst.msk [vmem:[#allocation3] sm:$0xff] %vm1400, %v1392
      %1402 = vst.msk [vmem:[#allocation3 + $0x8] sm:$0xff] %vm1400, %v1394
      %vm1403 = vcmask 519552
      %1404 = vst.msk [vmem:[#allocation3 + $0x10] sm:$0xf] %vm1403, %v1396
      %v1405 = vld [vmem:[#allocation3] sm:$0xff]
      %v1406 = vld [vmem:[#allocation3 + $0x8] sm:$0xff]
      %v1407 = vld [vmem:[#allocation3 + $0x10] sm:$0xf]
      %v1408 = vld [vmem:[%s6] sm:$0xf]
      %v1409 = vld [vmem:[%s6 + $0x4] sm:$0xf]
      %v1410 = vld [vmem:[%s6 + $0x8] sm:$0xf]
      %v1411 = vld [vmem:[%s6 + $0xc] sm:$0xf]
      %v1412 = vld [vmem:[%s6 + $0x10] sm:$0xf]
      %v1413 = vld [vmem:[%s6 + $0x14] sm:$0xf]
      %v1414 = vld [vmem:[%s6 + $0x18] sm:$0xf]
      %v1415 = vld [vmem:[%s6 + $0x1c] sm:$0xf]
      %v1416 = vpack.c.bf16 %v1406, %v1405
      %v1417 = vpack.c.bf16 %v1407, %v1407
      %v1426 = vunpack.c.l.b16 %v1408
      %v1427 = vunpack.c.l.b16 %v1409
      %v1428 = vunpack.c.l.b16 %v1410
      %v1429 = vunpack.c.l.b16 %v1411
      %v1430 = vunpack.c.l.b16 %v1412
      %v1431 = vunpack.c.l.b16 %v1413
      %v1432 = vunpack.c.l.b16 %v1414
      %v1433 = vunpack.c.l.b16 %v1415
      %v1434 = vpack.c.b16 %v1427, %v1426
      %v1435 = vpack.c.b16 %v1429, %v1428
      %v1436 = vpack.c.b16 %v1431, %v1430
      %v1437 = vpack.c.b16 %v1433, %v1432
      %vm1442 = vcmask 523264
      %v1444 = vsel %vm1442, %v1416, 0
      %v1447 = vsel %vm1442, %v1417, 0
      %1449 = vmatprep.subr.bf16.mxu0 0
      %1450 = vmatpush1.bf16.msra.mxu0 0
      %1451 = vmatprep.subr.bf16.mxu0 0
      %1452 = vmatpush1.bf16.msra.mxu0 0
      %1453 = vmatprep.subr.bf16.mxu0 0
      %1454 = vmatpush1.bf16.msra.mxu0 0
      %1455 = vmatprep.subr.bf16.mxu0 0
      %1456 = vmatpush1.bf16.msra.mxu0 0
      %1457 = vmatprep.subr.bf16.mxu0 0
      %1458 = vmatpush1.bf16.msra.mxu0 %v1437
      %1459 = vmatprep.subr.bf16.mxu0 0
      %1460 = vmatpush1.bf16.msra.mxu0 %v1436
      %1461 = vmatprep.subr.bf16.mxu0 0
      %1462 = vmatpush1.bf16.msra.mxu0 %v1435
      %1463 = vmatprep.subr.bf16.mxu0 0
      %1464 = vmatpush1.bf16.msra.mxu0 %v1434
      %1465 = vmatprep.subr.bf16.mxu0 0
      %1466 = vmatpush2.bf16.msra.mxu0 0
      %1467 = vmatprep.subr.bf16.mxu0 0
      %1468 = vmatpush2.bf16.msra.mxu0 0
      %1469 = vmatprep.subr.bf16.mxu0 0
      %1470 = vmatpush2.bf16.msra.mxu0 0
      %1471 = vmatprep.subr.bf16.mxu0 0
      %1472 = vmatpush2.bf16.msra.mxu0 0
      %1473 = vmatprep.subr.bf16.mxu0 0
      %1474 = vmatpush2.bf16.msra.mxu0 0
      %1475 = vmatprep.subr.bf16.mxu0 0
      %1476 = vmatpush2.bf16.msra.mxu0 0
      %1477 = vmatprep.subr.bf16.mxu0 0
      %1478 = vmatpush2.bf16.msra.mxu0 0
      %1479 = vmatprep.subr.bf16.mxu0 0
      %1480 = vmatpush2.bf16.msra.mxu0 0
      %1481 = vmatprep.mubr.bf16.mxu0 0
      %1482 = vmatmul.mubr.bf16.gmra.mxu0 %v1444
      %v1483 = vpop.f32.mrf.mxu0
      %v1484 = vadd.f32 0.0, %v1483
      %v1485 = vpop.f32.mrf.mxu0
      %v1486 = vpop.f32.mrf.mxu0
      %v1487 = vadd.f32 0.0, %v1486
      %v1488 = vpop.f32.mrf.mxu0
      %1489 = vmatprep.mubr.bf16.mxu0 0
      %1490 = vmatmul.mubr.bf16.gmra.mxu0 %v1447
      %v1491 = vpop.f32.mrf.mxu0
      %v1492 = vadd.f32 0.0, %v1491
      %v1493 = vpop.f32.mrf.mxu0
      %v1494 = vpop.f32.mrf.mxu0
      %v1495 = vpop.f32.mrf.mxu0
      %1496 = vdwg.mxu0
      %v1497 = vadd.f32 %v552, %v1484
      %v1498 = vadd.f32 %v553, %v1487
      %v1499 = vadd.f32 %v554, %v1492
      %v1500 = vlaneseq
      %v1501 = vshrl.u32 %v1500, 7
      %v1502 = vsub.s32 0, %v1501
      %v1503 = vrot.slane %v556, %v1502
      %v1504 = vadd.f32 %v1497, %v1503
      %v1505 = vadd.f32 %v1498, %v1503
      %v1506 = vadd.f32 %v1499, %v1503
      %v1507 = vmul.f32 %v1504, %v1504
      %v1508 = vmul.f32 %v1505, %v1505
      %v1509 = vmul.f32 %v1506, %v1506
      %v1510 = vsel %vm562, %v1507, 0.0
      %1511 = vadd.xlane.f32.xlu0 %v1510
      %v1512 = vpop.xlane.xlu0 %1511
      %v1513 = vsel %vm562, %v1508, 0.0
      %1514 = vadd.xlane.f32.xlu0 %v1513
      %v1515 = vpop.xlane.xlu0 %1514
      %v1516 = vsel %vm451, %v1509, 0.0
      %1517 = vadd.xlane.f32.xlu0 %v1516
      %v1518 = vpop.xlane.xlu0 %1517
      %v1519 = vmul.f32 %v1512, %v572
      %v1520 = vmul.f32 %v1515, %v572
      %v1521 = vmul.f32 %v1518, %v572
      %v1522 = vadd.f32 %v1519, 1e-06
      %v1523 = vadd.f32 %v1520, 1e-06
      %v1524 = vadd.f32 %v1521, 1e-06
      %v1525 = vrsqrt.pop %v1522
      %v1526 = vrsqrt.pop %v1523
      %v1527 = vrsqrt.pop %v1524
      %v1528 = vmul.f32 %v1504, %v1525
      %v1529 = vmul.f32 %v1505, %v1526
      %v1530 = vmul.f32 %v1506, %v1527
      %v1531 = vlaneseq
      %v1532 = vshrl.u32 %v1531, 7
      %v1533 = vsub.s32 0, %v1532
      %v1534 = vrot.slane %v557, %v1533
      %v1535 = vmul.f32 %v1528, %v1534
      %v1536 = vmul.f32 %v1529, %v1534
      %v1537 = vmul.f32 %v1530, %v1534
      %v1538 = vld [vmem:[%s7] sm:$0xf]
      %v1539 = vld [vmem:[%s7 + $0x4] sm:$0xf]
      %v1540 = vld [vmem:[%s7 + $0x8] sm:$0xf]
      %v1541 = vld [vmem:[%s7 + $0xc] sm:$0xf]
      %v1542 = vpack.c.bf16 %v1536, %v1535
      %v1543 = vpack.c.bf16 %v1537, %v1537
      %v1544 = vld [vmem:[%s8] sm:$0x1]
      %v1545 = vlaneseq
      %v1546 = vshrl.u32 %v1545, 7
      %v1547 = vsub.s32 0, %v1546
      %v1548 = vrot.slane %v1544, %v1547
      %v1553 = vunpack.c.l.b16 %v1538
      %v1554 = vunpack.c.l.b16 %v1539
      %v1555 = vunpack.c.l.b16 %v1540
      %v1556 = vunpack.c.l.b16 %v1541
      %v1557 = vpack.c.b16 %v1554, %v1553
      %v1558 = vpack.c.b16 %v1556, %v1555
      %v1562 = vsel %vm562, %v1542, 0
      %v1565 = vsel %vm562, %v1543, 0
      %1567 = vmatprep.subr.bf16.mxu0 0
      %1568 = vmatpush1.bf16.msra.mxu0 0
      %1569 = vmatprep.subr.bf16.mxu0 0
      %1570 = vmatpush1.bf16.msra.mxu0 0
      %1571 = vmatprep.subr.bf16.mxu0 0
      %1572 = vmatpush1.bf16.msra.mxu0 0
      %1573 = vmatprep.subr.bf16.mxu0 0
      %1574 = vmatpush1.bf16.msra.mxu0 0
      %1575 = vmatprep.subr.bf16.mxu0 0
      %1576 = vmatpush1.bf16.msra.mxu0 0
      %1577 = vmatprep.subr.bf16.mxu0 0
      %1578 = vmatpush1.bf16.msra.mxu0 0
      %1579 = vmatprep.subr.bf16.mxu0 0
      %1580 = vmatpush1.bf16.msra.mxu0 %v1558
      %1581 = vmatprep.subr.bf16.mxu0 0
      %1582 = vmatpush1.bf16.msra.mxu0 %v1557
      %1583 = vmatprep.subr.bf16.mxu0 0
      %1584 = vmatpush2.bf16.msra.mxu0 0
      %1585 = vmatprep.subr.bf16.mxu0 0
      %1586 = vmatpush2.bf16.msra.mxu0 0
      %1587 = vmatprep.subr.bf16.mxu0 0
      %1588 = vmatpush2.bf16.msra.mxu0 0
      %1589 = vmatprep.subr.bf16.mxu0 0
      %1590 = vmatpush2.bf16.msra.mxu0 0
      %1591 = vmatprep.subr.bf16.mxu0 0
      %1592 = vmatpush2.bf16.msra.mxu0 0
      %1593 = vmatprep.subr.bf16.mxu0 0
      %1594 = vmatpush2.bf16.msra.mxu0 0
      %1595 = vmatprep.subr.bf16.mxu0 0
      %1596 = vmatpush2.bf16.msra.mxu0 0
      %1597 = vmatprep.subr.bf16.mxu0 0
      %1598 = vmatpush2.bf16.msra.mxu0 0
      %1599 = vmatprep.mubr.bf16.mxu0 0
      %1600 = vmatmul.mubr.bf16.gmra.mxu0 %v1562
      %v1601 = vpop.f32.mrf.mxu0
      %v1602 = vadd.f32 %v1548, %v1601
      %v1603 = vpop.f32.mrf.mxu0
      %v1604 = vpop.f32.mrf.mxu0
      %v1605 = vadd.f32 %v1548, %v1604
      %v1606 = vpop.f32.mrf.mxu0
      %1607 = vmatprep.mubr.bf16.mxu0 0
      %1608 = vmatmul.mubr.bf16.gmra.mxu0 %v1565
      %v1609 = vpop.f32.mrf.mxu0
      %v1610 = vadd.f32 %v1548, %v1609
      %v1611 = vpop.f32.mrf.mxu0
      %v1612 = vpop.f32.mrf.mxu0
      %v1613 = vpop.f32.mrf.mxu0
      %1614 = vdwg.mxu0
      %v1615 = vmul.f32 %v1602, %v1602
      %v1616 = vmul.f32 %v1605, %v1605
      %v1617 = vmul.f32 %v1610, %v1610
      %v1618 = vmul.f32 %v1602, %v1615
      %v1619 = vmul.f32 %v1605, %v1616
      %v1620 = vmul.f32 %v1610, %v1617
      %v1621 = vmul.f32 %v1618, 0.044715
      %v1622 = vmul.f32 %v1619, 0.044715
      %v1623 = vmul.f32 %v1620, 0.044715
      %v1624 = vadd.f32 %v1602, %v1621
      %v1625 = vadd.f32 %v1605, %v1622
      %v1626 = vadd.f32 %v1610, %v1623
      %v1627 = vmul.f32 %v1624, 0.7978846
      %v1628 = vmul.f32 %v1625, 0.7978846
      %v1629 = vmul.f32 %v1626, 0.7978846
      %v1630 = vtanh.pop %v1627
      %v1631 = vtanh.pop %v1628
      %v1632 = vtanh.pop %v1629
      %v1633 = vadd.f32 %v1630, 1.0
      %v1634 = vadd.f32 %v1631, 1.0
      %v1635 = vadd.f32 %v1632, 1.0
      %v1636 = vmul.f32 %v1633, 0.5
      %v1637 = vmul.f32 %v1634, 0.5
      %v1638 = vmul.f32 %v1635, 0.5
      %v1639 = vmul.f32 %v1602, %v1636
      %v1640 = vmul.f32 %v1605, %v1637
      %v1641 = vmul.f32 %v1610, %v1638
      %v1642 = vld [vmem:[%s9] sm:$0xf]
      %v1643 = vld [vmem:[%s9 + $0x4] sm:$0xf]
      %v1644 = vld [vmem:[%s9 + $0x8] sm:$0xf]
      %v1645 = vld [vmem:[%s9 + $0xc] sm:$0xf]
      %v1646 = vld [vmem:[%s9 + $0x10] sm:$0xf]
      %v1647 = vld [vmem:[%s9 + $0x14] sm:$0xf]
      %v1648 = vld [vmem:[%s9 + $0x18] sm:$0xf]
      %v1649 = vld [vmem:[%s9 + $0x1c] sm:$0xf]
      %v1650 = vld [vmem:[%s9 + $0x20] sm:$0xf]
      %v1651 = vld [vmem:[%s9 + $0x24] sm:$0xf]
      %v1652 = vld [vmem:[%s9 + $0x28] sm:$0xf]
      %v1653 = vld [vmem:[%s9 + $0x2c] sm:$0xf]
      %v1654 = vld [vmem:[%s9 + $0x30] sm:$0xf]
      %v1655 = vld [vmem:[%s9 + $0x34] sm:$0xf]
      %v1656 = vld [vmem:[%s9 + $0x38] sm:$0xf]
      %v1657 = vld [vmem:[%s9 + $0x3c] sm:$0xf]
      %v1658 = vpack.c.bf16 %v1640, %v1639
      %v1659 = vpack.c.bf16 %v1641, %v1641
      %v1660 = vlaneseq
      %v1661 = vshrl.u32 %v1660, 7
      %v1662 = vsub.s32 0, %v1661
      %v1663 = vrot.slane %v558, %v1662
      %v1680 = vunpack.c.l.b16 %v1642
      %v1681 = vunpack.c.l.b16 %v1643
      %v1682 = vunpack.c.l.b16 %v1644
      %v1683 = vunpack.c.l.b16 %v1645
      %v1684 = vunpack.c.l.b16 %v1646
      %v1685 = vunpack.c.l.b16 %v1647
      %v1686 = vunpack.c.l.b16 %v1648
      %v1687 = vunpack.c.l.b16 %v1649
      %v1688 = vunpack.c.l.b16 %v1650
      %v1689 = vunpack.c.l.b16 %v1651
      %v1690 = vunpack.c.l.b16 %v1652
      %v1691 = vunpack.c.l.b16 %v1653
      %v1692 = vunpack.c.l.b16 %v1654
      %v1693 = vunpack.c.l.b16 %v1655
      %v1694 = vunpack.c.l.b16 %v1656
      %v1695 = vunpack.c.l.b16 %v1657
      %v1696 = vpack.c.b16 %v1681, %v1680
      %v1697 = vpack.c.b16 %v1683, %v1682
      %v1698 = vpack.c.b16 %v1685, %v1684
      %v1699 = vpack.c.b16 %v1687, %v1686
      %v1700 = vpack.c.b16 %v1689, %v1688
      %v1701 = vpack.c.b16 %v1691, %v1690
      %v1702 = vpack.c.b16 %v1693, %v1692
      %v1703 = vpack.c.b16 %v1695, %v1694
      %1712 = vmatprep.subr.bf16.mxu0 0
      %1713 = vmatpush1.bf16.msra.mxu0 %v1703
      %1714 = vmatprep.subr.bf16.mxu0 0
      %1715 = vmatpush1.bf16.msra.mxu0 %v1702
      %1716 = vmatprep.subr.bf16.mxu0 0
      %1717 = vmatpush1.bf16.msra.mxu0 %v1701
      %1718 = vmatprep.subr.bf16.mxu0 0
      %1719 = vmatpush1.bf16.msra.mxu0 %v1700
      %1720 = vmatprep.subr.bf16.mxu0 0
      %1721 = vmatpush1.bf16.msra.mxu0 %v1699
      %1722 = vmatprep.subr.bf16.mxu0 0
      %1723 = vmatpush1.bf16.msra.mxu0 %v1698
      %1724 = vmatprep.subr.bf16.mxu0 0
      %1725 = vmatpush1.bf16.msra.mxu0 %v1697
      %1726 = vmatprep.subr.bf16.mxu0 0
      %1727 = vmatpush1.bf16.msra.mxu0 %v1696
      %1728 = vmatprep.subr.bf16.mxu0 0
      %1729 = vmatpush2.bf16.msra.mxu0 0
      %1730 = vmatprep.subr.bf16.mxu0 0
      %1731 = vmatpush2.bf16.msra.mxu0 0
      %1732 = vmatprep.subr.bf16.mxu0 0
      %1733 = vmatpush2.bf16.msra.mxu0 0
      %1734 = vmatprep.subr.bf16.mxu0 0
      %1735 = vmatpush2.bf16.msra.mxu0 0
      %1736 = vmatprep.subr.bf16.mxu0 0
      %1737 = vmatpush2.bf16.msra.mxu0 0
      %1738 = vmatprep.subr.bf16.mxu0 0
      %1739 = vmatpush2.bf16.msra.mxu0 0
      %1740 = vmatprep.subr.bf16.mxu0 0
      %1741 = vmatpush2.bf16.msra.mxu0 0
      %1742 = vmatprep.subr.bf16.mxu0 0
      %1743 = vmatpush2.bf16.msra.mxu0 0
      %1744 = vmatprep.mubr.bf16.mxu0 0
      %1745 = vmatmul.mubr.bf16.gmra.mxu0 %v1658
      %v1746 = vpop.f32.mrf.mxu0
      %v1747 = vadd.f32 %v1663, %v1746
      %v1748 = vpop.f32.mrf.mxu0
      %v1749 = vpop.f32.mrf.mxu0
      %v1750 = vadd.f32 %v1663, %v1749
      %v1751 = vpop.f32.mrf.mxu0
      %1752 = vmatprep.mubr.bf16.mxu0 0
      %1753 = vmatmul.mubr.bf16.gmra.mxu0 %v1659
      %v1754 = vpop.f32.mrf.mxu0
      %v1755 = vadd.f32 %v1663, %v1754
      %v1756 = vpop.f32.mrf.mxu0
      %v1757 = vpop.f32.mrf.mxu0
      %v1758 = vpop.f32.mrf.mxu0
      %1759 = vdwg.mxu0
      %v1760 = vadd.f32 %v1504, %v1747
      %v1761 = vadd.f32 %v1505, %v1750
      %v1762 = vadd.f32 %v1506, %v1755
      %v1763 = vld [vmem:[%s3 + $0x4] sm:$0x1]
      %v1764 = vld [vmem:[%s3 + $0x5] sm:$0x1]
      %v1765 = vld [vmem:[%s3 + $0x6] sm:$0x1]
      %v1766 = vld [vmem:[%s3 + $0x7] sm:$0x1]
      %v1767 = vmul.f32 %v1760, %v1760
      %v1768 = vmul.f32 %v1761, %v1761
      %v1769 = vmul.f32 %v1762, %v1762
      %v1770 = vsel %vm562, %v1767, 0.0
      %1771 = vadd.xlane.f32.xlu0 %v1770
      %v1772 = vpop.xlane.xlu0 %1771
      %v1773 = vsel %vm562, %v1768, 0.0
      %1774 = vadd.xlane.f32.xlu0 %v1773
      %v1775 = vpop.xlane.xlu0 %1774
      %v1776 = vsel %vm451, %v1769, 0.0
      %1777 = vadd.xlane.f32.xlu0 %v1776
      %v1778 = vpop.xlane.xlu0 %1777
      %v1779 = vmul.f32 %v1772, %v572
      %v1780 = vmul.f32 %v1775, %v572
      %v1781 = vmul.f32 %v1778, %v572
      %v1782 = vadd.f32 %v1779, 1e-06
      %v1783 = vadd.f32 %v1780, 1e-06
      %v1784 = vadd.f32 %v1781, 1e-06
      %v1785 = vrsqrt.pop %v1782
      %v1786 = vrsqrt.pop %v1783
      %v1787 = vrsqrt.pop %v1784
      %v1788 = vmul.f32 %v1760, %v1785
      %v1789 = vmul.f32 %v1761, %v1786
      %v1790 = vmul.f32 %v1762, %v1787
      %v1791 = vlaneseq
      %v1792 = vshrl.u32 %v1791, 7
      %v1793 = vsub.s32 0, %v1792
      %v1794 = vrot.slane %v1763, %v1793
      %v1795 = vmul.f32 %v1788, %v1794
      %v1796 = vmul.f32 %v1789, %v1794
      %v1797 = vmul.f32 %v1790, %v1794
      %s1798 = scalar_lea.vmem %s4, 32
      %v1799 = vld [vmem:[%s1798] sm:$0xff]
      %v1800 = vld [vmem:[%s1798 + $0x8] sm:$0xff]
      %v1801 = vld [vmem:[%s1798 + $0x10] sm:$0xff]
      %v1802 = vld [vmem:[%s1798 + $0x18] sm:$0xff]
      %v1803 = vpack.c.bf16 %v1796, %v1795
      %v1804 = vpack.c.bf16 %v1797, %v1797
      %s1805 = scalar_lea.vmem %s5, 1
      %v1806 = vld [vmem:[%s1805] ss:$2 sm:$0x3]
      %v1808 = vlaneseq
      %v1809 = vshrl.u32 %v1808, 7
      %v1810 = vsub.s32 0, %v1809
      %v1811 = vrot.slane %v1806, %v1810
      %v1812 = vlaneseq
      %v1813 = vshrl.u32 %v1812, 7
      %v1814 = vsub.s32 1, %v1813
      %v1815 = vrot.slane %v1806, %v1814
      %v1822 = vunpack.c.l.b16 %v1799
      %v1823 = vunpack.c.h.b16 %v1799
      %v1824 = vunpack.c.l.b16 %v1800
      %v1825 = vunpack.c.h.b16 %v1800
      %v1826 = vunpack.c.l.b16 %v1801
      %v1827 = vunpack.c.h.b16 %v1801
      %v1828 = vunpack.c.l.b16 %v1802
      %v1829 = vunpack.c.h.b16 %v1802
      %v1830 = vpack.c.b16 %v1824, %v1822
      %v1831 = vpack.c.b16 %v1825, %v1823
      %v1832 = vpack.c.b16 %v1828, %v1826
      %v1833 = vpack.c.b16 %v1829, %v1827
      %v1839 = vsel %vm562, %v1803, 0
      %v1842 = vsel %vm562, %v1804, 0
      %1844 = vmatprep.subr.bf16.mxu0 0
      %1845 = vmatpush1.bf16.msra.mxu0 0
      %1846 = vmatprep.subr.bf16.mxu0 0
      %1847 = vmatpush1.bf16.msra.mxu0 0
      %1848 = vmatprep.subr.bf16.mxu0 0
      %1849 = vmatpush1.bf16.msra.mxu0 0
      %1850 = vmatprep.subr.bf16.mxu0 0
      %1851 = vmatpush1.bf16.msra.mxu0 0
      %1852 = vmatprep.subr.bf16.mxu0 0
      %1853 = vmatpush1.bf16.msra.mxu0 0
      %1854 = vmatprep.subr.bf16.mxu0 0
      %1855 = vmatpush1.bf16.msra.mxu0 0
      %1856 = vmatprep.subr.bf16.mxu0 %v1833
      %1857 = vmatpush1.bf16.msra.mxu0 %v1832
      %1858 = vmatprep.subr.bf16.mxu0 %v1831
      %1859 = vmatpush1.bf16.msra.mxu0 %v1830
      %1860 = vmatprep.subr.bf16.mxu0 0
      %1861 = vmatpush2.bf16.msra.mxu0 0
      %1862 = vmatprep.subr.bf16.mxu0 0
      %1863 = vmatpush2.bf16.msra.mxu0 0
      %1864 = vmatprep.subr.bf16.mxu0 0
      %1865 = vmatpush2.bf16.msra.mxu0 0
      %1866 = vmatprep.subr.bf16.mxu0 0
      %1867 = vmatpush2.bf16.msra.mxu0 0
      %1868 = vmatprep.subr.bf16.mxu0 0
      %1869 = vmatpush2.bf16.msra.mxu0 0
      %1870 = vmatprep.subr.bf16.mxu0 0
      %1871 = vmatpush2.bf16.msra.mxu0 0
      %1872 = vmatprep.subr.bf16.mxu0 0
      %1873 = vmatpush2.bf16.msra.mxu0 0
      %1874 = vmatprep.subr.bf16.mxu0 0
      %1875 = vmatpush2.bf16.msra.mxu0 0
      %1876 = vmatprep.mubr.bf16.mxu0 0
      %1877 = vmatmul.mubr.bf16.gmra.mxu0 %v1839
      %v1878 = vpop.f32.mrf.mxu0
      %v1879 = vadd.f32 %v1811, %v1878
      %v1880 = vpop.f32.mrf.mxu0
      %v1881 = vadd.f32 %v1815, %v1880
      %v1882 = vpop.f32.mrf.mxu0
      %v1883 = vadd.f32 %v1811, %v1882
      %v1884 = vpop.f32.mrf.mxu0
      %v1885 = vadd.f32 %v1815, %v1884
      %1886 = vmatprep.mubr.bf16.mxu0 0
      %1887 = vmatmul.mubr.bf16.gmra.mxu0 %v1842
      %v1888 = vpop.f32.mrf.mxu0
      %v1889 = vadd.f32 %v1811, %v1888
      %v1890 = vpop.f32.mrf.mxu0
      %v1891 = vadd.f32 %v1815, %v1890
      %v1892 = vpop.f32.mrf.mxu0
      %v1893 = vpop.f32.mrf.mxu0
      %1894 = vdwg.mxu0
      %v1895 = vpack.c.bf16 %v1883, %v1879
      %v1896 = vpack.c.bf16 %v1889, %v1889
      %1899 = vrot.lane.b32.xlu0 %v1895, 64
      %v1900 = vpop.permute.xlu0 %1899
      %1901 = vrot.lane.b32.xlu0 %v1896, 64
      %v1902 = vpop.permute.xlu0 %1901
      %v1904 = vsel %vm695, %v1895, 0
      %v1907 = vsel %vm695, %v1896, 0
      %v1910 = vsel %vm695, %v1900, 0
      %v1913 = vsel %vm695, %v1902, 0
      %1915 = vmatprep.subr.bf16.mxu0 0
      %1916 = vmatpush1.bf16.xpose.msra.mxu0 0
      %1917 = vmatprep.subr.bf16.mxu0 0
      %1918 = vmatpush1.bf16.xpose.msra.mxu0 0
      %1919 = vmatprep.subr.bf16.mxu0 0
      %1920 = vmatpush1.bf16.xpose.msra.mxu0 0
      %1921 = vmatprep.subr.bf16.mxu0 0
      %1922 = vmatpush1.bf16.xpose.msra.mxu0 0
      %1923 = vmatprep.subr.bf16.mxu0 0
      %1924 = vmatpush1.bf16.xpose.msra.mxu0 0
      %1925 = vmatprep.subr.bf16.mxu0 0
      %1926 = vmatpush1.bf16.xpose.msra.mxu0 0
      %1927 = vmatprep.subr.bf16.mxu0 0
      %1928 = vmatpush1.bf16.xpose.msra.mxu0 %v1913
      %1929 = vmatprep.subr.bf16.mxu0 0
      %1930 = vmatpush1.bf16.xpose.msra.mxu0 %v1910
      %1931 = vmatprep.subr.bf16.mxu0 0
      %1932 = vmatpush2.bf16.xpose.msra.mxu0 0
      %1933 = vmatprep.subr.bf16.mxu0 0
      %1934 = vmatpush2.bf16.xpose.msra.mxu0 0
      %1935 = vmatprep.subr.bf16.mxu0 0
      %1936 = vmatpush2.bf16.xpose.msra.mxu0 0
      %1937 = vmatprep.subr.bf16.mxu0 0
      %1938 = vmatpush2.bf16.xpose.msra.mxu0 0
      %1939 = vmatprep.subr.bf16.mxu0 0
      %1940 = vmatpush2.bf16.xpose.msra.mxu0 0
      %1941 = vmatprep.subr.bf16.mxu0 0
      %1942 = vmatpush2.bf16.xpose.msra.mxu0 0
      %1943 = vmatprep.subr.bf16.mxu0 0
      %1944 = vmatpush2.bf16.xpose.msra.mxu0 0
      %1945 = vmatprep.subr.bf16.mxu0 0
      %1946 = vmatpush2.bf16.xpose.msra.mxu0 0
      %1947 = vmatprep.mubr.bf16.mxu0 0
      %1948 = vmatmul.mubr.bf16.gmra.mxu0 %v1904
      %v1949 = vpop.f32.mrf.mxu0
      %v1950 = vadd.f32 %v549, %v1949
      %v1951 = vpop.f32.mrf.mxu0
      %v1952 = vpop.f32.mrf.mxu0
      %v1953 = vadd.f32 %v550, %v1952
      %v1954 = vpop.f32.mrf.mxu0
      %1955 = vmatprep.mubr.bf16.mxu0 0
      %1956 = vmatmul.mubr.bf16.gmra.mxu0 %v1907
      %v1957 = vpop.f32.mrf.mxu0
      %v1958 = vadd.f32 %v551, %v1957
      %v1959 = vpop.f32.mrf.mxu0
      %v1960 = vpop.f32.mrf.mxu0
      %v1961 = vpop.f32.mrf.mxu0
      %1962 = vdwg.mxu0
      %v1963 = vsel %vm756, %v1950, -inf
      %1964 = vmax.xlane.f32.xlu0 %v1963
      %v1965 = vpop.xlane.xlu0 %1964
      %v1966 = vsel %vm756, %v1953, -inf
      %1967 = vmax.xlane.f32.xlu0 %v1966
      %v1968 = vpop.xlane.xlu0 %1967
      %v1969 = vsel %vm763, %v1958, -inf
      %1970 = vmax.xlane.f32.xlu0 %v1969
      %v1971 = vpop.xlane.xlu0 %1970
      %v1972 = vsub.f32 %v1950, %v1965
      %v1973 = vsub.f32 %v1953, %v1968
      %v1974 = vsub.f32 %v1958, %v1971
      %v1975 = vmul.f32 %v1972, 1.442695
      %v1976 = vpow.pop %v1975
      %v1977 = vmul.f32 %v1973, 1.442695
      %v1978 = vpow.pop %v1977
      %v1979 = vmul.f32 %v1974, 1.442695
      %v1980 = vpow.pop %v1979
      %v1981 = vsel %vm756, %v1976, 0.0
      %1982 = vadd.xlane.f32.xlu0 %v1981
      %v1983 = vpop.xlane.xlu0 %1982
      %v1984 = vsel %vm756, %v1978, 0.0
      %1985 = vadd.xlane.f32.xlu0 %v1984
      %v1986 = vpop.xlane.xlu0 %1985
      %v1987 = vsel %vm763, %v1980, 0.0
      %1988 = vadd.xlane.f32.xlu0 %v1987
      %v1989 = vpop.xlane.xlu0 %1988
      %v1990 = vrcp.pop %v1983
      %v1991 = vmul.f32 %v1976, %v1990
      %v1992 = vrcp.pop %v1986
      %v1993 = vmul.f32 %v1978, %v1992
      %v1994 = vrcp.pop %v1989
      %v1995 = vmul.f32 %v1980, %v1994
      %v1996 = vpack.c.bf16 %v1993, %v1991
      %v1997 = vpack.c.bf16 %v1995, %v1995
      %v1998 = vpack.c.bf16 %v1885, %v1881
      %v1999 = vpack.c.bf16 %v1891, %v1891
      %v2001 = vsel %vm756, %v1996, 0
      %v2004 = vsel %vm756, %v1997, 0
      %v2007 = vsel %vm801, %v1999, 0
      %2009 = vmatprep.subr.bf16.mxu0 0
      %2010 = vmatpush1.bf16.msra.mxu0 0
      %2011 = vmatprep.subr.bf16.mxu0 0
      %2012 = vmatpush1.bf16.msra.mxu0 0
      %2013 = vmatprep.subr.bf16.mxu0 0
      %2014 = vmatpush1.bf16.msra.mxu0 0
      %2015 = vmatprep.subr.bf16.mxu0 0
      %2016 = vmatpush1.bf16.msra.mxu0 0
      %2017 = vmatprep.subr.bf16.mxu0 0
      %2018 = vmatpush1.bf16.msra.mxu0 0
      %2019 = vmatprep.subr.bf16.mxu0 0
      %2020 = vmatpush1.bf16.msra.mxu0 0
      %2021 = vmatprep.subr.bf16.mxu0 0
      %2022 = vmatpush1.bf16.msra.mxu0 %v2007
      %2023 = vmatprep.subr.bf16.mxu0 0
      %2024 = vmatpush1.bf16.msra.mxu0 %v1998
      %2025 = vmatprep.subr.bf16.mxu0 0
      %2026 = vmatpush2.bf16.msra.mxu0 0
      %2027 = vmatprep.subr.bf16.mxu0 0
      %2028 = vmatpush2.bf16.msra.mxu0 0
      %2029 = vmatprep.subr.bf16.mxu0 0
      %2030 = vmatpush2.bf16.msra.mxu0 0
      %2031 = vmatprep.subr.bf16.mxu0 0
      %2032 = vmatpush2.bf16.msra.mxu0 0
      %2033 = vmatprep.subr.bf16.mxu0 0
      %2034 = vmatpush2.bf16.msra.mxu0 0
      %2035 = vmatprep.subr.bf16.mxu0 0
      %2036 = vmatpush2.bf16.msra.mxu0 0
      %2037 = vmatprep.subr.bf16.mxu0 0
      %2038 = vmatpush2.bf16.msra.mxu0 0
      %2039 = vmatprep.subr.bf16.mxu0 0
      %2040 = vmatpush2.bf16.msra.mxu0 0
      %2041 = vmatprep.mubr.bf16.mxu0 0
      %2042 = vmatmul.mubr.bf16.gmra.mxu0 %v2001
      %v2043 = vpop.f32.mrf.mxu0
      %v2044 = vadd.f32 0.0, %v2043
      %v2045 = vpop.f32.mrf.mxu0
      %v2046 = vpop.f32.mrf.mxu0
      %v2047 = vadd.f32 0.0, %v2046
      %v2048 = vpop.f32.mrf.mxu0
      %2049 = vmatprep.mubr.bf16.mxu0 0
      %2050 = vmatmul.mubr.bf16.gmra.mxu0 %v2004
      %v2051 = vpop.f32.mrf.mxu0
      %v2052 = vadd.f32 0.0, %v2051
      %v2053 = vpop.f32.mrf.mxu0
      %v2054 = vpop.f32.mrf.mxu0
      %v2055 = vpop.f32.mrf.mxu0
      %2056 = vdwg.mxu0
      %2057 = vst.msk [vmem:[#allocation3] sm:$0xff] %vm695, %v2044
      %2058 = vst.msk [vmem:[#allocation3 + $0x8] sm:$0xff] %vm695, %v2047
      %2059 = vst.msk [vmem:[#allocation3 + $0x10] sm:$0xf] %vm855, %v2052
      %2060 = vrot.lane.b32.xlu0 %v1895, 112
      %v2061 = vpop.permute.xlu0 %2060
      %2062 = vrot.lane.b32.xlu0 %v1896, 112
      %v2063 = vpop.permute.xlu0 %2062
      %2064 = vrot.lane.b32.xlu0 %v1895, 48
      %v2065 = vpop.permute.xlu0 %2064
      %2066 = vrot.lane.b32.xlu0 %v1896, 48
      %v2067 = vpop.permute.xlu0 %2066
      %v2069 = vsel %vm695, %v2061, 0
      %v2072 = vsel %vm695, %v2063, 0
      %v2075 = vsel %vm695, %v2065, 0
      %v2078 = vsel %vm695, %v2067, 0
      %2080 = vmatprep.subr.bf16.mxu0 0
      %2081 = vmatpush1.bf16.xpose.msra.mxu0 0
      %2082 = vmatprep.subr.bf16.mxu0 0
      %2083 = vmatpush1.bf16.xpose.msra.mxu0 0
      %2084 = vmatprep.subr.bf16.mxu0 0
      %2085 = vmatpush1.bf16.xpose.msra.mxu0 0
      %2086 = vmatprep.subr.bf16.mxu0 0
      %2087 = vmatpush1.bf16.xpose.msra.mxu0 0
      %2088 = vmatprep.subr.bf16.mxu0 0
      %2089 = vmatpush1.bf16.xpose.msra.mxu0 0
      %2090 = vmatprep.subr.bf16.mxu0 0
      %2091 = vmatpush1.bf16.xpose.msra.mxu0 0
      %2092 = vmatprep.subr.bf16.mxu0 0
      %2093 = vmatpush1.bf16.xpose.msra.mxu0 %v2078
      %2094 = vmatprep.subr.bf16.mxu0 0
      %2095 = vmatpush1.bf16.xpose.msra.mxu0 %v2075
      %2096 = vmatprep.subr.bf16.mxu0 0
      %2097 = vmatpush2.bf16.xpose.msra.mxu0 0
      %2098 = vmatprep.subr.bf16.mxu0 0
      %2099 = vmatpush2.bf16.xpose.msra.mxu0 0
      %2100 = vmatprep.subr.bf16.mxu0 0
      %2101 = vmatpush2.bf16.xpose.msra.mxu0 0
      %2102 = vmatprep.subr.bf16.mxu0 0
      %2103 = vmatpush2.bf16.xpose.msra.mxu0 0
      %2104 = vmatprep.subr.bf16.mxu0 0
      %2105 = vmatpush2.bf16.xpose.msra.mxu0 0
      %2106 = vmatprep.subr.bf16.mxu0 0
      %2107 = vmatpush2.bf16.xpose.msra.mxu0 0
      %2108 = vmatprep.subr.bf16.mxu0 0
      %2109 = vmatpush2.bf16.xpose.msra.mxu0 0
      %2110 = vmatprep.subr.bf16.mxu0 0
      %2111 = vmatpush2.bf16.xpose.msra.mxu0 0
      %2112 = vmatprep.mubr.bf16.mxu0 0
      %2113 = vmatmul.mubr.bf16.gmra.mxu0 %v2069
      %v2114 = vpop.f32.mrf.mxu0
      %v2115 = vadd.f32 %v549, %v2114
      %v2116 = vpop.f32.mrf.mxu0
      %v2117 = vpop.f32.mrf.mxu0
      %v2118 = vadd.f32 %v550, %v2117
      %v2119 = vpop.f32.mrf.mxu0
      %2120 = vmatprep.mubr.bf16.mxu0 0
      %2121 = vmatmul.mubr.bf16.gmra.mxu0 %v2072
      %v2122 = vpop.f32.mrf.mxu0
      %v2123 = vadd.f32 %v551, %v2122
      %v2124 = vpop.f32.mrf.mxu0
      %v2125 = vpop.f32.mrf.mxu0
      %v2126 = vpop.f32.mrf.mxu0
      %2127 = vdwg.mxu0
      %v2128 = vsel %vm756, %v2115, -inf
      %2129 = vmax.xlane.f32.xlu0 %v2128
      %v2130 = vpop.xlane.xlu0 %2129
      %v2131 = vsel %vm756, %v2118, -inf
      %2132 = vmax.xlane.f32.xlu0 %v2131
      %v2133 = vpop.xlane.xlu0 %2132
      %v2134 = vsel %vm763, %v2123, -inf
      %2135 = vmax.xlane.f32.xlu0 %v2134
      %v2136 = vpop.xlane.xlu0 %2135
      %v2137 = vsub.f32 %v2115, %v2130
      %v2138 = vsub.f32 %v2118, %v2133
      %v2139 = vsub.f32 %v2123, %v2136
      %v2140 = vmul.f32 %v2137, 1.442695
      %v2141 = vpow.pop %v2140
      %v2142 = vmul.f32 %v2138, 1.442695
      %v2143 = vpow.pop %v2142
      %v2144 = vmul.f32 %v2139, 1.442695
      %v2145 = vpow.pop %v2144
      %v2146 = vsel %vm756, %v2141, 0.0
      %2147 = vadd.xlane.f32.xlu0 %v2146
      %v2148 = vpop.xlane.xlu0 %2147
      %v2149 = vsel %vm756, %v2143, 0.0
      %2150 = vadd.xlane.f32.xlu0 %v2149
      %v2151 = vpop.xlane.xlu0 %2150
      %v2152 = vsel %vm763, %v2145, 0.0
      %2153 = vadd.xlane.f32.xlu0 %v2152
      %v2154 = vpop.xlane.xlu0 %2153
      %v2155 = vrcp.pop %v2148
      %v2156 = vmul.f32 %v2141, %v2155
      %v2157 = vrcp.pop %v2151
      %v2158 = vmul.f32 %v2143, %v2157
      %v2159 = vrcp.pop %v2154
      %v2160 = vmul.f32 %v2145, %v2159
      %v2161 = vpack.c.bf16 %v2158, %v2156
      %v2162 = vpack.c.bf16 %v2160, %v2160
      %2165 = vrot.lane.b32.xlu0 %v1998, 112
      %v2166 = vpop.permute.xlu0 %2165
      %2167 = vrot.lane.b32.xlu0 %v1999, 112
      %v2168 = vpop.permute.xlu0 %2167
      %v2171 = vsel %vm756, %v2161, 0
      %v2174 = vsel %vm756, %v2162, 0
      %v2177 = vsel %vm801, %v2168, 0
      %2179 = vmatprep.subr.bf16.mxu0 0
      %2180 = vmatpush1.bf16.msra.mxu0 0
      %2181 = vmatprep.subr.bf16.mxu0 0
      %2182 = vmatpush1.bf16.msra.mxu0 0
      %2183 = vmatprep.subr.bf16.mxu0 0
      %2184 = vmatpush1.bf16.msra.mxu0 0
      %2185 = vmatprep.subr.bf16.mxu0 0
      %2186 = vmatpush1.bf16.msra.mxu0 0
      %2187 = vmatprep.subr.bf16.mxu0 0
      %2188 = vmatpush1.bf16.msra.mxu0 0
      %2189 = vmatprep.subr.bf16.mxu0 0
      %2190 = vmatpush1.bf16.msra.mxu0 0
      %2191 = vmatprep.subr.bf16.mxu0 0
      %2192 = vmatpush1.bf16.msra.mxu0 %v2177
      %2193 = vmatprep.subr.bf16.mxu0 0
      %2194 = vmatpush1.bf16.msra.mxu0 %v2166
      %2195 = vmatprep.subr.bf16.mxu0 0
      %2196 = vmatpush2.bf16.msra.mxu0 0
      %2197 = vmatprep.subr.bf16.mxu0 0
      %2198 = vmatpush2.bf16.msra.mxu0 0
      %2199 = vmatprep.subr.bf16.mxu0 0
      %2200 = vmatpush2.bf16.msra.mxu0 0
      %2201 = vmatprep.subr.bf16.mxu0 0
      %2202 = vmatpush2.bf16.msra.mxu0 0
      %2203 = vmatprep.subr.bf16.mxu0 0
      %2204 = vmatpush2.bf16.msra.mxu0 0
      %2205 = vmatprep.subr.bf16.mxu0 0
      %2206 = vmatpush2.bf16.msra.mxu0 0
      %2207 = vmatprep.subr.bf16.mxu0 0
      %2208 = vmatpush2.bf16.msra.mxu0 0
      %2209 = vmatprep.subr.bf16.mxu0 0
      %2210 = vmatpush2.bf16.msra.mxu0 0
      %2211 = vmatprep.mubr.bf16.mxu0 0
      %2212 = vmatmul.mubr.bf16.gmra.mxu0 %v2171
      %v2213 = vpop.f32.mrf.mxu0
      %v2214 = vadd.f32 0.0, %v2213
      %v2215 = vpop.f32.mrf.mxu0
      %v2216 = vpop.f32.mrf.mxu0
      %v2217 = vadd.f32 0.0, %v2216
      %v2218 = vpop.f32.mrf.mxu0
      %2219 = vmatprep.mubr.bf16.mxu0 0
      %2220 = vmatmul.mubr.bf16.gmra.mxu0 %v2174
      %v2221 = vpop.f32.mrf.mxu0
      %v2222 = vadd.f32 0.0, %v2221
      %v2223 = vpop.f32.mrf.mxu0
      %v2224 = vpop.f32.mrf.mxu0
      %v2225 = vpop.f32.mrf.mxu0
      %2226 = vdwg.mxu0
      %2230 = vrot.lane.b32.xlu0 %v2214, 16
      %v2231 = vpop.permute.xlu0 %2230
      %2232 = vrot.lane.b32.xlu0 %v2217, 16
      %v2233 = vpop.permute.xlu0 %2232
      %2234 = vrot.lane.b32.xlu0 %v2222, 16
      %v2235 = vpop.permute.xlu0 %2234
      %2239 = vst.msk [vmem:[#allocation3] sm:$0xff] %vm1036, %v2231
      %2240 = vst.msk [vmem:[#allocation3 + $0x8] sm:$0xff] %vm1036, %v2233
      %2241 = vst.msk [vmem:[#allocation3 + $0x10] sm:$0xf] %vm1039, %v2235
      %2242 = vrot.lane.b32.xlu0 %v1895, 96
      %v2243 = vpop.permute.xlu0 %2242
      %2244 = vrot.lane.b32.xlu0 %v1896, 96
      %v2245 = vpop.permute.xlu0 %2244
      %2246 = vrot.lane.b32.xlu0 %v1895, 32
      %v2247 = vpop.permute.xlu0 %2246
      %2248 = vrot.lane.b32.xlu0 %v1896, 32
      %v2249 = vpop.permute.xlu0 %2248
      %v2251 = vsel %vm695, %v2243, 0
      %v2254 = vsel %vm695, %v2245, 0
      %v2257 = vsel %vm695, %v2247, 0
      %v2260 = vsel %vm695, %v2249, 0
      %2262 = vmatprep.subr.bf16.mxu0 0
      %2263 = vmatpush1.bf16.xpose.msra.mxu0 0
      %2264 = vmatprep.subr.bf16.mxu0 0
      %2265 = vmatpush1.bf16.xpose.msra.mxu0 0
      %2266 = vmatprep.subr.bf16.mxu0 0
      %2267 = vmatpush1.bf16.xpose.msra.mxu0 0
      %2268 = vmatprep.subr.bf16.mxu0 0
      %2269 = vmatpush1.bf16.xpose.msra.mxu0 0
      %2270 = vmatprep.subr.bf16.mxu0 0
      %2271 = vmatpush1.bf16.xpose.msra.mxu0 0
      %2272 = vmatprep.subr.bf16.mxu0 0
      %2273 = vmatpush1.bf16.xpose.msra.mxu0 0
      %2274 = vmatprep.subr.bf16.mxu0 0
      %2275 = vmatpush1.bf16.xpose.msra.mxu0 %v2260
      %2276 = vmatprep.subr.bf16.mxu0 0
      %2277 = vmatpush1.bf16.xpose.msra.mxu0 %v2257
      %2278 = vmatprep.subr.bf16.mxu0 0
      %2279 = vmatpush2.bf16.xpose.msra.mxu0 0
      %2280 = vmatprep.subr.bf16.mxu0 0
      %2281 = vmatpush2.bf16.xpose.msra.mxu0 0
      %2282 = vmatprep.subr.bf16.mxu0 0
      %2283 = vmatpush2.bf16.xpose.msra.mxu0 0
      %2284 = vmatprep.subr.bf16.mxu0 0
      %2285 = vmatpush2.bf16.xpose.msra.mxu0 0
      %2286 = vmatprep.subr.bf16.mxu0 0
      %2287 = vmatpush2.bf16.xpose.msra.mxu0 0
      %2288 = vmatprep.subr.bf16.mxu0 0
      %2289 = vmatpush2.bf16.xpose.msra.mxu0 0
      %2290 = vmatprep.subr.bf16.mxu0 0
      %2291 = vmatpush2.bf16.xpose.msra.mxu0 0
      %2292 = vmatprep.subr.bf16.mxu0 0
      %2293 = vmatpush2.bf16.xpose.msra.mxu0 0
      %2294 = vmatprep.mubr.bf16.mxu0 0
      %2295 = vmatmul.mubr.bf16.gmra.mxu0 %v2251
      %v2296 = vpop.f32.mrf.mxu0
      %v2297 = vadd.f32 %v549, %v2296
      %v2298 = vpop.f32.mrf.mxu0
      %v2299 = vpop.f32.mrf.mxu0
      %v2300 = vadd.f32 %v550, %v2299
      %v2301 = vpop.f32.mrf.mxu0
      %2302 = vmatprep.mubr.bf16.mxu0 0
      %2303 = vmatmul.mubr.bf16.gmra.mxu0 %v2254
      %v2304 = vpop.f32.mrf.mxu0
      %v2305 = vadd.f32 %v551, %v2304
      %v2306 = vpop.f32.mrf.mxu0
      %v2307 = vpop.f32.mrf.mxu0
      %v2308 = vpop.f32.mrf.mxu0
      %2309 = vdwg.mxu0
      %v2310 = vsel %vm756, %v2297, -inf
      %2311 = vmax.xlane.f32.xlu0 %v2310
      %v2312 = vpop.xlane.xlu0 %2311
      %v2313 = vsel %vm756, %v2300, -inf
      %2314 = vmax.xlane.f32.xlu0 %v2313
      %v2315 = vpop.xlane.xlu0 %2314
      %v2316 = vsel %vm763, %v2305, -inf
      %2317 = vmax.xlane.f32.xlu0 %v2316
      %v2318 = vpop.xlane.xlu0 %2317
      %v2319 = vsub.f32 %v2297, %v2312
      %v2320 = vsub.f32 %v2300, %v2315
      %v2321 = vsub.f32 %v2305, %v2318
      %v2322 = vmul.f32 %v2319, 1.442695
      %v2323 = vpow.pop %v2322
      %v2324 = vmul.f32 %v2320, 1.442695
      %v2325 = vpow.pop %v2324
      %v2326 = vmul.f32 %v2321, 1.442695
      %v2327 = vpow.pop %v2326
      %v2328 = vsel %vm756, %v2323, 0.0
      %2329 = vadd.xlane.f32.xlu0 %v2328
      %v2330 = vpop.xlane.xlu0 %2329
      %v2331 = vsel %vm756, %v2325, 0.0
      %2332 = vadd.xlane.f32.xlu0 %v2331
      %v2333 = vpop.xlane.xlu0 %2332
      %v2334 = vsel %vm763, %v2327, 0.0
      %2335 = vadd.xlane.f32.xlu0 %v2334
      %v2336 = vpop.xlane.xlu0 %2335
      %v2337 = vrcp.pop %v2330
      %v2338 = vmul.f32 %v2323, %v2337
      %v2339 = vrcp.pop %v2333
      %v2340 = vmul.f32 %v2325, %v2339
      %v2341 = vrcp.pop %v2336
      %v2342 = vmul.f32 %v2327, %v2341
      %v2343 = vpack.c.bf16 %v2340, %v2338
      %v2344 = vpack.c.bf16 %v2342, %v2342
      %2345 = vrot.lane.b32.xlu0 %v1998, 96
      %v2346 = vpop.permute.xlu0 %2345
      %2347 = vrot.lane.b32.xlu0 %v1999, 96
      %v2348 = vpop.permute.xlu0 %2347
      %v2351 = vsel %vm756, %v2343, 0
      %v2354 = vsel %vm756, %v2344, 0
      %v2357 = vsel %vm801, %v2348, 0
      %2359 = vmatprep.subr.bf16.mxu0 0
      %2360 = vmatpush1.bf16.msra.mxu0 0
      %2361 = vmatprep.subr.bf16.mxu0 0
      %2362 = vmatpush1.bf16.msra.mxu0 0
      %2363 = vmatprep.subr.bf16.mxu0 0
      %2364 = vmatpush1.bf16.msra.mxu0 0
      %2365 = vmatprep.subr.bf16.mxu0 0
      %2366 = vmatpush1.bf16.msra.mxu0 0
      %2367 = vmatprep.subr.bf16.mxu0 0
      %2368 = vmatpush1.bf16.msra.mxu0 0
      %2369 = vmatprep.subr.bf16.mxu0 0
      %2370 = vmatpush1.bf16.msra.mxu0 0
      %2371 = vmatprep.subr.bf16.mxu0 0
      %2372 = vmatpush1.bf16.msra.mxu0 %v2357
      %2373 = vmatprep.subr.bf16.mxu0 0
      %2374 = vmatpush1.bf16.msra.mxu0 %v2346
      %2375 = vmatprep.subr.bf16.mxu0 0
      %2376 = vmatpush2.bf16.msra.mxu0 0
      %2377 = vmatprep.subr.bf16.mxu0 0
      %2378 = vmatpush2.bf16.msra.mxu0 0
      %2379 = vmatprep.subr.bf16.mxu0 0
      %2380 = vmatpush2.bf16.msra.mxu0 0
      %2381 = vmatprep.subr.bf16.mxu0 0
      %2382 = vmatpush2.bf16.msra.mxu0 0
      %2383 = vmatprep.subr.bf16.mxu0 0
      %2384 = vmatpush2.bf16.msra.mxu0 0
      %2385 = vmatprep.subr.bf16.mxu0 0
      %2386 = vmatpush2.bf16.msra.mxu0 0
      %2387 = vmatprep.subr.bf16.mxu0 0
      %2388 = vmatpush2.bf16.msra.mxu0 0
      %2389 = vmatprep.subr.bf16.mxu0 0
      %2390 = vmatpush2.bf16.msra.mxu0 0
      %2391 = vmatprep.mubr.bf16.mxu0 0
      %2392 = vmatmul.mubr.bf16.gmra.mxu0 %v2351
      %v2393 = vpop.f32.mrf.mxu0
      %v2394 = vadd.f32 0.0, %v2393
      %v2395 = vpop.f32.mrf.mxu0
      %v2396 = vpop.f32.mrf.mxu0
      %v2397 = vadd.f32 0.0, %v2396
      %v2398 = vpop.f32.mrf.mxu0
      %2399 = vmatprep.mubr.bf16.mxu0 0
      %2400 = vmatmul.mubr.bf16.gmra.mxu0 %v2354
      %v2401 = vpop.f32.mrf.mxu0
      %v2402 = vadd.f32 0.0, %v2401
      %v2403 = vpop.f32.mrf.mxu0
      %v2404 = vpop.f32.mrf.mxu0
      %v2405 = vpop.f32.mrf.mxu0
      %2406 = vdwg.mxu0
      %2410 = vrot.lane.b32.xlu0 %v2394, 32
      %v2411 = vpop.permute.xlu0 %2410
      %2412 = vrot.lane.b32.xlu0 %v2397, 32
      %v2413 = vpop.permute.xlu0 %2412
      %2414 = vrot.lane.b32.xlu0 %v2402, 32
      %v2415 = vpop.permute.xlu0 %2414
      %2419 = vst.msk [vmem:[#allocation3] sm:$0xff] %vm1218, %v2411
      %2420 = vst.msk [vmem:[#allocation3 + $0x8] sm:$0xff] %vm1218, %v2413
      %2421 = vst.msk [vmem:[#allocation3 + $0x10] sm:$0xf] %vm1221, %v2415
      %2422 = vrot.lane.b32.xlu0 %v1895, 80
      %v2423 = vpop.permute.xlu0 %2422
      %2424 = vrot.lane.b32.xlu0 %v1896, 80
      %v2425 = vpop.permute.xlu0 %2424
      %2426 = vrot.lane.b32.xlu0 %v1895, 16
      %v2427 = vpop.permute.xlu0 %2426
      %2428 = vrot.lane.b32.xlu0 %v1896, 16
      %v2429 = vpop.permute.xlu0 %2428
      %v2431 = vsel %vm695, %v2423, 0
      %v2434 = vsel %vm695, %v2425, 0
      %v2437 = vsel %vm695, %v2427, 0
      %v2440 = vsel %vm695, %v2429, 0
      %2442 = vmatprep.subr.bf16.mxu0 0
      %2443 = vmatpush1.bf16.xpose.msra.mxu0 0
      %2444 = vmatprep.subr.bf16.mxu0 0
      %2445 = vmatpush1.bf16.xpose.msra.mxu0 0
      %2446 = vmatprep.subr.bf16.mxu0 0
      %2447 = vmatpush1.bf16.xpose.msra.mxu0 0
      %2448 = vmatprep.subr.bf16.mxu0 0
      %2449 = vmatpush1.bf16.xpose.msra.mxu0 0
      %2450 = vmatprep.subr.bf16.mxu0 0
      %2451 = vmatpush1.bf16.xpose.msra.mxu0 0
      %2452 = vmatprep.subr.bf16.mxu0 0
      %2453 = vmatpush1.bf16.xpose.msra.mxu0 0
      %2454 = vmatprep.subr.bf16.mxu0 0
      %2455 = vmatpush1.bf16.xpose.msra.mxu0 %v2440
      %2456 = vmatprep.subr.bf16.mxu0 0
      %2457 = vmatpush1.bf16.xpose.msra.mxu0 %v2437
      %2458 = vmatprep.subr.bf16.mxu0 0
      %2459 = vmatpush2.bf16.xpose.msra.mxu0 0
      %2460 = vmatprep.subr.bf16.mxu0 0
      %2461 = vmatpush2.bf16.xpose.msra.mxu0 0
      %2462 = vmatprep.subr.bf16.mxu0 0
      %2463 = vmatpush2.bf16.xpose.msra.mxu0 0
      %2464 = vmatprep.subr.bf16.mxu0 0
      %2465 = vmatpush2.bf16.xpose.msra.mxu0 0
      %2466 = vmatprep.subr.bf16.mxu0 0
      %2467 = vmatpush2.bf16.xpose.msra.mxu0 0
      %2468 = vmatprep.subr.bf16.mxu0 0
      %2469 = vmatpush2.bf16.xpose.msra.mxu0 0
      %2470 = vmatprep.subr.bf16.mxu0 0
      %2471 = vmatpush2.bf16.xpose.msra.mxu0 0
      %2472 = vmatprep.subr.bf16.mxu0 0
      %2473 = vmatpush2.bf16.xpose.msra.mxu0 0
      %2474 = vmatprep.mubr.bf16.mxu0 0
      %2475 = vmatmul.mubr.bf16.gmra.mxu0 %v2431
      %v2476 = vpop.f32.mrf.mxu0
      %v2477 = vadd.f32 %v549, %v2476
      %v2478 = vpop.f32.mrf.mxu0
      %v2479 = vpop.f32.mrf.mxu0
      %v2480 = vadd.f32 %v550, %v2479
      %v2481 = vpop.f32.mrf.mxu0
      %2482 = vmatprep.mubr.bf16.mxu0 0
      %2483 = vmatmul.mubr.bf16.gmra.mxu0 %v2434
      %v2484 = vpop.f32.mrf.mxu0
      %v2485 = vadd.f32 %v551, %v2484
      %v2486 = vpop.f32.mrf.mxu0
      %v2487 = vpop.f32.mrf.mxu0
      %v2488 = vpop.f32.mrf.mxu0
      %2489 = vdwg.mxu0
      %v2490 = vsel %vm756, %v2477, -inf
      %2491 = vmax.xlane.f32.xlu0 %v2490
      %v2492 = vpop.xlane.xlu0 %2491
      %v2493 = vsel %vm756, %v2480, -inf
      %2494 = vmax.xlane.f32.xlu0 %v2493
      %v2495 = vpop.xlane.xlu0 %2494
      %v2496 = vsel %vm763, %v2485, -inf
      %2497 = vmax.xlane.f32.xlu0 %v2496
      %v2498 = vpop.xlane.xlu0 %2497
      %v2499 = vsub.f32 %v2477, %v2492
      %v2500 = vsub.f32 %v2480, %v2495
      %v2501 = vsub.f32 %v2485, %v2498
      %v2502 = vmul.f32 %v2499, 1.442695
      %v2503 = vpow.pop %v2502
      %v2504 = vmul.f32 %v2500, 1.442695
      %v2505 = vpow.pop %v2504
      %v2506 = vmul.f32 %v2501, 1.442695
      %v2507 = vpow.pop %v2506
      %v2508 = vsel %vm756, %v2503, 0.0
      %2509 = vadd.xlane.f32.xlu0 %v2508
      %v2510 = vpop.xlane.xlu0 %2509
      %v2511 = vsel %vm756, %v2505, 0.0
      %2512 = vadd.xlane.f32.xlu0 %v2511
      %v2513 = vpop.xlane.xlu0 %2512
      %v2514 = vsel %vm763, %v2507, 0.0
      %2515 = vadd.xlane.f32.xlu0 %v2514
      %v2516 = vpop.xlane.xlu0 %2515
      %v2517 = vrcp.pop %v2510
      %v2518 = vmul.f32 %v2503, %v2517
      %v2519 = vrcp.pop %v2513
      %v2520 = vmul.f32 %v2505, %v2519
      %v2521 = vrcp.pop %v2516
      %v2522 = vmul.f32 %v2507, %v2521
      %v2523 = vpack.c.bf16 %v2520, %v2518
      %v2524 = vpack.c.bf16 %v2522, %v2522
      %2525 = vrot.lane.b32.xlu0 %v1998, 80
      %v2526 = vpop.permute.xlu0 %2525
      %2527 = vrot.lane.b32.xlu0 %v1999, 80
      %v2528 = vpop.permute.xlu0 %2527
      %v2531 = vsel %vm756, %v2523, 0
      %v2534 = vsel %vm756, %v2524, 0
      %v2537 = vsel %vm801, %v2528, 0
      %2539 = vmatprep.subr.bf16.mxu0 0
      %2540 = vmatpush1.bf16.msra.mxu0 0
      %2541 = vmatprep.subr.bf16.mxu0 0
      %2542 = vmatpush1.bf16.msra.mxu0 0
      %2543 = vmatprep.subr.bf16.mxu0 0
      %2544 = vmatpush1.bf16.msra.mxu0 0
      %2545 = vmatprep.subr.bf16.mxu0 0
      %2546 = vmatpush1.bf16.msra.mxu0 0
      %2547 = vmatprep.subr.bf16.mxu0 0
      %2548 = vmatpush1.bf16.msra.mxu0 0
      %2549 = vmatprep.subr.bf16.mxu0 0
      %2550 = vmatpush1.bf16.msra.mxu0 0
      %2551 = vmatprep.subr.bf16.mxu0 0
      %2552 = vmatpush1.bf16.msra.mxu0 %v2537
      %2553 = vmatprep.subr.bf16.mxu0 0
      %2554 = vmatpush1.bf16.msra.mxu0 %v2526
      %2555 = vmatprep.subr.bf16.mxu0 0
      %2556 = vmatpush2.bf16.msra.mxu0 0
      %2557 = vmatprep.subr.bf16.mxu0 0
      %2558 = vmatpush2.bf16.msra.mxu0 0
      %2559 = vmatprep.subr.bf16.mxu0 0
      %2560 = vmatpush2.bf16.msra.mxu0 0
      %2561 = vmatprep.subr.bf16.mxu0 0
      %2562 = vmatpush2.bf16.msra.mxu0 0
      %2563 = vmatprep.subr.bf16.mxu0 0
      %2564 = vmatpush2.bf16.msra.mxu0 0
      %2565 = vmatprep.subr.bf16.mxu0 0
      %2566 = vmatpush2.bf16.msra.mxu0 0
      %2567 = vmatprep.subr.bf16.mxu0 0
      %2568 = vmatpush2.bf16.msra.mxu0 0
      %2569 = vmatprep.subr.bf16.mxu0 0
      %2570 = vmatpush2.bf16.msra.mxu0 0
      %2571 = vmatprep.mubr.bf16.mxu0 0
      %2572 = vmatmul.mubr.bf16.gmra.mxu0 %v2531
      %v2573 = vpop.f32.mrf.mxu0
      %v2574 = vadd.f32 0.0, %v2573
      %v2575 = vpop.f32.mrf.mxu0
      %v2576 = vpop.f32.mrf.mxu0
      %v2577 = vadd.f32 0.0, %v2576
      %v2578 = vpop.f32.mrf.mxu0
      %2579 = vmatprep.mubr.bf16.mxu0 0
      %2580 = vmatmul.mubr.bf16.gmra.mxu0 %v2534
      %v2581 = vpop.f32.mrf.mxu0
      %v2582 = vadd.f32 0.0, %v2581
      %v2583 = vpop.f32.mrf.mxu0
      %v2584 = vpop.f32.mrf.mxu0
      %v2585 = vpop.f32.mrf.mxu0
      %2586 = vdwg.mxu0
      %2590 = vrot.lane.b32.xlu0 %v2574, 48
      %v2591 = vpop.permute.xlu0 %2590
      %2592 = vrot.lane.b32.xlu0 %v2577, 48
      %v2593 = vpop.permute.xlu0 %2592
      %2594 = vrot.lane.b32.xlu0 %v2582, 48
      %v2595 = vpop.permute.xlu0 %2594
      %2599 = vst.msk [vmem:[#allocation3] sm:$0xff] %vm1400, %v2591
      %2600 = vst.msk [vmem:[#allocation3 + $0x8] sm:$0xff] %vm1400, %v2593
      %2601 = vst.msk [vmem:[#allocation3 + $0x10] sm:$0xf] %vm1403, %v2595
      %v2602 = vld [vmem:[#allocation3] sm:$0xff]
      %v2603 = vld [vmem:[#allocation3 + $0x8] sm:$0xff]
      %v2604 = vld [vmem:[#allocation3 + $0x10] sm:$0xf]
      %s2605 = scalar_lea.vmem %s6, 32
      %v2606 = vld [vmem:[%s2605] sm:$0xf]
      %v2607 = vld [vmem:[%s2605 + $0x4] sm:$0xf]
      %v2608 = vld [vmem:[%s2605 + $0x8] sm:$0xf]
      %v2609 = vld [vmem:[%s2605 + $0xc] sm:$0xf]
      %v2610 = vld [vmem:[%s2605 + $0x10] sm:$0xf]
      %v2611 = vld [vmem:[%s2605 + $0x14] sm:$0xf]
      %v2612 = vld [vmem:[%s2605 + $0x18] sm:$0xf]
      %v2613 = vld [vmem:[%s2605 + $0x1c] sm:$0xf]
      %v2614 = vpack.c.bf16 %v2603, %v2602
      %v2615 = vpack.c.bf16 %v2604, %v2604
      %v2624 = vunpack.c.l.b16 %v2606
      %v2625 = vunpack.c.l.b16 %v2607
      %v2626 = vunpack.c.l.b16 %v2608
      %v2627 = vunpack.c.l.b16 %v2609
      %v2628 = vunpack.c.l.b16 %v2610
      %v2629 = vunpack.c.l.b16 %v2611
      %v2630 = vunpack.c.l.b16 %v2612
      %v2631 = vunpack.c.l.b16 %v2613
      %v2632 = vpack.c.b16 %v2625, %v2624
      %v2633 = vpack.c.b16 %v2627, %v2626
      %v2634 = vpack.c.b16 %v2629, %v2628
      %v2635 = vpack.c.b16 %v2631, %v2630
      %v2641 = vsel %vm1442, %v2614, 0
      %v2644 = vsel %vm1442, %v2615, 0
      %2646 = vmatprep.subr.bf16.mxu0 0
      %2647 = vmatpush1.bf16.msra.mxu0 0
      %2648 = vmatprep.subr.bf16.mxu0 0
      %2649 = vmatpush1.bf16.msra.mxu0 0
      %2650 = vmatprep.subr.bf16.mxu0 0
      %2651 = vmatpush1.bf16.msra.mxu0 0
      %2652 = vmatprep.subr.bf16.mxu0 0
      %2653 = vmatpush1.bf16.msra.mxu0 0
      %2654 = vmatprep.subr.bf16.mxu0 0
      %2655 = vmatpush1.bf16.msra.mxu0 %v2635
      %2656 = vmatprep.subr.bf16.mxu0 0
      %2657 = vmatpush1.bf16.msra.mxu0 %v2634
      %2658 = vmatprep.subr.bf16.mxu0 0
      %2659 = vmatpush1.bf16.msra.mxu0 %v2633
      %2660 = vmatprep.subr.bf16.mxu0 0
      %2661 = vmatpush1.bf16.msra.mxu0 %v2632
      %2662 = vmatprep.subr.bf16.mxu0 0
      %2663 = vmatpush2.bf16.msra.mxu0 0
      %2664 = vmatprep.subr.bf16.mxu0 0
      %2665 = vmatpush2.bf16.msra.mxu0 0
      %2666 = vmatprep.subr.bf16.mxu0 0
      %2667 = vmatpush2.bf16.msra.mxu0 0
      %2668 = vmatprep.subr.bf16.mxu0 0
      %2669 = vmatpush2.bf16.msra.mxu0 0
      %2670 = vmatprep.subr.bf16.mxu0 0
      %2671 = vmatpush2.bf16.msra.mxu0 0
      %2672 = vmatprep.subr.bf16.mxu0 0
      %2673 = vmatpush2.bf16.msra.mxu0 0
      %2674 = vmatprep.subr.bf16.mxu0 0
      %2675 = vmatpush2.bf16.msra.mxu0 0
      %2676 = vmatprep.subr.bf16.mxu0 0
      %2677 = vmatpush2.bf16.msra.mxu0 0
      %2678 = vmatprep.mubr.bf16.mxu0 0
      %2679 = vmatmul.mubr.bf16.gmra.mxu0 %v2641
      %v2680 = vpop.f32.mrf.mxu0
      %v2681 = vadd.f32 0.0, %v2680
      %v2682 = vpop.f32.mrf.mxu0
      %v2683 = vpop.f32.mrf.mxu0
      %v2684 = vadd.f32 0.0, %v2683
      %v2685 = vpop.f32.mrf.mxu0
      %2686 = vmatprep.mubr.bf16.mxu0 0
      %2687 = vmatmul.mubr.bf16.gmra.mxu0 %v2644
      %v2688 = vpop.f32.mrf.mxu0
      %v2689 = vadd.f32 0.0, %v2688
      %v2690 = vpop.f32.mrf.mxu0
      %v2691 = vpop.f32.mrf.mxu0
      %v2692 = vpop.f32.mrf.mxu0
      %2693 = vdwg.mxu0
      %v2694 = vadd.f32 %v1760, %v2681
      %v2695 = vadd.f32 %v1761, %v2684
      %v2696 = vadd.f32 %v1762, %v2689
      %v2697 = vlaneseq
      %v2698 = vshrl.u32 %v2697, 7
      %v2699 = vsub.s32 0, %v2698
      %v2700 = vrot.slane %v1764, %v2699
      %v2701 = vadd.f32 %v2694, %v2700
      %v2702 = vadd.f32 %v2695, %v2700
      %v2703 = vadd.f32 %v2696, %v2700
      %v2704 = vmul.f32 %v2701, %v2701
      %v2705 = vmul.f32 %v2702, %v2702
      %v2706 = vmul.f32 %v2703, %v2703
      %v2707 = vsel %vm562, %v2704, 0.0
      %2708 = vadd.xlane.f32.xlu0 %v2707
      %v2709 = vpop.xlane.xlu0 %2708
      %v2710 = vsel %vm562, %v2705, 0.0
      %2711 = vadd.xlane.f32.xlu0 %v2710
      %v2712 = vpop.xlane.xlu0 %2711
      %v2713 = vsel %vm451, %v2706, 0.0
      %2714 = vadd.xlane.f32.xlu0 %v2713
      %v2715 = vpop.xlane.xlu0 %2714
      %v2716 = vmul.f32 %v2709, %v572
      %v2717 = vmul.f32 %v2712, %v572
      %v2718 = vmul.f32 %v2715, %v572
      %v2719 = vadd.f32 %v2716, 1e-06
      %v2720 = vadd.f32 %v2717, 1e-06
      %v2721 = vadd.f32 %v2718, 1e-06
      %v2722 = vrsqrt.pop %v2719
      %v2723 = vrsqrt.pop %v2720
      %v2724 = vrsqrt.pop %v2721
      %v2725 = vmul.f32 %v2701, %v2722
      %v2726 = vmul.f32 %v2702, %v2723
      %v2727 = vmul.f32 %v2703, %v2724
      %v2728 = vlaneseq
      %v2729 = vshrl.u32 %v2728, 7
      %v2730 = vsub.s32 0, %v2729
      %v2731 = vrot.slane %v1765, %v2730
      %v2732 = vmul.f32 %v2725, %v2731
      %v2733 = vmul.f32 %v2726, %v2731
      %v2734 = vmul.f32 %v2727, %v2731
      %s2735 = scalar_lea.vmem %s7, 16
      %v2736 = vld [vmem:[%s2735] sm:$0xf]
      %v2737 = vld [vmem:[%s2735 + $0x4] sm:$0xf]
      %v2738 = vld [vmem:[%s2735 + $0x8] sm:$0xf]
      %v2739 = vld [vmem:[%s2735 + $0xc] sm:$0xf]
      %v2740 = vpack.c.bf16 %v2733, %v2732
      %v2741 = vpack.c.bf16 %v2734, %v2734
      %v2742 = vld [vmem:[%s8 + $0x1] sm:$0x1]
      %v2743 = vlaneseq
      %v2744 = vshrl.u32 %v2743, 7
      %v2745 = vsub.s32 0, %v2744
      %v2746 = vrot.slane %v2742, %v2745
      %v2751 = vunpack.c.l.b16 %v2736
      %v2752 = vunpack.c.l.b16 %v2737
      %v2753 = vunpack.c.l.b16 %v2738
      %v2754 = vunpack.c.l.b16 %v2739
      %v2755 = vpack.c.b16 %v2752, %v2751
      %v2756 = vpack.c.b16 %v2754, %v2753
      %v2760 = vsel %vm562, %v2740, 0
      %v2763 = vsel %vm562, %v2741, 0
      %2765 = vmatprep.subr.bf16.mxu0 0
      %2766 = vmatpush1.bf16.msra.mxu0 0
      %2767 = vmatprep.subr.bf16.mxu0 0
      %2768 = vmatpush1.bf16.msra.mxu0 0
      %2769 = vmatprep.subr.bf16.mxu0 0
      %2770 = vmatpush1.bf16.msra.mxu0 0
      %2771 = vmatprep.subr.bf16.mxu0 0
      %2772 = vmatpush1.bf16.msra.mxu0 0
      %2773 = vmatprep.subr.bf16.mxu0 0
      %2774 = vmatpush1.bf16.msra.mxu0 0
      %2775 = vmatprep.subr.bf16.mxu0 0
      %2776 = vmatpush1.bf16.msra.mxu0 0
      %2777 = vmatprep.subr.bf16.mxu0 0
      %2778 = vmatpush1.bf16.msra.mxu0 %v2756
      %2779 = vmatprep.subr.bf16.mxu0 0
      %2780 = vmatpush1.bf16.msra.mxu0 %v2755
      %2781 = vmatprep.subr.bf16.mxu0 0
      %2782 = vmatpush2.bf16.msra.mxu0 0
      %2783 = vmatprep.subr.bf16.mxu0 0
      %2784 = vmatpush2.bf16.msra.mxu0 0
      %2785 = vmatprep.subr.bf16.mxu0 0
      %2786 = vmatpush2.bf16.msra.mxu0 0
      %2787 = vmatprep.subr.bf16.mxu0 0
      %2788 = vmatpush2.bf16.msra.mxu0 0
      %2789 = vmatprep.subr.bf16.mxu0 0
      %2790 = vmatpush2.bf16.msra.mxu0 0
      %2791 = vmatprep.subr.bf16.mxu0 0
      %2792 = vmatpush2.bf16.msra.mxu0 0
      %2793 = vmatprep.subr.bf16.mxu0 0
      %2794 = vmatpush2.bf16.msra.mxu0 0
      %2795 = vmatprep.subr.bf16.mxu0 0
      %2796 = vmatpush2.bf16.msra.mxu0 0
      %2797 = vmatprep.mubr.bf16.mxu0 0
      %2798 = vmatmul.mubr.bf16.gmra.mxu0 %v2760
      %v2799 = vpop.f32.mrf.mxu0
      %v2800 = vadd.f32 %v2746, %v2799
      %v2801 = vpop.f32.mrf.mxu0
      %v2802 = vpop.f32.mrf.mxu0
      %v2803 = vadd.f32 %v2746, %v2802
      %v2804 = vpop.f32.mrf.mxu0
      %2805 = vmatprep.mubr.bf16.mxu0 0
      %2806 = vmatmul.mubr.bf16.gmra.mxu0 %v2763
      %v2807 = vpop.f32.mrf.mxu0
      %v2808 = vadd.f32 %v2746, %v2807
      %v2809 = vpop.f32.mrf.mxu0
      %v2810 = vpop.f32.mrf.mxu0
      %v2811 = vpop.f32.mrf.mxu0
      %2812 = vdwg.mxu0
      %v2813 = vmul.f32 %v2800, %v2800
      %v2814 = vmul.f32 %v2803, %v2803
      %v2815 = vmul.f32 %v2808, %v2808
      %v2816 = vmul.f32 %v2800, %v2813
      %v2817 = vmul.f32 %v2803, %v2814
      %v2818 = vmul.f32 %v2808, %v2815
      %v2819 = vmul.f32 %v2816, 0.044715
      %v2820 = vmul.f32 %v2817, 0.044715
      %v2821 = vmul.f32 %v2818, 0.044715
      %v2822 = vadd.f32 %v2800, %v2819
      %v2823 = vadd.f32 %v2803, %v2820
      %v2824 = vadd.f32 %v2808, %v2821
      %v2825 = vmul.f32 %v2822, 0.7978846
      %v2826 = vmul.f32 %v2823, 0.7978846
      %v2827 = vmul.f32 %v2824, 0.7978846
      %v2828 = vtanh.pop %v2825
      %v2829 = vtanh.pop %v2826
      %v2830 = vtanh.pop %v2827
      %v2831 = vadd.f32 %v2828, 1.0
      %v2832 = vadd.f32 %v2829, 1.0
      %v2833 = vadd.f32 %v2830, 1.0
      %v2834 = vmul.f32 %v2831, 0.5
      %v2835 = vmul.f32 %v2832, 0.5
      %v2836 = vmul.f32 %v2833, 0.5
      %v2837 = vmul.f32 %v2800, %v2834
      %v2838 = vmul.f32 %v2803, %v2835
      %v2839 = vmul.f32 %v2808, %v2836
      %s2840 = scalar_lea.vmem %s9, 64
      %v2841 = vld [vmem:[%s2840] sm:$0xf]
      %v2842 = vld [vmem:[%s2840 + $0x4] sm:$0xf]
      %v2843 = vld [vmem:[%s2840 + $0x8] sm:$0xf]
      %v2844 = vld [vmem:[%s2840 + $0xc] sm:$0xf]
      %v2845 = vld [vmem:[%s2840 + $0x10] sm:$0xf]
      %v2846 = vld [vmem:[%s2840 + $0x14] sm:$0xf]
      %v2847 = vld [vmem:[%s2840 + $0x18] sm:$0xf]
      %v2848 = vld [vmem:[%s2840 + $0x1c] sm:$0xf]
      %v2849 = vld [vmem:[%s2840 + $0x20] sm:$0xf]
      %v2850 = vld [vmem:[%s2840 + $0x24] sm:$0xf]
      %v2851 = vld [vmem:[%s2840 + $0x28] sm:$0xf]
      %v2852 = vld [vmem:[%s2840 + $0x2c] sm:$0xf]
      %v2853 = vld [vmem:[%s2840 + $0x30] sm:$0xf]
      %v2854 = vld [vmem:[%s2840 + $0x34] sm:$0xf]
      %v2855 = vld [vmem:[%s2840 + $0x38] sm:$0xf]
      %v2856 = vld [vmem:[%s2840 + $0x3c] sm:$0xf]
      %v2857 = vpack.c.bf16 %v2838, %v2837
      %v2858 = vpack.c.bf16 %v2839, %v2839
      %v2859 = vlaneseq
      %v2860 = vshrl.u32 %v2859, 7
      %v2861 = vsub.s32 0, %v2860
      %v2862 = vrot.slane %v1766, %v2861
      %v2879 = vunpack.c.l.b16 %v2841
      %v2880 = vunpack.c.l.b16 %v2842
      %v2881 = vunpack.c.l.b16 %v2843
      %v2882 = vunpack.c.l.b16 %v2844
      %v2883 = vunpack.c.l.b16 %v2845
      %v2884 = vunpack.c.l.b16 %v2846
      %v2885 = vunpack.c.l.b16 %v2847
      %v2886 = vunpack.c.l.b16 %v2848
      %v2887 = vunpack.c.l.b16 %v2849
      %v2888 = vunpack.c.l.b16 %v2850
      %v2889 = vunpack.c.l.b16 %v2851
      %v2890 = vunpack.c.l.b16 %v2852
      %v2891 = vunpack.c.l.b16 %v2853
      %v2892 = vunpack.c.l.b16 %v2854
      %v2893 = vunpack.c.l.b16 %v2855
      %v2894 = vunpack.c.l.b16 %v2856
      %v2895 = vpack.c.b16 %v2880, %v2879
      %v2896 = vpack.c.b16 %v2882, %v2881
      %v2897 = vpack.c.b16 %v2884, %v2883
      %v2898 = vpack.c.b16 %v2886, %v2885
      %v2899 = vpack.c.b16 %v2888, %v2887
      %v2900 = vpack.c.b16 %v2890, %v2889
      %v2901 = vpack.c.b16 %v2892, %v2891
      %v2902 = vpack.c.b16 %v2894, %v2893
      %2911 = vmatprep.subr.bf16.mxu0 0
      %2912 = vmatpush1.bf16.msra.mxu0 %v2902
      %2913 = vmatprep.subr.bf16.mxu0 0
      %2914 = vmatpush1.bf16.msra.mxu0 %v2901
      %2915 = vmatprep.subr.bf16.mxu0 0
      %2916 = vmatpush1.bf16.msra.mxu0 %v2900
      %2917 = vmatprep.subr.bf16.mxu0 0
      %2918 = vmatpush1.bf16.msra.mxu0 %v2899
      %2919 = vmatprep.subr.bf16.mxu0 0
      %2920 = vmatpush1.bf16.msra.mxu0 %v2898
      %2921 = vmatprep.subr.bf16.mxu0 0
      %2922 = vmatpush1.bf16.msra.mxu0 %v2897
      %2923 = vmatprep.subr.bf16.mxu0 0
      %2924 = vmatpush1.bf16.msra.mxu0 %v2896
      %2925 = vmatprep.subr.bf16.mxu0 0
      %2926 = vmatpush1.bf16.msra.mxu0 %v2895
      %2927 = vmatprep.subr.bf16.mxu0 0
      %2928 = vmatpush2.bf16.msra.mxu0 0
      %2929 = vmatprep.subr.bf16.mxu0 0
      %2930 = vmatpush2.bf16.msra.mxu0 0
      %2931 = vmatprep.subr.bf16.mxu0 0
      %2932 = vmatpush2.bf16.msra.mxu0 0
      %2933 = vmatprep.subr.bf16.mxu0 0
      %2934 = vmatpush2.bf16.msra.mxu0 0
      %2935 = vmatprep.subr.bf16.mxu0 0
      %2936 = vmatpush2.bf16.msra.mxu0 0
      %2937 = vmatprep.subr.bf16.mxu0 0
      %2938 = vmatpush2.bf16.msra.mxu0 0
      %2939 = vmatprep.subr.bf16.mxu0 0
      %2940 = vmatpush2.bf16.msra.mxu0 0
      %2941 = vmatprep.subr.bf16.mxu0 0
      %2942 = vmatpush2.bf16.msra.mxu0 0
      %2943 = vmatprep.mubr.bf16.mxu0 0
      %2944 = vmatmul.mubr.bf16.gmra.mxu0 %v2857
      %v2945 = vpop.f32.mrf.mxu0
      %v2946 = vadd.f32 %v2862, %v2945
      %v2947 = vpop.f32.mrf.mxu0
      %v2948 = vpop.f32.mrf.mxu0
      %v2949 = vadd.f32 %v2862, %v2948
      %v2950 = vpop.f32.mrf.mxu0
      %2951 = vmatprep.mubr.bf16.mxu0 0
      %2952 = vmatmul.mubr.bf16.gmra.mxu0 %v2858
      %v2953 = vpop.f32.mrf.mxu0
      %v2954 = vadd.f32 %v2862, %v2953
      %v2955 = vpop.f32.mrf.mxu0
      %v2956 = vpop.f32.mrf.mxu0
      %v2957 = vpop.f32.mrf.mxu0
      %2958 = vdwg.mxu0
      %v2959 = vadd.f32 %v2701, %v2946
      %v2960 = vadd.f32 %v2702, %v2949
      %v2961 = vadd.f32 %v2703, %v2954
      %v2962 = vld [vmem:[%s3 + $0x8] sm:$0x1]
      %v2963 = vmul.f32 %v2959, %v2959
      %v2964 = vmul.f32 %v2960, %v2960
      %v2965 = vmul.f32 %v2961, %v2961
      %v2966 = vsel %vm562, %v2963, 0.0
      %2967 = vadd.xlane.f32.xlu0 %v2966
      %v2968 = vpop.xlane.xlu0 %2967
      %v2969 = vsel %vm562, %v2964, 0.0
      %2970 = vadd.xlane.f32.xlu0 %v2969
      %v2971 = vpop.xlane.xlu0 %2970
      %v2972 = vsel %vm451, %v2965, 0.0
      %2973 = vadd.xlane.f32.xlu0 %v2972
      %v2974 = vpop.xlane.xlu0 %2973
      %v2975 = vmul.f32 %v2968, %v572
      %v2976 = vmul.f32 %v2971, %v572
      %v2977 = vmul.f32 %v2974, %v572
      %v2978 = vadd.f32 %v2975, 1e-06
      %v2979 = vadd.f32 %v2976, 1e-06
      %v2980 = vadd.f32 %v2977, 1e-06
      %v2981 = vrsqrt.pop %v2978
      %v2982 = vrsqrt.pop %v2979
      %v2983 = vrsqrt.pop %v2980
      %v2984 = vmul.f32 %v2959, %v2981
      %v2985 = vmul.f32 %v2960, %v2982
      %v2986 = vmul.f32 %v2961, %v2983
      %v2987 = vlaneseq
      %v2988 = vshrl.u32 %v2987, 7
      %v2989 = vsub.s32 0, %v2988
      %v2990 = vrot.slane %v2962, %v2989
      %v2991 = vmul.f32 %v2984, %v2990
      %v2992 = vmul.f32 %v2985, %v2990
      %v2993 = vmul.f32 %v2986, %v2990
      %v2994 = vld [vmem:[%s10] sm:$0xff]
      %v2995 = vld [vmem:[%s10 + $0x8] sm:$0xff]
      %v2996 = vld [vmem:[%s10 + $0x10] sm:$0xff]
      %v2997 = vld [vmem:[%s10 + $0x18] sm:$0xff]
      %v2998 = vpack.c.bf16 %v2992, %v2991
      %v2999 = vpack.c.bf16 %v2993, %v2993
      %v3000 = vld [vmem:[%s11] sm:$0x3]
      %v3002 = vlaneseq
      %v3003 = vshrl.u32 %v3002, 7
      %v3004 = vsub.s32 0, %v3003
      %v3005 = vrot.slane %v3000, %v3004
      %v3006 = vlaneseq
      %v3007 = vshrl.u32 %v3006, 7
      %v3008 = vsub.s32 1, %v3007
      %v3009 = vrot.slane %v3000, %v3008
      %v3016 = vunpack.c.l.b16 %v2994
      %v3017 = vunpack.c.h.b16 %v2994
      %v3018 = vunpack.c.l.b16 %v2995
      %v3019 = vunpack.c.h.b16 %v2995
      %v3020 = vunpack.c.l.b16 %v2996
      %v3021 = vunpack.c.h.b16 %v2996
      %v3022 = vunpack.c.l.b16 %v2997
      %v3023 = vunpack.c.h.b16 %v2997
      %v3024 = vpack.c.b16 %v3018, %v3016
      %v3025 = vpack.c.b16 %v3019, %v3017
      %v3026 = vpack.c.b16 %v3022, %v3020
      %v3027 = vpack.c.b16 %v3023, %v3021
      %v3033 = vsel %vm562, %v2998, 0
      %v3036 = vsel %vm562, %v2999, 0
      %3038 = vmatprep.subr.bf16.mxu0 0
      %3039 = vmatpush1.bf16.msra.mxu0 0
      %3040 = vmatprep.subr.bf16.mxu0 0
      %3041 = vmatpush1.bf16.msra.mxu0 0
      %3042 = vmatprep.subr.bf16.mxu0 0
      %3043 = vmatpush1.bf16.msra.mxu0 0
      %3044 = vmatprep.subr.bf16.mxu0 0
      %3045 = vmatpush1.bf16.msra.mxu0 0
      %3046 = vmatprep.subr.bf16.mxu0 0
      %3047 = vmatpush1.bf16.msra.mxu0 0
      %3048 = vmatprep.subr.bf16.mxu0 0
      %3049 = vmatpush1.bf16.msra.mxu0 0
      %3050 = vmatprep.subr.bf16.mxu0 %v3027
      %3051 = vmatpush1.bf16.msra.mxu0 %v3026
      %3052 = vmatprep.subr.bf16.mxu0 %v3025
      %3053 = vmatpush1.bf16.msra.mxu0 %v3024
      %3054 = vmatprep.subr.bf16.mxu0 0
      %3055 = vmatpush2.bf16.msra.mxu0 0
      %3056 = vmatprep.subr.bf16.mxu0 0
      %3057 = vmatpush2.bf16.msra.mxu0 0
      %3058 = vmatprep.subr.bf16.mxu0 0
      %3059 = vmatpush2.bf16.msra.mxu0 0
      %3060 = vmatprep.subr.bf16.mxu0 0
      %3061 = vmatpush2.bf16.msra.mxu0 0
      %3062 = vmatprep.subr.bf16.mxu0 0
      %3063 = vmatpush2.bf16.msra.mxu0 0
      %3064 = vmatprep.subr.bf16.mxu0 0
      %3065 = vmatpush2.bf16.msra.mxu0 0
      %3066 = vmatprep.subr.bf16.mxu0 0
      %3067 = vmatpush2.bf16.msra.mxu0 0
      %3068 = vmatprep.subr.bf16.mxu0 0
      %3069 = vmatpush2.bf16.msra.mxu0 0
      %3070 = vmatprep.mubr.bf16.mxu0 0
      %3071 = vmatmul.mubr.bf16.gmra.mxu0 %v3033
      %v3072 = vpop.f32.mrf.mxu0
      %v3073 = vadd.f32 %v3005, %v3072
      %v3074 = vpop.f32.mrf.mxu0
      %v3075 = vadd.f32 %v3009, %v3074
      %v3076 = vpop.f32.mrf.mxu0
      %v3077 = vadd.f32 %v3005, %v3076
      %v3078 = vpop.f32.mrf.mxu0
      %v3079 = vadd.f32 %v3009, %v3078
      %3080 = vmatprep.mubr.bf16.mxu0 0
      %3081 = vmatmul.mubr.bf16.gmra.mxu0 %v3036
      %v3082 = vpop.f32.mrf.mxu0
      %v3083 = vadd.f32 %v3005, %v3082
      %v3084 = vpop.f32.mrf.mxu0
      %v3085 = vadd.f32 %v3009, %v3084
      %v3086 = vpop.f32.mrf.mxu0
      %v3087 = vpop.f32.mrf.mxu0
      %3088 = vdwg.mxu0
      %v3091 = vrot.slane %v3073, 1
      %v3092 = vrot.slane %v3075, 1
      %3095 = vst [vmem:[%s439] sm:$0xf] %v3091
      %3096 = vst [vmem:[%s439 + $0x8] sm:$0xf] %v3092
      %vm3099 = vcmask 1045504
      %v3100 = vrot.slane %v3073, 2
      %v3101 = vrot.slane %v3077, 2
      %v3102 = vsel %vm3099, %v3100, %v3101
      %v3103 = vrot.slane %v3075, 2
      %v3104 = vrot.slane %v3079, 2
      %v3105 = vsel %vm3099, %v3103, %v3104
      %3108 = vst [vmem:[%s439] sm:$0xf0] %v3102
      %3109 = vst [vmem:[%s439 + $0x8] sm:$0xf0] %v3105
      %v3110 = vrot.slane %v3077, 3
      %v3111 = vrot.slane %v3079, 3
      %3114 = vst [vmem:[%s439 + $0x10] sm:$0xf] %v3110
      %3115 = vst [vmem:[%s439 + $0x18] sm:$0xf] %v3111
      %v3118 = vrot.slane %v3083, 4
      %v3119 = vrot.slane %v3085, 4
      %3122 = vst [vmem:[%s439 + $0x10] sm:$0xf0] %v3118
      %3123 = vst [vmem:[%s439 + $0x18] sm:$0xf0] %v3119
      %s3124 = smul.u32 2, %s23
      %p3125 = scmp.lt.s32.totalorder %s3124, 3
      %s3126 = scalar_select %p3125, %s3124, 3
      %s3127 = smul.addr %s3126, 2
      %s3128 = smul.addr %s3127, 8
      %s3129 = scalar_lea.vmem %s12, %s3128
      // Predicated region
      $region69: #{terra_byte_forward.3} parent=67 // pred_check
        %p3130 = pneg %p303
      $region70: #{terra_byte_forward.3} parent=67 // pred_check_branch
        %3132 = sbr.rel (%p3130) target = $region72
      $region71: #{terra_byte_forward.3} parent=67 // pred_region
        %s3133 = smul.u32 2, %s23
      $region72: #{terra_byte_forward.3} parent=67 // pred_fallthru
        _
    $region68: #{terra_byte_forward.3} parent=5 // pred_fallthru
      _
    %p3134 = scmp.le.s32.totalorder 2, %s18
    // Predicated region
    $region73: #{terra_byte_forward.3} parent=5 // pred_check
      %p3135 = pneg %p3134
    $region74: #{terra_byte_forward.3} parent=5 // pred_check_branch
      %3137 = sbr.rel (%p3135) target = $region76
    $region75: #{terra_byte_forward.3} parent=5 // pred_region
      %s3138 = ssub.s32 %s18, 2
      // Predicated region
      $region77: #{terra_byte_forward.3} parent=75 // pred_check
        %p3139 = pneg %p309
      $region78: #{terra_byte_forward.3} parent=75 // pred_check_branch
        %3141 = sbr.rel (%p3139) target = $region80
      $region79: #{terra_byte_forward.3} parent=75 // pred_region
        %s3142 = smul.u32 2, %s24
        %p3143 = scmp.lt.s32.totalorder %s3142, 3
        %s3144 = scalar_select %p3143, %s3142, 3
        %s3145 = smul.addr %s3144, 2
        %s3146 = smul.addr %s3145, 8
        %s3147 = scalar_lea.vmem %s12, %s3146
      $region80: #{terra_byte_forward.3} parent=75 // pred_fallthru
        _
    $region76: #{terra_byte_forward.3} parent=5 // pred_fallthru
      _
  $region6: #{terra_byte_forward.3} parent=0 // loop_footer
    %s22 = sadd.s32 1, %s18
  $region7: #{terra_byte_forward.3} parent=0 // loop_footer_branch
    %17 = sbr.rel target = $region3
  $region8: #{terra_byte_forward.3} parent=0 // loop_exit
    _

</llo_original>
